<compile_context>
chip_gen: v6e
topology: v6e:2x2x1
jax: 0.10.0
libtpu: 0.0.40
codegen_flags: <defaults>
</compile_context>

<pallas_src>
import jax
import jax.numpy as jnp
from jax.experimental import pallas as pl
from jax.experimental.pallas import tpu as pltpu

EPS = 1e-5
POS1 = 256                       # conv1 pooled positions (196) padded to 2*128 lanes
HWP2 = 40                        # conv2 pooled positions (36) padded to a multiple of 8
VMEM_LIMIT = 32 * 1024 * 1024    # within scoped/physical VMEM on v5e / v6e / v7x


# --------------------------------------------------------------------------- #
# Pallas kernels
# --------------------------------------------------------------------------- #
def _conv1_kernel(p_ref, w_ref, s_ref, o_ref):
    """Transposed conv1 GEMM (BN folded) + shift + ReLU + 2x2 max-pool.

    p_ref: (tb, 9, 4*POS1) f32   taps on sublanes, (candidate, position) on lanes
    w_ref: (32, 9)         f32   BN-scaled conv weight
    s_ref: (32, 1)         f32   folded shift = conv_b*scale + (beta - mean*scale)
    o_ref: (tb, 32, POS1)  bf16  pooled output, channels on sublanes (lane dense)
    """
    tb = p_ref.shape[0]
    p1 = o_ref.shape[2]
    for t in range(tb):                                   # tb is tiny & static
        z = jnp.dot(w_ref[...], p_ref[t], preferred_element_type=jnp.float32)
        # 2x2 max-pool == elementwise max over four 128-aligned lane stripes.
        m = jnp.maximum(jnp.maximum(z[:, 0 * p1:1 * p1], z[:, 1 * p1:2 * p1]),
                        jnp.maximum(z[:, 2 * p1:3 * p1], z[:, 3 * p1:4 * p1]))
        # relu(max(z)+s) == max(relu(z+s)): shift/ReLU after the pool (f32 epilogue).
        o_ref[t] = jnp.maximum(m + s_ref[...], 0.0).astype(o_ref.dtype)


def _conv2_kernel(p_ref, w_ref, s_ref, o_ref):
    """conv2 im2col GEMM (bf16 MXU, BN folded) + shift + ReLU + 2x2 max-pool.

    p_ref: (tb, 4*HWP2, 288) bf16   rows = (candidate, padded position)
    w_ref: (288, 64)         bf16
    s_ref: (1, 64)           f32
    o_ref: (tb, 36, 64)      bf16   row-major flatten == fc1 (h,w,c) input order
    """
    tb, rows, k = p_ref.shape
    hwp = rows // 4
    c = w_ref.shape[1]
    z = jnp.dot(p_ref[...].reshape(tb * rows, k), w_ref[...],
                preferred_element_type=jnp.float32)
    z = z.reshape(tb, 4, hwp, c)                          # hwp % 8 == 0: aligned split
    m = jnp.maximum(jnp.maximum(z[:, 0], z[:, 1]),
                    jnp.maximum(z[:, 2], z[:, 3]))        # pool over 4 candidates
    m = jnp.maximum(m + s_ref[...], 0.0)                  # folded bias + ReLU (f32)
    o_ref[...] = m[:, :o_ref.shape[1], :].astype(o_ref.dtype)


def _mlp_kernel(x_ref, w1_ref, b1_ref, w2_ref, b2_ref, w3_ref, b3_ref, o_ref):
    """fc1 -> dropout(eval: identity) -> fc2 -> fc3; all operands 128-lane padded."""
    tb, _, d = x_ref.shape
    x = x_ref[...].reshape(tb, d)                                            # bf16
    h = jnp.dot(x, w1_ref[...], preferred_element_type=jnp.float32) + b1_ref[...]
    # TODO(synk): Dropout(p=0.25) is identity in eval mode; training-mode RNG
    # masking is not implemented.
    h = jnp.dot(h.astype(jnp.bfloat16), w2_ref[...],
                preferred_element_type=jnp.float32) + b2_ref[...]
    y = jnp.dot(h.astype(jnp.bfloat16), w3_ref[...],
                preferred_element_type=jnp.float32) + b3_ref[...]
    o_ref[...] = y.reshape(tb, 1, y.shape[-1])


# --------------------------------------------------------------------------- #
# Pallas wrappers
# --------------------------------------------------------------------------- #
def _pick_tb(n, cap):
    """Largest divisor of n that is <= cap, keeping the batch grid >= 2 steps."""
    cap = max(1, min(cap, n // 2 if n >= 2 else 1))
    for t in range(cap, 0, -1):
        if n % t == 0:
            return t
    return 1


def _conv1_block(patches, w, s, tb):
    """patches: (N, 9, 4*POS1) f32 -> (N, 32, POS1) bf16 pooled output."""
    n = patches.shape[0]
    assert n % tb == 0
    cost = pl.CostEstimate(flops=2 * 32 * 9 * 4 * POS1 * n, transcendentals=0,
                           bytes_accessed=patches.size * 4 + n * 32 * POS1 * 2 + 32 * 10 * 4)
    return pl.pallas_call(
        _conv1_kernel,
        out_shape=jax.ShapeDtypeStruct((n, 32, POS1), jnp.bfloat16),
        grid=(n // tb,),
        in_specs=[
            pl.BlockSpec((tb, 9, 4 * POS1), lambda i: (i, 0, 0)),
            pl.BlockSpec((32, 9), lambda i: (0, 0)),        # resident across grid
            pl.BlockSpec((32, 1), lambda i: (0, 0)),
        ],
        out_specs=pl.BlockSpec((tb, 32, POS1), lambda i: (i, 0, 0)),
        compiler_params=pltpu.CompilerParams(
            dimension_semantics=("parallel",), vmem_limit_bytes=VMEM_LIMIT),
        cost_estimate=cost,
    )(patches, w, s)


def _conv2_block(patches, w, s, tb):
    """patches: (N, 4*HWP2, 288) bf16 -> (N, 36, 64) bf16 pooled output."""
    n, rows, k = patches.shape
    c = w.shape[1]
    assert n % tb == 0
    cost = pl.CostEstimate(flops=2 * rows * k * c * n, transcendentals=0,
                           bytes_accessed=patches.size * 2 + n * 36 * c * 2 + k * c * 2)
    return pl.pallas_call(
        _conv2_kernel,
        out_shape=jax.ShapeDtypeStruct((n, 36, c), jnp.bfloat16),
        grid=(n // tb,),
        in_specs=[
            pl.BlockSpec((tb, rows, k), lambda i: (i, 0, 0)),
            pl.BlockSpec((k, c), lambda i: (0, 0)),         # resident across grid
            pl.BlockSpec((1, c), lambda i: (0, 0)),
        ],
        out_specs=pl.BlockSpec((tb, 36, c), lambda i: (i, 0, 0)),
        compiler_params=pltpu.CompilerParams(
            dimension_semantics=("parallel",), vmem_limit_bytes=VMEM_LIMIT),
        cost_estimate=cost,
    )(patches, w, s)


def _mlp_block(x3, w1, b1, w2, b2, w3, b3, tb):
    """x3: (N, 1, 2304) bf16 -> (N, 1, 128) f32 logits (cols >= 10 are zero)."""
    n, _, d = x3.shape
    h1, h2, h3 = w1.shape[1], w2.shape[1], w3.shape[1]
    assert n % tb == 0
    wbytes = (w1.size + w2.size + w3.size) * 2
    cost = pl.CostEstimate(flops=2 * n * (d * h1 + h1 * h2 + h2 * h3),
                           transcendentals=0,
                           bytes_accessed=x3.size * 2 + n * h3 * 4 + wbytes)
    return pl.pallas_call(
        _mlp_kernel,
        out_shape=jax.ShapeDtypeStruct((n, 1, h3), jnp.float32),
        grid=(n // tb,),
        in_specs=[
            pl.BlockSpec((tb, 1, d), lambda i: (i, 0, 0)),
            pl.BlockSpec((d, h1), lambda i: (0, 0)),        # weights resident
            pl.BlockSpec((1, h1), lambda i: (0, 0)),
            pl.BlockSpec((h1, h2), lambda i: (0, 0)),
            pl.BlockSpec((1, h2), lambda i: (0, 0)),
            pl.BlockSpec((h2, h3), lambda i: (0, 0)),
            pl.BlockSpec((1, h3), lambda i: (0, 0)),
        ],
        out_specs=pl.BlockSpec((tb, 1, h3), lambda i: (i, 0, 0)),
        compiler_params=pltpu.CompilerParams(
            dimension_semantics=("parallel",), vmem_limit_bytes=VMEM_LIMIT),
        cost_estimate=cost,
    )(x3, w1, b1, w2, b2, w3, b3)


# --------------------------------------------------------------------------- #
# Glue (pure data plumbing in plain JAX)
# --------------------------------------------------------------------------- #
def _conv1_patches(xp):
    """xp: (N, 30, 30) padded image -> (N, 9, 4*POS1) f32.

    Lanes ordered (pool-candidate, pooled-position); each candidate's 196
    positions zero-padded to POS1 = 2*128 so in-kernel pool stripes are
    128-lane aligned.  Sublanes are the 9 conv taps in (ky, kx) order.
    """
    n = xp.shape[0]
    cands = []
    for di in range(2):
        for dj in range(2):
            taps = []
            for ky in range(3):
                for kx in range(3):
                    sl = jax.lax.slice(xp, (0, di + ky, dj + kx),
                                       (n, di + ky + 27, dj + kx + 27), (1, 2, 2))
                    taps.append(sl.reshape(n, 1, 196))       # (N, 1, 14*14)
            t = jnp.concatenate(taps, axis=1)                # (N, 9, 196)
            cands.append(jnp.pad(t, ((0, 0), (0, 0), (0, POS1 - 196))))
    return jnp.concatenate(cands, axis=2)                    # (N, 9, 4*POS1)


def _conv2_patches(y1):
    """y1: (N, 14, 14, 32) bf16 -> (N, 4*HWP2, 288) bf16.

    Rows ordered (pool-candidate, pooled-position), positions padded 36->HWP2
    (multiple of 8) for sublane-aligned stripe splitting in the kernel;
    features ordered (ky, kx, cin) to match the folded conv2 weight.
    """
    n = y1.shape[0]
    cands = []
    for di in range(2):
        for dj in range(2):
            taps = []
            for ky in range(3):
                for kx in range(3):
                    sl = jax.lax.slice(y1, (0, di + ky, dj + kx, 0),
                                       (n, di + ky + 11, dj + kx + 11, 32),
                                       (1, 2, 2, 1))         # (N, 6, 6, 32)
                    taps.append(sl)
            t = jnp.concatenate(taps, axis=-1).reshape(n, 36, 288)
            cands.append(jnp.pad(t, ((0, 0), (0, HWP2 - 36), (0, 0))))
    return jnp.concatenate(cands, axis=1)                    # (N, 4*HWP2, 288)


def prepare_params(p):
    """One-time weight prep: BN folding, layout permutes, lane pads, dtype casts."""
    # layer1: fold BN into weight/shift; transposed-GEMM layout (cout x taps); f32.
    s1 = p["bn1_gamma"] / jnp.sqrt(p["bn1_var"] + EPS)
    t1 = p["bn1_beta"] - p["bn1_mean"] * s1
    conv1_w = (p["conv1_w"].reshape(32, 9) * s1[:, None]).astype(jnp.float32)
    conv1_s = (p["conv1_b"] * s1 + t1).reshape(32, 1).astype(jnp.float32)

    # layer2: fold BN; (ky,kx,cin) x cout layout; bf16 GEMM operands.
    s2 = p["bn2_gamma"] / jnp.sqrt(p["bn2_var"] + EPS)
    t2 = p["bn2_beta"] - p["bn2_mean"] * s2
    w2 = jnp.transpose(p["conv2_w"], (2, 3, 1, 0)).reshape(9 * 32, 64)
    conv2_w = (w2 * s2[None, :]).astype(jnp.bfloat16)
    conv2_s = (p["conv2_b"] * s2 + t2).reshape(1, 64).astype(jnp.float32)

    # fc1: permute columns from PyTorch (c,h,w) flatten order to our (h,w,c),
    # then zero-pad outputs 600 -> 640 (= 5*128 lanes).
    fc1_w = (p["fc1_w"].reshape(600, 64, 6, 6).transpose(0, 2, 3, 1)
             .reshape(600, 2304).T)
    fc1_w = jnp.pad(fc1_w, ((0, 0), (0, 40))).astype(jnp.bfloat16)
    fc1_b = jnp.pad(p["fc1_b"], (0, 40)).reshape(1, 640).astype(jnp.float32)
    # fc2: contraction rows 600 -> 640 (zeros), output lanes 120 -> 128.
    fc2_w = jnp.pad(p["fc2_w"].T, ((0, 40), (0, 8))).astype(jnp.bfloat16)
    fc2_b = jnp.pad(p["fc2_b"], (0, 8)).reshape(1, 128).astype(jnp.float32)
    # fc3: contraction rows 120 -> 128, output lanes 10 -> 128 (lane-dense store).
    fc3_w = jnp.pad(p["fc3_w"].T, ((0, 8), (0, 118))).astype(jnp.bfloat16)
    fc3_b = jnp.pad(p["fc3_b"], (0, 118)).reshape(1, 128).astype(jnp.float32)

    return dict(conv1_w=conv1_w, conv1_s=conv1_s, conv2_w=conv2_w, conv2_s=conv2_s,
                fc1_w=fc1_w, fc1_b=fc1_b, fc2_w=fc2_w, fc2_b=fc2_b,
                fc3_w=fc3_w, fc3_b=fc3_b)


def forward_pallas(x_nchw, pp):
    """Forward pass; `pp` must come from prepare_params (weight prep hoisted)."""
    n = x_nchw.shape[0]
    tb_conv = _pick_tb(n, 8)      # conv tiles are DMA-sized; keep grid >= 2 steps
    tb_mlp = _pick_tb(n, 128)     # MLP wants large M; capped by VMEM / grid >= 2

    x = x_nchw[:, 0, :, :].astype(jnp.float32)                      # (N, 28, 28)
    xp = jnp.pad(x, ((0, 0), (1, 1), (1, 1)))                       # (N, 30, 30)

    # layer1: Conv2d(1->32, 3x3, pad=1) + BN + ReLU + MaxPool2  (f32 GEMM)
    pat1 = _conv1_patches(xp)                                       # (N, 9, 1024)
    y1 = _conv1_block(pat1, pp["conv1_w"], pp["conv1_s"], tb_conv)  # (N, 32, 256)
    y1 = y1[:, :, :196].reshape(n, 32, 14, 14).transpose(0, 2, 3, 1)  # (N,14,14,32)

    # layer2: Conv2d(32->64, 3x3, valid) + BN + ReLU + MaxPool2  (bf16 GEMM)
    pat2 = _conv2_patches(y1)                                       # (N, 160, 288)
    y2 = _conv2_block(pat2, pp["conv2_w"], pp["conv2_s"], tb_conv)  # (N, 36, 64)

    # (h,w,c) flatten is a free bitcast; fc1 columns were pre-permuted to match.
    feat = y2.reshape(n, 1, 36 * 64)                                # (N, 1, 2304)
    logits = _mlp_block(feat, pp["fc1_w"], pp["fc1_b"], pp["fc2_w"], pp["fc2_b"],
                        pp["fc3_w"], pp["fc3_b"], tb_mlp)
    return logits[:, 0, :10]


# --------------------------------------------------------------------------- #
# Deterministic parameter init (PyTorch shapes; synthetic values)
# --------------------------------------------------------------------------- #
def init_params(key):
    ks = jax.random.split(key, 10)

    def u(k, shape, fan_in):
        bound = 1.0 / (fan_in ** 0.5)
        return jax.random.uniform(k, shape, jnp.float32, -bound, bound)

    return {
        "conv1_w": u(ks[0], (32, 1, 3, 3), 9),      # PyTorch OIHW
        "conv1_b": u(ks[1], (32,), 9),
        "bn1_gamma": jnp.ones((32,), jnp.float32),
        "bn1_beta": jnp.zeros((32,), jnp.float32),
        "bn1_mean": jnp.zeros((32,), jnp.float32),
        "bn1_var": jnp.ones((32,), jnp.float32),
        "conv2_w": u(ks[2], (64, 32, 3, 3), 288),
        "conv2_b": u(ks[3], (64,), 288),
        "bn2_gamma": jnp.ones((64,), jnp.float32),
        "bn2_beta": jnp.zeros((64,), jnp.float32),
        "bn2_mean": jnp.zeros((64,), jnp.float32),
        "bn2_var": jnp.ones((64,), jnp.float32),
        "fc1_w": u(ks[4], (600, 2304), 2304),       # PyTorch (out, in)
        "fc1_b": u(ks[5], (600,), 2304),
        "fc2_w": u(ks[6], (120, 600), 600),
        "fc2_b": u(ks[7], (120,), 600),
        "fc3_w": u(ks[8], (10, 120), 120),
        "fc3_b": u(ks[9], (10,), 120),
    }


# --------------------------------------------------------------------------- #
# Pure-JAX f32 reference (eval-mode semantics, PyTorch layout conventions)
# --------------------------------------------------------------------------- #
def forward_reference(x_nchw, p):
    x = jnp.transpose(x_nchw, (0, 2, 3, 1)).astype(jnp.float32)

    def conv(x, wp, b, pad):
        w = jnp.transpose(wp, (2, 3, 1, 0))
        y = jax.lax.conv_general_dilated(
            x, w, (1, 1), pad, dimension_numbers=("NHWC", "HWIO", "NHWC"),
            precision=jax.lax.Precision.HIGHEST)
        return y + b

    def bn(y, g, be, m, v):
        return (y - m) / jnp.sqrt(v + EPS) * g + be

    def pool(y):
        return jax.lax.reduce_window(y, -jnp.inf, jax.lax.max,
                                     (1, 2, 2, 1), (1, 2, 2, 1), "VALID")

    y = pool(jax.nn.relu(bn(conv(x, p["conv1_w"], p["conv1_b"], [(1, 1), (1, 1)]),
                            p["bn1_gamma"], p["bn1_beta"], p["bn1_mean"], p["bn1_var"])))
    y = pool(jax.nn.relu(bn(conv(y, p["conv2_w"], p["conv2_b"], [(0, 0), (0, 0)]),
                            p["bn2_gamma"], p["bn2_beta"], p["bn2_mean"], p["bn2_var"])))
    y = jnp.transpose(y, (0, 3, 1, 2)).reshape(x.shape[0], -1)   # PyTorch NCHW flatten
    mm = lambda a, b: jnp.dot(a, b, precision=jax.lax.Precision.HIGHEST)
    y = mm(y, p["fc1_w"].T) + p["fc1_b"]
    y = mm(y, p["fc2_w"].T) + p["fc2_b"]
    y = mm(y, p["fc3_w"].T) + p["fc3_b"]
    return y


if __name__ == "__main__":
    key = jax.random.PRNGKey(0)
    pkey, xkey = jax.random.split(key)
    params = init_params(pkey)
    prepped = prepare_params(params)            # weight prep hoisted: done once
    # 28x28x1 input is required by the 64*6*6 fc1 fan-in; small batch of 2.
    x = jax.random.normal(xkey, (2, 1, 28, 28), jnp.float32)

    fwd = jax.jit(forward_pallas)
    out = jax.block_until_ready(fwd(x, prepped))
    ref = jax.block_until_ready(forward_reference(x, params))

    assert out.shape == (2, 10), out.shape
    rel_err = float(jnp.max(jnp.abs(out - ref)) / (jnp.max(jnp.abs(ref)) + 1e-6))
    # Tolerance sized deliberately for bf16 MXU operands with f32 accumulation.
    assert rel_err < 3e-2, f"mismatch vs reference: rel_err={rel_err}"
    print("KERNEL_OK")
</pallas_src>

<mosaic_0001>
module attributes {stable_mosaic.version = 11 : i64} {
  func.func @_conv1_kernel(%arg0: i32, %arg1: memref<1x9x1024xf32, #tpu.memory_space<vmem>>, %arg2: memref<32x9xf32, #tpu.memory_space<vmem>>, %arg3: memref<32x1xf32, #tpu.memory_space<vmem>>, %arg4: memref<1x32x256xbf16, #tpu.memory_space<vmem>>) attributes {dimension_semantics = [#tpu.dimension_semantics<parallel>], iteration_bounds = array<i64: 2>, scalar_prefetch = 0 : i64, scratch_operands = 0 : i64, tpu.core_type = #tpu.core_type<tc>, window_params = [{transform_indices = @transform_0, window_bounds = array<i64: 1, 9, 1024>}, {pipeline_mode = #tpu.pipeline_mode<synchronous>, transform_indices = @transform_1, window_bounds = array<i64: 32, 9>}, {pipeline_mode = #tpu.pipeline_mode<synchronous>, transform_indices = @transform_2, window_bounds = array<i64: 32, 1>}, {transform_indices = @transform_3, window_bounds = array<i64: 1, 32, 256>}]} {
    %c0 = arith.constant 0 : index
    %c0_0 = arith.constant 0 : index
    %0 = vector.load %arg2[%c0, %c0_0] : memref<32x9xf32, #tpu.memory_space<vmem>>, vector<32x9xf32>
    %c0_1 = arith.constant 0 : index
    %c0_2 = arith.constant 0 : index
    %c0_3 = arith.constant 0 : index
    %1 = vector.load %arg1[%c0_1, %c0_2, %c0_3] : memref<1x9x1024xf32, #tpu.memory_space<vmem>>, vector<1x9x1024xf32>
    %2 = vector.shape_cast %1 : vector<1x9x1024xf32> to vector<9x1024xf32>
    %cst = arith.constant dense<0.000000e+00> : vector<32x1024xf32>
    %3 = tpu.matmul %0, %2, %cst {dimension_numbers = #tpu.dot_dimension_numbers<[1], [0], [0], [1], [0, 0, 1, 1], [], []>} : vector<32x9xf32>, vector<9x1024xf32>, vector<32x1024xf32> -> vector<32x1024xf32>
    %4 = vector.extract_strided_slice %3 {offsets = [0, 0], sizes = [32, 256], strides = [1, 1]} : vector<32x1024xf32> to vector<32x256xf32>
    %5 = vector.extract_strided_slice %3 {offsets = [0, 256], sizes = [32, 256], strides = [1, 1]} : vector<32x1024xf32> to vector<32x256xf32>
    %6 = arith.maximumf %4, %5 : vector<32x256xf32>
    %7 = vector.extract_strided_slice %3 {offsets = [0, 512], sizes = [32, 256], strides = [1, 1]} : vector<32x1024xf32> to vector<32x256xf32>
    %8 = vector.extract_strided_slice %3 {offsets = [0, 768], sizes = [32, 256], strides = [1, 1]} : vector<32x1024xf32> to vector<32x256xf32>
    %9 = arith.maximumf %7, %8 : vector<32x256xf32>
    %10 = arith.maximumf %6, %9 : vector<32x256xf32>
    %c0_4 = arith.constant 0 : index
    %c0_5 = arith.constant 0 : index
    %11 = vector.load %arg3[%c0_4, %c0_5] : memref<32x1xf32, #tpu.memory_space<vmem>>, vector<32x1xf32>
    %12 = vector.broadcast %11 : vector<32x1xf32> to vector<32x256xf32>
    %13 = arith.addf %10, %12 : vector<32x256xf32>
    %cst_6 = arith.constant 0.000000e+00 : f32
    %14 = vector.broadcast %cst_6 : f32 to vector<32x256xf32>
    %15 = arith.maximumf %13, %14 : vector<32x256xf32>
    %16 = arith.truncf %15 : vector<32x256xf32> to vector<32x256xbf16>
    %c0_7 = arith.constant 0 : index
    %c0_8 = arith.constant 0 : index
    %c0_9 = arith.constant 0 : index
    %17 = vector.load %arg4[%c0_7, %c0_8, %c0_9] : memref<1x32x256xbf16, #tpu.memory_space<vmem>>, vector<1x32x256xbf16>
    %18 = vector.shape_cast %17 : vector<1x32x256xbf16> to vector<32x256xbf16>
    %19 = vector.shape_cast %16 : vector<32x256xbf16> to vector<1x32x256xbf16>
    tpu.vector_store %arg4[%c0_7, %c0_8, %c0_9], %19 {strides = array<i32>} : memref<1x32x256xbf16, #tpu.memory_space<vmem>>, vector<1x32x256xbf16>,
    return
  }
  func.func @transform_0(%arg0: i32) -> (i32, i32, i32) {
    %c0_i32 = arith.constant 0 : i32
    %c0_i32_0 = arith.constant 0 : i32
    %c0_i32_1 = arith.constant 0 : i32
    return %arg0, %c0_i32, %c0_i32_0 : i32, i32, i32
  }
  func.func @transform_1(%arg0: i32) -> (i32, i32) {
    %c0_i32 = arith.constant 0 : i32
    %c0_i32_0 = arith.constant 0 : i32
    %c0_i32_1 = arith.constant 0 : i32
    return %c0_i32, %c0_i32_0 : i32, i32
  }
  func.func @transform_2(%arg0: i32) -> (i32, i32) {
    %c0_i32 = arith.constant 0 : i32
    %c0_i32_0 = arith.constant 0 : i32
    %c0_i32_1 = arith.constant 0 : i32
    return %c0_i32, %c0_i32_0 : i32, i32
  }
  func.func @transform_3(%arg0: i32) -> (i32, i32, i32) {
    %c0_i32 = arith.constant 0 : i32
    %c0_i32_0 = arith.constant 0 : i32
    %c0_i32_1 = arith.constant 0 : i32
    return %arg0, %c0_i32, %c0_i32_0 : i32, i32, i32
  }
}

module attributes {stable_mosaic.version = 11 : i64} {
  func.func @_conv2_kernel(%arg0: i32, %arg1: memref<1x160x288xbf16, #tpu.memory_space<vmem>>, %arg2: memref<288x64xbf16, #tpu.memory_space<vmem>>, %arg3: memref<1x64xf32, #tpu.memory_space<vmem>>, %arg4: memref<1x36x64xbf16, #tpu.memory_space<vmem>>) attributes {dimension_semantics = [#tpu.dimension_semantics<parallel>], iteration_bounds = array<i64: 2>, scalar_prefetch = 0 : i64, scratch_operands = 0 : i64, tpu.core_type = #tpu.core_type<tc>, window_params = [{transform_indices = @transform_0, window_bounds = array<i64: 1, 160, 288>}, {pipeline_mode = #tpu.pipeline_mode<synchronous>, transform_indices = @transform_1, window_bounds = array<i64: 288, 64>}, {pipeline_mode = #tpu.pipeline_mode<synchronous>, transform_indices = @transform_2, window_bounds = array<i64: 1, 64>}, {transform_indices = @transform_3, window_bounds = array<i64: 1, 36, 64>}]} {
    %c0 = arith.constant 0 : index
    %c0_0 = arith.constant 0 : index
    %c0_1 = arith.constant 0 : index
    %0 = vector.load %arg1[%c0, %c0_0, %c0_1] : memref<1x160x288xbf16, #tpu.memory_space<vmem>>, vector<1x160x288xbf16>
    %1 = vector.shape_cast %0 : vector<1x160x288xbf16> to vector<160x288xbf16>
    %c0_2 = arith.constant 0 : index
    %c0_3 = arith.constant 0 : index
    %2 = vector.load %arg2[%c0_2, %c0_3] : memref<288x64xbf16, #tpu.memory_space<vmem>>, vector<288x64xbf16>
    %cst = arith.constant dense<0.000000e+00> : vector<160x64xf32>
    %3 = tpu.matmul %1, %2, %cst {dimension_numbers = #tpu.dot_dimension_numbers<[1], [0], [0], [1], [0, 0, 1, 1], [], []>} : vector<160x288xbf16>, vector<288x64xbf16>, vector<160x64xf32> -> vector<160x64xf32>
    %4 = vector.shape_cast %3 : vector<160x64xf32> to vector<1x4x40x64xf32>
    %5 = vector.extract_strided_slice %4 {offsets = [0, 0, 0, 0], sizes = [1, 1, 40, 64], strides = [1, 1, 1, 1]} : vector<1x4x40x64xf32> to vector<1x1x40x64xf32>
    %6 = vector.shape_cast %5 : vector<1x1x40x64xf32> to vector<1x40x64xf32>
    %7 = vector.extract_strided_slice %4 {offsets = [0, 1, 0, 0], sizes = [1, 1, 40, 64], strides = [1, 1, 1, 1]} : vector<1x4x40x64xf32> to vector<1x1x40x64xf32>
    %8 = vector.shape_cast %7 : vector<1x1x40x64xf32> to vector<1x40x64xf32>
    %9 = arith.maximumf %6, %8 : vector<1x40x64xf32>
    %10 = vector.extract_strided_slice %4 {offsets = [0, 2, 0, 0], sizes = [1, 1, 40, 64], strides = [1, 1, 1, 1]} : vector<1x4x40x64xf32> to vector<1x1x40x64xf32>
    %11 = vector.shape_cast %10 : vector<1x1x40x64xf32> to vector<1x40x64xf32>
    %12 = vector.extract_strided_slice %4 {offsets = [0, 3, 0, 0], sizes = [1, 1, 40, 64], strides = [1, 1, 1, 1]} : vector<1x4x40x64xf32> to vector<1x1x40x64xf32>
    %13 = vector.shape_cast %12 : vector<1x1x40x64xf32> to vector<1x40x64xf32>
    %14 = arith.maximumf %11, %13 : vector<1x40x64xf32>
    %15 = arith.maximumf %9, %14 : vector<1x40x64xf32>
    %c0_4 = arith.constant 0 : index
    %c0_5 = arith.constant 0 : index
    %16 = vector.load %arg3[%c0_4, %c0_5] : memref<1x64xf32, #tpu.memory_space<vmem>>, vector<1x64xf32>
    %17 = vector.shape_cast %16 : vector<1x64xf32> to vector<1x1x64xf32>
    %18 = vector.broadcast %17 : vector<1x1x64xf32> to vector<1x40x64xf32>
    %19 = arith.addf %15, %18 : vector<1x40x64xf32>
    %cst_6 = arith.constant 0.000000e+00 : f32
    %20 = vector.broadcast %cst_6 : f32 to vector<1x40x64xf32>
    %21 = arith.maximumf %19, %20 : vector<1x40x64xf32>
    %22 = vector.extract_strided_slice %21 {offsets = [0, 0, 0], sizes = [1, 36, 64], strides = [1, 1, 1]} : vector<1x40x64xf32> to vector<1x36x64xf32>
    %23 = arith.truncf %22 : vector<1x36x64xf32> to vector<1x36x64xbf16>
    %c0_7 = arith.constant 0 : index
    %c0_8 = arith.constant 0 : index
    %c0_9 = arith.constant 0 : index
    %24 = vector.load %arg4[%c0_7, %c0_8, %c0_9] : memref<1x36x64xbf16, #tpu.memory_space<vmem>>, vector<1x36x64xbf16>
    tpu.vector_store %arg4[%c0_7, %c0_8, %c0_9], %23 {strides = array<i32>} : memref<1x36x64xbf16, #tpu.memory_space<vmem>>, vector<1x36x64xbf16>,
    return
  }
  func.func @transform_0(%arg0: i32) -> (i32, i32, i32) {
    %c0_i32 = arith.constant 0 : i32
    %c0_i32_0 = arith.constant 0 : i32
    %c0_i32_1 = arith.constant 0 : i32
    return %arg0, %c0_i32, %c0_i32_0 : i32, i32, i32
  }
  func.func @transform_1(%arg0: i32) -> (i32, i32) {
    %c0_i32 = arith.constant 0 : i32
    %c0_i32_0 = arith.constant 0 : i32
    %c0_i32_1 = arith.constant 0 : i32
    return %c0_i32, %c0_i32_0 : i32, i32
  }
  func.func @transform_2(%arg0: i32) -> (i32, i32) {
    %c0_i32 = arith.constant 0 : i32
    %c0_i32_0 = arith.constant 0 : i32
    %c0_i32_1 = arith.constant 0 : i32
    return %c0_i32, %c0_i32_0 : i32, i32
  }
  func.func @transform_3(%arg0: i32) -> (i32, i32, i32) {
    %c0_i32 = arith.constant 0 : i32
    %c0_i32_0 = arith.constant 0 : i32
    %c0_i32_1 = arith.constant 0 : i32
    return %arg0, %c0_i32, %c0_i32_0 : i32, i32, i32
  }
}

module attributes {stable_mosaic.version = 11 : i64} {
  func.func @_mlp_kernel(%arg0: i32, %arg1: memref<1x1x2304xbf16, #tpu.memory_space<vmem>>, %arg2: memref<2304x640xbf16, #tpu.memory_space<vmem>>, %arg3: memref<1x640xf32, #tpu.memory_space<vmem>>, %arg4: memref<640x128xbf16, #tpu.memory_space<vmem>>, %arg5: memref<1x128xf32, #tpu.memory_space<vmem>>, %arg6: memref<128x128xbf16, #tpu.memory_space<vmem>>, %arg7: memref<1x128xf32, #tpu.memory_space<vmem>>, %arg8: memref<1x1x128xf32, #tpu.memory_space<vmem>>) attributes {dimension_semantics = [#tpu.dimension_semantics<parallel>], iteration_bounds = array<i64: 2>, scalar_prefetch = 0 : i64, scratch_operands = 0 : i64, tpu.core_type = #tpu.core_type<tc>, window_params = [{transform_indices = @transform_0, window_bounds = array<i64: 1, 1, 2304>}, {pipeline_mode = #tpu.pipeline_mode<synchronous>, transform_indices = @transform_1, window_bounds = array<i64: 2304, 640>}, {pipeline_mode = #tpu.pipeline_mode<synchronous>, transform_indices = @transform_2, window_bounds = array<i64: 1, 640>}, {pipeline_mode = #tpu.pipeline_mode<synchronous>, transform_indices = @transform_3, window_bounds = array<i64: 640, 128>}, {pipeline_mode = #tpu.pipeline_mode<synchronous>, transform_indices = @transform_4, window_bounds = array<i64: 1, 128>}, {pipeline_mode = #tpu.pipeline_mode<synchronous>, transform_indices = @transform_5, window_bounds = array<i64: 128, 128>}, {pipeline_mode = #tpu.pipeline_mode<synchronous>, transform_indices = @transform_6, window_bounds = array<i64: 1, 128>}, {transform_indices = @transform_7, window_bounds = array<i64: 1, 1, 128>}]} {
    %c0 = arith.constant 0 : index
    %c0_0 = arith.constant 0 : index
    %c0_1 = arith.constant 0 : index
    %0 = vector.load %arg1[%c0, %c0_0, %c0_1] : memref<1x1x2304xbf16, #tpu.memory_space<vmem>>, vector<1x1x2304xbf16>
    %1 = vector.shape_cast %0 : vector<1x1x2304xbf16> to vector<1x2304xbf16>
    %c0_2 = arith.constant 0 : index
    %c0_3 = arith.constant 0 : index
    %2 = vector.load %arg2[%c0_2, %c0_3] : memref<2304x640xbf16, #tpu.memory_space<vmem>>, vector<2304x640xbf16>
    %cst = arith.constant dense<0.000000e+00> : vector<1x640xf32>
    %3 = tpu.matmul %1, %2, %cst {dimension_numbers = #tpu.dot_dimension_numbers<[1], [0], [0], [1], [0, 0, 1, 1], [], []>} : vector<1x2304xbf16>, vector<2304x640xbf16>, vector<1x640xf32> -> vector<1x640xf32>
    %c0_4 = arith.constant 0 : index
    %c0_5 = arith.constant 0 : index
    %4 = vector.load %arg3[%c0_4, %c0_5] : memref<1x640xf32, #tpu.memory_space<vmem>>, vector<1x640xf32>
    %5 = arith.addf %3, %4 : vector<1x640xf32>
    %6 = arith.truncf %5 : vector<1x640xf32> to vector<1x640xbf16>
    %c0_6 = arith.constant 0 : index
    %c0_7 = arith.constant 0 : index
    %7 = vector.load %arg4[%c0_6, %c0_7] : memref<640x128xbf16, #tpu.memory_space<vmem>>, vector<640x128xbf16>
    %cst_8 = arith.constant dense<0.000000e+00> : vector<1x128xf32>
    %8 = tpu.matmul %6, %7, %cst_8 {dimension_numbers = #tpu.dot_dimension_numbers<[1], [0], [0], [1], [0, 0, 1, 1], [], []>} : vector<1x640xbf16>, vector<640x128xbf16>, vector<1x128xf32> -> vector<1x128xf32>
    %c0_9 = arith.constant 0 : index
    %c0_10 = arith.constant 0 : index
    %9 = vector.load %arg5[%c0_9, %c0_10] : memref<1x128xf32, #tpu.memory_space<vmem>>, vector<1x128xf32>
    %10 = arith.addf %8, %9 : vector<1x128xf32>
    %11 = arith.truncf %10 : vector<1x128xf32> to vector<1x128xbf16>
    %c0_11 = arith.constant 0 : index
    %c0_12 = arith.constant 0 : index
    %12 = vector.load %arg6[%c0_11, %c0_12] : memref<128x128xbf16, #tpu.memory_space<vmem>>, vector<128x128xbf16>
    %cst_13 = arith.constant dense<0.000000e+00> : vector<1x128xf32>
    %13 = tpu.matmul %11, %12, %cst_13 {dimension_numbers = #tpu.dot_dimension_numbers<[1], [0], [0], [1], [0, 0, 1, 1], [], []>} : vector<1x128xbf16>, vector<128x128xbf16>, vector<1x128xf32> -> vector<1x128xf32>
    %c0_14 = arith.constant 0 : index
    %c0_15 = arith.constant 0 : index
    %14 = vector.load %arg7[%c0_14, %c0_15] : memref<1x128xf32, #tpu.memory_space<vmem>>, vector<1x128xf32>
    %15 = arith.addf %13, %14 : vector<1x128xf32>
    %16 = vector.shape_cast %15 : vector<1x128xf32> to vector<1x1x128xf32>
    %c0_16 = arith.constant 0 : index
    %c0_17 = arith.constant 0 : index
    %c0_18 = arith.constant 0 : index
    %17 = vector.load %arg8[%c0_16, %c0_17, %c0_18] : memref<1x1x128xf32, #tpu.memory_space<vmem>>, vector<1x1x128xf32>
    tpu.vector_store %arg8[%c0_16, %c0_17, %c0_18], %16 {strides = array<i32>} : memref<1x1x128xf32, #tpu.memory_space<vmem>>, vector<1x1x128xf32>,
    return
  }
  func.func @transform_0(%arg0: i32) -> (i32, i32, i32) {
    %c0_i32 = arith.constant 0 : i32
    %c0_i32_0 = arith.constant 0 : i32
    %c0_i32_1 = arith.constant 0 : i32
    return %arg0, %c0_i32, %c0_i32_0 : i32, i32, i32
  }
  func.func @transform_1(%arg0: i32) -> (i32, i32) {
    %c0_i32 = arith.constant 0 : i32
    %c0_i32_0 = arith.constant 0 : i32
    %c0_i32_1 = arith.constant 0 : i32
    return %c0_i32, %c0_i32_0 : i32, i32
  }
  func.func @transform_2(%arg0: i32) -> (i32, i32) {
    %c0_i32 = arith.constant 0 : i32
    %c0_i32_0 = arith.constant 0 : i32
    %c0_i32_1 = arith.constant 0 : i32
    return %c0_i32, %c0_i32_0 : i32, i32
  }
  func.func @transform_3(%arg0: i32) -> (i32, i32) {
    %c0_i32 = arith.constant 0 : i32
    %c0_i32_0 = arith.constant 0 : i32
    %c0_i32_1 = arith.constant 0 : i32
    return %c0_i32, %c0_i32_0 : i32, i32
  }
  func.func @transform_4(%arg0: i32) -> (i32, i32) {
    %c0_i32 = arith.constant 0 : i32
    %c0_i32_0 = arith.constant 0 : i32
    %c0_i32_1 = arith.constant 0 : i32
    return %c0_i32, %c0_i32_0 : i32, i32
  }
  func.func @transform_5(%arg0: i32) -> (i32, i32) {
    %c0_i32 = arith.constant 0 : i32
    %c0_i32_0 = arith.constant 0 : i32
    %c0_i32_1 = arith.constant 0 : i32
    return %c0_i32, %c0_i32_0 : i32, i32
  }
  func.func @transform_6(%arg0: i32) -> (i32, i32) {
    %c0_i32 = arith.constant 0 : i32
    %c0_i32_0 = arith.constant 0 : i32
    %c0_i32_1 = arith.constant 0 : i32
    return %c0_i32, %c0_i32_0 : i32, i32
  }
  func.func @transform_7(%arg0: i32) -> (i32, i32, i32) {
    %c0_i32 = arith.constant 0 : i32
    %c0_i32_0 = arith.constant 0 : i32
    %c0_i32_1 = arith.constant 0 : i32
    return %arg0, %c0_i32, %c0_i32_0 : i32, i32, i32
  }
}

</mosaic_0001>

<llo_original>
// kernel: forward_pallas.3
$region0: #{forward_pallas.3}
  #allocation0 [shape = 'u32[]', space=smem, size = 0x4, offset = 0x4, fixed_abs, tag = 'smem constant byte address 0x4 - core index']
  #allocation1 [shape = 'u32[144,128]{1,0:T(1,128)}', space=vmem, size = 0x12000, scoped, tag = 'internal scratch']
  %s0 = inlined_call_operand.vmem [shape: f32[2,9,1024], index: 0, kind: input, shape index: {}]
  %s1 = inlined_call_operand.vmem [shape: f32[32,9], index: 1, kind: input, shape index: {}]
  %s2 = inlined_call_operand.vmem [shape: f32[32,1], index: 2, kind: input, shape index: {}]
  %s3 = inlined_call_operand.vmem [shape: bf16[2,32,256], index: 3, kind: output, shape index: {}]
  %s4 = sld [smem:[#allocation0]]
  $region45: #{forward_pallas.3} parent=0
    _
  %s6 = ssub.s32 1, %s4
  %s7 = scalar_select 0, %s6, %s4
  loop: start=0, step=1, limit=4
  $region2: #{forward_pallas.3} parent=0 // loop_pre_header
    _
  $region3: #{forward_pallas.3} parent=0 // loop_header
    %s9 = sphi 0, %s13
    %p10 = scmp.ge.s32.totalorder %s9, 4
    %s19 = sphi 0, %s21
    %s22 = sphi 0, %s19
    %s23 = sphi 0, %s22
    %s39 = sphi 0, %s23
    %s43 = sphi 0, %s43
    %s45 = sphi 0, %s43
    %s46 = sphi 0, %s45
    %s60 = sphi 0, %s46
    %s64 = sphi 0, %s64
    %s66 = sphi 0, %s64
    %s67 = sphi 0, %s66
    %s81 = sphi 0, %s67
    %s87 = sphi 0, %s89
    %s90 = sphi 0, %s87
    %s91 = sphi 0, %s90
    %s107 = sphi 0, %s91
  $region4: #{forward_pallas.3} parent=0 // loop_header_branch
    %12 = sbr.rel (%p10) target = $region8
  $region5: #{forward_pallas.3} parent=0 // loop_body
    %s14 = ssub.s32 %s9, 1
    %s15 = ssub.s32 %s9, 2
    %s16 = sadd.s32 %s9, 1
    %s17 = ssub.s32 %s9, %s16
    %p18 = scmp.eq.s32.totalorder %s17, 0
    %s20 = sadd.s32 %s19, 1
    %s21 = scalar_select %p18, %s19, %s20
    %p24 = pneg %p18
    %p25 = scmp.eq.s32.totalorder %s9, 1
    %p26 = por %p24, %p25
    %p27 = scmp.ne.s32.totalorder %s19, %s22
    %p28 = scmp.eq.s32.totalorder %s9, 0
    %p29 = por %p27, %p28
    %p30 = scmp.ne.s32.totalorder %s19, %s22
    %p31 = scmp.eq.s32.totalorder %s14, 1
    %p32 = por %p30, %p31
    %p33 = scmp.ne.s32.totalorder %s22, %s23
    %p34 = scmp.eq.s32.totalorder %s14, 0
    %p35 = por %p33, %p34
    %p36 = scmp.ne.s32.totalorder %s22, %s23
    %p37 = scmp.eq.s32.totalorder %s15, 1
    %p38 = por %p36, %p37
    %p40 = scmp.ne.s32.totalorder %s23, %s39
    %p41 = scmp.eq.s32.totalorder %s15, 0
    %p42 = por %p40, %p41
    %s44 = sadd.s32 %s43, 1
    %p47 = scmp.eq.s32.totalorder %s9, 1
    %p48 = scmp.ne.s32.totalorder %s43, %s45
    %p49 = scmp.eq.s32.totalorder %s9, 0
    %p50 = por %p48, %p49
    %p51 = scmp.ne.s32.totalorder %s43, %s45
    %p52 = scmp.eq.s32.totalorder %s14, 1
    %p53 = por %p51, %p52
    %p54 = scmp.ne.s32.totalorder %s45, %s46
    %p55 = scmp.eq.s32.totalorder %s14, 0
    %p56 = por %p54, %p55
    %p57 = scmp.ne.s32.totalorder %s45, %s46
    %p58 = scmp.eq.s32.totalorder %s15, 1
    %p59 = por %p57, %p58
    %p61 = scmp.ne.s32.totalorder %s46, %s60
    %p62 = scmp.eq.s32.totalorder %s15, 0
    %p63 = por %p61, %p62
    %s65 = sadd.s32 %s64, 1
    %p68 = scmp.eq.s32.totalorder %s9, 1
    %p69 = scmp.ne.s32.totalorder %s64, %s66
    %p70 = scmp.eq.s32.totalorder %s9, 0
    %p71 = por %p69, %p70
    %p72 = scmp.ne.s32.totalorder %s64, %s66
    %p73 = scmp.eq.s32.totalorder %s14, 1
    %p74 = por %p72, %p73
    %p75 = scmp.ne.s32.totalorder %s66, %s67
    %p76 = scmp.eq.s32.totalorder %s14, 0
    %p77 = por %p75, %p76
    %p78 = scmp.ne.s32.totalorder %s66, %s67
    %p79 = scmp.eq.s32.totalorder %s15, 1
    %p80 = por %p78, %p79
    %p82 = scmp.ne.s32.totalorder %s67, %s81
    %p83 = scmp.eq.s32.totalorder %s15, 0
    %p84 = por %p82, %p83
    %s85 = ssub.s32 %s9, %s16
    %p86 = scmp.eq.s32.totalorder %s85, 0
    %s88 = sadd.s32 %s87, 1
    %s89 = scalar_select %p86, %s87, %s88
    %p92 = pneg %p86
    %p93 = scmp.eq.s32.totalorder %s9, 1
    %p94 = por %p92, %p93
    %p95 = scmp.ne.s32.totalorder %s87, %s90
    %p96 = scmp.eq.s32.totalorder %s9, 0
    %p97 = por %p95, %p96
    %p98 = scmp.ne.s32.totalorder %s87, %s90
    %p99 = scmp.eq.s32.totalorder %s14, 1
    %p100 = por %p98, %p99
    %p101 = scmp.ne.s32.totalorder %s90, %s91
    %p102 = scmp.eq.s32.totalorder %s14, 0
    %p103 = por %p101, %p102
    %p104 = scmp.ne.s32.totalorder %s90, %s91
    %p105 = scmp.eq.s32.totalorder %s15, 1
    %p106 = por %p104, %p105
    %p108 = scmp.ne.s32.totalorder %s91, %s107
    %p109 = scmp.eq.s32.totalorder %s15, 0
    %p110 = por %p108, %p109
    %p111 = scmp.le.s32.totalorder 1, %s9
    %p112 = scmp.lt.s32.totalorder %s9, 3
    %p113 = pnand %p111, %p112
    %p114 = pneg %p113
    // Predicated region
    $region9: #{forward_pallas.3} parent=5 // pred_check
      _
    $region10: #{forward_pallas.3} parent=5 // pred_check_branch
      %116 = sbr.rel (%p113) target = $region12
    $region11: #{forward_pallas.3} parent=5 // pred_region
      %s117 = ssub.s32 %s9, 1
      // Predicated region
      $region13: #{forward_pallas.3} parent=11 // pred_check
        %p118 = pneg %p56
      $region14: #{forward_pallas.3} parent=11 // pred_check_branch
        %120 = sbr.rel (%p118) target = $region16
      $region15: #{forward_pallas.3} parent=11 // pred_region
        _
      $region16: #{forward_pallas.3} parent=11 // pred_fallthru
        _
      // Predicated region
      $region17: #{forward_pallas.3} parent=11 // pred_check
        %p121 = pneg %p77
      $region18: #{forward_pallas.3} parent=11 // pred_check_branch
        %123 = sbr.rel (%p121) target = $region20
      $region19: #{forward_pallas.3} parent=11 // pred_region
        _
      $region20: #{forward_pallas.3} parent=11 // pred_fallthru
        _
    $region12: #{forward_pallas.3} parent=5 // pred_fallthru
      _
    %p124 = scmp.lt.s32.totalorder %s9, 2
    // Predicated region
    $region21: #{forward_pallas.3} parent=5 // pred_check
      %p125 = pneg %p124
    $region22: #{forward_pallas.3} parent=5 // pred_check_branch
      %127 = sbr.rel (%p125) target = $region24
    $region23: #{forward_pallas.3} parent=5 // pred_region
      // Predicated region
      $region25: #{forward_pallas.3} parent=23 // pred_check
        %p128 = pneg %p29
      $region26: #{forward_pallas.3} parent=23 // pred_check_branch
        %130 = sbr.rel (%p128) target = $region28
      $region27: #{forward_pallas.3} parent=23 // pred_region
        %p131 = scmp.lt.s32.totalorder %s9, 1
        %s132 = scalar_select %p131, %s9, 1
        %s133 = smul.addr %s132, 16
        %s134 = smul.addr %s133, 8
        %s135 = scalar_lea.vmem %s0, %s134
      $region28: #{forward_pallas.3} parent=23 // pred_fallthru
        _
    $region24: #{forward_pallas.3} parent=5 // pred_fallthru
      _
    %p136 = scmp.le.s32.totalorder 1, %s9
    %p137 = scmp.lt.s32.totalorder %s9, 3
    %p138 = pnand %p136, %p137
    %p139 = pneg %p138
    // Predicated region
    $region29: #{forward_pallas.3} parent=5 // pred_check
      _
    $region30: #{forward_pallas.3} parent=5 // pred_check_branch
      %141 = sbr.rel (%p138) target = $region32
    $region31: #{forward_pallas.3} parent=5 // pred_region
      %s142 = ssub.s32 %s9, 1
      %p143 = scmp.lt.s32.totalorder %s14, 1
      %s144 = scalar_select %p143, %s14, 1
      %s145 = smul.addr %s144, 16
      %s146 = smul.addr %s145, 8
      %s147 = scalar_lea.vmem %s0, %s146
      %p148 = pneg %p35
      %p149 = pneg %p32
      %p150 = pneg %p56
      %p151 = pneg %p53
      %p152 = pneg %p77
      %p153 = pneg %p74
      %p154 = pneg %p103
      %p155 = pneg %p100
      %p156 = scmp.lt.s32.totalorder %s14, 1
      %s157 = scalar_select %p156, %s14, 1
      %s158 = smul.addr %s157, 8
      %s159 = smul.addr %s158, 4
      %s160 = scalar_lea.vmem %s3, %s159
      %p161 = scmp.lt.s32.totalorder %s14, 1
      %s162 = scalar_select %p161, %s14, 1
      %s163 = smul.addr %s162, 16
      %s164 = smul.addr %s163, 8
      %s165 = scalar_lea.vmem %s0, %s164
      %p166 = scmp.lt.s32.totalorder %s14, 1
      %s167 = scalar_select %p166, %s14, 1
      %s168 = smul.addr %s167, 8
      %s169 = smul.addr %s168, 4
      %s170 = scalar_lea.vmem %s3, %s169
      %v171 = vld [vmem:[%s1] sm:$0xff]
      %v172 = vld [vmem:[%s1 + $0x8] sm:$0xff]
      %v173 = vld [vmem:[%s1 + $0x10] sm:$0xff]
      %v174 = vld [vmem:[%s1 + $0x18] sm:$0xff]
      %v175 = vld [vmem:[%s165] sm:$0xff]
      %v176 = vld [vmem:[%s165 + $0x8] sm:$0xff]
      %v177 = vld [vmem:[%s165 + $0x10] sm:$0xff]
      %v178 = vld [vmem:[%s165 + $0x18] sm:$0xff]
      %v179 = vld [vmem:[%s165 + $0x20] sm:$0xff]
      %v180 = vld [vmem:[%s165 + $0x28] sm:$0xff]
      %v181 = vld [vmem:[%s165 + $0x30] sm:$0xff]
      %v182 = vld [vmem:[%s165 + $0x38] sm:$0xff]
      %v183 = vld [vmem:[%s165 + $0x40] sm:$0x1]
      %v184 = vld [vmem:[%s165 + $0x48] sm:$0x1]
      %v185 = vld [vmem:[%s165 + $0x50] sm:$0x1]
      %v186 = vld [vmem:[%s165 + $0x58] sm:$0x1]
      %v187 = vld [vmem:[%s165 + $0x60] sm:$0x1]
      %v188 = vld [vmem:[%s165 + $0x68] sm:$0x1]
      %v189 = vld [vmem:[%s165 + $0x70] sm:$0x1]
      %v190 = vld [vmem:[%s165 + $0x78] sm:$0x1]
      %vm191 = vcmask 72704
      %v193 = vsel %vm191, %v171, 0
      %v196 = vsel %vm191, %v172, 0
      %v199 = vsel %vm191, %v173, 0
      %v202 = vsel %vm191, %v174, 0
      %vm204 = vcmask 1040384
      %v206 = vsel %vm204, %v183, 0
      %v209 = vsel %vm204, %v184, 0
      %v212 = vsel %vm204, %v185, 0
      %v215 = vsel %vm204, %v186, 0
      %v218 = vsel %vm204, %v187, 0
      %v221 = vsel %vm204, %v188, 0
      %v224 = vsel %vm204, %v189, 0
      %v227 = vsel %vm204, %v190, 0
      %229 = vmatprep.subr.mxu0 0.0
      %230 = vmatpush1.msra.mxu0 0.0
      %231 = vmatprep.subr.mxu0 0.0
      %232 = vmatpush1.msra.mxu0 0.0
      %233 = vmatprep.subr.mxu0 0.0
      %234 = vmatpush1.msra.mxu0 0.0
      %235 = vmatprep.subr.mxu0 0.0
      %236 = vmatpush1.msra.mxu0 0.0
      %237 = vmatprep.subr.mxu0 0.0
      %238 = vmatpush1.msra.mxu0 0.0
      %239 = vmatprep.subr.mxu0 0.0
      %240 = vmatpush1.msra.mxu0 0.0
      %241 = vmatprep.subr.mxu0 0.0
      %242 = vmatpush1.msra.mxu0 0.0
      %243 = vmatprep.subr.mxu0 0.0
      %244 = vmatpush1.msra.mxu0 0.0
      %245 = vmatprep.subr.mxu0 0.0
      %246 = vmatpush1.msra.mxu0 0.0
      %247 = vmatprep.subr.mxu0 0.0
      %248 = vmatpush1.msra.mxu0 0.0
      %249 = vmatprep.subr.mxu0 0.0
      %250 = vmatpush1.msra.mxu0 0.0
      %251 = vmatprep.subr.mxu0 0.0
      %252 = vmatpush1.msra.mxu0 0.0
      %253 = vmatprep.subr.mxu0 0.0
      %254 = vmatpush1.msra.mxu0 0.0
      %255 = vmatprep.subr.mxu0 0.0
      %256 = vmatpush1.msra.mxu0 0.0
      %257 = vmatprep.subr.mxu0 %v209
      %258 = vmatpush1.msra.mxu0 %v206
      %259 = vmatprep.subr.mxu0 %v176
      %260 = vmatpush1.msra.mxu0 %v175
      %261 = vmatprep.subr.mxu0 0.0
      %262 = vmatpush2.msra.mxu0 0.0
      %263 = vmatprep.subr.mxu0 0.0
      %264 = vmatpush2.msra.mxu0 0.0
      %265 = vmatprep.subr.mxu0 0.0
      %266 = vmatpush2.msra.mxu0 0.0
      %267 = vmatprep.subr.mxu0 0.0
      %268 = vmatpush2.msra.mxu0 0.0
      %269 = vmatprep.subr.mxu0 0.0
      %270 = vmatpush2.msra.mxu0 0.0
      %271 = vmatprep.subr.mxu0 0.0
      %272 = vmatpush2.msra.mxu0 0.0
      %273 = vmatprep.subr.mxu0 0.0
      %274 = vmatpush2.msra.mxu0 0.0
      %275 = vmatprep.subr.mxu0 0.0
      %276 = vmatpush2.msra.mxu0 0.0
      %277 = vmatprep.subr.mxu0 0.0
      %278 = vmatpush2.msra.mxu0 0.0
      %279 = vmatprep.subr.mxu0 0.0
      %280 = vmatpush2.msra.mxu0 0.0
      %281 = vmatprep.subr.mxu0 0.0
      %282 = vmatpush2.msra.mxu0 0.0
      %283 = vmatprep.subr.mxu0 0.0
      %284 = vmatpush2.msra.mxu0 0.0
      %285 = vmatprep.subr.mxu0 0.0
      %286 = vmatpush2.msra.mxu0 0.0
      %287 = vmatprep.subr.mxu0 0.0
      %288 = vmatpush2.msra.mxu0 0.0
      %289 = vmatprep.subr.mxu0 0.0
      %290 = vmatpush2.msra.mxu0 0.0
      %291 = vmatprep.subr.mxu0 0.0
      %292 = vmatpush2.msra.mxu0 0.0
      %293 = vmatprep.mubr.f32.mxu0 0.0
      %294 = vmatmul.mubr.f32.gmra.mxu0 %v193
      %v295 = vpop.f32.mrf.mxu0
      %v296 = vadd.f32 0.0, %v295
      %v297 = vpop.f32.mrf.mxu0
      %v298 = vadd.f32 0.0, %v297
      %299 = vmatprep.mubr.f32.mxu0 0.0
      %300 = vmatmul.mubr.f32.gmra.mxu0 %v196
      %v301 = vpop.f32.mrf.mxu0
      %v302 = vadd.f32 0.0, %v301
      %v303 = vpop.f32.mrf.mxu0
      %v304 = vadd.f32 0.0, %v303
      %305 = vmatprep.mubr.f32.mxu0 0.0
      %306 = vmatmul.mubr.f32.gmra.mxu0 %v199
      %v307 = vpop.f32.mrf.mxu0
      %v308 = vadd.f32 0.0, %v307
      %v309 = vpop.f32.mrf.mxu0
      %v310 = vadd.f32 0.0, %v309
      %311 = vmatprep.mubr.f32.mxu0 0.0
      %312 = vmatmul.mubr.f32.gmra.mxu0 %v202
      %v313 = vpop.f32.mrf.mxu0
      %v314 = vadd.f32 0.0, %v313
      %v315 = vpop.f32.mrf.mxu0
      %v316 = vadd.f32 0.0, %v315
      %317 = vdwg.mxu0
      %318 = vmatprep.subr.mxu0 0.0
      %319 = vmatpush1.msra.mxu0 0.0
      %320 = vmatprep.subr.mxu0 0.0
      %321 = vmatpush1.msra.mxu0 0.0
      %322 = vmatprep.subr.mxu0 0.0
      %323 = vmatpush1.msra.mxu0 0.0
      %324 = vmatprep.subr.mxu0 0.0
      %325 = vmatpush1.msra.mxu0 0.0
      %326 = vmatprep.subr.mxu0 0.0
      %327 = vmatpush1.msra.mxu0 0.0
      %328 = vmatprep.subr.mxu0 0.0
      %329 = vmatpush1.msra.mxu0 0.0
      %330 = vmatprep.subr.mxu0 0.0
      %331 = vmatpush1.msra.mxu0 0.0
      %332 = vmatprep.subr.mxu0 0.0
      %333 = vmatpush1.msra.mxu0 0.0
      %334 = vmatprep.subr.mxu0 0.0
      %335 = vmatpush1.msra.mxu0 0.0
      %336 = vmatprep.subr.mxu0 0.0
      %337 = vmatpush1.msra.mxu0 0.0
      %338 = vmatprep.subr.mxu0 0.0
      %339 = vmatpush1.msra.mxu0 0.0
      %340 = vmatprep.subr.mxu0 0.0
      %341 = vmatpush1.msra.mxu0 0.0
      %342 = vmatprep.subr.mxu0 0.0
      %343 = vmatpush1.msra.mxu0 0.0
      %344 = vmatprep.subr.mxu0 0.0
      %345 = vmatpush1.msra.mxu0 0.0
      %346 = vmatprep.subr.mxu0 %v215
      %347 = vmatpush1.msra.mxu0 %v212
      %348 = vmatprep.subr.mxu0 %v178
      %349 = vmatpush1.msra.mxu0 %v177
      %350 = vmatprep.subr.mxu0 0.0
      %351 = vmatpush2.msra.mxu0 0.0
      %352 = vmatprep.subr.mxu0 0.0
      %353 = vmatpush2.msra.mxu0 0.0
      %354 = vmatprep.subr.mxu0 0.0
      %355 = vmatpush2.msra.mxu0 0.0
      %356 = vmatprep.subr.mxu0 0.0
      %357 = vmatpush2.msra.mxu0 0.0
      %358 = vmatprep.subr.mxu0 0.0
      %359 = vmatpush2.msra.mxu0 0.0
      %360 = vmatprep.subr.mxu0 0.0
      %361 = vmatpush2.msra.mxu0 0.0
      %362 = vmatprep.subr.mxu0 0.0
      %363 = vmatpush2.msra.mxu0 0.0
      %364 = vmatprep.subr.mxu0 0.0
      %365 = vmatpush2.msra.mxu0 0.0
      %366 = vmatprep.subr.mxu0 0.0
      %367 = vmatpush2.msra.mxu0 0.0
      %368 = vmatprep.subr.mxu0 0.0
      %369 = vmatpush2.msra.mxu0 0.0
      %370 = vmatprep.subr.mxu0 0.0
      %371 = vmatpush2.msra.mxu0 0.0
      %372 = vmatprep.subr.mxu0 0.0
      %373 = vmatpush2.msra.mxu0 0.0
      %374 = vmatprep.subr.mxu0 0.0
      %375 = vmatpush2.msra.mxu0 0.0
      %376 = vmatprep.subr.mxu0 0.0
      %377 = vmatpush2.msra.mxu0 0.0
      %378 = vmatprep.subr.mxu0 0.0
      %379 = vmatpush2.msra.mxu0 0.0
      %380 = vmatprep.subr.mxu0 0.0
      %381 = vmatpush2.msra.mxu0 0.0
      %382 = vmatprep.mubr.f32.mxu0 0.0
      %383 = vmatmul.mubr.f32.gmra.mxu0 %v193
      %v384 = vpop.f32.mrf.mxu0
      %v385 = vadd.f32 0.0, %v384
      %v386 = vpop.f32.mrf.mxu0
      %v387 = vadd.f32 0.0, %v386
      %388 = vmatprep.mubr.f32.mxu0 0.0
      %389 = vmatmul.mubr.f32.gmra.mxu0 %v196
      %v390 = vpop.f32.mrf.mxu0
      %v391 = vadd.f32 0.0, %v390
      %v392 = vpop.f32.mrf.mxu0
      %v393 = vadd.f32 0.0, %v392
      %394 = vmatprep.mubr.f32.mxu0 0.0
      %395 = vmatmul.mubr.f32.gmra.mxu0 %v199
      %v396 = vpop.f32.mrf.mxu0
      %v397 = vadd.f32 0.0, %v396
      %v398 = vpop.f32.mrf.mxu0
      %v399 = vadd.f32 0.0, %v398
      %400 = vmatprep.mubr.f32.mxu0 0.0
      %401 = vmatmul.mubr.f32.gmra.mxu0 %v202
      %v402 = vpop.f32.mrf.mxu0
      %v403 = vadd.f32 0.0, %v402
      %v404 = vpop.f32.mrf.mxu0
      %v405 = vadd.f32 0.0, %v404
      %406 = vdwg.mxu0
      %407 = vmatprep.subr.mxu0 0.0
      %408 = vmatpush1.msra.mxu0 0.0
      %409 = vmatprep.subr.mxu0 0.0
      %410 = vmatpush1.msra.mxu0 0.0
      %411 = vmatprep.subr.mxu0 0.0
      %412 = vmatpush1.msra.mxu0 0.0
      %413 = vmatprep.subr.mxu0 0.0
      %414 = vmatpush1.msra.mxu0 0.0
      %415 = vmatprep.subr.mxu0 0.0
      %416 = vmatpush1.msra.mxu0 0.0
      %417 = vmatprep.subr.mxu0 0.0
      %418 = vmatpush1.msra.mxu0 0.0
      %419 = vmatprep.subr.mxu0 0.0
      %420 = vmatpush1.msra.mxu0 0.0
      %421 = vmatprep.subr.mxu0 0.0
      %422 = vmatpush1.msra.mxu0 0.0
      %423 = vmatprep.subr.mxu0 0.0
      %424 = vmatpush1.msra.mxu0 0.0
      %425 = vmatprep.subr.mxu0 0.0
      %426 = vmatpush1.msra.mxu0 0.0
      %427 = vmatprep.subr.mxu0 0.0
      %428 = vmatpush1.msra.mxu0 0.0
      %429 = vmatprep.subr.mxu0 0.0
      %430 = vmatpush1.msra.mxu0 0.0
      %431 = vmatprep.subr.mxu0 0.0
      %432 = vmatpush1.msra.mxu0 0.0
      %433 = vmatprep.subr.mxu0 0.0
      %434 = vmatpush1.msra.mxu0 0.0
      %435 = vmatprep.subr.mxu0 %v221
      %436 = vmatpush1.msra.mxu0 %v218
      %437 = vmatprep.subr.mxu0 %v180
      %438 = vmatpush1.msra.mxu0 %v179
      %439 = vmatprep.subr.mxu0 0.0
      %440 = vmatpush2.msra.mxu0 0.0
      %441 = vmatprep.subr.mxu0 0.0
      %442 = vmatpush2.msra.mxu0 0.0
      %443 = vmatprep.subr.mxu0 0.0
      %444 = vmatpush2.msra.mxu0 0.0
      %445 = vmatprep.subr.mxu0 0.0
      %446 = vmatpush2.msra.mxu0 0.0
      %447 = vmatprep.subr.mxu0 0.0
      %448 = vmatpush2.msra.mxu0 0.0
      %449 = vmatprep.subr.mxu0 0.0
      %450 = vmatpush2.msra.mxu0 0.0
      %451 = vmatprep.subr.mxu0 0.0
      %452 = vmatpush2.msra.mxu0 0.0
      %453 = vmatprep.subr.mxu0 0.0
      %454 = vmatpush2.msra.mxu0 0.0
      %455 = vmatprep.subr.mxu0 0.0
      %456 = vmatpush2.msra.mxu0 0.0
      %457 = vmatprep.subr.mxu0 0.0
      %458 = vmatpush2.msra.mxu0 0.0
      %459 = vmatprep.subr.mxu0 0.0
      %460 = vmatpush2.msra.mxu0 0.0
      %461 = vmatprep.subr.mxu0 0.0
      %462 = vmatpush2.msra.mxu0 0.0
      %463 = vmatprep.subr.mxu0 0.0
      %464 = vmatpush2.msra.mxu0 0.0
      %465 = vmatprep.subr.mxu0 0.0
      %466 = vmatpush2.msra.mxu0 0.0
      %467 = vmatprep.subr.mxu0 0.0
      %468 = vmatpush2.msra.mxu0 0.0
      %469 = vmatprep.subr.mxu0 0.0
      %470 = vmatpush2.msra.mxu0 0.0
      %471 = vmatprep.mubr.f32.mxu0 0.0
      %472 = vmatmul.mubr.f32.gmra.mxu0 %v193
      %v473 = vpop.f32.mrf.mxu0
      %v474 = vadd.f32 0.0, %v473
      %v475 = vpop.f32.mrf.mxu0
      %v476 = vadd.f32 0.0, %v475
      %477 = vmatprep.mubr.f32.mxu0 0.0
      %478 = vmatmul.mubr.f32.gmra.mxu0 %v196
      %v479 = vpop.f32.mrf.mxu0
      %v480 = vadd.f32 0.0, %v479
      %v481 = vpop.f32.mrf.mxu0
      %v482 = vadd.f32 0.0, %v481
      %483 = vmatprep.mubr.f32.mxu0 0.0
      %484 = vmatmul.mubr.f32.gmra.mxu0 %v199
      %v485 = vpop.f32.mrf.mxu0
      %v486 = vadd.f32 0.0, %v485
      %v487 = vpop.f32.mrf.mxu0
      %v488 = vadd.f32 0.0, %v487
      %489 = vmatprep.mubr.f32.mxu0 0.0
      %490 = vmatmul.mubr.f32.gmra.mxu0 %v202
      %v491 = vpop.f32.mrf.mxu0
      %v492 = vadd.f32 0.0, %v491
      %v493 = vpop.f32.mrf.mxu0
      %v494 = vadd.f32 0.0, %v493
      %495 = vdwg.mxu0
      %496 = vmatprep.subr.mxu0 0.0
      %497 = vmatpush1.msra.mxu0 0.0
      %498 = vmatprep.subr.mxu0 0.0
      %499 = vmatpush1.msra.mxu0 0.0
      %500 = vmatprep.subr.mxu0 0.0
      %501 = vmatpush1.msra.mxu0 0.0
      %502 = vmatprep.subr.mxu0 0.0
      %503 = vmatpush1.msra.mxu0 0.0
      %504 = vmatprep.subr.mxu0 0.0
      %505 = vmatpush1.msra.mxu0 0.0
      %506 = vmatprep.subr.mxu0 0.0
      %507 = vmatpush1.msra.mxu0 0.0
      %508 = vmatprep.subr.mxu0 0.0
      %509 = vmatpush1.msra.mxu0 0.0
      %510 = vmatprep.subr.mxu0 0.0
      %511 = vmatpush1.msra.mxu0 0.0
      %512 = vmatprep.subr.mxu0 0.0
      %513 = vmatpush1.msra.mxu0 0.0
      %514 = vmatprep.subr.mxu0 0.0
      %515 = vmatpush1.msra.mxu0 0.0
      %516 = vmatprep.subr.mxu0 0.0
      %517 = vmatpush1.msra.mxu0 0.0
      %518 = vmatprep.subr.mxu0 0.0
      %519 = vmatpush1.msra.mxu0 0.0
      %520 = vmatprep.subr.mxu0 0.0
      %521 = vmatpush1.msra.mxu0 0.0
      %522 = vmatprep.subr.mxu0 0.0
      %523 = vmatpush1.msra.mxu0 0.0
      %524 = vmatprep.subr.mxu0 %v227
      %525 = vmatpush1.msra.mxu0 %v224
      %526 = vmatprep.subr.mxu0 %v182
      %527 = vmatpush1.msra.mxu0 %v181
      %528 = vmatprep.subr.mxu0 0.0
      %529 = vmatpush2.msra.mxu0 0.0
      %530 = vmatprep.subr.mxu0 0.0
      %531 = vmatpush2.msra.mxu0 0.0
      %532 = vmatprep.subr.mxu0 0.0
      %533 = vmatpush2.msra.mxu0 0.0
      %534 = vmatprep.subr.mxu0 0.0
      %535 = vmatpush2.msra.mxu0 0.0
      %536 = vmatprep.subr.mxu0 0.0
      %537 = vmatpush2.msra.mxu0 0.0
      %538 = vmatprep.subr.mxu0 0.0
      %539 = vmatpush2.msra.mxu0 0.0
      %540 = vmatprep.subr.mxu0 0.0
      %541 = vmatpush2.msra.mxu0 0.0
      %542 = vmatprep.subr.mxu0 0.0
      %543 = vmatpush2.msra.mxu0 0.0
      %544 = vmatprep.subr.mxu0 0.0
      %545 = vmatpush2.msra.mxu0 0.0
      %546 = vmatprep.subr.mxu0 0.0
      %547 = vmatpush2.msra.mxu0 0.0
      %548 = vmatprep.subr.mxu0 0.0
      %549 = vmatpush2.msra.mxu0 0.0
      %550 = vmatprep.subr.mxu0 0.0
      %551 = vmatpush2.msra.mxu0 0.0
      %552 = vmatprep.subr.mxu0 0.0
      %553 = vmatpush2.msra.mxu0 0.0
      %554 = vmatprep.subr.mxu0 0.0
      %555 = vmatpush2.msra.mxu0 0.0
      %556 = vmatprep.subr.mxu0 0.0
      %557 = vmatpush2.msra.mxu0 0.0
      %558 = vmatprep.subr.mxu0 0.0
      %559 = vmatpush2.msra.mxu0 0.0
      %560 = vmatprep.mubr.f32.mxu0 0.0
      %561 = vmatmul.mubr.f32.gmra.mxu0 %v193
      %v562 = vpop.f32.mrf.mxu0
      %v563 = vadd.f32 0.0, %v562
      %v564 = vpop.f32.mrf.mxu0
      %v565 = vadd.f32 0.0, %v564
      %566 = vmatprep.mubr.f32.mxu0 0.0
      %567 = vmatmul.mubr.f32.gmra.mxu0 %v196
      %v568 = vpop.f32.mrf.mxu0
      %v569 = vadd.f32 0.0, %v568
      %v570 = vpop.f32.mrf.mxu0
      %v571 = vadd.f32 0.0, %v570
      %572 = vmatprep.mubr.f32.mxu0 0.0
      %573 = vmatmul.mubr.f32.gmra.mxu0 %v199
      %v574 = vpop.f32.mrf.mxu0
      %v575 = vadd.f32 0.0, %v574
      %v576 = vpop.f32.mrf.mxu0
      %v577 = vadd.f32 0.0, %v576
      %578 = vmatprep.mubr.f32.mxu0 0.0
      %579 = vmatmul.mubr.f32.gmra.mxu0 %v202
      %v580 = vpop.f32.mrf.mxu0
      %v581 = vadd.f32 0.0, %v580
      %v582 = vpop.f32.mrf.mxu0
      %v583 = vadd.f32 0.0, %v582
      %584 = vdwg.mxu0
      %v585 = vmax.f32 %v296, %v385
      %v586 = vmax.f32 %v298, %v387
      %v587 = vmax.f32 %v302, %v391
      %v588 = vmax.f32 %v304, %v393
      %v589 = vmax.f32 %v308, %v397
      %v590 = vmax.f32 %v310, %v399
      %v591 = vmax.f32 %v314, %v403
      %v592 = vmax.f32 %v316, %v405
      %v593 = vmax.f32 %v474, %v563
      %v594 = vmax.f32 %v476, %v565
      %v595 = vmax.f32 %v480, %v569
      %v596 = vmax.f32 %v482, %v571
      %v597 = vmax.f32 %v486, %v575
      %v598 = vmax.f32 %v488, %v577
      %v599 = vmax.f32 %v492, %v581
      %v600 = vmax.f32 %v494, %v583
      %v601 = vmax.f32 %v585, %v593
      %v602 = vmax.f32 %v586, %v594
      %v603 = vmax.f32 %v587, %v595
      %v604 = vmax.f32 %v588, %v596
      %v605 = vmax.f32 %v589, %v597
      %v606 = vmax.f32 %v590, %v598
      %v607 = vmax.f32 %v591, %v599
      %v608 = vmax.f32 %v592, %v600
      %v609 = vld [vmem:[%s2] sm:$0xff]
      %v610 = vld [vmem:[%s2 + $0x8] sm:$0xff]
      %v611 = vld [vmem:[%s2 + $0x10] sm:$0xff]
      %v612 = vld [vmem:[%s2 + $0x18] sm:$0xff]
      %614 = vset.pattern.permute.xlu0 0
      %615 = vperm.xlu0 %614, %v609
      %v616 = vpop.permute.xlu0 %615
      %619 = vset.pattern.permute.xlu0 0
      %620 = vperm.xlu0 %619, %v610
      %v621 = vpop.permute.xlu0 %620
      %624 = vset.pattern.permute.xlu0 0
      %625 = vperm.xlu0 %624, %v611
      %v626 = vpop.permute.xlu0 %625
      %629 = vset.pattern.permute.xlu0 0
      %630 = vperm.xlu0 %629, %v612
      %v631 = vpop.permute.xlu0 %630
      %v633 = vadd.f32 %v601, %v616
      %v634 = vadd.f32 %v602, %v616
      %v635 = vadd.f32 %v603, %v621
      %v636 = vadd.f32 %v604, %v621
      %v637 = vadd.f32 %v605, %v626
      %v638 = vadd.f32 %v606, %v626
      %v639 = vadd.f32 %v607, %v631
      %v640 = vadd.f32 %v608, %v631
      %v641 = vmax.f32 %v633, 0.0
      %v642 = vmax.f32 %v634, 0.0
      %v643 = vmax.f32 %v635, 0.0
      %v644 = vmax.f32 %v636, 0.0
      %v645 = vmax.f32 %v637, 0.0
      %v646 = vmax.f32 %v638, 0.0
      %v647 = vmax.f32 %v639, 0.0
      %v648 = vmax.f32 %v640, 0.0
      %v649 = vpack.c.bf16 %v643, %v641
      %v650 = vpack.c.bf16 %v644, %v642
      %v651 = vpack.c.bf16 %v647, %v645
      %v652 = vpack.c.bf16 %v648, %v646
      %v657 = vunpack.c.l.b16 %v649
      %v658 = vunpack.c.l.b16 %v650
      %v659 = vunpack.c.h.b16 %v649
      %v660 = vunpack.c.h.b16 %v650
      %v661 = vunpack.c.l.b16 %v651
      %v662 = vunpack.c.l.b16 %v652
      %v663 = vunpack.c.h.b16 %v651
      %v664 = vunpack.c.h.b16 %v652
      %v665 = vpack.c.b16 %v658, %v657
      %v666 = vpack.c.b16 %v660, %v659
      %v667 = vpack.c.b16 %v662, %v661
      %v668 = vpack.c.b16 %v664, %v663
      %673 = vst [vmem:[%s170] sm:$0xff] %v665
      %674 = vst [vmem:[%s170 + $0x8] sm:$0xff] %v666
      %675 = vst [vmem:[%s170 + $0x10] sm:$0xff] %v667
      %676 = vst [vmem:[%s170 + $0x18] sm:$0xff] %v668
      %p677 = scmp.lt.s32.totalorder %s14, 1
      %s678 = scalar_select %p677, %s14, 1
      %s679 = smul.addr %s678, 8
      %s680 = smul.addr %s679, 4
      %s681 = scalar_lea.vmem %s3, %s680
      // Predicated region
      $region33: #{forward_pallas.3} parent=31 // pred_check
        %p682 = pneg %p100
      $region34: #{forward_pallas.3} parent=31 // pred_check_branch
        %684 = sbr.rel (%p682) target = $region36
      $region35: #{forward_pallas.3} parent=31 // pred_region
        _
      $region36: #{forward_pallas.3} parent=31 // pred_fallthru
        _
    $region32: #{forward_pallas.3} parent=5 // pred_fallthru
      _
    %p685 = scmp.le.s32.totalorder 2, %s9
    // Predicated region
    $region37: #{forward_pallas.3} parent=5 // pred_check
      %p686 = pneg %p685
    $region38: #{forward_pallas.3} parent=5 // pred_check_branch
      %688 = sbr.rel (%p686) target = $region40
    $region39: #{forward_pallas.3} parent=5 // pred_region
      %s689 = ssub.s32 %s9, 2
      // Predicated region
      $region41: #{forward_pallas.3} parent=39 // pred_check
        %p690 = pneg %p106
      $region42: #{forward_pallas.3} parent=39 // pred_check_branch
        %692 = sbr.rel (%p690) target = $region44
      $region43: #{forward_pallas.3} parent=39 // pred_region
        %p693 = scmp.lt.s32.totalorder %s15, 1
        %s694 = scalar_select %p693, %s15, 1
        %s695 = smul.addr %s694, 8
        %s696 = smul.addr %s695, 4
        %s697 = scalar_lea.vmem %s3, %s696
      $region44: #{forward_pallas.3} parent=39 // pred_fallthru
        _
    $region40: #{forward_pallas.3} parent=5 // pred_fallthru
      _
  $region6: #{forward_pallas.3} parent=0 // loop_footer
    %s13 = sadd.s32 1, %s9
  $region7: #{forward_pallas.3} parent=0 // loop_footer_branch
    %8 = sbr.rel target = $region3
  $region8: #{forward_pallas.3} parent=0 // loop_exit
    _

// kernel: forward_pallas.4
$region0: #{forward_pallas.4}
  #allocation0 [shape = 'u32[]', space=smem, size = 0x4, offset = 0x4, fixed_abs, tag = 'smem constant byte address 0x4 - core index']
  #allocation1 [shape = 'u32[144,128]{1,0:T(1,128)}', space=vmem, size = 0x12000, scoped, tag = 'internal scratch']
  %s0 = inlined_call_operand.vmem [shape: bf16[2,160,288], index: 0, kind: input, shape index: {}]
  %s1 = inlined_call_operand.vmem [shape: bf16[288,64], index: 1, kind: input, shape index: {}]
  %s2 = inlined_call_operand.vmem [shape: f32[1,64], index: 2, kind: input, shape index: {}]
  %s3 = inlined_call_operand.vmem [shape: bf16[2,36,64], index: 3, kind: output, shape index: {}]
  %s4 = sld [smem:[#allocation0]]
  $region45: #{forward_pallas.4} parent=0
    _
  %s6 = ssub.s32 1, %s4
  %s7 = scalar_select 0, %s6, %s4
  loop: start=0, step=1, limit=4
  $region2: #{forward_pallas.4} parent=0 // loop_pre_header
    _
  $region3: #{forward_pallas.4} parent=0 // loop_header
    %s9 = sphi 0, %s13
    %p10 = scmp.ge.s32.totalorder %s9, 4
    %s19 = sphi 0, %s21
    %s22 = sphi 0, %s19
    %s23 = sphi 0, %s22
    %s39 = sphi 0, %s23
    %s43 = sphi 0, %s43
    %s45 = sphi 0, %s43
    %s46 = sphi 0, %s45
    %s60 = sphi 0, %s46
    %s64 = sphi 0, %s64
    %s66 = sphi 0, %s64
    %s67 = sphi 0, %s66
    %s81 = sphi 0, %s67
    %s87 = sphi 0, %s89
    %s90 = sphi 0, %s87
    %s91 = sphi 0, %s90
    %s107 = sphi 0, %s91
  $region4: #{forward_pallas.4} parent=0 // loop_header_branch
    %12 = sbr.rel (%p10) target = $region8
  $region5: #{forward_pallas.4} parent=0 // loop_body
    %s14 = ssub.s32 %s9, 1
    %s15 = ssub.s32 %s9, 2
    %s16 = sadd.s32 %s9, 1
    %s17 = ssub.s32 %s9, %s16
    %p18 = scmp.eq.s32.totalorder %s17, 0
    %s20 = sadd.s32 %s19, 1
    %s21 = scalar_select %p18, %s19, %s20
    %p24 = pneg %p18
    %p25 = scmp.eq.s32.totalorder %s9, 1
    %p26 = por %p24, %p25
    %p27 = scmp.ne.s32.totalorder %s19, %s22
    %p28 = scmp.eq.s32.totalorder %s9, 0
    %p29 = por %p27, %p28
    %p30 = scmp.ne.s32.totalorder %s19, %s22
    %p31 = scmp.eq.s32.totalorder %s14, 1
    %p32 = por %p30, %p31
    %p33 = scmp.ne.s32.totalorder %s22, %s23
    %p34 = scmp.eq.s32.totalorder %s14, 0
    %p35 = por %p33, %p34
    %p36 = scmp.ne.s32.totalorder %s22, %s23
    %p37 = scmp.eq.s32.totalorder %s15, 1
    %p38 = por %p36, %p37
    %p40 = scmp.ne.s32.totalorder %s23, %s39
    %p41 = scmp.eq.s32.totalorder %s15, 0
    %p42 = por %p40, %p41
    %s44 = sadd.s32 %s43, 1
    %p47 = scmp.eq.s32.totalorder %s9, 1
    %p48 = scmp.ne.s32.totalorder %s43, %s45
    %p49 = scmp.eq.s32.totalorder %s9, 0
    %p50 = por %p48, %p49
    %p51 = scmp.ne.s32.totalorder %s43, %s45
    %p52 = scmp.eq.s32.totalorder %s14, 1
    %p53 = por %p51, %p52
    %p54 = scmp.ne.s32.totalorder %s45, %s46
    %p55 = scmp.eq.s32.totalorder %s14, 0
    %p56 = por %p54, %p55
    %p57 = scmp.ne.s32.totalorder %s45, %s46
    %p58 = scmp.eq.s32.totalorder %s15, 1
    %p59 = por %p57, %p58
    %p61 = scmp.ne.s32.totalorder %s46, %s60
    %p62 = scmp.eq.s32.totalorder %s15, 0
    %p63 = por %p61, %p62
    %s65 = sadd.s32 %s64, 1
    %p68 = scmp.eq.s32.totalorder %s9, 1
    %p69 = scmp.ne.s32.totalorder %s64, %s66
    %p70 = scmp.eq.s32.totalorder %s9, 0
    %p71 = por %p69, %p70
    %p72 = scmp.ne.s32.totalorder %s64, %s66
    %p73 = scmp.eq.s32.totalorder %s14, 1
    %p74 = por %p72, %p73
    %p75 = scmp.ne.s32.totalorder %s66, %s67
    %p76 = scmp.eq.s32.totalorder %s14, 0
    %p77 = por %p75, %p76
    %p78 = scmp.ne.s32.totalorder %s66, %s67
    %p79 = scmp.eq.s32.totalorder %s15, 1
    %p80 = por %p78, %p79
    %p82 = scmp.ne.s32.totalorder %s67, %s81
    %p83 = scmp.eq.s32.totalorder %s15, 0
    %p84 = por %p82, %p83
    %s85 = ssub.s32 %s9, %s16
    %p86 = scmp.eq.s32.totalorder %s85, 0
    %s88 = sadd.s32 %s87, 1
    %s89 = scalar_select %p86, %s87, %s88
    %p92 = pneg %p86
    %p93 = scmp.eq.s32.totalorder %s9, 1
    %p94 = por %p92, %p93
    %p95 = scmp.ne.s32.totalorder %s87, %s90
    %p96 = scmp.eq.s32.totalorder %s9, 0
    %p97 = por %p95, %p96
    %p98 = scmp.ne.s32.totalorder %s87, %s90
    %p99 = scmp.eq.s32.totalorder %s14, 1
    %p100 = por %p98, %p99
    %p101 = scmp.ne.s32.totalorder %s90, %s91
    %p102 = scmp.eq.s32.totalorder %s14, 0
    %p103 = por %p101, %p102
    %p104 = scmp.ne.s32.totalorder %s90, %s91
    %p105 = scmp.eq.s32.totalorder %s15, 1
    %p106 = por %p104, %p105
    %p108 = scmp.ne.s32.totalorder %s91, %s107
    %p109 = scmp.eq.s32.totalorder %s15, 0
    %p110 = por %p108, %p109
    %p111 = scmp.le.s32.totalorder 1, %s9
    %p112 = scmp.lt.s32.totalorder %s9, 3
    %p113 = pnand %p111, %p112
    %p114 = pneg %p113
    // Predicated region
    $region9: #{forward_pallas.4} parent=5 // pred_check
      _
    $region10: #{forward_pallas.4} parent=5 // pred_check_branch
      %116 = sbr.rel (%p113) target = $region12
    $region11: #{forward_pallas.4} parent=5 // pred_region
      %s117 = ssub.s32 %s9, 1
      // Predicated region
      $region13: #{forward_pallas.4} parent=11 // pred_check
        %p118 = pneg %p56
      $region14: #{forward_pallas.4} parent=11 // pred_check_branch
        %120 = sbr.rel (%p118) target = $region16
      $region15: #{forward_pallas.4} parent=11 // pred_region
        _
      $region16: #{forward_pallas.4} parent=11 // pred_fallthru
        _
      // Predicated region
      $region17: #{forward_pallas.4} parent=11 // pred_check
        %p121 = pneg %p77
      $region18: #{forward_pallas.4} parent=11 // pred_check_branch
        %123 = sbr.rel (%p121) target = $region20
      $region19: #{forward_pallas.4} parent=11 // pred_region
        _
      $region20: #{forward_pallas.4} parent=11 // pred_fallthru
        _
    $region12: #{forward_pallas.4} parent=5 // pred_fallthru
      _
    %p124 = scmp.lt.s32.totalorder %s9, 2
    // Predicated region
    $region21: #{forward_pallas.4} parent=5 // pred_check
      %p125 = pneg %p124
    $region22: #{forward_pallas.4} parent=5 // pred_check_branch
      %127 = sbr.rel (%p125) target = $region24
    $region23: #{forward_pallas.4} parent=5 // pred_region
      // Predicated region
      $region25: #{forward_pallas.4} parent=23 // pred_check
        %p128 = pneg %p29
      $region26: #{forward_pallas.4} parent=23 // pred_check_branch
        %130 = sbr.rel (%p128) target = $region28
      $region27: #{forward_pallas.4} parent=23 // pred_region
        %p131 = scmp.lt.s32.totalorder %s9, 1
        %s132 = scalar_select %p131, %s9, 1
        %s133 = smul.addr %s132, 60
        %s134 = smul.addr %s133, 4
        %s135 = scalar_lea.vmem %s0, %s134
      $region28: #{forward_pallas.4} parent=23 // pred_fallthru
        _
    $region24: #{forward_pallas.4} parent=5 // pred_fallthru
      _
    %p136 = scmp.le.s32.totalorder 1, %s9
    %p137 = scmp.lt.s32.totalorder %s9, 3
    %p138 = pnand %p136, %p137
    %p139 = pneg %p138
    // Predicated region
    $region29: #{forward_pallas.4} parent=5 // pred_check
      _
    $region30: #{forward_pallas.4} parent=5 // pred_check_branch
      %141 = sbr.rel (%p138) target = $region32
    $region31: #{forward_pallas.4} parent=5 // pred_region
      %s142 = ssub.s32 %s9, 1
      %p143 = scmp.lt.s32.totalorder %s14, 1
      %s144 = scalar_select %p143, %s14, 1
      %s145 = smul.addr %s144, 60
      %s146 = smul.addr %s145, 4
      %s147 = scalar_lea.vmem %s0, %s146
      %p148 = pneg %p35
      %p149 = pneg %p32
      %p150 = pneg %p56
      %p151 = pneg %p53
      %p152 = pneg %p77
      %p153 = pneg %p74
      %p154 = pneg %p103
      %p155 = pneg %p100
      %p156 = scmp.lt.s32.totalorder %s14, 1
      %s157 = scalar_select %p156, %s14, 1
      %s158 = smul.addr %s157, 5
      %s159 = smul.addr %s158, 4
      %s160 = scalar_lea.vmem %s3, %s159
      %p161 = scmp.lt.s32.totalorder %s14, 1
      %s162 = scalar_select %p161, %s14, 1
      %s163 = smul.addr %s162, 60
      %s164 = smul.addr %s163, 4
      %s165 = scalar_lea.vmem %s0, %s164
      %p166 = scmp.lt.s32.totalorder %s14, 1
      %s167 = scalar_select %p166, %s14, 1
      %s168 = smul.addr %s167, 5
      %s169 = smul.addr %s168, 4
      %s170 = scalar_lea.vmem %s3, %s169
      %v172 = vld [vmem:[%s165] sm:$0xff]
      %v173 = vld [vmem:[%s165 + $0x8] sm:$0xf]
      %v174 = vld [vmem:[%s165 + $0xc] sm:$0xff]
      %v175 = vld [vmem:[%s165 + $0x14] sm:$0xf]
      %v176 = vld [vmem:[%s165 + $0x18] sm:$0xff]
      %v177 = vld [vmem:[%s165 + $0x20] sm:$0xf]
      %v178 = vld [vmem:[%s165 + $0x24] sm:$0xff]
      %v179 = vld [vmem:[%s165 + $0x2c] sm:$0xf]
      %v180 = vld [vmem:[%s165 + $0x30] sm:$0xff]
      %v181 = vld [vmem:[%s165 + $0x38] sm:$0xf]
      %v182 = vld [vmem:[%s165 + $0x3c] sm:$0xff]
      %v183 = vld [vmem:[%s165 + $0x44] sm:$0xf]
      %v184 = vld [vmem:[%s165 + $0x48] sm:$0xff]
      %v185 = vld [vmem:[%s165 + $0x50] sm:$0xf]
      %v186 = vld [vmem:[%s165 + $0x54] sm:$0xff]
      %v187 = vld [vmem:[%s165 + $0x5c] sm:$0xf]
      %v188 = vld [vmem:[%s165 + $0x60] sm:$0xff]
      %v189 = vld [vmem:[%s165 + $0x68] sm:$0xf]
      %v190 = vld [vmem:[%s165 + $0x6c] sm:$0xff]
      %v191 = vld [vmem:[%s165 + $0x74] sm:$0xf]
      %v192 = vld [vmem:[%s165 + $0x78] sm:$0xff]
      %v193 = vld [vmem:[%s165 + $0x80] sm:$0xf]
      %v194 = vld [vmem:[%s165 + $0x84] sm:$0xff]
      %v195 = vld [vmem:[%s165 + $0x8c] sm:$0xf]
      %v196 = vld [vmem:[%s165 + $0x90] sm:$0xff]
      %v197 = vld [vmem:[%s165 + $0x98] sm:$0xf]
      %v198 = vld [vmem:[%s165 + $0x9c] sm:$0xff]
      %v199 = vld [vmem:[%s165 + $0xa4] sm:$0xf]
      %v200 = vld [vmem:[%s165 + $0xa8] sm:$0xff]
      %v201 = vld [vmem:[%s165 + $0xb0] sm:$0xf]
      %v202 = vld [vmem:[%s165 + $0xb4] sm:$0xff]
      %v203 = vld [vmem:[%s165 + $0xbc] sm:$0xf]
      %v204 = vld [vmem:[%s165 + $0xc0] sm:$0xff]
      %v205 = vld [vmem:[%s165 + $0xc8] sm:$0xf]
      %v206 = vld [vmem:[%s165 + $0xcc] sm:$0xff]
      %v207 = vld [vmem:[%s165 + $0xd4] sm:$0xf]
      %v208 = vld [vmem:[%s165 + $0xd8] sm:$0xff]
      %v209 = vld [vmem:[%s165 + $0xe0] sm:$0xf]
      %v210 = vld [vmem:[%s165 + $0xe4] sm:$0xff]
      %v211 = vld [vmem:[%s165 + $0xec] sm:$0xf]
      %v212 = vld [vmem:[%s1] sm:$0xf]
      %v213 = vld [vmem:[%s1 + $0x4] sm:$0xf]
      %v214 = vld [vmem:[%s1 + $0x8] sm:$0xf]
      %v215 = vld [vmem:[%s1 + $0xc] sm:$0xf]
      %v216 = vld [vmem:[%s1 + $0x10] sm:$0xf]
      %v217 = vld [vmem:[%s1 + $0x14] sm:$0xf]
      %v218 = vld [vmem:[%s1 + $0x18] sm:$0xf]
      %v219 = vld [vmem:[%s1 + $0x1c] sm:$0xf]
      %v220 = vld [vmem:[%s1 + $0x20] sm:$0xf]
      %v221 = vld [vmem:[%s1 + $0x24] sm:$0xf]
      %v222 = vld [vmem:[%s1 + $0x28] sm:$0xf]
      %v223 = vld [vmem:[%s1 + $0x2c] sm:$0xf]
      %v224 = vld [vmem:[%s1 + $0x30] sm:$0xf]
      %v225 = vld [vmem:[%s1 + $0x34] sm:$0xf]
      %v226 = vld [vmem:[%s1 + $0x38] sm:$0xf]
      %v227 = vld [vmem:[%s1 + $0x3c] sm:$0xf]
      %v228 = vld [vmem:[%s1 + $0x40] sm:$0xf]
      %v229 = vld [vmem:[%s1 + $0x44] sm:$0xf]
      %v230 = vld [vmem:[%s1 + $0x48] sm:$0xf]
      %v231 = vld [vmem:[%s1 + $0x4c] sm:$0xf]
      %v232 = vld [vmem:[%s1 + $0x50] sm:$0xf]
      %v233 = vld [vmem:[%s1 + $0x54] sm:$0xf]
      %v234 = vld [vmem:[%s1 + $0x58] sm:$0xf]
      %v235 = vld [vmem:[%s1 + $0x5c] sm:$0xf]
      %v236 = vld [vmem:[%s1 + $0x60] sm:$0xf]
      %v237 = vld [vmem:[%s1 + $0x64] sm:$0xf]
      %v238 = vld [vmem:[%s1 + $0x68] sm:$0xf]
      %v239 = vld [vmem:[%s1 + $0x6c] sm:$0xf]
      %v240 = vld [vmem:[%s1 + $0x70] sm:$0xf]
      %v241 = vld [vmem:[%s1 + $0x74] sm:$0xf]
      %v242 = vld [vmem:[%s1 + $0x78] sm:$0xf]
      %v243 = vld [vmem:[%s1 + $0x7c] sm:$0xf]
      %v244 = vld [vmem:[%s1 + $0x80] sm:$0xf]
      %v245 = vld [vmem:[%s1 + $0x84] sm:$0xf]
      %v246 = vld [vmem:[%s1 + $0x88] sm:$0xf]
      %v247 = vld [vmem:[%s1 + $0x8c] sm:$0xf]
      %v288 = vunpack.c.l.b16 %v172
      %v289 = vunpack.c.h.b16 %v172
      %v290 = vunpack.c.l.b16 %v173
      %v291 = vunpack.c.l.b16 %v174
      %v292 = vunpack.c.h.b16 %v174
      %v293 = vunpack.c.l.b16 %v175
      %v294 = vunpack.c.l.b16 %v176
      %v295 = vunpack.c.h.b16 %v176
      %v296 = vunpack.c.l.b16 %v177
      %v297 = vunpack.c.l.b16 %v178
      %v298 = vunpack.c.h.b16 %v178
      %v299 = vunpack.c.l.b16 %v179
      %v300 = vunpack.c.l.b16 %v180
      %v301 = vunpack.c.h.b16 %v180
      %v302 = vunpack.c.l.b16 %v181
      %v303 = vunpack.c.l.b16 %v182
      %v304 = vunpack.c.h.b16 %v182
      %v305 = vunpack.c.l.b16 %v183
      %v306 = vunpack.c.l.b16 %v184
      %v307 = vunpack.c.h.b16 %v184
      %v308 = vunpack.c.l.b16 %v185
      %v309 = vunpack.c.l.b16 %v186
      %v310 = vunpack.c.h.b16 %v186
      %v311 = vunpack.c.l.b16 %v187
      %v312 = vunpack.c.l.b16 %v188
      %v313 = vunpack.c.h.b16 %v188
      %v314 = vunpack.c.l.b16 %v189
      %v315 = vunpack.c.l.b16 %v190
      %v316 = vunpack.c.h.b16 %v190
      %v317 = vunpack.c.l.b16 %v191
      %v318 = vunpack.c.l.b16 %v192
      %v319 = vunpack.c.h.b16 %v192
      %v320 = vunpack.c.l.b16 %v193
      %v321 = vunpack.c.l.b16 %v194
      %v322 = vunpack.c.h.b16 %v194
      %v323 = vunpack.c.l.b16 %v195
      %v324 = vunpack.c.l.b16 %v196
      %v325 = vunpack.c.h.b16 %v196
      %v326 = vunpack.c.l.b16 %v197
      %v327 = vunpack.c.l.b16 %v198
      %v328 = vunpack.c.h.b16 %v198
      %v329 = vunpack.c.l.b16 %v199
      %v330 = vunpack.c.l.b16 %v200
      %v331 = vunpack.c.h.b16 %v200
      %v332 = vunpack.c.l.b16 %v201
      %v333 = vunpack.c.l.b16 %v202
      %v334 = vunpack.c.h.b16 %v202
      %v335 = vunpack.c.l.b16 %v203
      %v336 = vunpack.c.l.b16 %v204
      %v337 = vunpack.c.h.b16 %v204
      %v338 = vunpack.c.l.b16 %v205
      %v339 = vunpack.c.l.b16 %v206
      %v340 = vunpack.c.h.b16 %v206
      %v341 = vunpack.c.l.b16 %v207
      %v342 = vunpack.c.l.b16 %v208
      %v343 = vunpack.c.h.b16 %v208
      %v344 = vunpack.c.l.b16 %v209
      %v345 = vunpack.c.l.b16 %v210
      %v346 = vunpack.c.h.b16 %v210
      %v347 = vunpack.c.l.b16 %v211
      %v348 = vpack.c.b16 %v291, %v288
      %v349 = vpack.c.b16 %v292, %v289
      %v350 = vpack.c.b16 %v293, %v290
      %v351 = vpack.c.b16 %v297, %v294
      %v352 = vpack.c.b16 %v298, %v295
      %v353 = vpack.c.b16 %v299, %v296
      %v354 = vpack.c.b16 %v303, %v300
      %v355 = vpack.c.b16 %v304, %v301
      %v356 = vpack.c.b16 %v305, %v302
      %v357 = vpack.c.b16 %v309, %v306
      %v358 = vpack.c.b16 %v310, %v307
      %v359 = vpack.c.b16 %v311, %v308
      %v360 = vpack.c.b16 %v315, %v312
      %v361 = vpack.c.b16 %v316, %v313
      %v362 = vpack.c.b16 %v317, %v314
      %v363 = vpack.c.b16 %v321, %v318
      %v364 = vpack.c.b16 %v322, %v319
      %v365 = vpack.c.b16 %v323, %v320
      %v366 = vpack.c.b16 %v327, %v324
      %v367 = vpack.c.b16 %v328, %v325
      %v368 = vpack.c.b16 %v329, %v326
      %v369 = vpack.c.b16 %v333, %v330
      %v370 = vpack.c.b16 %v334, %v331
      %v371 = vpack.c.b16 %v335, %v332
      %v372 = vpack.c.b16 %v339, %v336
      %v373 = vpack.c.b16 %v340, %v337
      %v374 = vpack.c.b16 %v341, %v338
      %v375 = vpack.c.b16 %v345, %v342
      %v376 = vpack.c.b16 %v346, %v343
      %v377 = vpack.c.b16 %v347, %v344
      %v434 = vunpack.c.l.b16 %v212
      %v435 = vunpack.c.l.b16 %v213
      %v436 = vunpack.c.l.b16 %v214
      %v437 = vunpack.c.l.b16 %v215
      %v438 = vunpack.c.l.b16 %v216
      %v439 = vunpack.c.l.b16 %v217
      %v440 = vunpack.c.l.b16 %v218
      %v441 = vunpack.c.l.b16 %v219
      %v442 = vunpack.c.l.b16 %v220
      %v443 = vunpack.c.l.b16 %v221
      %v444 = vunpack.c.l.b16 %v222
      %v445 = vunpack.c.l.b16 %v223
      %v446 = vunpack.c.l.b16 %v224
      %v447 = vunpack.c.l.b16 %v225
      %v448 = vunpack.c.l.b16 %v226
      %v449 = vunpack.c.l.b16 %v227
      %v450 = vunpack.c.l.b16 %v228
      %v451 = vunpack.c.l.b16 %v229
      %v452 = vunpack.c.l.b16 %v230
      %v453 = vunpack.c.l.b16 %v231
      %v454 = vunpack.c.l.b16 %v232
      %v455 = vunpack.c.l.b16 %v233
      %v456 = vunpack.c.l.b16 %v234
      %v457 = vunpack.c.l.b16 %v235
      %v458 = vunpack.c.l.b16 %v236
      %v459 = vunpack.c.l.b16 %v237
      %v460 = vunpack.c.l.b16 %v238
      %v461 = vunpack.c.l.b16 %v239
      %v462 = vunpack.c.l.b16 %v240
      %v463 = vunpack.c.l.b16 %v241
      %v464 = vunpack.c.l.b16 %v242
      %v465 = vunpack.c.l.b16 %v243
      %v466 = vunpack.c.l.b16 %v244
      %v467 = vunpack.c.l.b16 %v245
      %v468 = vunpack.c.l.b16 %v246
      %v469 = vunpack.c.l.b16 %v247
      %v470 = vpack.c.b16 %v435, %v434
      %v471 = vpack.c.b16 %v437, %v436
      %v472 = vpack.c.b16 %v439, %v438
      %v473 = vpack.c.b16 %v441, %v440
      %v474 = vpack.c.b16 %v443, %v442
      %v475 = vpack.c.b16 %v445, %v444
      %v476 = vpack.c.b16 %v447, %v446
      %v477 = vpack.c.b16 %v449, %v448
      %v478 = vpack.c.b16 %v451, %v450
      %v479 = vpack.c.b16 %v453, %v452
      %v480 = vpack.c.b16 %v455, %v454
      %v481 = vpack.c.b16 %v457, %v456
      %v482 = vpack.c.b16 %v459, %v458
      %v483 = vpack.c.b16 %v461, %v460
      %v484 = vpack.c.b16 %v463, %v462
      %v485 = vpack.c.b16 %v465, %v464
      %v486 = vpack.c.b16 %v467, %v466
      %v487 = vpack.c.b16 %v469, %v468
      %vm506 = vcmask 261120
      %v508 = vsel %vm506, %v350, 0
      %v511 = vsel %vm506, %v353, 0
      %v514 = vsel %vm506, %v356, 0
      %v517 = vsel %vm506, %v359, 0
      %v520 = vsel %vm506, %v362, 0
      %v523 = vsel %vm506, %v365, 0
      %v526 = vsel %vm506, %v368, 0
      %v529 = vsel %vm506, %v371, 0
      %v532 = vsel %vm506, %v374, 0
      %v535 = vsel %vm506, %v377, 0
      %537 = vmatprep.subr.bf16.mxu0 0
      %538 = vmatpush1.bf16.msra.mxu0 %v477
      %539 = vmatprep.subr.bf16.mxu0 0
      %540 = vmatpush1.bf16.msra.mxu0 %v476
      %541 = vmatprep.subr.bf16.mxu0 0
      %542 = vmatpush1.bf16.msra.mxu0 %v475
      %543 = vmatprep.subr.bf16.mxu0 0
      %544 = vmatpush1.bf16.msra.mxu0 %v474
      %545 = vmatprep.subr.bf16.mxu0 0
      %546 = vmatpush1.bf16.msra.mxu0 %v473
      %547 = vmatprep.subr.bf16.mxu0 0
      %548 = vmatpush1.bf16.msra.mxu0 %v472
      %549 = vmatprep.subr.bf16.mxu0 0
      %550 = vmatpush1.bf16.msra.mxu0 %v471
      %551 = vmatprep.subr.bf16.mxu0 0
      %552 = vmatpush1.bf16.msra.mxu0 %v470
      %553 = vmatprep.subr.bf16.mxu0 0
      %554 = vmatpush2.bf16.msra.mxu0 %v485
      %555 = vmatprep.subr.bf16.mxu0 0
      %556 = vmatpush2.bf16.msra.mxu0 %v484
      %557 = vmatprep.subr.bf16.mxu0 0
      %558 = vmatpush2.bf16.msra.mxu0 %v483
      %559 = vmatprep.subr.bf16.mxu0 0
      %560 = vmatpush2.bf16.msra.mxu0 %v482
      %561 = vmatprep.subr.bf16.mxu0 0
      %562 = vmatpush2.bf16.msra.mxu0 %v481
      %563 = vmatprep.subr.bf16.mxu0 0
      %564 = vmatpush2.bf16.msra.mxu0 %v480
      %565 = vmatprep.subr.bf16.mxu0 0
      %566 = vmatpush2.bf16.msra.mxu0 %v479
      %567 = vmatprep.subr.bf16.mxu0 0
      %568 = vmatpush2.bf16.msra.mxu0 %v478
      %569 = vmatprep.mubr.bf16.mxu0 %v349
      %570 = vmatmul.mubr.bf16.gmra.mxu0 %v348
      %v571 = vpop.f32.mrf.mxu0
      %v572 = vadd.f32 0.0, %v571
      %v573 = vpop.f32.mrf.mxu0
      %v574 = vpop.f32.mrf.mxu0
      %v575 = vadd.f32 0.0, %v574
      %v576 = vpop.f32.mrf.mxu0
      %577 = vmatprep.mubr.bf16.mxu0 %v352
      %578 = vmatmul.mubr.bf16.gmra.mxu0 %v351
      %v579 = vpop.f32.mrf.mxu0
      %v580 = vadd.f32 0.0, %v579
      %v581 = vpop.f32.mrf.mxu0
      %v582 = vpop.f32.mrf.mxu0
      %v583 = vadd.f32 0.0, %v582
      %v584 = vpop.f32.mrf.mxu0
      %585 = vmatprep.mubr.bf16.mxu0 %v355
      %586 = vmatmul.mubr.bf16.gmra.mxu0 %v354
      %v587 = vpop.f32.mrf.mxu0
      %v588 = vadd.f32 0.0, %v587
      %v589 = vpop.f32.mrf.mxu0
      %v590 = vpop.f32.mrf.mxu0
      %v591 = vadd.f32 0.0, %v590
      %v592 = vpop.f32.mrf.mxu0
      %593 = vmatprep.mubr.bf16.mxu0 %v358
      %594 = vmatmul.mubr.bf16.gmra.mxu0 %v357
      %v595 = vpop.f32.mrf.mxu0
      %v596 = vadd.f32 0.0, %v595
      %v597 = vpop.f32.mrf.mxu0
      %v598 = vpop.f32.mrf.mxu0
      %v599 = vadd.f32 0.0, %v598
      %v600 = vpop.f32.mrf.mxu0
      %601 = vmatprep.mubr.bf16.mxu0 %v361
      %602 = vmatmul.mubr.bf16.gmra.mxu0 %v360
      %v603 = vpop.f32.mrf.mxu0
      %v604 = vadd.f32 0.0, %v603
      %v605 = vpop.f32.mrf.mxu0
      %v606 = vpop.f32.mrf.mxu0
      %v607 = vadd.f32 0.0, %v606
      %v608 = vpop.f32.mrf.mxu0
      %609 = vmatprep.mubr.bf16.mxu0 %v364
      %610 = vmatmul.mubr.bf16.gmra.mxu0 %v363
      %v611 = vpop.f32.mrf.mxu0
      %v612 = vadd.f32 0.0, %v611
      %v613 = vpop.f32.mrf.mxu0
      %v614 = vpop.f32.mrf.mxu0
      %v615 = vadd.f32 0.0, %v614
      %v616 = vpop.f32.mrf.mxu0
      %617 = vmatprep.mubr.bf16.mxu0 %v367
      %618 = vmatmul.mubr.bf16.gmra.mxu0 %v366
      %v619 = vpop.f32.mrf.mxu0
      %v620 = vadd.f32 0.0, %v619
      %v621 = vpop.f32.mrf.mxu0
      %v622 = vpop.f32.mrf.mxu0
      %v623 = vadd.f32 0.0, %v622
      %v624 = vpop.f32.mrf.mxu0
      %625 = vmatprep.mubr.bf16.mxu0 %v370
      %626 = vmatmul.mubr.bf16.gmra.mxu0 %v369
      %v627 = vpop.f32.mrf.mxu0
      %v628 = vadd.f32 0.0, %v627
      %v629 = vpop.f32.mrf.mxu0
      %v630 = vpop.f32.mrf.mxu0
      %v631 = vadd.f32 0.0, %v630
      %v632 = vpop.f32.mrf.mxu0
      %633 = vmatprep.mubr.bf16.mxu0 %v373
      %634 = vmatmul.mubr.bf16.gmra.mxu0 %v372
      %v635 = vpop.f32.mrf.mxu0
      %v636 = vadd.f32 0.0, %v635
      %v637 = vpop.f32.mrf.mxu0
      %v638 = vpop.f32.mrf.mxu0
      %v639 = vadd.f32 0.0, %v638
      %v640 = vpop.f32.mrf.mxu0
      %641 = vmatprep.mubr.bf16.mxu0 %v376
      %642 = vmatmul.mubr.bf16.gmra.mxu0 %v375
      %v643 = vpop.f32.mrf.mxu0
      %v644 = vadd.f32 0.0, %v643
      %v645 = vpop.f32.mrf.mxu0
      %v646 = vpop.f32.mrf.mxu0
      %v647 = vadd.f32 0.0, %v646
      %v648 = vpop.f32.mrf.mxu0
      %649 = vdwg.mxu0
      %650 = vmatprep.subr.bf16.mxu0 0
      %651 = vmatpush1.bf16.msra.mxu0 0
      %652 = vmatprep.subr.bf16.mxu0 0
      %653 = vmatpush1.bf16.msra.mxu0 0
      %654 = vmatprep.subr.bf16.mxu0 0
      %655 = vmatpush1.bf16.msra.mxu0 0
      %656 = vmatprep.subr.bf16.mxu0 0
      %657 = vmatpush1.bf16.msra.mxu0 0
      %658 = vmatprep.subr.bf16.mxu0 0
      %659 = vmatpush1.bf16.msra.mxu0 0
      %660 = vmatprep.subr.bf16.mxu0 0
      %661 = vmatpush1.bf16.msra.mxu0 0
      %662 = vmatprep.subr.bf16.mxu0 0
      %663 = vmatpush1.bf16.msra.mxu0 %v487
      %664 = vmatprep.subr.bf16.mxu0 0
      %665 = vmatpush1.bf16.msra.mxu0 %v486
      %666 = vmatprep.subr.bf16.mxu0 0
      %667 = vmatpush2.bf16.msra.mxu0 0
      %668 = vmatprep.subr.bf16.mxu0 0
      %669 = vmatpush2.bf16.msra.mxu0 0
      %670 = vmatprep.subr.bf16.mxu0 0
      %671 = vmatpush2.bf16.msra.mxu0 0
      %672 = vmatprep.subr.bf16.mxu0 0
      %673 = vmatpush2.bf16.msra.mxu0 0
      %674 = vmatprep.subr.bf16.mxu0 0
      %675 = vmatpush2.bf16.msra.mxu0 0
      %676 = vmatprep.subr.bf16.mxu0 0
      %677 = vmatpush2.bf16.msra.mxu0 0
      %678 = vmatprep.subr.bf16.mxu0 0
      %679 = vmatpush2.bf16.msra.mxu0 0
      %680 = vmatprep.subr.bf16.mxu0 0
      %681 = vmatpush2.bf16.msra.mxu0 0
      %682 = vmatprep.mubr.bf16.mxu0 0
      %683 = vmatmul.mubr.bf16.gmra.mxu0 %v508
      %v684 = vpop.f32.mrf.mxu0
      %v685 = vadd.f32 %v572, %v684
      %v686 = vpop.f32.mrf.mxu0
      %v687 = vpop.f32.mrf.mxu0
      %v688 = vadd.f32 %v575, %v687
      %v689 = vpop.f32.mrf.mxu0
      %690 = vmatprep.mubr.bf16.mxu0 0
      %691 = vmatmul.mubr.bf16.gmra.mxu0 %v511
      %v692 = vpop.f32.mrf.mxu0
      %v693 = vadd.f32 %v580, %v692
      %v694 = vpop.f32.mrf.mxu0
      %v695 = vpop.f32.mrf.mxu0
      %v696 = vadd.f32 %v583, %v695
      %v697 = vpop.f32.mrf.mxu0
      %698 = vmatprep.mubr.bf16.mxu0 0
      %699 = vmatmul.mubr.bf16.gmra.mxu0 %v514
      %v700 = vpop.f32.mrf.mxu0
      %v701 = vadd.f32 %v588, %v700
      %v702 = vpop.f32.mrf.mxu0
      %v703 = vpop.f32.mrf.mxu0
      %v704 = vadd.f32 %v591, %v703
      %v705 = vpop.f32.mrf.mxu0
      %706 = vmatprep.mubr.bf16.mxu0 0
      %707 = vmatmul.mubr.bf16.gmra.mxu0 %v517
      %v708 = vpop.f32.mrf.mxu0
      %v709 = vadd.f32 %v596, %v708
      %v710 = vpop.f32.mrf.mxu0
      %v711 = vpop.f32.mrf.mxu0
      %v712 = vadd.f32 %v599, %v711
      %v713 = vpop.f32.mrf.mxu0
      %714 = vmatprep.mubr.bf16.mxu0 0
      %715 = vmatmul.mubr.bf16.gmra.mxu0 %v520
      %v716 = vpop.f32.mrf.mxu0
      %v717 = vadd.f32 %v604, %v716
      %v718 = vpop.f32.mrf.mxu0
      %v719 = vpop.f32.mrf.mxu0
      %v720 = vadd.f32 %v607, %v719
      %v721 = vpop.f32.mrf.mxu0
      %722 = vmatprep.mubr.bf16.mxu0 0
      %723 = vmatmul.mubr.bf16.gmra.mxu0 %v523
      %v724 = vpop.f32.mrf.mxu0
      %v725 = vadd.f32 %v612, %v724
      %v726 = vpop.f32.mrf.mxu0
      %v727 = vpop.f32.mrf.mxu0
      %v728 = vadd.f32 %v615, %v727
      %v729 = vpop.f32.mrf.mxu0
      %730 = vmatprep.mubr.bf16.mxu0 0
      %731 = vmatmul.mubr.bf16.gmra.mxu0 %v526
      %v732 = vpop.f32.mrf.mxu0
      %v733 = vadd.f32 %v620, %v732
      %v734 = vpop.f32.mrf.mxu0
      %v735 = vpop.f32.mrf.mxu0
      %v736 = vadd.f32 %v623, %v735
      %v737 = vpop.f32.mrf.mxu0
      %738 = vmatprep.mubr.bf16.mxu0 0
      %739 = vmatmul.mubr.bf16.gmra.mxu0 %v529
      %v740 = vpop.f32.mrf.mxu0
      %v741 = vadd.f32 %v628, %v740
      %v742 = vpop.f32.mrf.mxu0
      %v743 = vpop.f32.mrf.mxu0
      %v744 = vadd.f32 %v631, %v743
      %v745 = vpop.f32.mrf.mxu0
      %746 = vmatprep.mubr.bf16.mxu0 0
      %747 = vmatmul.mubr.bf16.gmra.mxu0 %v532
      %v748 = vpop.f32.mrf.mxu0
      %v749 = vadd.f32 %v636, %v748
      %v750 = vpop.f32.mrf.mxu0
      %v751 = vpop.f32.mrf.mxu0
      %v752 = vadd.f32 %v639, %v751
      %v753 = vpop.f32.mrf.mxu0
      %754 = vmatprep.mubr.bf16.mxu0 0
      %755 = vmatmul.mubr.bf16.gmra.mxu0 %v535
      %v756 = vpop.f32.mrf.mxu0
      %v757 = vadd.f32 %v644, %v756
      %v758 = vpop.f32.mrf.mxu0
      %v759 = vpop.f32.mrf.mxu0
      %v760 = vadd.f32 %v647, %v759
      %v761 = vpop.f32.mrf.mxu0
      %762 = vdwg.mxu0
      %v763 = vmax.f32 %v685, %v704
      %v764 = vmax.f32 %v688, %v709
      %v765 = vmax.f32 %v693, %v712
      %v766 = vmax.f32 %v696, %v717
      %v767 = vmax.f32 %v701, %v720
      %v768 = vmax.f32 %v725, %v744
      %v769 = vmax.f32 %v728, %v749
      %v770 = vmax.f32 %v733, %v752
      %v771 = vmax.f32 %v736, %v757
      %v772 = vmax.f32 %v741, %v760
      %v773 = vmax.f32 %v763, %v768
      %v774 = vmax.f32 %v764, %v769
      %v775 = vmax.f32 %v765, %v770
      %v776 = vmax.f32 %v766, %v771
      %v777 = vmax.f32 %v767, %v772
      %v778 = vld [vmem:[%s2] sm:$0x1]
      %v780 = vlaneseq
      %v781 = vshrl.u32 %v780, 7
      %v782 = vsub.s32 0, %v781
      %v783 = vrot.slane %v778, %v782
      %v785 = vadd.f32 %v773, %v783
      %v786 = vadd.f32 %v774, %v783
      %v787 = vadd.f32 %v775, %v783
      %v788 = vadd.f32 %v776, %v783
      %v789 = vadd.f32 %v777, %v783
      %v790 = vmax.f32 %v785, 0.0
      %v791 = vmax.f32 %v786, 0.0
      %v792 = vmax.f32 %v787, 0.0
      %v793 = vmax.f32 %v788, 0.0
      %v794 = vmax.f32 %v789, 0.0
      %v795 = vpack.c.bf16 %v791, %v790
      %v796 = vpack.c.bf16 %v793, %v792
      %v797 = vpack.c.bf16 %v794, %v794
      %v801 = vunpack.c.l.b16 %v795
      %v802 = vunpack.c.h.b16 %v795
      %v803 = vunpack.c.l.b16 %v796
      %v804 = vunpack.c.h.b16 %v796
      %v805 = vunpack.c.l.b16 %v797
      %v806 = vpack.c.b16 %v801, %v801
      %v807 = vpack.c.b16 %v802, %v802
      %v808 = vpack.c.b16 %v803, %v803
      %v809 = vpack.c.b16 %v804, %v804
      %v810 = vpack.c.b16 %v805, %v805
      %vm816 = vcmask 519168
      %817 = vst.msk [vmem:[%s170] sm:$0xf] %vm816, %v806
      %818 = vst.msk [vmem:[%s170 + $0x4] sm:$0xf] %vm816, %v807
      %819 = vst.msk [vmem:[%s170 + $0x8] sm:$0xf] %vm816, %v808
      %820 = vst.msk [vmem:[%s170 + $0xc] sm:$0xf] %vm816, %v809
      %vm821 = vcmask 517120
      %822 = vst.msk [vmem:[%s170 + $0x10] sm:$0x3] %vm821, %v810
      %p823 = scmp.lt.s32.totalorder %s14, 1
      %s824 = scalar_select %p823, %s14, 1
      %s825 = smul.addr %s824, 5
      %s826 = smul.addr %s825, 4
      %s827 = scalar_lea.vmem %s3, %s826
      // Predicated region
      $region33: #{forward_pallas.4} parent=31 // pred_check
        %p828 = pneg %p100
      $region34: #{forward_pallas.4} parent=31 // pred_check_branch
        %830 = sbr.rel (%p828) target = $region36
      $region35: #{forward_pallas.4} parent=31 // pred_region
        _
      $region36: #{forward_pallas.4} parent=31 // pred_fallthru
        _
    $region32: #{forward_pallas.4} parent=5 // pred_fallthru
      _
    %p831 = scmp.le.s32.totalorder 2, %s9
    // Predicated region
    $region37: #{forward_pallas.4} parent=5 // pred_check
      %p832 = pneg %p831
    $region38: #{forward_pallas.4} parent=5 // pred_check_branch
      %834 = sbr.rel (%p832) target = $region40
    $region39: #{forward_pallas.4} parent=5 // pred_region
      %s835 = ssub.s32 %s9, 2
      // Predicated region
      $region41: #{forward_pallas.4} parent=39 // pred_check
        %p836 = pneg %p106
      $region42: #{forward_pallas.4} parent=39 // pred_check_branch
        %838 = sbr.rel (%p836) target = $region44
      $region43: #{forward_pallas.4} parent=39 // pred_region
        %p839 = scmp.lt.s32.totalorder %s15, 1
        %s840 = scalar_select %p839, %s15, 1
        %s841 = smul.addr %s840, 5
        %s842 = smul.addr %s841, 4
        %s843 = scalar_lea.vmem %s3, %s842
      $region44: #{forward_pallas.4} parent=39 // pred_fallthru
        _
    $region40: #{forward_pallas.4} parent=5 // pred_fallthru
      _
  $region6: #{forward_pallas.4} parent=0 // loop_footer
    %s13 = sadd.s32 1, %s9
  $region7: #{forward_pallas.4} parent=0 // loop_footer_branch
    %8 = sbr.rel target = $region3
  $region8: #{forward_pallas.4} parent=0 // loop_exit
    _

// kernel: forward_pallas.5
$region0: #{forward_pallas.5}
  #allocation0 [shape = 'u32[]', space=smem, size = 0x4, offset = 0x4, fixed_abs, tag = 'smem constant byte address 0x4 - core index']
  #allocation1 [shape = 'u32[144,128]{1,0:T(1,128)}', space=vmem, size = 0x12000, scoped, tag = 'internal scratch']
  %s0 = inlined_call_operand.vmem [shape: bf16[2,1,2304], index: 0, kind: input, shape index: {}]
  %s1 = inlined_call_operand.vmem [shape: bf16[2304,640], index: 1, kind: input, shape index: {}]
  %s2 = inlined_call_operand.vmem [shape: f32[1,640], index: 2, kind: input, shape index: {}]
  %s3 = inlined_call_operand.vmem [shape: bf16[640,128], index: 3, kind: input, shape index: {}]
  %s4 = inlined_call_operand.vmem [shape: f32[1,128], index: 4, kind: input, shape index: {}]
  %s5 = inlined_call_operand.vmem [shape: bf16[128,128], index: 5, kind: input, shape index: {}]
  %s6 = inlined_call_operand.vmem [shape: f32[1,128], index: 6, kind: input, shape index: {}]
  %s7 = inlined_call_operand.hbm [shape: f32[2,1,128], index: 7, kind: output, shape index: {}]
  %s8 = sld [smem:[#allocation0]]
  $region61: #{forward_pallas.5} parent=0
    _
  %s10 = ssub.s32 1, %s8
  %s11 = scalar_select 0, %s10, %s8
  $region1: #{forward_pallas.5} parent=0
    #allocation2 [shape = 'u8[1024]{0}', space=vmem, size = 0x400, scoped, tag = 'output window, operand 0']
    #allocation3 [shape = 's32[2]{0}', space=sflag, size = 0x8, scoped, tag = 'scoped memory for forward_pallas.5']
    %12 = vsyncpa [#allocation3], 0
    %s13 = scalar_lea.sflag [#allocation3], 1
    %14 = vsyncpa %s13, 0
    loop: start=0, step=1, limit=4
    $region2: #{forward_pallas.5} parent=1 // loop_pre_header
      _
    $region3: #{forward_pallas.5} parent=1 // loop_header
      %s16 = sphi 0, %s20
      %p17 = scmp.ge.s32.totalorder %s16, 4
      %s26 = sphi 0, %s28
      %s29 = sphi 0, %s26
      %s30 = sphi 0, %s29
      %s46 = sphi 0, %s30
      %s50 = sphi 0, %s50
      %s52 = sphi 0, %s50
      %s53 = sphi 0, %s52
      %s67 = sphi 0, %s53
      %s71 = sphi 0, %s71
      %s73 = sphi 0, %s71
      %s74 = sphi 0, %s73
      %s88 = sphi 0, %s74
      %s92 = sphi 0, %s92
      %s94 = sphi 0, %s92
      %s95 = sphi 0, %s94
      %s109 = sphi 0, %s95
      %s113 = sphi 0, %s113
      %s115 = sphi 0, %s113
      %s116 = sphi 0, %s115
      %s130 = sphi 0, %s116
      %s134 = sphi 0, %s134
      %s136 = sphi 0, %s134
      %s137 = sphi 0, %s136
      %s151 = sphi 0, %s137
      %s155 = sphi 0, %s155
      %s157 = sphi 0, %s155
      %s158 = sphi 0, %s157
      %s172 = sphi 0, %s158
      %s178 = sphi 0, %s180
      %s181 = sphi 0, %s178
      %s182 = sphi 0, %s181
      %s198 = sphi 0, %s182
    $region4: #{forward_pallas.5} parent=1 // loop_header_branch
      %19 = sbr.rel (%p17) target = $region8
    $region5: #{forward_pallas.5} parent=1 // loop_body
      %s21 = ssub.s32 %s16, 1
      %s22 = ssub.s32 %s16, 2
      %s23 = sadd.s32 %s16, 1
      %s24 = ssub.s32 %s16, %s23
      %p25 = scmp.eq.s32.totalorder %s24, 0
      %s27 = sadd.s32 %s26, 1
      %s28 = scalar_select %p25, %s26, %s27
      %p31 = pneg %p25
      %p32 = scmp.eq.s32.totalorder %s16, 1
      %p33 = por %p31, %p32
      %p34 = scmp.ne.s32.totalorder %s26, %s29
      %p35 = scmp.eq.s32.totalorder %s16, 0
      %p36 = por %p34, %p35
      %p37 = scmp.ne.s32.totalorder %s26, %s29
      %p38 = scmp.eq.s32.totalorder %s21, 1
      %p39 = por %p37, %p38
      %p40 = scmp.ne.s32.totalorder %s29, %s30
      %p41 = scmp.eq.s32.totalorder %s21, 0
      %p42 = por %p40, %p41
      %p43 = scmp.ne.s32.totalorder %s29, %s30
      %p44 = scmp.eq.s32.totalorder %s22, 1
      %p45 = por %p43, %p44
      %p47 = scmp.ne.s32.totalorder %s30, %s46
      %p48 = scmp.eq.s32.totalorder %s22, 0
      %p49 = por %p47, %p48
      %s51 = sadd.s32 %s50, 1
      %p54 = scmp.eq.s32.totalorder %s16, 1
      %p55 = scmp.ne.s32.totalorder %s50, %s52
      %p56 = scmp.eq.s32.totalorder %s16, 0
      %p57 = por %p55, %p56
      %p58 = scmp.ne.s32.totalorder %s50, %s52
      %p59 = scmp.eq.s32.totalorder %s21, 1
      %p60 = por %p58, %p59
      %p61 = scmp.ne.s32.totalorder %s52, %s53
      %p62 = scmp.eq.s32.totalorder %s21, 0
      %p63 = por %p61, %p62
      %p64 = scmp.ne.s32.totalorder %s52, %s53
      %p65 = scmp.eq.s32.totalorder %s22, 1
      %p66 = por %p64, %p65
      %p68 = scmp.ne.s32.totalorder %s53, %s67
      %p69 = scmp.eq.s32.totalorder %s22, 0
      %p70 = por %p68, %p69
      %s72 = sadd.s32 %s71, 1
      %p75 = scmp.eq.s32.totalorder %s16, 1
      %p76 = scmp.ne.s32.totalorder %s71, %s73
      %p77 = scmp.eq.s32.totalorder %s16, 0
      %p78 = por %p76, %p77
      %p79 = scmp.ne.s32.totalorder %s71, %s73
      %p80 = scmp.eq.s32.totalorder %s21, 1
      %p81 = por %p79, %p80
      %p82 = scmp.ne.s32.totalorder %s73, %s74
      %p83 = scmp.eq.s32.totalorder %s21, 0
      %p84 = por %p82, %p83
      %p85 = scmp.ne.s32.totalorder %s73, %s74
      %p86 = scmp.eq.s32.totalorder %s22, 1
      %p87 = por %p85, %p86
      %p89 = scmp.ne.s32.totalorder %s74, %s88
      %p90 = scmp.eq.s32.totalorder %s22, 0
      %p91 = por %p89, %p90
      %s93 = sadd.s32 %s92, 1
      %p96 = scmp.eq.s32.totalorder %s16, 1
      %p97 = scmp.ne.s32.totalorder %s92, %s94
      %p98 = scmp.eq.s32.totalorder %s16, 0
      %p99 = por %p97, %p98
      %p100 = scmp.ne.s32.totalorder %s92, %s94
      %p101 = scmp.eq.s32.totalorder %s21, 1
      %p102 = por %p100, %p101
      %p103 = scmp.ne.s32.totalorder %s94, %s95
      %p104 = scmp.eq.s32.totalorder %s21, 0
      %p105 = por %p103, %p104
      %p106 = scmp.ne.s32.totalorder %s94, %s95
      %p107 = scmp.eq.s32.totalorder %s22, 1
      %p108 = por %p106, %p107
      %p110 = scmp.ne.s32.totalorder %s95, %s109
      %p111 = scmp.eq.s32.totalorder %s22, 0
      %p112 = por %p110, %p111
      %s114 = sadd.s32 %s113, 1
      %p117 = scmp.eq.s32.totalorder %s16, 1
      %p118 = scmp.ne.s32.totalorder %s113, %s115
      %p119 = scmp.eq.s32.totalorder %s16, 0
      %p120 = por %p118, %p119
      %p121 = scmp.ne.s32.totalorder %s113, %s115
      %p122 = scmp.eq.s32.totalorder %s21, 1
      %p123 = por %p121, %p122
      %p124 = scmp.ne.s32.totalorder %s115, %s116
      %p125 = scmp.eq.s32.totalorder %s21, 0
      %p126 = por %p124, %p125
      %p127 = scmp.ne.s32.totalorder %s115, %s116
      %p128 = scmp.eq.s32.totalorder %s22, 1
      %p129 = por %p127, %p128
      %p131 = scmp.ne.s32.totalorder %s116, %s130
      %p132 = scmp.eq.s32.totalorder %s22, 0
      %p133 = por %p131, %p132
      %s135 = sadd.s32 %s134, 1
      %p138 = scmp.eq.s32.totalorder %s16, 1
      %p139 = scmp.ne.s32.totalorder %s134, %s136
      %p140 = scmp.eq.s32.totalorder %s16, 0
      %p141 = por %p139, %p140
      %p142 = scmp.ne.s32.totalorder %s134, %s136
      %p143 = scmp.eq.s32.totalorder %s21, 1
      %p144 = por %p142, %p143
      %p145 = scmp.ne.s32.totalorder %s136, %s137
      %p146 = scmp.eq.s32.totalorder %s21, 0
      %p147 = por %p145, %p146
      %p148 = scmp.ne.s32.totalorder %s136, %s137
      %p149 = scmp.eq.s32.totalorder %s22, 1
      %p150 = por %p148, %p149
      %p152 = scmp.ne.s32.totalorder %s137, %s151
      %p153 = scmp.eq.s32.totalorder %s22, 0
      %p154 = por %p152, %p153
      %s156 = sadd.s32 %s155, 1
      %p159 = scmp.eq.s32.totalorder %s16, 1
      %p160 = scmp.ne.s32.totalorder %s155, %s157
      %p161 = scmp.eq.s32.totalorder %s16, 0
      %p162 = por %p160, %p161
      %p163 = scmp.ne.s32.totalorder %s155, %s157
      %p164 = scmp.eq.s32.totalorder %s21, 1
      %p165 = por %p163, %p164
      %p166 = scmp.ne.s32.totalorder %s157, %s158
      %p167 = scmp.eq.s32.totalorder %s21, 0
      %p168 = por %p166, %p167
      %p169 = scmp.ne.s32.totalorder %s157, %s158
      %p170 = scmp.eq.s32.totalorder %s22, 1
      %p171 = por %p169, %p170
      %p173 = scmp.ne.s32.totalorder %s158, %s172
      %p174 = scmp.eq.s32.totalorder %s22, 0
      %p175 = por %p173, %p174
      %s176 = ssub.s32 %s16, %s23
      %p177 = scmp.eq.s32.totalorder %s176, 0
      %s179 = sadd.s32 %s178, 1
      %s180 = scalar_select %p177, %s178, %s179
      %p183 = pneg %p177
      %p184 = scmp.eq.s32.totalorder %s16, 1
      %p185 = por %p183, %p184
      %p186 = scmp.ne.s32.totalorder %s178, %s181
      %p187 = scmp.eq.s32.totalorder %s16, 0
      %p188 = por %p186, %p187
      %p189 = scmp.ne.s32.totalorder %s178, %s181
      %p190 = scmp.eq.s32.totalorder %s21, 1
      %p191 = por %p189, %p190
      %p192 = scmp.ne.s32.totalorder %s181, %s182
      %p193 = scmp.eq.s32.totalorder %s21, 0
      %p194 = por %p192, %p193
      %p195 = scmp.ne.s32.totalorder %s181, %s182
      %p196 = scmp.eq.s32.totalorder %s22, 1
      %p197 = por %p195, %p196
      %p199 = scmp.ne.s32.totalorder %s182, %s198
      %p200 = scmp.eq.s32.totalorder %s22, 0
      %p201 = por %p199, %p200
      %p202 = scmp.le.s32.totalorder 1, %s16
      %p203 = scmp.lt.s32.totalorder %s16, 3
      %p204 = pnand %p202, %p203
      %p205 = pneg %p204
      // Predicated region
      $region9: #{forward_pallas.5} parent=5 // pred_check
        _
      $region10: #{forward_pallas.5} parent=5 // pred_check_branch
        %207 = sbr.rel (%p204) target = $region12
      $region11: #{forward_pallas.5} parent=5 // pred_region
        %s208 = ssub.s32 %s16, 1
        // Predicated region
        $region13: #{forward_pallas.5} parent=11 // pred_check
          %p209 = pneg %p63
        $region14: #{forward_pallas.5} parent=11 // pred_check_branch
          %211 = sbr.rel (%p209) target = $region16
        $region15: #{forward_pallas.5} parent=11 // pred_region
          _
        $region16: #{forward_pallas.5} parent=11 // pred_fallthru
          _
        // Predicated region
        $region17: #{forward_pallas.5} parent=11 // pred_check
          %p212 = pneg %p84
        $region18: #{forward_pallas.5} parent=11 // pred_check_branch
          %214 = sbr.rel (%p212) target = $region20
        $region19: #{forward_pallas.5} parent=11 // pred_region
          _
        $region20: #{forward_pallas.5} parent=11 // pred_fallthru
          _
        // Predicated region
        $region21: #{forward_pallas.5} parent=11 // pred_check
          %p215 = pneg %p105
        $region22: #{forward_pallas.5} parent=11 // pred_check_branch
          %217 = sbr.rel (%p215) target = $region24
        $region23: #{forward_pallas.5} parent=11 // pred_region
          _
        $region24: #{forward_pallas.5} parent=11 // pred_fallthru
          _
        // Predicated region
        $region25: #{forward_pallas.5} parent=11 // pred_check
          %p218 = pneg %p126
        $region26: #{forward_pallas.5} parent=11 // pred_check_branch
          %220 = sbr.rel (%p218) target = $region28
        $region27: #{forward_pallas.5} parent=11 // pred_region
          _
        $region28: #{forward_pallas.5} parent=11 // pred_fallthru
          _
        // Predicated region
        $region29: #{forward_pallas.5} parent=11 // pred_check
          %p221 = pneg %p147
        $region30: #{forward_pallas.5} parent=11 // pred_check_branch
          %223 = sbr.rel (%p221) target = $region32
        $region31: #{forward_pallas.5} parent=11 // pred_region
          _
        $region32: #{forward_pallas.5} parent=11 // pred_fallthru
          _
        // Predicated region
        $region33: #{forward_pallas.5} parent=11 // pred_check
          %p224 = pneg %p168
        $region34: #{forward_pallas.5} parent=11 // pred_check_branch
          %226 = sbr.rel (%p224) target = $region36
        $region35: #{forward_pallas.5} parent=11 // pred_region
          _
        $region36: #{forward_pallas.5} parent=11 // pred_fallthru
          _
      $region12: #{forward_pallas.5} parent=5 // pred_fallthru
        _
      %p227 = scmp.lt.s32.totalorder %s16, 2
      // Predicated region
      $region37: #{forward_pallas.5} parent=5 // pred_check
        %p228 = pneg %p227
      $region38: #{forward_pallas.5} parent=5 // pred_check_branch
        %230 = sbr.rel (%p228) target = $region40
      $region39: #{forward_pallas.5} parent=5 // pred_region
        // Predicated region
        $region41: #{forward_pallas.5} parent=39 // pred_check
          %p231 = pneg %p36
        $region42: #{forward_pallas.5} parent=39 // pred_check_branch
          %233 = sbr.rel (%p231) target = $region44
        $region43: #{forward_pallas.5} parent=39 // pred_region
          %p234 = scmp.lt.s32.totalorder %s16, 1
          %s235 = scalar_select %p234, %s16, 1
          %s236 = smul.addr %s235, 18
          %s237 = scalar_lea.vmem %s0, %s236
        $region44: #{forward_pallas.5} parent=39 // pred_fallthru
          _
      $region40: #{forward_pallas.5} parent=5 // pred_fallthru
        _
      %p238 = scmp.le.s32.totalorder 1, %s16
      %p239 = scmp.lt.s32.totalorder %s16, 3
      %p240 = pnand %p238, %p239
      %p241 = pneg %p240
      // Predicated region
      $region45: #{forward_pallas.5} parent=5 // pred_check
        _
      $region46: #{forward_pallas.5} parent=5 // pred_check_branch
        %243 = sbr.rel (%p240) target = $region48
      $region47: #{forward_pallas.5} parent=5 // pred_region
        %s244 = ssub.s32 %s16, 1
        %p245 = scmp.lt.s32.totalorder %s21, 1
        %s246 = scalar_select %p245, %s21, 1
        %s247 = smul.addr %s246, 18
        %s248 = scalar_lea.vmem %s0, %s247
        %p249 = pneg %p42
        %p250 = pneg %p39
        %p251 = pneg %p63
        %p252 = pneg %p60
        %p253 = pneg %p84
        %p254 = pneg %p81
        %p255 = pneg %p105
        %p256 = pneg %p102
        %p257 = pneg %p126
        %p258 = pneg %p123
        %p259 = pneg %p147
        %p260 = pneg %p144
        %p261 = pneg %p168
        %p262 = pneg %p165
        %p263 = pneg %p194
        %p264 = pneg %p191
        %s265 = sand.u32 %s181, 1
        %s266 = scalar_lea.sflag [#allocation3], %s265
        %s267 = sand.u32 %s181, 1
        %s268 = scalar_lea.vmem [#allocation2], %s267
        %p269 = scmp.lt.s32.totalorder %s21, 1
        %s270 = scalar_select %p269, %s21, 1
        %s271 = smul.addr %s270, 18
        %s272 = scalar_lea.vmem %s0, %s271
        %v274 = vld [vmem:[%s272] sm:$0xff]
        %v275 = vld [vmem:[%s272 + $0x8] sm:$0xff]
        %v276 = vld [vmem:[%s272 + $0x10] sm:$0x3]
        %v277 = vld [vmem:[%s1] sm:$0xff]
        %v278 = vld [vmem:[%s1 + $0x8] sm:$0xff]
        %v279 = vld [vmem:[%s1 + $0x10] sm:$0xf]
        %v280 = vld [vmem:[%s1 + $0x14] sm:$0xff]
        %v281 = vld [vmem:[%s1 + $0x1c] sm:$0xff]
        %v282 = vld [vmem:[%s1 + $0x24] sm:$0xf]
        %v283 = vld [vmem:[%s1 + $0x28] sm:$0xff]
        %v284 = vld [vmem:[%s1 + $0x30] sm:$0xff]
        %v285 = vld [vmem:[%s1 + $0x38] sm:$0xf]
        %v286 = vld [vmem:[%s1 + $0x3c] sm:$0xff]
        %v287 = vld [vmem:[%s1 + $0x44] sm:$0xff]
        %v288 = vld [vmem:[%s1 + $0x4c] sm:$0xf]
        %v289 = vld [vmem:[%s1 + $0x50] sm:$0xff]
        %v290 = vld [vmem:[%s1 + $0x58] sm:$0xff]
        %v291 = vld [vmem:[%s1 + $0x60] sm:$0xf]
        %v292 = vld [vmem:[%s1 + $0x64] sm:$0xff]
        %v293 = vld [vmem:[%s1 + $0x6c] sm:$0xff]
        %v294 = vld [vmem:[%s1 + $0x74] sm:$0xf]
        %v295 = vld [vmem:[%s1 + $0x78] sm:$0xff]
        %v296 = vld [vmem:[%s1 + $0x80] sm:$0xff]
        %v297 = vld [vmem:[%s1 + $0x88] sm:$0xf]
        %v298 = vld [vmem:[%s1 + $0x8c] sm:$0xff]
        %v299 = vld [vmem:[%s1 + $0x94] sm:$0xff]
        %v300 = vld [vmem:[%s1 + $0x9c] sm:$0xf]
        %v301 = vld [vmem:[%s1 + $0xa0] sm:$0xff]
        %v302 = vld [vmem:[%s1 + $0xa8] sm:$0xff]
        %v303 = vld [vmem:[%s1 + $0xb0] sm:$0xf]
        %v304 = vld [vmem:[%s1 + $0xb4] sm:$0xff]
        %v305 = vld [vmem:[%s1 + $0xbc] sm:$0xff]
        %v306 = vld [vmem:[%s1 + $0xc4] sm:$0xf]
        %v307 = vld [vmem:[%s1 + $0xc8] sm:$0xff]
        %v308 = vld [vmem:[%s1 + $0xd0] sm:$0xff]
        %v309 = vld [vmem:[%s1 + $0xd8] sm:$0xf]
        %v310 = vld [vmem:[%s1 + $0xdc] sm:$0xff]
        %v311 = vld [vmem:[%s1 + $0xe4] sm:$0xff]
        %v312 = vld [vmem:[%s1 + $0xec] sm:$0xf]
        %v313 = vld [vmem:[%s1 + $0xf0] sm:$0xff]
        %v314 = vld [vmem:[%s1 + $0xf8] sm:$0xff]
        %v315 = vld [vmem:[%s1 + $0x100] sm:$0xf]
        %v316 = vld [vmem:[%s1 + $0x104] sm:$0xff]
        %v317 = vld [vmem:[%s1 + $0x10c] sm:$0xff]
        %v318 = vld [vmem:[%s1 + $0x114] sm:$0xf]
        %v319 = vld [vmem:[%s1 + $0x118] sm:$0xff]
        %v320 = vld [vmem:[%s1 + $0x120] sm:$0xff]
        %v321 = vld [vmem:[%s1 + $0x128] sm:$0xf]
        %v322 = vld [vmem:[%s1 + $0x12c] sm:$0xff]
        %v323 = vld [vmem:[%s1 + $0x134] sm:$0xff]
        %v324 = vld [vmem:[%s1 + $0x13c] sm:$0xf]
        %v325 = vld [vmem:[%s1 + $0x140] sm:$0xff]
        %v326 = vld [vmem:[%s1 + $0x148] sm:$0xff]
        %v327 = vld [vmem:[%s1 + $0x150] sm:$0xf]
        %v328 = vld [vmem:[%s1 + $0x154] sm:$0xff]
        %v329 = vld [vmem:[%s1 + $0x15c] sm:$0xff]
        %v330 = vld [vmem:[%s1 + $0x164] sm:$0xf]
        %v331 = vld [vmem:[%s1 + $0x168] sm:$0xff]
        %v332 = vld [vmem:[%s1 + $0x170] sm:$0xff]
        %v333 = vld [vmem:[%s1 + $0x178] sm:$0xf]
        %v334 = vld [vmem:[%s1 + $0x17c] sm:$0xff]
        %v335 = vld [vmem:[%s1 + $0x184] sm:$0xff]
        %v336 = vld [vmem:[%s1 + $0x18c] sm:$0xf]
        %v337 = vld [vmem:[%s1 + $0x190] sm:$0xff]
        %v338 = vld [vmem:[%s1 + $0x198] sm:$0xff]
        %v339 = vld [vmem:[%s1 + $0x1a0] sm:$0xf]
        %v340 = vld [vmem:[%s1 + $0x1a4] sm:$0xff]
        %v341 = vld [vmem:[%s1 + $0x1ac] sm:$0xff]
        %v342 = vld [vmem:[%s1 + $0x1b4] sm:$0xf]
        %v343 = vld [vmem:[%s1 + $0x1b8] sm:$0xff]
        %v344 = vld [vmem:[%s1 + $0x1c0] sm:$0xff]
        %v345 = vld [vmem:[%s1 + $0x1c8] sm:$0xf]
        %v346 = vld [vmem:[%s1 + $0x1cc] sm:$0xff]
        %v347 = vld [vmem:[%s1 + $0x1d4] sm:$0xff]
        %v348 = vld [vmem:[%s1 + $0x1dc] sm:$0xf]
        %v349 = vld [vmem:[%s1 + $0x1e0] sm:$0xff]
        %v350 = vld [vmem:[%s1 + $0x1e8] sm:$0xff]
        %v351 = vld [vmem:[%s1 + $0x1f0] sm:$0xf]
        %v352 = vld [vmem:[%s1 + $0x1f4] sm:$0xff]
        %v353 = vld [vmem:[%s1 + $0x1fc] sm:$0xff]
        %v354 = vld [vmem:[%s1 + $0x204] sm:$0xf]
        %v355 = vld [vmem:[%s1 + $0x208] sm:$0xff]
        %v356 = vld [vmem:[%s1 + $0x210] sm:$0xff]
        %v357 = vld [vmem:[%s1 + $0x218] sm:$0xf]
        %v358 = vld [vmem:[%s1 + $0x21c] sm:$0xff]
        %v359 = vld [vmem:[%s1 + $0x224] sm:$0xff]
        %v360 = vld [vmem:[%s1 + $0x22c] sm:$0xf]
        %v361 = vld [vmem:[%s1 + $0x230] sm:$0xff]
        %v362 = vld [vmem:[%s1 + $0x238] sm:$0xff]
        %v363 = vld [vmem:[%s1 + $0x240] sm:$0xf]
        %v364 = vld [vmem:[%s1 + $0x244] sm:$0xff]
        %v365 = vld [vmem:[%s1 + $0x24c] sm:$0xff]
        %v366 = vld [vmem:[%s1 + $0x254] sm:$0xf]
        %v367 = vld [vmem:[%s1 + $0x258] sm:$0xff]
        %v368 = vld [vmem:[%s1 + $0x260] sm:$0xff]
        %v369 = vld [vmem:[%s1 + $0x268] sm:$0xf]
        %v370 = vld [vmem:[%s1 + $0x26c] sm:$0xff]
        %v371 = vld [vmem:[%s1 + $0x274] sm:$0xff]
        %v372 = vld [vmem:[%s1 + $0x27c] sm:$0xf]
        %v373 = vld [vmem:[%s1 + $0x280] sm:$0xff]
        %v374 = vld [vmem:[%s1 + $0x288] sm:$0xff]
        %v375 = vld [vmem:[%s1 + $0x290] sm:$0xf]
        %v376 = vld [vmem:[%s1 + $0x294] sm:$0xff]
        %v377 = vld [vmem:[%s1 + $0x29c] sm:$0xff]
        %v378 = vld [vmem:[%s1 + $0x2a4] sm:$0xf]
        %v379 = vld [vmem:[%s1 + $0x2a8] sm:$0xff]
        %v380 = vld [vmem:[%s1 + $0x2b0] sm:$0xff]
        %v381 = vld [vmem:[%s1 + $0x2b8] sm:$0xf]
        %v382 = vld [vmem:[%s1 + $0x2bc] sm:$0xff]
        %v383 = vld [vmem:[%s1 + $0x2c4] sm:$0xff]
        %v384 = vld [vmem:[%s1 + $0x2cc] sm:$0xf]
        %v385 = vld [vmem:[%s1 + $0x2d0] sm:$0xff]
        %v386 = vld [vmem:[%s1 + $0x2d8] sm:$0xff]
        %v387 = vld [vmem:[%s1 + $0x2e0] sm:$0xf]
        %v388 = vld [vmem:[%s1 + $0x2e4] sm:$0xff]
        %v389 = vld [vmem:[%s1 + $0x2ec] sm:$0xff]
        %v390 = vld [vmem:[%s1 + $0x2f4] sm:$0xf]
        %v391 = vld [vmem:[%s1 + $0x2f8] sm:$0xff]
        %v392 = vld [vmem:[%s1 + $0x300] sm:$0xff]
        %v393 = vld [vmem:[%s1 + $0x308] sm:$0xf]
        %v394 = vld [vmem:[%s1 + $0x30c] sm:$0xff]
        %v395 = vld [vmem:[%s1 + $0x314] sm:$0xff]
        %v396 = vld [vmem:[%s1 + $0x31c] sm:$0xf]
        %v397 = vld [vmem:[%s1 + $0x320] sm:$0xff]
        %v398 = vld [vmem:[%s1 + $0x328] sm:$0xff]
        %v399 = vld [vmem:[%s1 + $0x330] sm:$0xf]
        %v400 = vld [vmem:[%s1 + $0x334] sm:$0xff]
        %v401 = vld [vmem:[%s1 + $0x33c] sm:$0xff]
        %v402 = vld [vmem:[%s1 + $0x344] sm:$0xf]
        %v403 = vld [vmem:[%s1 + $0x348] sm:$0xff]
        %v404 = vld [vmem:[%s1 + $0x350] sm:$0xff]
        %v405 = vld [vmem:[%s1 + $0x358] sm:$0xf]
        %v406 = vld [vmem:[%s1 + $0x35c] sm:$0xff]
        %v407 = vld [vmem:[%s1 + $0x364] sm:$0xff]
        %v408 = vld [vmem:[%s1 + $0x36c] sm:$0xf]
        %v409 = vld [vmem:[%s1 + $0x370] sm:$0xff]
        %v410 = vld [vmem:[%s1 + $0x378] sm:$0xff]
        %v411 = vld [vmem:[%s1 + $0x380] sm:$0xf]
        %v412 = vld [vmem:[%s1 + $0x384] sm:$0xff]
        %v413 = vld [vmem:[%s1 + $0x38c] sm:$0xff]
        %v414 = vld [vmem:[%s1 + $0x394] sm:$0xf]
        %v415 = vld [vmem:[%s1 + $0x398] sm:$0xff]
        %v416 = vld [vmem:[%s1 + $0x3a0] sm:$0xff]
        %v417 = vld [vmem:[%s1 + $0x3a8] sm:$0xf]
        %v418 = vld [vmem:[%s1 + $0x3ac] sm:$0xff]
        %v419 = vld [vmem:[%s1 + $0x3b4] sm:$0xff]
        %v420 = vld [vmem:[%s1 + $0x3bc] sm:$0xf]
        %v421 = vld [vmem:[%s1 + $0x3c0] sm:$0xff]
        %v422 = vld [vmem:[%s1 + $0x3c8] sm:$0xff]
        %v423 = vld [vmem:[%s1 + $0x3d0] sm:$0xf]
        %v424 = vld [vmem:[%s1 + $0x3d4] sm:$0xff]
        %v425 = vld [vmem:[%s1 + $0x3dc] sm:$0xff]
        %v426 = vld [vmem:[%s1 + $0x3e4] sm:$0xf]
        %v427 = vld [vmem:[%s1 + $0x3e8] sm:$0xff]
        %v428 = vld [vmem:[%s1 + $0x3f0] sm:$0xff]
        %v429 = vld [vmem:[%s1 + $0x3f8] sm:$0xf]
        %v430 = vld [vmem:[%s1 + $0x3fc] sm:$0xff]
        %v431 = vld [vmem:[%s1 + $0x404] sm:$0xff]
        %v432 = vld [vmem:[%s1 + $0x40c] sm:$0xf]
        %v433 = vld [vmem:[%s1 + $0x410] sm:$0xff]
        %v434 = vld [vmem:[%s1 + $0x418] sm:$0xff]
        %v435 = vld [vmem:[%s1 + $0x420] sm:$0xf]
        %v436 = vld [vmem:[%s1 + $0x424] sm:$0xff]
        %v437 = vld [vmem:[%s1 + $0x42c] sm:$0xff]
        %v438 = vld [vmem:[%s1 + $0x434] sm:$0xf]
        %v439 = vld [vmem:[%s1 + $0x438] sm:$0xff]
        %v440 = vld [vmem:[%s1 + $0x440] sm:$0xff]
        %v441 = vld [vmem:[%s1 + $0x448] sm:$0xf]
        %v442 = vld [vmem:[%s1 + $0x44c] sm:$0xff]
        %v443 = vld [vmem:[%s1 + $0x454] sm:$0xff]
        %v444 = vld [vmem:[%s1 + $0x45c] sm:$0xf]
        %v445 = vld [vmem:[%s1 + $0x460] sm:$0xff]
        %v446 = vld [vmem:[%s1 + $0x468] sm:$0xff]
        %v447 = vld [vmem:[%s1 + $0x470] sm:$0xf]
        %v448 = vld [vmem:[%s1 + $0x474] sm:$0xff]
        %v449 = vld [vmem:[%s1 + $0x47c] sm:$0xff]
        %v450 = vld [vmem:[%s1 + $0x484] sm:$0xf]
        %v451 = vld [vmem:[%s1 + $0x488] sm:$0xff]
        %v452 = vld [vmem:[%s1 + $0x490] sm:$0xff]
        %v453 = vld [vmem:[%s1 + $0x498] sm:$0xf]
        %v454 = vld [vmem:[%s1 + $0x49c] sm:$0xff]
        %v455 = vld [vmem:[%s1 + $0x4a4] sm:$0xff]
        %v456 = vld [vmem:[%s1 + $0x4ac] sm:$0xf]
        %v457 = vld [vmem:[%s1 + $0x4b0] sm:$0xff]
        %v458 = vld [vmem:[%s1 + $0x4b8] sm:$0xff]
        %v459 = vld [vmem:[%s1 + $0x4c0] sm:$0xf]
        %v460 = vld [vmem:[%s1 + $0x4c4] sm:$0xff]
        %v461 = vld [vmem:[%s1 + $0x4cc] sm:$0xff]
        %v462 = vld [vmem:[%s1 + $0x4d4] sm:$0xf]
        %v463 = vld [vmem:[%s1 + $0x4d8] sm:$0xff]
        %v464 = vld [vmem:[%s1 + $0x4e0] sm:$0xff]
        %v465 = vld [vmem:[%s1 + $0x4e8] sm:$0xf]
        %v466 = vld [vmem:[%s1 + $0x4ec] sm:$0xff]
        %v467 = vld [vmem:[%s1 + $0x4f4] sm:$0xff]
        %v468 = vld [vmem:[%s1 + $0x4fc] sm:$0xf]
        %v469 = vld [vmem:[%s1 + $0x500] sm:$0xff]
        %v470 = vld [vmem:[%s1 + $0x508] sm:$0xff]
        %v471 = vld [vmem:[%s1 + $0x510] sm:$0xf]
        %v472 = vld [vmem:[%s1 + $0x514] sm:$0xff]
        %v473 = vld [vmem:[%s1 + $0x51c] sm:$0xff]
        %v474 = vld [vmem:[%s1 + $0x524] sm:$0xf]
        %v475 = vld [vmem:[%s1 + $0x528] sm:$0xff]
        %v476 = vld [vmem:[%s1 + $0x530] sm:$0xff]
        %v477 = vld [vmem:[%s1 + $0x538] sm:$0xf]
        %v478 = vld [vmem:[%s1 + $0x53c] sm:$0xff]
        %v479 = vld [vmem:[%s1 + $0x544] sm:$0xff]
        %v480 = vld [vmem:[%s1 + $0x54c] sm:$0xf]
        %v481 = vld [vmem:[%s1 + $0x550] sm:$0xff]
        %v482 = vld [vmem:[%s1 + $0x558] sm:$0xff]
        %v483 = vld [vmem:[%s1 + $0x560] sm:$0xf]
        %v484 = vld [vmem:[%s1 + $0x564] sm:$0xff]
        %v485 = vld [vmem:[%s1 + $0x56c] sm:$0xff]
        %v486 = vld [vmem:[%s1 + $0x574] sm:$0xf]
        %v487 = vld [vmem:[%s1 + $0x578] sm:$0xff]
        %v488 = vld [vmem:[%s1 + $0x580] sm:$0xff]
        %v489 = vld [vmem:[%s1 + $0x588] sm:$0xf]
        %v490 = vld [vmem:[%s1 + $0x58c] sm:$0xff]
        %v491 = vld [vmem:[%s1 + $0x594] sm:$0xff]
        %v492 = vld [vmem:[%s1 + $0x59c] sm:$0xf]
        %v493 = vld [vmem:[%s1 + $0x5a0] sm:$0xff]
        %v494 = vld [vmem:[%s1 + $0x5a8] sm:$0xff]
        %v495 = vld [vmem:[%s1 + $0x5b0] sm:$0xf]
        %v496 = vld [vmem:[%s1 + $0x5b4] sm:$0xff]
        %v497 = vld [vmem:[%s1 + $0x5bc] sm:$0xff]
        %v498 = vld [vmem:[%s1 + $0x5c4] sm:$0xf]
        %v499 = vld [vmem:[%s1 + $0x5c8] sm:$0xff]
        %v500 = vld [vmem:[%s1 + $0x5d0] sm:$0xff]
        %v501 = vld [vmem:[%s1 + $0x5d8] sm:$0xf]
        %v502 = vld [vmem:[%s1 + $0x5dc] sm:$0xff]
        %v503 = vld [vmem:[%s1 + $0x5e4] sm:$0xff]
        %v504 = vld [vmem:[%s1 + $0x5ec] sm:$0xf]
        %v505 = vld [vmem:[%s1 + $0x5f0] sm:$0xff]
        %v506 = vld [vmem:[%s1 + $0x5f8] sm:$0xff]
        %v507 = vld [vmem:[%s1 + $0x600] sm:$0xf]
        %v508 = vld [vmem:[%s1 + $0x604] sm:$0xff]
        %v509 = vld [vmem:[%s1 + $0x60c] sm:$0xff]
        %v510 = vld [vmem:[%s1 + $0x614] sm:$0xf]
        %v511 = vld [vmem:[%s1 + $0x618] sm:$0xff]
        %v512 = vld [vmem:[%s1 + $0x620] sm:$0xff]
        %v513 = vld [vmem:[%s1 + $0x628] sm:$0xf]
        %v514 = vld [vmem:[%s1 + $0x62c] sm:$0xff]
        %v515 = vld [vmem:[%s1 + $0x634] sm:$0xff]
        %v516 = vld [vmem:[%s1 + $0x63c] sm:$0xf]
        %v517 = vld [vmem:[%s1 + $0x640] sm:$0xff]
        %v518 = vld [vmem:[%s1 + $0x648] sm:$0xff]
        %v519 = vld [vmem:[%s1 + $0x650] sm:$0xf]
        %v520 = vld [vmem:[%s1 + $0x654] sm:$0xff]
        %v521 = vld [vmem:[%s1 + $0x65c] sm:$0xff]
        %v522 = vld [vmem:[%s1 + $0x664] sm:$0xf]
        %v523 = vld [vmem:[%s1 + $0x668] sm:$0xff]
        %v524 = vld [vmem:[%s1 + $0x670] sm:$0xff]
        %v525 = vld [vmem:[%s1 + $0x678] sm:$0xf]
        %v526 = vld [vmem:[%s1 + $0x67c] sm:$0xff]
        %v527 = vld [vmem:[%s1 + $0x684] sm:$0xff]
        %v528 = vld [vmem:[%s1 + $0x68c] sm:$0xf]
        %v529 = vld [vmem:[%s1 + $0x690] sm:$0xff]
        %v530 = vld [vmem:[%s1 + $0x698] sm:$0xff]
        %v531 = vld [vmem:[%s1 + $0x6a0] sm:$0xf]
        %v532 = vld [vmem:[%s1 + $0x6a4] sm:$0xff]
        %v533 = vld [vmem:[%s1 + $0x6ac] sm:$0xff]
        %v534 = vld [vmem:[%s1 + $0x6b4] sm:$0xf]
        %v535 = vld [vmem:[%s1 + $0x6b8] sm:$0xff]
        %v536 = vld [vmem:[%s1 + $0x6c0] sm:$0xff]
        %v537 = vld [vmem:[%s1 + $0x6c8] sm:$0xf]
        %v538 = vld [vmem:[%s1 + $0x6cc] sm:$0xff]
        %v539 = vld [vmem:[%s1 + $0x6d4] sm:$0xff]
        %v540 = vld [vmem:[%s1 + $0x6dc] sm:$0xf]
        %v541 = vld [vmem:[%s1 + $0x6e0] sm:$0xff]
        %v542 = vld [vmem:[%s1 + $0x6e8] sm:$0xff]
        %v543 = vld [vmem:[%s1 + $0x6f0] sm:$0xf]
        %v544 = vld [vmem:[%s1 + $0x6f4] sm:$0xff]
        %v545 = vld [vmem:[%s1 + $0x6fc] sm:$0xff]
        %v546 = vld [vmem:[%s1 + $0x704] sm:$0xf]
        %v547 = vld [vmem:[%s1 + $0x708] sm:$0xff]
        %v548 = vld [vmem:[%s1 + $0x710] sm:$0xff]
        %v549 = vld [vmem:[%s1 + $0x718] sm:$0xf]
        %v550 = vld [vmem:[%s1 + $0x71c] sm:$0xff]
        %v551 = vld [vmem:[%s1 + $0x724] sm:$0xff]
        %v552 = vld [vmem:[%s1 + $0x72c] sm:$0xf]
        %v553 = vld [vmem:[%s1 + $0x730] sm:$0xff]
        %v554 = vld [vmem:[%s1 + $0x738] sm:$0xff]
        %v555 = vld [vmem:[%s1 + $0x740] sm:$0xf]
        %v556 = vld [vmem:[%s1 + $0x744] sm:$0xff]
        %v557 = vld [vmem:[%s1 + $0x74c] sm:$0xff]
        %v558 = vld [vmem:[%s1 + $0x754] sm:$0xf]
        %v559 = vld [vmem:[%s1 + $0x758] sm:$0xff]
        %v560 = vld [vmem:[%s1 + $0x760] sm:$0xff]
        %v561 = vld [vmem:[%s1 + $0x768] sm:$0xf]
        %v562 = vld [vmem:[%s1 + $0x76c] sm:$0xff]
        %v563 = vld [vmem:[%s1 + $0x774] sm:$0xff]
        %v564 = vld [vmem:[%s1 + $0x77c] sm:$0xf]
        %v565 = vld [vmem:[%s1 + $0x780] sm:$0xff]
        %v566 = vld [vmem:[%s1 + $0x788] sm:$0xff]
        %v567 = vld [vmem:[%s1 + $0x790] sm:$0xf]
        %v568 = vld [vmem:[%s1 + $0x794] sm:$0xff]
        %v569 = vld [vmem:[%s1 + $0x79c] sm:$0xff]
        %v570 = vld [vmem:[%s1 + $0x7a4] sm:$0xf]
        %v571 = vld [vmem:[%s1 + $0x7a8] sm:$0xff]
        %v572 = vld [vmem:[%s1 + $0x7b0] sm:$0xff]
        %v573 = vld [vmem:[%s1 + $0x7b8] sm:$0xf]
        %v574 = vld [vmem:[%s1 + $0x7bc] sm:$0xff]
        %v575 = vld [vmem:[%s1 + $0x7c4] sm:$0xff]
        %v576 = vld [vmem:[%s1 + $0x7cc] sm:$0xf]
        %v577 = vld [vmem:[%s1 + $0x7d0] sm:$0xff]
        %v578 = vld [vmem:[%s1 + $0x7d8] sm:$0xff]
        %v579 = vld [vmem:[%s1 + $0x7e0] sm:$0xf]
        %v580 = vld [vmem:[%s1 + $0x7e4] sm:$0xff]
        %v581 = vld [vmem:[%s1 + $0x7ec] sm:$0xff]
        %v582 = vld [vmem:[%s1 + $0x7f4] sm:$0xf]
        %v583 = vld [vmem:[%s1 + $0x7f8] sm:$0xff]
        %v584 = vld [vmem:[%s1 + $0x800] sm:$0xff]
        %v585 = vld [vmem:[%s1 + $0x808] sm:$0xf]
        %v586 = vld [vmem:[%s1 + $0x80c] sm:$0xff]
        %v587 = vld [vmem:[%s1 + $0x814] sm:$0xff]
        %v588 = vld [vmem:[%s1 + $0x81c] sm:$0xf]
        %v589 = vld [vmem:[%s1 + $0x820] sm:$0xff]
        %v590 = vld [vmem:[%s1 + $0x828] sm:$0xff]
        %v591 = vld [vmem:[%s1 + $0x830] sm:$0xf]
        %v592 = vld [vmem:[%s1 + $0x834] sm:$0xff]
        %v593 = vld [vmem:[%s1 + $0x83c] sm:$0xff]
        %v594 = vld [vmem:[%s1 + $0x844] sm:$0xf]
        %v595 = vld [vmem:[%s1 + $0x848] sm:$0xff]
        %v596 = vld [vmem:[%s1 + $0x850] sm:$0xff]
        %v597 = vld [vmem:[%s1 + $0x858] sm:$0xf]
        %v598 = vld [vmem:[%s1 + $0x85c] sm:$0xff]
        %v599 = vld [vmem:[%s1 + $0x864] sm:$0xff]
        %v600 = vld [vmem:[%s1 + $0x86c] sm:$0xf]
        %v601 = vld [vmem:[%s1 + $0x870] sm:$0xff]
        %v602 = vld [vmem:[%s1 + $0x878] sm:$0xff]
        %v603 = vld [vmem:[%s1 + $0x880] sm:$0xf]
        %v604 = vld [vmem:[%s1 + $0x884] sm:$0xff]
        %v605 = vld [vmem:[%s1 + $0x88c] sm:$0xff]
        %v606 = vld [vmem:[%s1 + $0x894] sm:$0xf]
        %v607 = vld [vmem:[%s1 + $0x898] sm:$0xff]
        %v608 = vld [vmem:[%s1 + $0x8a0] sm:$0xff]
        %v609 = vld [vmem:[%s1 + $0x8a8] sm:$0xf]
        %v610 = vld [vmem:[%s1 + $0x8ac] sm:$0xff]
        %v611 = vld [vmem:[%s1 + $0x8b4] sm:$0xff]
        %v612 = vld [vmem:[%s1 + $0x8bc] sm:$0xf]
        %v613 = vld [vmem:[%s1 + $0x8c0] sm:$0xff]
        %v614 = vld [vmem:[%s1 + $0x8c8] sm:$0xff]
        %v615 = vld [vmem:[%s1 + $0x8d0] sm:$0xf]
        %v616 = vld [vmem:[%s1 + $0x8d4] sm:$0xff]
        %v617 = vld [vmem:[%s1 + $0x8dc] sm:$0xff]
        %v618 = vld [vmem:[%s1 + $0x8e4] sm:$0xf]
        %v619 = vld [vmem:[%s1 + $0x8e8] sm:$0xff]
        %v620 = vld [vmem:[%s1 + $0x8f0] sm:$0xff]
        %v621 = vld [vmem:[%s1 + $0x8f8] sm:$0xf]
        %v622 = vld [vmem:[%s1 + $0x8fc] sm:$0xff]
        %v623 = vld [vmem:[%s1 + $0x904] sm:$0xff]
        %v624 = vld [vmem:[%s1 + $0x90c] sm:$0xf]
        %v625 = vld [vmem:[%s1 + $0x910] sm:$0xff]
        %v626 = vld [vmem:[%s1 + $0x918] sm:$0xff]
        %v627 = vld [vmem:[%s1 + $0x920] sm:$0xf]
        %v628 = vld [vmem:[%s1 + $0x924] sm:$0xff]
        %v629 = vld [vmem:[%s1 + $0x92c] sm:$0xff]
        %v630 = vld [vmem:[%s1 + $0x934] sm:$0xf]
        %v631 = vld [vmem:[%s1 + $0x938] sm:$0xff]
        %v632 = vld [vmem:[%s1 + $0x940] sm:$0xff]
        %v633 = vld [vmem:[%s1 + $0x948] sm:$0xf]
        %v634 = vld [vmem:[%s1 + $0x94c] sm:$0xff]
        %v635 = vld [vmem:[%s1 + $0x954] sm:$0xff]
        %v636 = vld [vmem:[%s1 + $0x95c] sm:$0xf]
        %v637 = vld [vmem:[%s1 + $0x960] sm:$0xff]
        %v638 = vld [vmem:[%s1 + $0x968] sm:$0xff]
        %v639 = vld [vmem:[%s1 + $0x970] sm:$0xf]
        %v640 = vld [vmem:[%s1 + $0x974] sm:$0xff]
        %v641 = vld [vmem:[%s1 + $0x97c] sm:$0xff]
        %v642 = vld [vmem:[%s1 + $0x984] sm:$0xf]
        %v643 = vld [vmem:[%s1 + $0x988] sm:$0xff]
        %v644 = vld [vmem:[%s1 + $0x990] sm:$0xff]
        %v645 = vld [vmem:[%s1 + $0x998] sm:$0xf]
        %v646 = vld [vmem:[%s1 + $0x99c] sm:$0xff]
        %v647 = vld [vmem:[%s1 + $0x9a4] sm:$0xff]
        %v648 = vld [vmem:[%s1 + $0x9ac] sm:$0xf]
        %v649 = vld [vmem:[%s1 + $0x9b0] sm:$0xff]
        %v650 = vld [vmem:[%s1 + $0x9b8] sm:$0xff]
        %v651 = vld [vmem:[%s1 + $0x9c0] sm:$0xf]
        %v652 = vld [vmem:[%s1 + $0x9c4] sm:$0xff]
        %v653 = vld [vmem:[%s1 + $0x9cc] sm:$0xff]
        %v654 = vld [vmem:[%s1 + $0x9d4] sm:$0xf]
        %v655 = vld [vmem:[%s1 + $0x9d8] sm:$0xff]
        %v656 = vld [vmem:[%s1 + $0x9e0] sm:$0xff]
        %v657 = vld [vmem:[%s1 + $0x9e8] sm:$0xf]
        %v658 = vld [vmem:[%s1 + $0x9ec] sm:$0xff]
        %v659 = vld [vmem:[%s1 + $0x9f4] sm:$0xff]
        %v660 = vld [vmem:[%s1 + $0x9fc] sm:$0xf]
        %v661 = vld [vmem:[%s1 + $0xa00] sm:$0xff]
        %v662 = vld [vmem:[%s1 + $0xa08] sm:$0xff]
        %v663 = vld [vmem:[%s1 + $0xa10] sm:$0xf]
        %v664 = vld [vmem:[%s1 + $0xa14] sm:$0xff]
        %v665 = vld [vmem:[%s1 + $0xa1c] sm:$0xff]
        %v666 = vld [vmem:[%s1 + $0xa24] sm:$0xf]
        %v667 = vld [vmem:[%s1 + $0xa28] sm:$0xff]
        %v668 = vld [vmem:[%s1 + $0xa30] sm:$0xff]
        %v669 = vld [vmem:[%s1 + $0xa38] sm:$0xf]
        %v670 = vld [vmem:[%s1 + $0xa3c] sm:$0xff]
        %v671 = vld [vmem:[%s1 + $0xa44] sm:$0xff]
        %v672 = vld [vmem:[%s1 + $0xa4c] sm:$0xf]
        %v673 = vld [vmem:[%s1 + $0xa50] sm:$0xff]
        %v674 = vld [vmem:[%s1 + $0xa58] sm:$0xff]
        %v675 = vld [vmem:[%s1 + $0xa60] sm:$0xf]
        %v676 = vld [vmem:[%s1 + $0xa64] sm:$0xff]
        %v677 = vld [vmem:[%s1 + $0xa6c] sm:$0xff]
        %v678 = vld [vmem:[%s1 + $0xa74] sm:$0xf]
        %v679 = vld [vmem:[%s1 + $0xa78] sm:$0xff]
        %v680 = vld [vmem:[%s1 + $0xa80] sm:$0xff]
        %v681 = vld [vmem:[%s1 + $0xa88] sm:$0xf]
        %v682 = vld [vmem:[%s1 + $0xa8c] sm:$0xff]
        %v683 = vld [vmem:[%s1 + $0xa94] sm:$0xff]
        %v684 = vld [vmem:[%s1 + $0xa9c] sm:$0xf]
        %v685 = vld [vmem:[%s1 + $0xaa0] sm:$0xff]
        %v686 = vld [vmem:[%s1 + $0xaa8] sm:$0xff]
        %v687 = vld [vmem:[%s1 + $0xab0] sm:$0xf]
        %v688 = vld [vmem:[%s1 + $0xab4] sm:$0xff]
        %v689 = vld [vmem:[%s1 + $0xabc] sm:$0xff]
        %v690 = vld [vmem:[%s1 + $0xac4] sm:$0xf]
        %v691 = vld [vmem:[%s1 + $0xac8] sm:$0xff]
        %v692 = vld [vmem:[%s1 + $0xad0] sm:$0xff]
        %v693 = vld [vmem:[%s1 + $0xad8] sm:$0xf]
        %v694 = vld [vmem:[%s1 + $0xadc] sm:$0xff]
        %v695 = vld [vmem:[%s1 + $0xae4] sm:$0xff]
        %v696 = vld [vmem:[%s1 + $0xaec] sm:$0xf]
        %v697 = vld [vmem:[%s1 + $0xaf0] sm:$0xff]
        %v698 = vld [vmem:[%s1 + $0xaf8] sm:$0xff]
        %v699 = vld [vmem:[%s1 + $0xb00] sm:$0xf]
        %v700 = vld [vmem:[%s1 + $0xb04] sm:$0xff]
        %v701 = vld [vmem:[%s1 + $0xb0c] sm:$0xff]
        %v702 = vld [vmem:[%s1 + $0xb14] sm:$0xf]
        %v703 = vld [vmem:[%s1 + $0xb18] sm:$0xff]
        %v704 = vld [vmem:[%s1 + $0xb20] sm:$0xff]
        %v705 = vld [vmem:[%s1 + $0xb28] sm:$0xf]
        %v706 = vld [vmem:[%s1 + $0xb2c] sm:$0xff]
        %v707 = vld [vmem:[%s1 + $0xb34] sm:$0xff]
        %v708 = vld [vmem:[%s1 + $0xb3c] sm:$0xf]
        %v709 = vld [vmem:[%s1 + $0xb40] sm:$0xff]
        %v710 = vld [vmem:[%s1 + $0xb48] sm:$0xff]
        %v711 = vld [vmem:[%s1 + $0xb50] sm:$0xf]
        %v712 = vld [vmem:[%s1 + $0xb54] sm:$0xff]
        %v713 = vld [vmem:[%s1 + $0xb5c] sm:$0xff]
        %v714 = vld [vmem:[%s1 + $0xb64] sm:$0xf]
        %v715 = vld [vmem:[%s1 + $0xb68] sm:$0xff]
        %v716 = vld [vmem:[%s1 + $0xb70] sm:$0xff]
        %v717 = vld [vmem:[%s1 + $0xb78] sm:$0xf]
        %v718 = vld [vmem:[%s1 + $0xb7c] sm:$0xff]
        %v719 = vld [vmem:[%s1 + $0xb84] sm:$0xff]
        %v720 = vld [vmem:[%s1 + $0xb8c] sm:$0xf]
        %v721 = vld [vmem:[%s1 + $0xb90] sm:$0xff]
        %v722 = vld [vmem:[%s1 + $0xb98] sm:$0xff]
        %v723 = vld [vmem:[%s1 + $0xba0] sm:$0xf]
        %v724 = vld [vmem:[%s1 + $0xba4] sm:$0xff]
        %v725 = vld [vmem:[%s1 + $0xbac] sm:$0xff]
        %v726 = vld [vmem:[%s1 + $0xbb4] sm:$0xf]
        %v727 = vld [vmem:[%s1 + $0xbb8] sm:$0xff]
        %v728 = vld [vmem:[%s1 + $0xbc0] sm:$0xff]
        %v729 = vld [vmem:[%s1 + $0xbc8] sm:$0xf]
        %v730 = vld [vmem:[%s1 + $0xbcc] sm:$0xff]
        %v731 = vld [vmem:[%s1 + $0xbd4] sm:$0xff]
        %v732 = vld [vmem:[%s1 + $0xbdc] sm:$0xf]
        %v733 = vld [vmem:[%s1 + $0xbe0] sm:$0xff]
        %v734 = vld [vmem:[%s1 + $0xbe8] sm:$0xff]
        %v735 = vld [vmem:[%s1 + $0xbf0] sm:$0xf]
        %v736 = vld [vmem:[%s1 + $0xbf4] sm:$0xff]
        %v737 = vld [vmem:[%s1 + $0xbfc] sm:$0xff]
        %v738 = vld [vmem:[%s1 + $0xc04] sm:$0xf]
        %v739 = vld [vmem:[%s1 + $0xc08] sm:$0xff]
        %v740 = vld [vmem:[%s1 + $0xc10] sm:$0xff]
        %v741 = vld [vmem:[%s1 + $0xc18] sm:$0xf]
        %v742 = vld [vmem:[%s1 + $0xc1c] sm:$0xff]
        %v743 = vld [vmem:[%s1 + $0xc24] sm:$0xff]
        %v744 = vld [vmem:[%s1 + $0xc2c] sm:$0xf]
        %v745 = vld [vmem:[%s1 + $0xc30] sm:$0xff]
        %v746 = vld [vmem:[%s1 + $0xc38] sm:$0xff]
        %v747 = vld [vmem:[%s1 + $0xc40] sm:$0xf]
        %v748 = vld [vmem:[%s1 + $0xc44] sm:$0xff]
        %v749 = vld [vmem:[%s1 + $0xc4c] sm:$0xff]
        %v750 = vld [vmem:[%s1 + $0xc54] sm:$0xf]
        %v751 = vld [vmem:[%s1 + $0xc58] sm:$0xff]
        %v752 = vld [vmem:[%s1 + $0xc60] sm:$0xff]
        %v753 = vld [vmem:[%s1 + $0xc68] sm:$0xf]
        %v754 = vld [vmem:[%s1 + $0xc6c] sm:$0xff]
        %v755 = vld [vmem:[%s1 + $0xc74] sm:$0xff]
        %v756 = vld [vmem:[%s1 + $0xc7c] sm:$0xf]
        %v757 = vld [vmem:[%s1 + $0xc80] sm:$0xff]
        %v758 = vld [vmem:[%s1 + $0xc88] sm:$0xff]
        %v759 = vld [vmem:[%s1 + $0xc90] sm:$0xf]
        %v760 = vld [vmem:[%s1 + $0xc94] sm:$0xff]
        %v761 = vld [vmem:[%s1 + $0xc9c] sm:$0xff]
        %v762 = vld [vmem:[%s1 + $0xca4] sm:$0xf]
        %v763 = vld [vmem:[%s1 + $0xca8] sm:$0xff]
        %v764 = vld [vmem:[%s1 + $0xcb0] sm:$0xff]
        %v765 = vld [vmem:[%s1 + $0xcb8] sm:$0xf]
        %v766 = vld [vmem:[%s1 + $0xcbc] sm:$0xff]
        %v767 = vld [vmem:[%s1 + $0xcc4] sm:$0xff]
        %v768 = vld [vmem:[%s1 + $0xccc] sm:$0xf]
        %v769 = vld [vmem:[%s1 + $0xcd0] sm:$0xff]
        %v770 = vld [vmem:[%s1 + $0xcd8] sm:$0xff]
        %v771 = vld [vmem:[%s1 + $0xce0] sm:$0xf]
        %v772 = vld [vmem:[%s1 + $0xce4] sm:$0xff]
        %v773 = vld [vmem:[%s1 + $0xcec] sm:$0xff]
        %v774 = vld [vmem:[%s1 + $0xcf4] sm:$0xf]
        %v775 = vld [vmem:[%s1 + $0xcf8] sm:$0xff]
        %v776 = vld [vmem:[%s1 + $0xd00] sm:$0xff]
        %v777 = vld [vmem:[%s1 + $0xd08] sm:$0xf]
        %v778 = vld [vmem:[%s1 + $0xd0c] sm:$0xff]
        %v779 = vld [vmem:[%s1 + $0xd14] sm:$0xff]
        %v780 = vld [vmem:[%s1 + $0xd1c] sm:$0xf]
        %v781 = vld [vmem:[%s1 + $0xd20] sm:$0xff]
        %v782 = vld [vmem:[%s1 + $0xd28] sm:$0xff]
        %v783 = vld [vmem:[%s1 + $0xd30] sm:$0xf]
        %v784 = vld [vmem:[%s1 + $0xd34] sm:$0xff]
        %v785 = vld [vmem:[%s1 + $0xd3c] sm:$0xff]
        %v786 = vld [vmem:[%s1 + $0xd44] sm:$0xf]
        %v787 = vld [vmem:[%s1 + $0xd48] sm:$0xff]
        %v788 = vld [vmem:[%s1 + $0xd50] sm:$0xff]
        %v789 = vld [vmem:[%s1 + $0xd58] sm:$0xf]
        %v790 = vld [vmem:[%s1 + $0xd5c] sm:$0xff]
        %v791 = vld [vmem:[%s1 + $0xd64] sm:$0xff]
        %v792 = vld [vmem:[%s1 + $0xd6c] sm:$0xf]
        %v793 = vld [vmem:[%s1 + $0xd70] sm:$0xff]
        %v794 = vld [vmem:[%s1 + $0xd78] sm:$0xff]
        %v795 = vld [vmem:[%s1 + $0xd80] sm:$0xf]
        %v796 = vld [vmem:[%s1 + $0xd84] sm:$0xff]
        %v797 = vld [vmem:[%s1 + $0xd8c] sm:$0xff]
        %v798 = vld [vmem:[%s1 + $0xd94] sm:$0xf]
        %v799 = vld [vmem:[%s1 + $0xd98] sm:$0xff]
        %v800 = vld [vmem:[%s1 + $0xda0] sm:$0xff]
        %v801 = vld [vmem:[%s1 + $0xda8] sm:$0xf]
        %v802 = vld [vmem:[%s1 + $0xdac] sm:$0xff]
        %v803 = vld [vmem:[%s1 + $0xdb4] sm:$0xff]
        %v804 = vld [vmem:[%s1 + $0xdbc] sm:$0xf]
        %v805 = vld [vmem:[%s1 + $0xdc0] sm:$0xff]
        %v806 = vld [vmem:[%s1 + $0xdc8] sm:$0xff]
        %v807 = vld [vmem:[%s1 + $0xdd0] sm:$0xf]
        %v808 = vld [vmem:[%s1 + $0xdd4] sm:$0xff]
        %v809 = vld [vmem:[%s1 + $0xddc] sm:$0xff]
        %v810 = vld [vmem:[%s1 + $0xde4] sm:$0xf]
        %v811 = vld [vmem:[%s1 + $0xde8] sm:$0xff]
        %v812 = vld [vmem:[%s1 + $0xdf0] sm:$0xff]
        %v813 = vld [vmem:[%s1 + $0xdf8] sm:$0xf]
        %v814 = vld [vmem:[%s1 + $0xdfc] sm:$0xff]
        %v815 = vld [vmem:[%s1 + $0xe04] sm:$0xff]
        %v816 = vld [vmem:[%s1 + $0xe0c] sm:$0xf]
        %v817 = vld [vmem:[%s1 + $0xe10] sm:$0xff]
        %v818 = vld [vmem:[%s1 + $0xe18] sm:$0xff]
        %v819 = vld [vmem:[%s1 + $0xe20] sm:$0xf]
        %v820 = vld [vmem:[%s1 + $0xe24] sm:$0xff]
        %v821 = vld [vmem:[%s1 + $0xe2c] sm:$0xff]
        %v822 = vld [vmem:[%s1 + $0xe34] sm:$0xf]
        %v823 = vld [vmem:[%s1 + $0xe38] sm:$0xff]
        %v824 = vld [vmem:[%s1 + $0xe40] sm:$0xff]
        %v825 = vld [vmem:[%s1 + $0xe48] sm:$0xf]
        %v826 = vld [vmem:[%s1 + $0xe4c] sm:$0xff]
        %v827 = vld [vmem:[%s1 + $0xe54] sm:$0xff]
        %v828 = vld [vmem:[%s1 + $0xe5c] sm:$0xf]
        %v829 = vld [vmem:[%s1 + $0xe60] sm:$0xff]
        %v830 = vld [vmem:[%s1 + $0xe68] sm:$0xff]
        %v831 = vld [vmem:[%s1 + $0xe70] sm:$0xf]
        %v832 = vld [vmem:[%s1 + $0xe74] sm:$0xff]
        %v833 = vld [vmem:[%s1 + $0xe7c] sm:$0xff]
        %v834 = vld [vmem:[%s1 + $0xe84] sm:$0xf]
        %v835 = vld [vmem:[%s1 + $0xe88] sm:$0xff]
        %v836 = vld [vmem:[%s1 + $0xe90] sm:$0xff]
        %v837 = vld [vmem:[%s1 + $0xe98] sm:$0xf]
        %v838 = vld [vmem:[%s1 + $0xe9c] sm:$0xff]
        %v839 = vld [vmem:[%s1 + $0xea4] sm:$0xff]
        %v840 = vld [vmem:[%s1 + $0xeac] sm:$0xf]
        %v841 = vld [vmem:[%s1 + $0xeb0] sm:$0xff]
        %v842 = vld [vmem:[%s1 + $0xeb8] sm:$0xff]
        %v843 = vld [vmem:[%s1 + $0xec0] sm:$0xf]
        %v844 = vld [vmem:[%s1 + $0xec4] sm:$0xff]
        %v845 = vld [vmem:[%s1 + $0xecc] sm:$0xff]
        %v846 = vld [vmem:[%s1 + $0xed4] sm:$0xf]
        %v847 = vld [vmem:[%s1 + $0xed8] sm:$0xff]
        %v848 = vld [vmem:[%s1 + $0xee0] sm:$0xff]
        %v849 = vld [vmem:[%s1 + $0xee8] sm:$0xf]
        %v850 = vld [vmem:[%s1 + $0xeec] sm:$0xff]
        %v851 = vld [vmem:[%s1 + $0xef4] sm:$0xff]
        %v852 = vld [vmem:[%s1 + $0xefc] sm:$0xf]
        %v853 = vld [vmem:[%s1 + $0xf00] sm:$0xff]
        %v854 = vld [vmem:[%s1 + $0xf08] sm:$0xff]
        %v855 = vld [vmem:[%s1 + $0xf10] sm:$0xf]
        %v856 = vld [vmem:[%s1 + $0xf14] sm:$0xff]
        %v857 = vld [vmem:[%s1 + $0xf1c] sm:$0xff]
        %v858 = vld [vmem:[%s1 + $0xf24] sm:$0xf]
        %v859 = vld [vmem:[%s1 + $0xf28] sm:$0xff]
        %v860 = vld [vmem:[%s1 + $0xf30] sm:$0xff]
        %v861 = vld [vmem:[%s1 + $0xf38] sm:$0xf]
        %v862 = vld [vmem:[%s1 + $0xf3c] sm:$0xff]
        %v863 = vld [vmem:[%s1 + $0xf44] sm:$0xff]
        %v864 = vld [vmem:[%s1 + $0xf4c] sm:$0xf]
        %v865 = vld [vmem:[%s1 + $0xf50] sm:$0xff]
        %v866 = vld [vmem:[%s1 + $0xf58] sm:$0xff]
        %v867 = vld [vmem:[%s1 + $0xf60] sm:$0xf]
        %v868 = vld [vmem:[%s1 + $0xf64] sm:$0xff]
        %v869 = vld [vmem:[%s1 + $0xf6c] sm:$0xff]
        %v870 = vld [vmem:[%s1 + $0xf74] sm:$0xf]
        %v871 = vld [vmem:[%s1 + $0xf78] sm:$0xff]
        %v872 = vld [vmem:[%s1 + $0xf80] sm:$0xff]
        %v873 = vld [vmem:[%s1 + $0xf88] sm:$0xf]
        %v874 = vld [vmem:[%s1 + $0xf8c] sm:$0xff]
        %v875 = vld [vmem:[%s1 + $0xf94] sm:$0xff]
        %v876 = vld [vmem:[%s1 + $0xf9c] sm:$0xf]
        %v877 = vld [vmem:[%s1 + $0xfa0] sm:$0xff]
        %v878 = vld [vmem:[%s1 + $0xfa8] sm:$0xff]
        %v879 = vld [vmem:[%s1 + $0xfb0] sm:$0xf]
        %v880 = vld [vmem:[%s1 + $0xfb4] sm:$0xff]
        %v881 = vld [vmem:[%s1 + $0xfbc] sm:$0xff]
        %v882 = vld [vmem:[%s1 + $0xfc4] sm:$0xf]
        %v883 = vld [vmem:[%s1 + $0xfc8] sm:$0xff]
        %v884 = vld [vmem:[%s1 + $0xfd0] sm:$0xff]
        %v885 = vld [vmem:[%s1 + $0xfd8] sm:$0xf]
        %v886 = vld [vmem:[%s1 + $0xfdc] sm:$0xff]
        %v887 = vld [vmem:[%s1 + $0xfe4] sm:$0xff]
        %v888 = vld [vmem:[%s1 + $0xfec] sm:$0xf]
        %v889 = vld [vmem:[%s1 + $0xff0] sm:$0xff]
        %v890 = vld [vmem:[%s1 + $0xff8] sm:$0xff]
        %v891 = vld [vmem:[%s1 + $0x1000] sm:$0xf]
        %v892 = vld [vmem:[%s1 + $0x1004] sm:$0xff]
        %v893 = vld [vmem:[%s1 + $0x100c] sm:$0xff]
        %v894 = vld [vmem:[%s1 + $0x1014] sm:$0xf]
        %v895 = vld [vmem:[%s1 + $0x1018] sm:$0xff]
        %v896 = vld [vmem:[%s1 + $0x1020] sm:$0xff]
        %v897 = vld [vmem:[%s1 + $0x1028] sm:$0xf]
        %v898 = vld [vmem:[%s1 + $0x102c] sm:$0xff]
        %v899 = vld [vmem:[%s1 + $0x1034] sm:$0xff]
        %v900 = vld [vmem:[%s1 + $0x103c] sm:$0xf]
        %v901 = vld [vmem:[%s1 + $0x1040] sm:$0xff]
        %v902 = vld [vmem:[%s1 + $0x1048] sm:$0xff]
        %v903 = vld [vmem:[%s1 + $0x1050] sm:$0xf]
        %v904 = vld [vmem:[%s1 + $0x1054] sm:$0xff]
        %v905 = vld [vmem:[%s1 + $0x105c] sm:$0xff]
        %v906 = vld [vmem:[%s1 + $0x1064] sm:$0xf]
        %v907 = vld [vmem:[%s1 + $0x1068] sm:$0xff]
        %v908 = vld [vmem:[%s1 + $0x1070] sm:$0xff]
        %v909 = vld [vmem:[%s1 + $0x1078] sm:$0xf]
        %v910 = vld [vmem:[%s1 + $0x107c] sm:$0xff]
        %v911 = vld [vmem:[%s1 + $0x1084] sm:$0xff]
        %v912 = vld [vmem:[%s1 + $0x108c] sm:$0xf]
        %v913 = vld [vmem:[%s1 + $0x1090] sm:$0xff]
        %v914 = vld [vmem:[%s1 + $0x1098] sm:$0xff]
        %v915 = vld [vmem:[%s1 + $0x10a0] sm:$0xf]
        %v916 = vld [vmem:[%s1 + $0x10a4] sm:$0xff]
        %v917 = vld [vmem:[%s1 + $0x10ac] sm:$0xff]
        %v918 = vld [vmem:[%s1 + $0x10b4] sm:$0xf]
        %v919 = vld [vmem:[%s1 + $0x10b8] sm:$0xff]
        %v920 = vld [vmem:[%s1 + $0x10c0] sm:$0xff]
        %v921 = vld [vmem:[%s1 + $0x10c8] sm:$0xf]
        %v922 = vld [vmem:[%s1 + $0x10cc] sm:$0xff]
        %v923 = vld [vmem:[%s1 + $0x10d4] sm:$0xff]
        %v924 = vld [vmem:[%s1 + $0x10dc] sm:$0xf]
        %v925 = vld [vmem:[%s1 + $0x10e0] sm:$0xff]
        %v926 = vld [vmem:[%s1 + $0x10e8] sm:$0xff]
        %v927 = vld [vmem:[%s1 + $0x10f0] sm:$0xf]
        %v928 = vld [vmem:[%s1 + $0x10f4] sm:$0xff]
        %v929 = vld [vmem:[%s1 + $0x10fc] sm:$0xff]
        %v930 = vld [vmem:[%s1 + $0x1104] sm:$0xf]
        %v931 = vld [vmem:[%s1 + $0x1108] sm:$0xff]
        %v932 = vld [vmem:[%s1 + $0x1110] sm:$0xff]
        %v933 = vld [vmem:[%s1 + $0x1118] sm:$0xf]
        %v934 = vld [vmem:[%s1 + $0x111c] sm:$0xff]
        %v935 = vld [vmem:[%s1 + $0x1124] sm:$0xff]
        %v936 = vld [vmem:[%s1 + $0x112c] sm:$0xf]
        %v937 = vld [vmem:[%s1 + $0x1130] sm:$0xff]
        %v938 = vld [vmem:[%s1 + $0x1138] sm:$0xff]
        %v939 = vld [vmem:[%s1 + $0x1140] sm:$0xf]
        %v940 = vld [vmem:[%s1 + $0x1144] sm:$0xff]
        %v941 = vld [vmem:[%s1 + $0x114c] sm:$0xff]
        %v942 = vld [vmem:[%s1 + $0x1154] sm:$0xf]
        %v943 = vld [vmem:[%s1 + $0x1158] sm:$0xff]
        %v944 = vld [vmem:[%s1 + $0x1160] sm:$0xff]
        %v945 = vld [vmem:[%s1 + $0x1168] sm:$0xf]
        %v946 = vld [vmem:[%s1 + $0x116c] sm:$0xff]
        %v947 = vld [vmem:[%s1 + $0x1174] sm:$0xff]
        %v948 = vld [vmem:[%s1 + $0x117c] sm:$0xf]
        %v949 = vld [vmem:[%s1 + $0x1180] sm:$0xff]
        %v950 = vld [vmem:[%s1 + $0x1188] sm:$0xff]
        %v951 = vld [vmem:[%s1 + $0x1190] sm:$0xf]
        %v952 = vld [vmem:[%s1 + $0x1194] sm:$0xff]
        %v953 = vld [vmem:[%s1 + $0x119c] sm:$0xff]
        %v954 = vld [vmem:[%s1 + $0x11a4] sm:$0xf]
        %v955 = vld [vmem:[%s1 + $0x11a8] sm:$0xff]
        %v956 = vld [vmem:[%s1 + $0x11b0] sm:$0xff]
        %v957 = vld [vmem:[%s1 + $0x11b8] sm:$0xf]
        %v958 = vld [vmem:[%s1 + $0x11bc] sm:$0xff]
        %v959 = vld [vmem:[%s1 + $0x11c4] sm:$0xff]
        %v960 = vld [vmem:[%s1 + $0x11cc] sm:$0xf]
        %v961 = vld [vmem:[%s1 + $0x11d0] sm:$0xff]
        %v962 = vld [vmem:[%s1 + $0x11d8] sm:$0xff]
        %v963 = vld [vmem:[%s1 + $0x11e0] sm:$0xf]
        %v964 = vld [vmem:[%s1 + $0x11e4] sm:$0xff]
        %v965 = vld [vmem:[%s1 + $0x11ec] sm:$0xff]
        %v966 = vld [vmem:[%s1 + $0x11f4] sm:$0xf]
        %v967 = vld [vmem:[%s1 + $0x11f8] sm:$0xff]
        %v968 = vld [vmem:[%s1 + $0x1200] sm:$0xff]
        %v969 = vld [vmem:[%s1 + $0x1208] sm:$0xf]
        %v970 = vld [vmem:[%s1 + $0x120c] sm:$0xff]
        %v971 = vld [vmem:[%s1 + $0x1214] sm:$0xff]
        %v972 = vld [vmem:[%s1 + $0x121c] sm:$0xf]
        %v973 = vld [vmem:[%s1 + $0x1220] sm:$0xff]
        %v974 = vld [vmem:[%s1 + $0x1228] sm:$0xff]
        %v975 = vld [vmem:[%s1 + $0x1230] sm:$0xf]
        %v976 = vld [vmem:[%s1 + $0x1234] sm:$0xff]
        %v977 = vld [vmem:[%s1 + $0x123c] sm:$0xff]
        %v978 = vld [vmem:[%s1 + $0x1244] sm:$0xf]
        %v979 = vld [vmem:[%s1 + $0x1248] sm:$0xff]
        %v980 = vld [vmem:[%s1 + $0x1250] sm:$0xff]
        %v981 = vld [vmem:[%s1 + $0x1258] sm:$0xf]
        %v982 = vld [vmem:[%s1 + $0x125c] sm:$0xff]
        %v983 = vld [vmem:[%s1 + $0x1264] sm:$0xff]
        %v984 = vld [vmem:[%s1 + $0x126c] sm:$0xf]
        %v985 = vld [vmem:[%s1 + $0x1270] sm:$0xff]
        %v986 = vld [vmem:[%s1 + $0x1278] sm:$0xff]
        %v987 = vld [vmem:[%s1 + $0x1280] sm:$0xf]
        %v988 = vld [vmem:[%s1 + $0x1284] sm:$0xff]
        %v989 = vld [vmem:[%s1 + $0x128c] sm:$0xff]
        %v990 = vld [vmem:[%s1 + $0x1294] sm:$0xf]
        %v991 = vld [vmem:[%s1 + $0x1298] sm:$0xff]
        %v992 = vld [vmem:[%s1 + $0x12a0] sm:$0xff]
        %v993 = vld [vmem:[%s1 + $0x12a8] sm:$0xf]
        %v994 = vld [vmem:[%s1 + $0x12ac] sm:$0xff]
        %v995 = vld [vmem:[%s1 + $0x12b4] sm:$0xff]
        %v996 = vld [vmem:[%s1 + $0x12bc] sm:$0xf]
        %v997 = vld [vmem:[%s1 + $0x12c0] sm:$0xff]
        %v998 = vld [vmem:[%s1 + $0x12c8] sm:$0xff]
        %v999 = vld [vmem:[%s1 + $0x12d0] sm:$0xf]
        %v1000 = vld [vmem:[%s1 + $0x12d4] sm:$0xff]
        %v1001 = vld [vmem:[%s1 + $0x12dc] sm:$0xff]
        %v1002 = vld [vmem:[%s1 + $0x12e4] sm:$0xf]
        %v1003 = vld [vmem:[%s1 + $0x12e8] sm:$0xff]
        %v1004 = vld [vmem:[%s1 + $0x12f0] sm:$0xff]
        %v1005 = vld [vmem:[%s1 + $0x12f8] sm:$0xf]
        %v1006 = vld [vmem:[%s1 + $0x12fc] sm:$0xff]
        %v1007 = vld [vmem:[%s1 + $0x1304] sm:$0xff]
        %v1008 = vld [vmem:[%s1 + $0x130c] sm:$0xf]
        %v1009 = vld [vmem:[%s1 + $0x1310] sm:$0xff]
        %v1010 = vld [vmem:[%s1 + $0x1318] sm:$0xff]
        %v1011 = vld [vmem:[%s1 + $0x1320] sm:$0xf]
        %v1012 = vld [vmem:[%s1 + $0x1324] sm:$0xff]
        %v1013 = vld [vmem:[%s1 + $0x132c] sm:$0xff]
        %v1014 = vld [vmem:[%s1 + $0x1334] sm:$0xf]
        %v1015 = vld [vmem:[%s1 + $0x1338] sm:$0xff]
        %v1016 = vld [vmem:[%s1 + $0x1340] sm:$0xff]
        %v1017 = vld [vmem:[%s1 + $0x1348] sm:$0xf]
        %v1018 = vld [vmem:[%s1 + $0x134c] sm:$0xff]
        %v1019 = vld [vmem:[%s1 + $0x1354] sm:$0xff]
        %v1020 = vld [vmem:[%s1 + $0x135c] sm:$0xf]
        %v1021 = vld [vmem:[%s1 + $0x1360] sm:$0xff]
        %v1022 = vld [vmem:[%s1 + $0x1368] sm:$0xff]
        %v1023 = vld [vmem:[%s1 + $0x1370] sm:$0xf]
        %v1024 = vld [vmem:[%s1 + $0x1374] sm:$0xff]
        %v1025 = vld [vmem:[%s1 + $0x137c] sm:$0xff]
        %v1026 = vld [vmem:[%s1 + $0x1384] sm:$0xf]
        %v1027 = vld [vmem:[%s1 + $0x1388] sm:$0xff]
        %v1028 = vld [vmem:[%s1 + $0x1390] sm:$0xff]
        %v1029 = vld [vmem:[%s1 + $0x1398] sm:$0xf]
        %v1030 = vld [vmem:[%s1 + $0x139c] sm:$0xff]
        %v1031 = vld [vmem:[%s1 + $0x13a4] sm:$0xff]
        %v1032 = vld [vmem:[%s1 + $0x13ac] sm:$0xf]
        %v1033 = vld [vmem:[%s1 + $0x13b0] sm:$0xff]
        %v1034 = vld [vmem:[%s1 + $0x13b8] sm:$0xff]
        %v1035 = vld [vmem:[%s1 + $0x13c0] sm:$0xf]
        %v1036 = vld [vmem:[%s1 + $0x13c4] sm:$0xff]
        %v1037 = vld [vmem:[%s1 + $0x13cc] sm:$0xff]
        %v1038 = vld [vmem:[%s1 + $0x13d4] sm:$0xf]
        %v1039 = vld [vmem:[%s1 + $0x13d8] sm:$0xff]
        %v1040 = vld [vmem:[%s1 + $0x13e0] sm:$0xff]
        %v1041 = vld [vmem:[%s1 + $0x13e8] sm:$0xf]
        %v1042 = vld [vmem:[%s1 + $0x13ec] sm:$0xff]
        %v1043 = vld [vmem:[%s1 + $0x13f4] sm:$0xff]
        %v1044 = vld [vmem:[%s1 + $0x13fc] sm:$0xf]
        %v1045 = vld [vmem:[%s1 + $0x1400] sm:$0xff]
        %v1046 = vld [vmem:[%s1 + $0x1408] sm:$0xff]
        %v1047 = vld [vmem:[%s1 + $0x1410] sm:$0xf]
        %v1048 = vld [vmem:[%s1 + $0x1414] sm:$0xff]
        %v1049 = vld [vmem:[%s1 + $0x141c] sm:$0xff]
        %v1050 = vld [vmem:[%s1 + $0x1424] sm:$0xf]
        %v1051 = vld [vmem:[%s1 + $0x1428] sm:$0xff]
        %v1052 = vld [vmem:[%s1 + $0x1430] sm:$0xff]
        %v1053 = vld [vmem:[%s1 + $0x1438] sm:$0xf]
        %v1054 = vld [vmem:[%s1 + $0x143c] sm:$0xff]
        %v1055 = vld [vmem:[%s1 + $0x1444] sm:$0xff]
        %v1056 = vld [vmem:[%s1 + $0x144c] sm:$0xf]
        %v1057 = vld [vmem:[%s1 + $0x1450] sm:$0xff]
        %v1058 = vld [vmem:[%s1 + $0x1458] sm:$0xff]
        %v1059 = vld [vmem:[%s1 + $0x1460] sm:$0xf]
        %v1060 = vld [vmem:[%s1 + $0x1464] sm:$0xff]
        %v1061 = vld [vmem:[%s1 + $0x146c] sm:$0xff]
        %v1062 = vld [vmem:[%s1 + $0x1474] sm:$0xf]
        %v1063 = vld [vmem:[%s1 + $0x1478] sm:$0xff]
        %v1064 = vld [vmem:[%s1 + $0x1480] sm:$0xff]
        %v1065 = vld [vmem:[%s1 + $0x1488] sm:$0xf]
        %v1066 = vld [vmem:[%s1 + $0x148c] sm:$0xff]
        %v1067 = vld [vmem:[%s1 + $0x1494] sm:$0xff]
        %v1068 = vld [vmem:[%s1 + $0x149c] sm:$0xf]
        %v1069 = vld [vmem:[%s1 + $0x14a0] sm:$0xff]
        %v1070 = vld [vmem:[%s1 + $0x14a8] sm:$0xff]
        %v1071 = vld [vmem:[%s1 + $0x14b0] sm:$0xf]
        %v1072 = vld [vmem:[%s1 + $0x14b4] sm:$0xff]
        %v1073 = vld [vmem:[%s1 + $0x14bc] sm:$0xff]
        %v1074 = vld [vmem:[%s1 + $0x14c4] sm:$0xf]
        %v1075 = vld [vmem:[%s1 + $0x14c8] sm:$0xff]
        %v1076 = vld [vmem:[%s1 + $0x14d0] sm:$0xff]
        %v1077 = vld [vmem:[%s1 + $0x14d8] sm:$0xf]
        %v1078 = vld [vmem:[%s1 + $0x14dc] sm:$0xff]
        %v1079 = vld [vmem:[%s1 + $0x14e4] sm:$0xff]
        %v1080 = vld [vmem:[%s1 + $0x14ec] sm:$0xf]
        %v1081 = vld [vmem:[%s1 + $0x14f0] sm:$0xff]
        %v1082 = vld [vmem:[%s1 + $0x14f8] sm:$0xff]
        %v1083 = vld [vmem:[%s1 + $0x1500] sm:$0xf]
        %v1084 = vld [vmem:[%s1 + $0x1504] sm:$0xff]
        %v1085 = vld [vmem:[%s1 + $0x150c] sm:$0xff]
        %v1086 = vld [vmem:[%s1 + $0x1514] sm:$0xf]
        %v1087 = vld [vmem:[%s1 + $0x1518] sm:$0xff]
        %v1088 = vld [vmem:[%s1 + $0x1520] sm:$0xff]
        %v1089 = vld [vmem:[%s1 + $0x1528] sm:$0xf]
        %v1090 = vld [vmem:[%s1 + $0x152c] sm:$0xff]
        %v1091 = vld [vmem:[%s1 + $0x1534] sm:$0xff]
        %v1092 = vld [vmem:[%s1 + $0x153c] sm:$0xf]
        %v1093 = vld [vmem:[%s1 + $0x1540] sm:$0xff]
        %v1094 = vld [vmem:[%s1 + $0x1548] sm:$0xff]
        %v1095 = vld [vmem:[%s1 + $0x1550] sm:$0xf]
        %v1096 = vld [vmem:[%s1 + $0x1554] sm:$0xff]
        %v1097 = vld [vmem:[%s1 + $0x155c] sm:$0xff]
        %v1098 = vld [vmem:[%s1 + $0x1564] sm:$0xf]
        %v1099 = vld [vmem:[%s1 + $0x1568] sm:$0xff]
        %v1100 = vld [vmem:[%s1 + $0x1570] sm:$0xff]
        %v1101 = vld [vmem:[%s1 + $0x1578] sm:$0xf]
        %v1102 = vld [vmem:[%s1 + $0x157c] sm:$0xff]
        %v1103 = vld [vmem:[%s1 + $0x1584] sm:$0xff]
        %v1104 = vld [vmem:[%s1 + $0x158c] sm:$0xf]
        %v1105 = vld [vmem:[%s1 + $0x1590] sm:$0xff]
        %v1106 = vld [vmem:[%s1 + $0x1598] sm:$0xff]
        %v1107 = vld [vmem:[%s1 + $0x15a0] sm:$0xf]
        %v1108 = vld [vmem:[%s1 + $0x15a4] sm:$0xff]
        %v1109 = vld [vmem:[%s1 + $0x15ac] sm:$0xff]
        %v1110 = vld [vmem:[%s1 + $0x15b4] sm:$0xf]
        %v1111 = vld [vmem:[%s1 + $0x15b8] sm:$0xff]
        %v1112 = vld [vmem:[%s1 + $0x15c0] sm:$0xff]
        %v1113 = vld [vmem:[%s1 + $0x15c8] sm:$0xf]
        %v1114 = vld [vmem:[%s1 + $0x15cc] sm:$0xff]
        %v1115 = vld [vmem:[%s1 + $0x15d4] sm:$0xff]
        %v1116 = vld [vmem:[%s1 + $0x15dc] sm:$0xf]
        %v1117 = vld [vmem:[%s1 + $0x15e0] sm:$0xff]
        %v1118 = vld [vmem:[%s1 + $0x15e8] sm:$0xff]
        %v1119 = vld [vmem:[%s1 + $0x15f0] sm:$0xf]
        %v1120 = vld [vmem:[%s1 + $0x15f4] sm:$0xff]
        %v1121 = vld [vmem:[%s1 + $0x15fc] sm:$0xff]
        %v1122 = vld [vmem:[%s1 + $0x1604] sm:$0xf]
        %v1123 = vld [vmem:[%s1 + $0x1608] sm:$0xff]
        %v1124 = vld [vmem:[%s1 + $0x1610] sm:$0xff]
        %v1125 = vld [vmem:[%s1 + $0x1618] sm:$0xf]
        %v1126 = vld [vmem:[%s1 + $0x161c] sm:$0xff]
        %v1127 = vld [vmem:[%s1 + $0x1624] sm:$0xff]
        %v1128 = vld [vmem:[%s1 + $0x162c] sm:$0xf]
        %v1129 = vld [vmem:[%s1 + $0x1630] sm:$0xff]
        %v1130 = vld [vmem:[%s1 + $0x1638] sm:$0xff]
        %v1131 = vld [vmem:[%s1 + $0x1640] sm:$0xf]
        %v1132 = vld [vmem:[%s1 + $0x1644] sm:$0xff]
        %v1133 = vld [vmem:[%s1 + $0x164c] sm:$0xff]
        %v1134 = vld [vmem:[%s1 + $0x1654] sm:$0xf]
        %v1135 = vld [vmem:[%s1 + $0x1658] sm:$0xff]
        %v1136 = vld [vmem:[%s1 + $0x1660] sm:$0xff]
        %v1137 = vld [vmem:[%s1 + $0x1668] sm:$0xf]
        %v1138 = vld [vmem:[%s1 + $0x166c] sm:$0xff]
        %v1139 = vld [vmem:[%s1 + $0x1674] sm:$0xff]
        %v1140 = vld [vmem:[%s1 + $0x167c] sm:$0xf]
        %v1141 = vld [vmem:[%s2] sm:$0x1f]
        %v1145 = vcombine.high %v274, %v274
        %v1147 = vunpack.c.l.s4 1966171168
        %v1148 = vunpack.c.0.s8 %v1147
        %v1149 = vlaneseq
        %v1150 = vshrl.u32 %v1149, 7
        %v1151 = vsub.s32 %v1148, %v1150
        %v1152 = vrot.slane %v274, %v1151
        %v1154 = vunpack.c.l.s4 1966171168
        %v1155 = vunpack.c.0.s8 %v1154
        %v1156 = vlaneseq
        %v1157 = vshrl.u32 %v1156, 7
        %v1158 = vsub.s32 %v1155, %v1157
        %v1159 = vrot.slane %v1145, %v1158
        %v1160 = vcombine.high %v1152, %v1152
        %v1161 = vcombine.high %v1159, %v1159
        %v1163 = vunpack.c.l.s4 1966171168
        %v1164 = vunpack.c.0.s8 %v1163
        %v1165 = vlaneseq
        %v1166 = vshrl.u32 %v1165, 7
        %v1167 = vsub.s32 %v1164, %v1166
        %v1168 = vrot.slane %v1152, %v1167
        %v1170 = vunpack.c.l.s4 1966171168
        %v1171 = vunpack.c.0.s8 %v1170
        %v1172 = vlaneseq
        %v1173 = vshrl.u32 %v1172, 7
        %v1174 = vsub.s32 %v1171, %v1173
        %v1175 = vrot.slane %v1159, %v1174
        %v1177 = vunpack.c.l.s4 1966171168
        %v1178 = vunpack.c.0.s8 %v1177
        %v1179 = vlaneseq
        %v1180 = vshrl.u32 %v1179, 7
        %v1181 = vsub.s32 %v1178, %v1180
        %v1182 = vrot.slane %v1160, %v1181
        %v1184 = vunpack.c.l.s4 1966171168
        %v1185 = vunpack.c.0.s8 %v1184
        %v1186 = vlaneseq
        %v1187 = vshrl.u32 %v1186, 7
        %v1188 = vsub.s32 %v1185, %v1187
        %v1189 = vrot.slane %v1161, %v1188
        %v1190 = vcombine.high %v1168, %v1168
        %v1191 = vcombine.high %v1175, %v1175
        %v1192 = vcombine.high %v1182, %v1182
        %v1193 = vcombine.high %v1189, %v1189
        %v1194 = vcombine.high %v275, %v275
        %v1196 = vunpack.c.l.s4 1966171168
        %v1197 = vunpack.c.0.s8 %v1196
        %v1198 = vlaneseq
        %v1199 = vshrl.u32 %v1198, 7
        %v1200 = vsub.s32 %v1197, %v1199
        %v1201 = vrot.slane %v275, %v1200
        %v1203 = vunpack.c.l.s4 1966171168
        %v1204 = vunpack.c.0.s8 %v1203
        %v1205 = vlaneseq
        %v1206 = vshrl.u32 %v1205, 7
        %v1207 = vsub.s32 %v1204, %v1206
        %v1208 = vrot.slane %v1194, %v1207
        %v1209 = vcombine.high %v1201, %v1201
        %v1210 = vcombine.high %v1208, %v1208
        %v1212 = vunpack.c.l.s4 1966171168
        %v1213 = vunpack.c.0.s8 %v1212
        %v1214 = vlaneseq
        %v1215 = vshrl.u32 %v1214, 7
        %v1216 = vsub.s32 %v1213, %v1215
        %v1217 = vrot.slane %v1201, %v1216
        %v1219 = vunpack.c.l.s4 1966171168
        %v1220 = vunpack.c.0.s8 %v1219
        %v1221 = vlaneseq
        %v1222 = vshrl.u32 %v1221, 7
        %v1223 = vsub.s32 %v1220, %v1222
        %v1224 = vrot.slane %v1208, %v1223
        %v1226 = vunpack.c.l.s4 1966171168
        %v1227 = vunpack.c.0.s8 %v1226
        %v1228 = vlaneseq
        %v1229 = vshrl.u32 %v1228, 7
        %v1230 = vsub.s32 %v1227, %v1229
        %v1231 = vrot.slane %v1209, %v1230
        %v1233 = vunpack.c.l.s4 1966171168
        %v1234 = vunpack.c.0.s8 %v1233
        %v1235 = vlaneseq
        %v1236 = vshrl.u32 %v1235, 7
        %v1237 = vsub.s32 %v1234, %v1236
        %v1238 = vrot.slane %v1210, %v1237
        %v1239 = vcombine.high %v1217, %v1217
        %v1240 = vcombine.high %v1224, %v1224
        %v1241 = vcombine.high %v1231, %v1231
        %v1242 = vcombine.high %v1238, %v1238
        %v1244 = vunpack.c.l.s4 1966171168
        %v1245 = vunpack.c.0.s8 %v1244
        %v1246 = vlaneseq
        %v1247 = vshrl.u32 %v1246, 7
        %v1248 = vsub.s32 %v1245, %v1247
        %v1249 = vrot.slane %v276, %v1248
        %v1250 = vcombine.high %v1249, %v1249
        %v1252 = vunpack.c.l.s4 1966171168
        %v1253 = vunpack.c.0.s8 %v1252
        %v1254 = vlaneseq
        %v1255 = vshrl.u32 %v1254, 7
        %v1256 = vsub.s32 %v1253, %v1255
        %v1257 = vrot.slane %v1249, %v1256
        %v1259 = vunpack.c.l.s4 1966171168
        %v1260 = vunpack.c.0.s8 %v1259
        %v1261 = vlaneseq
        %v1262 = vshrl.u32 %v1261, 7
        %v1263 = vsub.s32 %v1260, %v1262
        %v1264 = vrot.slane %v1250, %v1263
        %v2147 = vunpack.c.l.b16 %v277
        %v2148 = vunpack.c.h.b16 %v277
        %v2149 = vunpack.c.l.b16 %v278
        %v2150 = vunpack.c.h.b16 %v278
        %v2151 = vunpack.c.l.b16 %v279
        %v2152 = vunpack.c.l.b16 %v280
        %v2153 = vunpack.c.h.b16 %v280
        %v2154 = vunpack.c.l.b16 %v281
        %v2155 = vunpack.c.h.b16 %v281
        %v2156 = vunpack.c.l.b16 %v282
        %v2157 = vunpack.c.l.b16 %v283
        %v2158 = vunpack.c.h.b16 %v283
        %v2159 = vunpack.c.l.b16 %v284
        %v2160 = vunpack.c.h.b16 %v284
        %v2161 = vunpack.c.l.b16 %v285
        %v2162 = vunpack.c.l.b16 %v286
        %v2163 = vunpack.c.h.b16 %v286
        %v2164 = vunpack.c.l.b16 %v287
        %v2165 = vunpack.c.h.b16 %v287
        %v2166 = vunpack.c.l.b16 %v288
        %v2167 = vunpack.c.l.b16 %v289
        %v2168 = vunpack.c.h.b16 %v289
        %v2169 = vunpack.c.l.b16 %v290
        %v2170 = vunpack.c.h.b16 %v290
        %v2171 = vunpack.c.l.b16 %v291
        %v2172 = vunpack.c.l.b16 %v292
        %v2173 = vunpack.c.h.b16 %v292
        %v2174 = vunpack.c.l.b16 %v293
        %v2175 = vunpack.c.h.b16 %v293
        %v2176 = vunpack.c.l.b16 %v294
        %v2177 = vunpack.c.l.b16 %v295
        %v2178 = vunpack.c.h.b16 %v295
        %v2179 = vunpack.c.l.b16 %v296
        %v2180 = vunpack.c.h.b16 %v296
        %v2181 = vunpack.c.l.b16 %v297
        %v2182 = vunpack.c.l.b16 %v298
        %v2183 = vunpack.c.h.b16 %v298
        %v2184 = vunpack.c.l.b16 %v299
        %v2185 = vunpack.c.h.b16 %v299
        %v2186 = vunpack.c.l.b16 %v300
        %v2187 = vunpack.c.l.b16 %v301
        %v2188 = vunpack.c.h.b16 %v301
        %v2189 = vunpack.c.l.b16 %v302
        %v2190 = vunpack.c.h.b16 %v302
        %v2191 = vunpack.c.l.b16 %v303
        %v2192 = vunpack.c.l.b16 %v304
        %v2193 = vunpack.c.h.b16 %v304
        %v2194 = vunpack.c.l.b16 %v305
        %v2195 = vunpack.c.h.b16 %v305
        %v2196 = vunpack.c.l.b16 %v306
        %v2197 = vunpack.c.l.b16 %v307
        %v2198 = vunpack.c.h.b16 %v307
        %v2199 = vunpack.c.l.b16 %v308
        %v2200 = vunpack.c.h.b16 %v308
        %v2201 = vunpack.c.l.b16 %v309
        %v2202 = vunpack.c.l.b16 %v310
        %v2203 = vunpack.c.h.b16 %v310
        %v2204 = vunpack.c.l.b16 %v311
        %v2205 = vunpack.c.h.b16 %v311
        %v2206 = vunpack.c.l.b16 %v312
        %v2207 = vunpack.c.l.b16 %v313
        %v2208 = vunpack.c.h.b16 %v313
        %v2209 = vunpack.c.l.b16 %v314
        %v2210 = vunpack.c.h.b16 %v314
        %v2211 = vunpack.c.l.b16 %v315
        %v2212 = vunpack.c.l.b16 %v316
        %v2213 = vunpack.c.h.b16 %v316
        %v2214 = vunpack.c.l.b16 %v317
        %v2215 = vunpack.c.h.b16 %v317
        %v2216 = vunpack.c.l.b16 %v318
        %v2217 = vunpack.c.l.b16 %v319
        %v2218 = vunpack.c.h.b16 %v319
        %v2219 = vunpack.c.l.b16 %v320
        %v2220 = vunpack.c.h.b16 %v320
        %v2221 = vunpack.c.l.b16 %v321
        %v2222 = vunpack.c.l.b16 %v322
        %v2223 = vunpack.c.h.b16 %v322
        %v2224 = vunpack.c.l.b16 %v323
        %v2225 = vunpack.c.h.b16 %v323
        %v2226 = vunpack.c.l.b16 %v324
        %v2227 = vunpack.c.l.b16 %v325
        %v2228 = vunpack.c.h.b16 %v325
        %v2229 = vunpack.c.l.b16 %v326
        %v2230 = vunpack.c.h.b16 %v326
        %v2231 = vunpack.c.l.b16 %v327
        %v2232 = vunpack.c.l.b16 %v328
        %v2233 = vunpack.c.h.b16 %v328
        %v2234 = vunpack.c.l.b16 %v329
        %v2235 = vunpack.c.h.b16 %v329
        %v2236 = vunpack.c.l.b16 %v330
        %v2237 = vunpack.c.l.b16 %v331
        %v2238 = vunpack.c.h.b16 %v331
        %v2239 = vunpack.c.l.b16 %v332
        %v2240 = vunpack.c.h.b16 %v332
        %v2241 = vunpack.c.l.b16 %v333
        %v2242 = vunpack.c.l.b16 %v334
        %v2243 = vunpack.c.h.b16 %v334
        %v2244 = vunpack.c.l.b16 %v335
        %v2245 = vunpack.c.h.b16 %v335
        %v2246 = vunpack.c.l.b16 %v336
        %v2247 = vunpack.c.l.b16 %v337
        %v2248 = vunpack.c.h.b16 %v337
        %v2249 = vunpack.c.l.b16 %v338
        %v2250 = vunpack.c.h.b16 %v338
        %v2251 = vunpack.c.l.b16 %v339
        %v2252 = vunpack.c.l.b16 %v340
        %v2253 = vunpack.c.h.b16 %v340
        %v2254 = vunpack.c.l.b16 %v341
        %v2255 = vunpack.c.h.b16 %v341
        %v2256 = vunpack.c.l.b16 %v342
        %v2257 = vunpack.c.l.b16 %v343
        %v2258 = vunpack.c.h.b16 %v343
        %v2259 = vunpack.c.l.b16 %v344
        %v2260 = vunpack.c.h.b16 %v344
        %v2261 = vunpack.c.l.b16 %v345
        %v2262 = vunpack.c.l.b16 %v346
        %v2263 = vunpack.c.h.b16 %v346
        %v2264 = vunpack.c.l.b16 %v347
        %v2265 = vunpack.c.h.b16 %v347
        %v2266 = vunpack.c.l.b16 %v348
        %v2267 = vunpack.c.l.b16 %v349
        %v2268 = vunpack.c.h.b16 %v349
        %v2269 = vunpack.c.l.b16 %v350
        %v2270 = vunpack.c.h.b16 %v350
        %v2271 = vunpack.c.l.b16 %v351
        %v2272 = vunpack.c.l.b16 %v352
        %v2273 = vunpack.c.h.b16 %v352
        %v2274 = vunpack.c.l.b16 %v353
        %v2275 = vunpack.c.h.b16 %v353
        %v2276 = vunpack.c.l.b16 %v354
        %v2277 = vunpack.c.l.b16 %v355
        %v2278 = vunpack.c.h.b16 %v355
        %v2279 = vunpack.c.l.b16 %v356
        %v2280 = vunpack.c.h.b16 %v356
        %v2281 = vunpack.c.l.b16 %v357
        %v2282 = vunpack.c.l.b16 %v358
        %v2283 = vunpack.c.h.b16 %v358
        %v2284 = vunpack.c.l.b16 %v359
        %v2285 = vunpack.c.h.b16 %v359
        %v2286 = vunpack.c.l.b16 %v360
        %v2287 = vunpack.c.l.b16 %v361
        %v2288 = vunpack.c.h.b16 %v361
        %v2289 = vunpack.c.l.b16 %v362
        %v2290 = vunpack.c.h.b16 %v362
        %v2291 = vunpack.c.l.b16 %v363
        %v2292 = vunpack.c.l.b16 %v364
        %v2293 = vunpack.c.h.b16 %v364
        %v2294 = vunpack.c.l.b16 %v365
        %v2295 = vunpack.c.h.b16 %v365
        %v2296 = vunpack.c.l.b16 %v366
        %v2297 = vunpack.c.l.b16 %v367
        %v2298 = vunpack.c.h.b16 %v367
        %v2299 = vunpack.c.l.b16 %v368
        %v2300 = vunpack.c.h.b16 %v368
        %v2301 = vunpack.c.l.b16 %v369
        %v2302 = vunpack.c.l.b16 %v370
        %v2303 = vunpack.c.h.b16 %v370
        %v2304 = vunpack.c.l.b16 %v371
        %v2305 = vunpack.c.h.b16 %v371
        %v2306 = vunpack.c.l.b16 %v372
        %v2307 = vunpack.c.l.b16 %v373
        %v2308 = vunpack.c.h.b16 %v373
        %v2309 = vunpack.c.l.b16 %v374
        %v2310 = vunpack.c.h.b16 %v374
        %v2311 = vunpack.c.l.b16 %v375
        %v2312 = vunpack.c.l.b16 %v376
        %v2313 = vunpack.c.h.b16 %v376
        %v2314 = vunpack.c.l.b16 %v377
        %v2315 = vunpack.c.h.b16 %v377
        %v2316 = vunpack.c.l.b16 %v378
        %v2317 = vunpack.c.l.b16 %v379
        %v2318 = vunpack.c.h.b16 %v379
        %v2319 = vunpack.c.l.b16 %v380
        %v2320 = vunpack.c.h.b16 %v380
        %v2321 = vunpack.c.l.b16 %v381
        %v2322 = vunpack.c.l.b16 %v382
        %v2323 = vunpack.c.h.b16 %v382
        %v2324 = vunpack.c.l.b16 %v383
        %v2325 = vunpack.c.h.b16 %v383
        %v2326 = vunpack.c.l.b16 %v384
        %v2327 = vunpack.c.l.b16 %v385
        %v2328 = vunpack.c.h.b16 %v385
        %v2329 = vunpack.c.l.b16 %v386
        %v2330 = vunpack.c.h.b16 %v386
        %v2331 = vunpack.c.l.b16 %v387
        %v2332 = vunpack.c.l.b16 %v388
        %v2333 = vunpack.c.h.b16 %v388
        %v2334 = vunpack.c.l.b16 %v389
        %v2335 = vunpack.c.h.b16 %v389
        %v2336 = vunpack.c.l.b16 %v390
        %v2337 = vunpack.c.l.b16 %v391
        %v2338 = vunpack.c.h.b16 %v391
        %v2339 = vunpack.c.l.b16 %v392
        %v2340 = vunpack.c.h.b16 %v392
        %v2341 = vunpack.c.l.b16 %v393
        %v2342 = vunpack.c.l.b16 %v394
        %v2343 = vunpack.c.h.b16 %v394
        %v2344 = vunpack.c.l.b16 %v395
        %v2345 = vunpack.c.h.b16 %v395
        %v2346 = vunpack.c.l.b16 %v396
        %v2347 = vunpack.c.l.b16 %v397
        %v2348 = vunpack.c.h.b16 %v397
        %v2349 = vunpack.c.l.b16 %v398
        %v2350 = vunpack.c.h.b16 %v398
        %v2351 = vunpack.c.l.b16 %v399
        %v2352 = vunpack.c.l.b16 %v400
        %v2353 = vunpack.c.h.b16 %v400
        %v2354 = vunpack.c.l.b16 %v401
        %v2355 = vunpack.c.h.b16 %v401
        %v2356 = vunpack.c.l.b16 %v402
        %v2357 = vunpack.c.l.b16 %v403
        %v2358 = vunpack.c.h.b16 %v403
        %v2359 = vunpack.c.l.b16 %v404
        %v2360 = vunpack.c.h.b16 %v404
        %v2361 = vunpack.c.l.b16 %v405
        %v2362 = vunpack.c.l.b16 %v406
        %v2363 = vunpack.c.h.b16 %v406
        %v2364 = vunpack.c.l.b16 %v407
        %v2365 = vunpack.c.h.b16 %v407
        %v2366 = vunpack.c.l.b16 %v408
        %v2367 = vunpack.c.l.b16 %v409
        %v2368 = vunpack.c.h.b16 %v409
        %v2369 = vunpack.c.l.b16 %v410
        %v2370 = vunpack.c.h.b16 %v410
        %v2371 = vunpack.c.l.b16 %v411
        %v2372 = vunpack.c.l.b16 %v412
        %v2373 = vunpack.c.h.b16 %v412
        %v2374 = vunpack.c.l.b16 %v413
        %v2375 = vunpack.c.h.b16 %v413
        %v2376 = vunpack.c.l.b16 %v414
        %v2377 = vunpack.c.l.b16 %v415
        %v2378 = vunpack.c.h.b16 %v415
        %v2379 = vunpack.c.l.b16 %v416
        %v2380 = vunpack.c.h.b16 %v416
        %v2381 = vunpack.c.l.b16 %v417
        %v2382 = vunpack.c.l.b16 %v418
        %v2383 = vunpack.c.h.b16 %v418
        %v2384 = vunpack.c.l.b16 %v419
        %v2385 = vunpack.c.h.b16 %v419
        %v2386 = vunpack.c.l.b16 %v420
        %v2387 = vunpack.c.l.b16 %v421
        %v2388 = vunpack.c.h.b16 %v421
        %v2389 = vunpack.c.l.b16 %v422
        %v2390 = vunpack.c.h.b16 %v422
        %v2391 = vunpack.c.l.b16 %v423
        %v2392 = vunpack.c.l.b16 %v424
        %v2393 = vunpack.c.h.b16 %v424
        %v2394 = vunpack.c.l.b16 %v425
        %v2395 = vunpack.c.h.b16 %v425
        %v2396 = vunpack.c.l.b16 %v426
        %v2397 = vunpack.c.l.b16 %v427
        %v2398 = vunpack.c.h.b16 %v427
        %v2399 = vunpack.c.l.b16 %v428
        %v2400 = vunpack.c.h.b16 %v428
        %v2401 = vunpack.c.l.b16 %v429
        %v2402 = vunpack.c.l.b16 %v430
        %v2403 = vunpack.c.h.b16 %v430
        %v2404 = vunpack.c.l.b16 %v431
        %v2405 = vunpack.c.h.b16 %v431
        %v2406 = vunpack.c.l.b16 %v432
        %v2407 = vunpack.c.l.b16 %v433
        %v2408 = vunpack.c.h.b16 %v433
        %v2409 = vunpack.c.l.b16 %v434
        %v2410 = vunpack.c.h.b16 %v434
        %v2411 = vunpack.c.l.b16 %v435
        %v2412 = vunpack.c.l.b16 %v436
        %v2413 = vunpack.c.h.b16 %v436
        %v2414 = vunpack.c.l.b16 %v437
        %v2415 = vunpack.c.h.b16 %v437
        %v2416 = vunpack.c.l.b16 %v438
        %v2417 = vunpack.c.l.b16 %v439
        %v2418 = vunpack.c.h.b16 %v439
        %v2419 = vunpack.c.l.b16 %v440
        %v2420 = vunpack.c.h.b16 %v440
        %v2421 = vunpack.c.l.b16 %v441
        %v2422 = vunpack.c.l.b16 %v442
        %v2423 = vunpack.c.h.b16 %v442
        %v2424 = vunpack.c.l.b16 %v443
        %v2425 = vunpack.c.h.b16 %v443
        %v2426 = vunpack.c.l.b16 %v444
        %v2427 = vunpack.c.l.b16 %v445
        %v2428 = vunpack.c.h.b16 %v445
        %v2429 = vunpack.c.l.b16 %v446
        %v2430 = vunpack.c.h.b16 %v446
        %v2431 = vunpack.c.l.b16 %v447
        %v2432 = vunpack.c.l.b16 %v448
        %v2433 = vunpack.c.h.b16 %v448
        %v2434 = vunpack.c.l.b16 %v449
        %v2435 = vunpack.c.h.b16 %v449
        %v2436 = vunpack.c.l.b16 %v450
        %v2437 = vunpack.c.l.b16 %v451
        %v2438 = vunpack.c.h.b16 %v451
        %v2439 = vunpack.c.l.b16 %v452
        %v2440 = vunpack.c.h.b16 %v452
        %v2441 = vunpack.c.l.b16 %v453
        %v2442 = vunpack.c.l.b16 %v454
        %v2443 = vunpack.c.h.b16 %v454
        %v2444 = vunpack.c.l.b16 %v455
        %v2445 = vunpack.c.h.b16 %v455
        %v2446 = vunpack.c.l.b16 %v456
        %v2447 = vunpack.c.l.b16 %v457
        %v2448 = vunpack.c.h.b16 %v457
        %v2449 = vunpack.c.l.b16 %v458
        %v2450 = vunpack.c.h.b16 %v458
        %v2451 = vunpack.c.l.b16 %v459
        %v2452 = vunpack.c.l.b16 %v460
        %v2453 = vunpack.c.h.b16 %v460
        %v2454 = vunpack.c.l.b16 %v461
        %v2455 = vunpack.c.h.b16 %v461
        %v2456 = vunpack.c.l.b16 %v462
        %v2457 = vunpack.c.l.b16 %v463
        %v2458 = vunpack.c.h.b16 %v463
        %v2459 = vunpack.c.l.b16 %v464
        %v2460 = vunpack.c.h.b16 %v464
        %v2461 = vunpack.c.l.b16 %v465
        %v2462 = vunpack.c.l.b16 %v466
        %v2463 = vunpack.c.h.b16 %v466
        %v2464 = vunpack.c.l.b16 %v467
        %v2465 = vunpack.c.h.b16 %v467
        %v2466 = vunpack.c.l.b16 %v468
        %v2467 = vunpack.c.l.b16 %v469
        %v2468 = vunpack.c.h.b16 %v469
        %v2469 = vunpack.c.l.b16 %v470
        %v2470 = vunpack.c.h.b16 %v470
        %v2471 = vunpack.c.l.b16 %v471
        %v2472 = vunpack.c.l.b16 %v472
        %v2473 = vunpack.c.h.b16 %v472
        %v2474 = vunpack.c.l.b16 %v473
        %v2475 = vunpack.c.h.b16 %v473
        %v2476 = vunpack.c.l.b16 %v474
        %v2477 = vunpack.c.l.b16 %v475
        %v2478 = vunpack.c.h.b16 %v475
        %v2479 = vunpack.c.l.b16 %v476
        %v2480 = vunpack.c.h.b16 %v476
        %v2481 = vunpack.c.l.b16 %v477
        %v2482 = vunpack.c.l.b16 %v478
        %v2483 = vunpack.c.h.b16 %v478
        %v2484 = vunpack.c.l.b16 %v479
        %v2485 = vunpack.c.h.b16 %v479
        %v2486 = vunpack.c.l.b16 %v480
        %v2487 = vunpack.c.l.b16 %v481
        %v2488 = vunpack.c.h.b16 %v481
        %v2489 = vunpack.c.l.b16 %v482
        %v2490 = vunpack.c.h.b16 %v482
        %v2491 = vunpack.c.l.b16 %v483
        %v2492 = vunpack.c.l.b16 %v484
        %v2493 = vunpack.c.h.b16 %v484
        %v2494 = vunpack.c.l.b16 %v485
        %v2495 = vunpack.c.h.b16 %v485
        %v2496 = vunpack.c.l.b16 %v486
        %v2497 = vunpack.c.l.b16 %v487
        %v2498 = vunpack.c.h.b16 %v487
        %v2499 = vunpack.c.l.b16 %v488
        %v2500 = vunpack.c.h.b16 %v488
        %v2501 = vunpack.c.l.b16 %v489
        %v2502 = vunpack.c.l.b16 %v490
        %v2503 = vunpack.c.h.b16 %v490
        %v2504 = vunpack.c.l.b16 %v491
        %v2505 = vunpack.c.h.b16 %v491
        %v2506 = vunpack.c.l.b16 %v492
        %v2507 = vunpack.c.l.b16 %v493
        %v2508 = vunpack.c.h.b16 %v493
        %v2509 = vunpack.c.l.b16 %v494
        %v2510 = vunpack.c.h.b16 %v494
        %v2511 = vunpack.c.l.b16 %v495
        %v2512 = vunpack.c.l.b16 %v496
        %v2513 = vunpack.c.h.b16 %v496
        %v2514 = vunpack.c.l.b16 %v497
        %v2515 = vunpack.c.h.b16 %v497
        %v2516 = vunpack.c.l.b16 %v498
        %v2517 = vunpack.c.l.b16 %v499
        %v2518 = vunpack.c.h.b16 %v499
        %v2519 = vunpack.c.l.b16 %v500
        %v2520 = vunpack.c.h.b16 %v500
        %v2521 = vunpack.c.l.b16 %v501
        %v2522 = vunpack.c.l.b16 %v502
        %v2523 = vunpack.c.h.b16 %v502
        %v2524 = vunpack.c.l.b16 %v503
        %v2525 = vunpack.c.h.b16 %v503
        %v2526 = vunpack.c.l.b16 %v504
        %v2527 = vunpack.c.l.b16 %v505
        %v2528 = vunpack.c.h.b16 %v505
        %v2529 = vunpack.c.l.b16 %v506
        %v2530 = vunpack.c.h.b16 %v506
        %v2531 = vunpack.c.l.b16 %v507
        %v2532 = vunpack.c.l.b16 %v508
        %v2533 = vunpack.c.h.b16 %v508
        %v2534 = vunpack.c.l.b16 %v509
        %v2535 = vunpack.c.h.b16 %v509
        %v2536 = vunpack.c.l.b16 %v510
        %v2537 = vunpack.c.l.b16 %v511
        %v2538 = vunpack.c.h.b16 %v511
        %v2539 = vunpack.c.l.b16 %v512
        %v2540 = vunpack.c.h.b16 %v512
        %v2541 = vunpack.c.l.b16 %v513
        %v2542 = vunpack.c.l.b16 %v514
        %v2543 = vunpack.c.h.b16 %v514
        %v2544 = vunpack.c.l.b16 %v515
        %v2545 = vunpack.c.h.b16 %v515
        %v2546 = vunpack.c.l.b16 %v516
        %v2547 = vunpack.c.l.b16 %v517
        %v2548 = vunpack.c.h.b16 %v517
        %v2549 = vunpack.c.l.b16 %v518
        %v2550 = vunpack.c.h.b16 %v518
        %v2551 = vunpack.c.l.b16 %v519
        %v2552 = vunpack.c.l.b16 %v520
        %v2553 = vunpack.c.h.b16 %v520
        %v2554 = vunpack.c.l.b16 %v521
        %v2555 = vunpack.c.h.b16 %v521
        %v2556 = vunpack.c.l.b16 %v522
        %v2557 = vunpack.c.l.b16 %v523
        %v2558 = vunpack.c.h.b16 %v523
        %v2559 = vunpack.c.l.b16 %v524
        %v2560 = vunpack.c.h.b16 %v524
        %v2561 = vunpack.c.l.b16 %v525
        %v2562 = vunpack.c.l.b16 %v526
        %v2563 = vunpack.c.h.b16 %v526
        %v2564 = vunpack.c.l.b16 %v527
        %v2565 = vunpack.c.h.b16 %v527
        %v2566 = vunpack.c.l.b16 %v528
        %v2567 = vunpack.c.l.b16 %v529
        %v2568 = vunpack.c.h.b16 %v529
        %v2569 = vunpack.c.l.b16 %v530
        %v2570 = vunpack.c.h.b16 %v530
        %v2571 = vunpack.c.l.b16 %v531
        %v2572 = vunpack.c.l.b16 %v532
        %v2573 = vunpack.c.h.b16 %v532
        %v2574 = vunpack.c.l.b16 %v533
        %v2575 = vunpack.c.h.b16 %v533
        %v2576 = vunpack.c.l.b16 %v534
        %v2577 = vunpack.c.l.b16 %v535
        %v2578 = vunpack.c.h.b16 %v535
        %v2579 = vunpack.c.l.b16 %v536
        %v2580 = vunpack.c.h.b16 %v536
        %v2581 = vunpack.c.l.b16 %v537
        %v2582 = vunpack.c.l.b16 %v538
        %v2583 = vunpack.c.h.b16 %v538
        %v2584 = vunpack.c.l.b16 %v539
        %v2585 = vunpack.c.h.b16 %v539
        %v2586 = vunpack.c.l.b16 %v540
        %v2587 = vunpack.c.l.b16 %v541
        %v2588 = vunpack.c.h.b16 %v541
        %v2589 = vunpack.c.l.b16 %v542
        %v2590 = vunpack.c.h.b16 %v542
        %v2591 = vunpack.c.l.b16 %v543
        %v2592 = vunpack.c.l.b16 %v544
        %v2593 = vunpack.c.h.b16 %v544
        %v2594 = vunpack.c.l.b16 %v545
        %v2595 = vunpack.c.h.b16 %v545
        %v2596 = vunpack.c.l.b16 %v546
        %v2597 = vunpack.c.l.b16 %v547
        %v2598 = vunpack.c.h.b16 %v547
        %v2599 = vunpack.c.l.b16 %v548
        %v2600 = vunpack.c.h.b16 %v548
        %v2601 = vunpack.c.l.b16 %v549
        %v2602 = vunpack.c.l.b16 %v550
        %v2603 = vunpack.c.h.b16 %v550
        %v2604 = vunpack.c.l.b16 %v551
        %v2605 = vunpack.c.h.b16 %v551
        %v2606 = vunpack.c.l.b16 %v552
        %v2607 = vunpack.c.l.b16 %v553
        %v2608 = vunpack.c.h.b16 %v553
        %v2609 = vunpack.c.l.b16 %v554
        %v2610 = vunpack.c.h.b16 %v554
        %v2611 = vunpack.c.l.b16 %v555
        %v2612 = vunpack.c.l.b16 %v556
        %v2613 = vunpack.c.h.b16 %v556
        %v2614 = vunpack.c.l.b16 %v557
        %v2615 = vunpack.c.h.b16 %v557
        %v2616 = vunpack.c.l.b16 %v558
        %v2617 = vunpack.c.l.b16 %v559
        %v2618 = vunpack.c.h.b16 %v559
        %v2619 = vunpack.c.l.b16 %v560
        %v2620 = vunpack.c.h.b16 %v560
        %v2621 = vunpack.c.l.b16 %v561
        %v2622 = vunpack.c.l.b16 %v562
        %v2623 = vunpack.c.h.b16 %v562
        %v2624 = vunpack.c.l.b16 %v563
        %v2625 = vunpack.c.h.b16 %v563
        %v2626 = vunpack.c.l.b16 %v564
        %v2627 = vunpack.c.l.b16 %v565
        %v2628 = vunpack.c.h.b16 %v565
        %v2629 = vunpack.c.l.b16 %v566
        %v2630 = vunpack.c.h.b16 %v566
        %v2631 = vunpack.c.l.b16 %v567
        %v2632 = vunpack.c.l.b16 %v568
        %v2633 = vunpack.c.h.b16 %v568
        %v2634 = vunpack.c.l.b16 %v569
        %v2635 = vunpack.c.h.b16 %v569
        %v2636 = vunpack.c.l.b16 %v570
        %v2637 = vunpack.c.l.b16 %v571
        %v2638 = vunpack.c.h.b16 %v571
        %v2639 = vunpack.c.l.b16 %v572
        %v2640 = vunpack.c.h.b16 %v572
        %v2641 = vunpack.c.l.b16 %v573
        %v2642 = vunpack.c.l.b16 %v574
        %v2643 = vunpack.c.h.b16 %v574
        %v2644 = vunpack.c.l.b16 %v575
        %v2645 = vunpack.c.h.b16 %v575
        %v2646 = vunpack.c.l.b16 %v576
        %v2647 = vunpack.c.l.b16 %v577
        %v2648 = vunpack.c.h.b16 %v577
        %v2649 = vunpack.c.l.b16 %v578
        %v2650 = vunpack.c.h.b16 %v578
        %v2651 = vunpack.c.l.b16 %v579
        %v2652 = vunpack.c.l.b16 %v580
        %v2653 = vunpack.c.h.b16 %v580
        %v2654 = vunpack.c.l.b16 %v581
        %v2655 = vunpack.c.h.b16 %v581
        %v2656 = vunpack.c.l.b16 %v582
        %v2657 = vunpack.c.l.b16 %v583
        %v2658 = vunpack.c.h.b16 %v583
        %v2659 = vunpack.c.l.b16 %v584
        %v2660 = vunpack.c.h.b16 %v584
        %v2661 = vunpack.c.l.b16 %v585
        %v2662 = vunpack.c.l.b16 %v586
        %v2663 = vunpack.c.h.b16 %v586
        %v2664 = vunpack.c.l.b16 %v587
        %v2665 = vunpack.c.h.b16 %v587
        %v2666 = vunpack.c.l.b16 %v588
        %v2667 = vunpack.c.l.b16 %v589
        %v2668 = vunpack.c.h.b16 %v589
        %v2669 = vunpack.c.l.b16 %v590
        %v2670 = vunpack.c.h.b16 %v590
        %v2671 = vunpack.c.l.b16 %v591
        %v2672 = vunpack.c.l.b16 %v592
        %v2673 = vunpack.c.h.b16 %v592
        %v2674 = vunpack.c.l.b16 %v593
        %v2675 = vunpack.c.h.b16 %v593
        %v2676 = vunpack.c.l.b16 %v594
        %v2677 = vunpack.c.l.b16 %v595
        %v2678 = vunpack.c.h.b16 %v595
        %v2679 = vunpack.c.l.b16 %v596
        %v2680 = vunpack.c.h.b16 %v596
        %v2681 = vunpack.c.l.b16 %v597
        %v2682 = vunpack.c.l.b16 %v598
        %v2683 = vunpack.c.h.b16 %v598
        %v2684 = vunpack.c.l.b16 %v599
        %v2685 = vunpack.c.h.b16 %v599
        %v2686 = vunpack.c.l.b16 %v600
        %v2687 = vunpack.c.l.b16 %v601
        %v2688 = vunpack.c.h.b16 %v601
        %v2689 = vunpack.c.l.b16 %v602
        %v2690 = vunpack.c.h.b16 %v602
        %v2691 = vunpack.c.l.b16 %v603
        %v2692 = vunpack.c.l.b16 %v604
        %v2693 = vunpack.c.h.b16 %v604
        %v2694 = vunpack.c.l.b16 %v605
        %v2695 = vunpack.c.h.b16 %v605
        %v2696 = vunpack.c.l.b16 %v606
        %v2697 = vunpack.c.l.b16 %v607
        %v2698 = vunpack.c.h.b16 %v607
        %v2699 = vunpack.c.l.b16 %v608
        %v2700 = vunpack.c.h.b16 %v608
        %v2701 = vunpack.c.l.b16 %v609
        %v2702 = vunpack.c.l.b16 %v610
        %v2703 = vunpack.c.h.b16 %v610
        %v2704 = vunpack.c.l.b16 %v611
        %v2705 = vunpack.c.h.b16 %v611
        %v2706 = vunpack.c.l.b16 %v612
        %v2707 = vunpack.c.l.b16 %v613
        %v2708 = vunpack.c.h.b16 %v613
        %v2709 = vunpack.c.l.b16 %v614
        %v2710 = vunpack.c.h.b16 %v614
        %v2711 = vunpack.c.l.b16 %v615
        %v2712 = vunpack.c.l.b16 %v616
        %v2713 = vunpack.c.h.b16 %v616
        %v2714 = vunpack.c.l.b16 %v617
        %v2715 = vunpack.c.h.b16 %v617
        %v2716 = vunpack.c.l.b16 %v618
        %v2717 = vunpack.c.l.b16 %v619
        %v2718 = vunpack.c.h.b16 %v619
        %v2719 = vunpack.c.l.b16 %v620
        %v2720 = vunpack.c.h.b16 %v620
        %v2721 = vunpack.c.l.b16 %v621
        %v2722 = vunpack.c.l.b16 %v622
        %v2723 = vunpack.c.h.b16 %v622
        %v2724 = vunpack.c.l.b16 %v623
        %v2725 = vunpack.c.h.b16 %v623
        %v2726 = vunpack.c.l.b16 %v624
        %v2727 = vunpack.c.l.b16 %v625
        %v2728 = vunpack.c.h.b16 %v625
        %v2729 = vunpack.c.l.b16 %v626
        %v2730 = vunpack.c.h.b16 %v626
        %v2731 = vunpack.c.l.b16 %v627
        %v2732 = vunpack.c.l.b16 %v628
        %v2733 = vunpack.c.h.b16 %v628
        %v2734 = vunpack.c.l.b16 %v629
        %v2735 = vunpack.c.h.b16 %v629
        %v2736 = vunpack.c.l.b16 %v630
        %v2737 = vunpack.c.l.b16 %v631
        %v2738 = vunpack.c.h.b16 %v631
        %v2739 = vunpack.c.l.b16 %v632
        %v2740 = vunpack.c.h.b16 %v632
        %v2741 = vunpack.c.l.b16 %v633
        %v2742 = vunpack.c.l.b16 %v634
        %v2743 = vunpack.c.h.b16 %v634
        %v2744 = vunpack.c.l.b16 %v635
        %v2745 = vunpack.c.h.b16 %v635
        %v2746 = vunpack.c.l.b16 %v636
        %v2747 = vunpack.c.l.b16 %v637
        %v2748 = vunpack.c.h.b16 %v637
        %v2749 = vunpack.c.l.b16 %v638
        %v2750 = vunpack.c.h.b16 %v638
        %v2751 = vunpack.c.l.b16 %v639
        %v2752 = vunpack.c.l.b16 %v640
        %v2753 = vunpack.c.h.b16 %v640
        %v2754 = vunpack.c.l.b16 %v641
        %v2755 = vunpack.c.h.b16 %v641
        %v2756 = vunpack.c.l.b16 %v642
        %v2757 = vunpack.c.l.b16 %v643
        %v2758 = vunpack.c.h.b16 %v643
        %v2759 = vunpack.c.l.b16 %v644
        %v2760 = vunpack.c.h.b16 %v644
        %v2761 = vunpack.c.l.b16 %v645
        %v2762 = vunpack.c.l.b16 %v646
        %v2763 = vunpack.c.h.b16 %v646
        %v2764 = vunpack.c.l.b16 %v647
        %v2765 = vunpack.c.h.b16 %v647
        %v2766 = vunpack.c.l.b16 %v648
        %v2767 = vunpack.c.l.b16 %v649
        %v2768 = vunpack.c.h.b16 %v649
        %v2769 = vunpack.c.l.b16 %v650
        %v2770 = vunpack.c.h.b16 %v650
        %v2771 = vunpack.c.l.b16 %v651
        %v2772 = vunpack.c.l.b16 %v652
        %v2773 = vunpack.c.h.b16 %v652
        %v2774 = vunpack.c.l.b16 %v653
        %v2775 = vunpack.c.h.b16 %v653
        %v2776 = vunpack.c.l.b16 %v654
        %v2777 = vunpack.c.l.b16 %v655
        %v2778 = vunpack.c.h.b16 %v655
        %v2779 = vunpack.c.l.b16 %v656
        %v2780 = vunpack.c.h.b16 %v656
        %v2781 = vunpack.c.l.b16 %v657
        %v2782 = vunpack.c.l.b16 %v658
        %v2783 = vunpack.c.h.b16 %v658
        %v2784 = vunpack.c.l.b16 %v659
        %v2785 = vunpack.c.h.b16 %v659
        %v2786 = vunpack.c.l.b16 %v660
        %v2787 = vunpack.c.l.b16 %v661
        %v2788 = vunpack.c.h.b16 %v661
        %v2789 = vunpack.c.l.b16 %v662
        %v2790 = vunpack.c.h.b16 %v662
        %v2791 = vunpack.c.l.b16 %v663
        %v2792 = vunpack.c.l.b16 %v664
        %v2793 = vunpack.c.h.b16 %v664
        %v2794 = vunpack.c.l.b16 %v665
        %v2795 = vunpack.c.h.b16 %v665
        %v2796 = vunpack.c.l.b16 %v666
        %v2797 = vunpack.c.l.b16 %v667
        %v2798 = vunpack.c.h.b16 %v667
        %v2799 = vunpack.c.l.b16 %v668
        %v2800 = vunpack.c.h.b16 %v668
        %v2801 = vunpack.c.l.b16 %v669
        %v2802 = vunpack.c.l.b16 %v670
        %v2803 = vunpack.c.h.b16 %v670
        %v2804 = vunpack.c.l.b16 %v671
        %v2805 = vunpack.c.h.b16 %v671
        %v2806 = vunpack.c.l.b16 %v672
        %v2807 = vunpack.c.l.b16 %v673
        %v2808 = vunpack.c.h.b16 %v673
        %v2809 = vunpack.c.l.b16 %v674
        %v2810 = vunpack.c.h.b16 %v674
        %v2811 = vunpack.c.l.b16 %v675
        %v2812 = vunpack.c.l.b16 %v676
        %v2813 = vunpack.c.h.b16 %v676
        %v2814 = vunpack.c.l.b16 %v677
        %v2815 = vunpack.c.h.b16 %v677
        %v2816 = vunpack.c.l.b16 %v678
        %v2817 = vunpack.c.l.b16 %v679
        %v2818 = vunpack.c.h.b16 %v679
        %v2819 = vunpack.c.l.b16 %v680
        %v2820 = vunpack.c.h.b16 %v680
        %v2821 = vunpack.c.l.b16 %v681
        %v2822 = vunpack.c.l.b16 %v682
        %v2823 = vunpack.c.h.b16 %v682
        %v2824 = vunpack.c.l.b16 %v683
        %v2825 = vunpack.c.h.b16 %v683
        %v2826 = vunpack.c.l.b16 %v684
        %v2827 = vunpack.c.l.b16 %v685
        %v2828 = vunpack.c.h.b16 %v685
        %v2829 = vunpack.c.l.b16 %v686
        %v2830 = vunpack.c.h.b16 %v686
        %v2831 = vunpack.c.l.b16 %v687
        %v2832 = vunpack.c.l.b16 %v688
        %v2833 = vunpack.c.h.b16 %v688
        %v2834 = vunpack.c.l.b16 %v689
        %v2835 = vunpack.c.h.b16 %v689
        %v2836 = vunpack.c.l.b16 %v690
        %v2837 = vunpack.c.l.b16 %v691
        %v2838 = vunpack.c.h.b16 %v691
        %v2839 = vunpack.c.l.b16 %v692
        %v2840 = vunpack.c.h.b16 %v692
        %v2841 = vunpack.c.l.b16 %v693
        %v2842 = vunpack.c.l.b16 %v694
        %v2843 = vunpack.c.h.b16 %v694
        %v2844 = vunpack.c.l.b16 %v695
        %v2845 = vunpack.c.h.b16 %v695
        %v2846 = vunpack.c.l.b16 %v696
        %v2847 = vunpack.c.l.b16 %v697
        %v2848 = vunpack.c.h.b16 %v697
        %v2849 = vunpack.c.l.b16 %v698
        %v2850 = vunpack.c.h.b16 %v698
        %v2851 = vunpack.c.l.b16 %v699
        %v2852 = vunpack.c.l.b16 %v700
        %v2853 = vunpack.c.h.b16 %v700
        %v2854 = vunpack.c.l.b16 %v701
        %v2855 = vunpack.c.h.b16 %v701
        %v2856 = vunpack.c.l.b16 %v702
        %v2857 = vunpack.c.l.b16 %v703
        %v2858 = vunpack.c.h.b16 %v703
        %v2859 = vunpack.c.l.b16 %v704
        %v2860 = vunpack.c.h.b16 %v704
        %v2861 = vunpack.c.l.b16 %v705
        %v2862 = vunpack.c.l.b16 %v706
        %v2863 = vunpack.c.h.b16 %v706
        %v2864 = vunpack.c.l.b16 %v707
        %v2865 = vunpack.c.h.b16 %v707
        %v2866 = vunpack.c.l.b16 %v708
        %v2867 = vunpack.c.l.b16 %v709
        %v2868 = vunpack.c.h.b16 %v709
        %v2869 = vunpack.c.l.b16 %v710
        %v2870 = vunpack.c.h.b16 %v710
        %v2871 = vunpack.c.l.b16 %v711
        %v2872 = vunpack.c.l.b16 %v712
        %v2873 = vunpack.c.h.b16 %v712
        %v2874 = vunpack.c.l.b16 %v713
        %v2875 = vunpack.c.h.b16 %v713
        %v2876 = vunpack.c.l.b16 %v714
        %v2877 = vunpack.c.l.b16 %v715
        %v2878 = vunpack.c.h.b16 %v715
        %v2879 = vunpack.c.l.b16 %v716
        %v2880 = vunpack.c.h.b16 %v716
        %v2881 = vunpack.c.l.b16 %v717
        %v2882 = vunpack.c.l.b16 %v718
        %v2883 = vunpack.c.h.b16 %v718
        %v2884 = vunpack.c.l.b16 %v719
        %v2885 = vunpack.c.h.b16 %v719
        %v2886 = vunpack.c.l.b16 %v720
        %v2887 = vunpack.c.l.b16 %v721
        %v2888 = vunpack.c.h.b16 %v721
        %v2889 = vunpack.c.l.b16 %v722
        %v2890 = vunpack.c.h.b16 %v722
        %v2891 = vunpack.c.l.b16 %v723
        %v2892 = vunpack.c.l.b16 %v724
        %v2893 = vunpack.c.h.b16 %v724
        %v2894 = vunpack.c.l.b16 %v725
        %v2895 = vunpack.c.h.b16 %v725
        %v2896 = vunpack.c.l.b16 %v726
        %v2897 = vunpack.c.l.b16 %v727
        %v2898 = vunpack.c.h.b16 %v727
        %v2899 = vunpack.c.l.b16 %v728
        %v2900 = vunpack.c.h.b16 %v728
        %v2901 = vunpack.c.l.b16 %v729
        %v2902 = vunpack.c.l.b16 %v730
        %v2903 = vunpack.c.h.b16 %v730
        %v2904 = vunpack.c.l.b16 %v731
        %v2905 = vunpack.c.h.b16 %v731
        %v2906 = vunpack.c.l.b16 %v732
        %v2907 = vunpack.c.l.b16 %v733
        %v2908 = vunpack.c.h.b16 %v733
        %v2909 = vunpack.c.l.b16 %v734
        %v2910 = vunpack.c.h.b16 %v734
        %v2911 = vunpack.c.l.b16 %v735
        %v2912 = vunpack.c.l.b16 %v736
        %v2913 = vunpack.c.h.b16 %v736
        %v2914 = vunpack.c.l.b16 %v737
        %v2915 = vunpack.c.h.b16 %v737
        %v2916 = vunpack.c.l.b16 %v738
        %v2917 = vunpack.c.l.b16 %v739
        %v2918 = vunpack.c.h.b16 %v739
        %v2919 = vunpack.c.l.b16 %v740
        %v2920 = vunpack.c.h.b16 %v740
        %v2921 = vunpack.c.l.b16 %v741
        %v2922 = vunpack.c.l.b16 %v742
        %v2923 = vunpack.c.h.b16 %v742
        %v2924 = vunpack.c.l.b16 %v743
        %v2925 = vunpack.c.h.b16 %v743
        %v2926 = vunpack.c.l.b16 %v744
        %v2927 = vunpack.c.l.b16 %v745
        %v2928 = vunpack.c.h.b16 %v745
        %v2929 = vunpack.c.l.b16 %v746
        %v2930 = vunpack.c.h.b16 %v746
        %v2931 = vunpack.c.l.b16 %v747
        %v2932 = vunpack.c.l.b16 %v748
        %v2933 = vunpack.c.h.b16 %v748
        %v2934 = vunpack.c.l.b16 %v749
        %v2935 = vunpack.c.h.b16 %v749
        %v2936 = vunpack.c.l.b16 %v750
        %v2937 = vunpack.c.l.b16 %v751
        %v2938 = vunpack.c.h.b16 %v751
        %v2939 = vunpack.c.l.b16 %v752
        %v2940 = vunpack.c.h.b16 %v752
        %v2941 = vunpack.c.l.b16 %v753
        %v2942 = vunpack.c.l.b16 %v754
        %v2943 = vunpack.c.h.b16 %v754
        %v2944 = vunpack.c.l.b16 %v755
        %v2945 = vunpack.c.h.b16 %v755
        %v2946 = vunpack.c.l.b16 %v756
        %v2947 = vunpack.c.l.b16 %v757
        %v2948 = vunpack.c.h.b16 %v757
        %v2949 = vunpack.c.l.b16 %v758
        %v2950 = vunpack.c.h.b16 %v758
        %v2951 = vunpack.c.l.b16 %v759
        %v2952 = vunpack.c.l.b16 %v760
        %v2953 = vunpack.c.h.b16 %v760
        %v2954 = vunpack.c.l.b16 %v761
        %v2955 = vunpack.c.h.b16 %v761
        %v2956 = vunpack.c.l.b16 %v762
        %v2957 = vunpack.c.l.b16 %v763
        %v2958 = vunpack.c.h.b16 %v763
        %v2959 = vunpack.c.l.b16 %v764
        %v2960 = vunpack.c.h.b16 %v764
        %v2961 = vunpack.c.l.b16 %v765
        %v2962 = vunpack.c.l.b16 %v766
        %v2963 = vunpack.c.h.b16 %v766
        %v2964 = vunpack.c.l.b16 %v767
        %v2965 = vunpack.c.h.b16 %v767
        %v2966 = vunpack.c.l.b16 %v768
        %v2967 = vunpack.c.l.b16 %v769
        %v2968 = vunpack.c.h.b16 %v769
        %v2969 = vunpack.c.l.b16 %v770
        %v2970 = vunpack.c.h.b16 %v770
        %v2971 = vunpack.c.l.b16 %v771
        %v2972 = vunpack.c.l.b16 %v772
        %v2973 = vunpack.c.h.b16 %v772
        %v2974 = vunpack.c.l.b16 %v773
        %v2975 = vunpack.c.h.b16 %v773
        %v2976 = vunpack.c.l.b16 %v774
        %v2977 = vunpack.c.l.b16 %v775
        %v2978 = vunpack.c.h.b16 %v775
        %v2979 = vunpack.c.l.b16 %v776
        %v2980 = vunpack.c.h.b16 %v776
        %v2981 = vunpack.c.l.b16 %v777
        %v2982 = vunpack.c.l.b16 %v778
        %v2983 = vunpack.c.h.b16 %v778
        %v2984 = vunpack.c.l.b16 %v779
        %v2985 = vunpack.c.h.b16 %v779
        %v2986 = vunpack.c.l.b16 %v780
        %v2987 = vunpack.c.l.b16 %v781
        %v2988 = vunpack.c.h.b16 %v781
        %v2989 = vunpack.c.l.b16 %v782
        %v2990 = vunpack.c.h.b16 %v782
        %v2991 = vunpack.c.l.b16 %v783
        %v2992 = vunpack.c.l.b16 %v784
        %v2993 = vunpack.c.h.b16 %v784
        %v2994 = vunpack.c.l.b16 %v785
        %v2995 = vunpack.c.h.b16 %v785
        %v2996 = vunpack.c.l.b16 %v786
        %v2997 = vunpack.c.l.b16 %v787
        %v2998 = vunpack.c.h.b16 %v787
        %v2999 = vunpack.c.l.b16 %v788
        %v3000 = vunpack.c.h.b16 %v788
        %v3001 = vunpack.c.l.b16 %v789
        %v3002 = vunpack.c.l.b16 %v790
        %v3003 = vunpack.c.h.b16 %v790
        %v3004 = vunpack.c.l.b16 %v791
        %v3005 = vunpack.c.h.b16 %v791
        %v3006 = vunpack.c.l.b16 %v792
        %v3007 = vunpack.c.l.b16 %v793
        %v3008 = vunpack.c.h.b16 %v793
        %v3009 = vunpack.c.l.b16 %v794
        %v3010 = vunpack.c.h.b16 %v794
        %v3011 = vunpack.c.l.b16 %v795
        %v3012 = vunpack.c.l.b16 %v796
        %v3013 = vunpack.c.h.b16 %v796
        %v3014 = vunpack.c.l.b16 %v797
        %v3015 = vunpack.c.h.b16 %v797
        %v3016 = vunpack.c.l.b16 %v798
        %v3017 = vunpack.c.l.b16 %v799
        %v3018 = vunpack.c.h.b16 %v799
        %v3019 = vunpack.c.l.b16 %v800
        %v3020 = vunpack.c.h.b16 %v800
        %v3021 = vunpack.c.l.b16 %v801
        %v3022 = vunpack.c.l.b16 %v802
        %v3023 = vunpack.c.h.b16 %v802
        %v3024 = vunpack.c.l.b16 %v803
        %v3025 = vunpack.c.h.b16 %v803
        %v3026 = vunpack.c.l.b16 %v804
        %v3027 = vunpack.c.l.b16 %v805
        %v3028 = vunpack.c.h.b16 %v805
        %v3029 = vunpack.c.l.b16 %v806
        %v3030 = vunpack.c.h.b16 %v806
        %v3031 = vunpack.c.l.b16 %v807
        %v3032 = vunpack.c.l.b16 %v808
        %v3033 = vunpack.c.h.b16 %v808
        %v3034 = vunpack.c.l.b16 %v809
        %v3035 = vunpack.c.h.b16 %v809
        %v3036 = vunpack.c.l.b16 %v810
        %v3037 = vunpack.c.l.b16 %v811
        %v3038 = vunpack.c.h.b16 %v811
        %v3039 = vunpack.c.l.b16 %v812
        %v3040 = vunpack.c.h.b16 %v812
        %v3041 = vunpack.c.l.b16 %v813
        %v3042 = vunpack.c.l.b16 %v814
        %v3043 = vunpack.c.h.b16 %v814
        %v3044 = vunpack.c.l.b16 %v815
        %v3045 = vunpack.c.h.b16 %v815
        %v3046 = vunpack.c.l.b16 %v816
        %v3047 = vunpack.c.l.b16 %v817
        %v3048 = vunpack.c.h.b16 %v817
        %v3049 = vunpack.c.l.b16 %v818
        %v3050 = vunpack.c.h.b16 %v818
        %v3051 = vunpack.c.l.b16 %v819
        %v3052 = vunpack.c.l.b16 %v820
        %v3053 = vunpack.c.h.b16 %v820
        %v3054 = vunpack.c.l.b16 %v821
        %v3055 = vunpack.c.h.b16 %v821
        %v3056 = vunpack.c.l.b16 %v822
        %v3057 = vunpack.c.l.b16 %v823
        %v3058 = vunpack.c.h.b16 %v823
        %v3059 = vunpack.c.l.b16 %v824
        %v3060 = vunpack.c.h.b16 %v824
        %v3061 = vunpack.c.l.b16 %v825
        %v3062 = vunpack.c.l.b16 %v826
        %v3063 = vunpack.c.h.b16 %v826
        %v3064 = vunpack.c.l.b16 %v827
        %v3065 = vunpack.c.h.b16 %v827
        %v3066 = vunpack.c.l.b16 %v828
        %v3067 = vunpack.c.l.b16 %v829
        %v3068 = vunpack.c.h.b16 %v829
        %v3069 = vunpack.c.l.b16 %v830
        %v3070 = vunpack.c.h.b16 %v830
        %v3071 = vunpack.c.l.b16 %v831
        %v3072 = vunpack.c.l.b16 %v832
        %v3073 = vunpack.c.h.b16 %v832
        %v3074 = vunpack.c.l.b16 %v833
        %v3075 = vunpack.c.h.b16 %v833
        %v3076 = vunpack.c.l.b16 %v834
        %v3077 = vunpack.c.l.b16 %v835
        %v3078 = vunpack.c.h.b16 %v835
        %v3079 = vunpack.c.l.b16 %v836
        %v3080 = vunpack.c.h.b16 %v836
        %v3081 = vunpack.c.l.b16 %v837
        %v3082 = vunpack.c.l.b16 %v838
        %v3083 = vunpack.c.h.b16 %v838
        %v3084 = vunpack.c.l.b16 %v839
        %v3085 = vunpack.c.h.b16 %v839
        %v3086 = vunpack.c.l.b16 %v840
        %v3087 = vunpack.c.l.b16 %v841
        %v3088 = vunpack.c.h.b16 %v841
        %v3089 = vunpack.c.l.b16 %v842
        %v3090 = vunpack.c.h.b16 %v842
        %v3091 = vunpack.c.l.b16 %v843
        %v3092 = vunpack.c.l.b16 %v844
        %v3093 = vunpack.c.h.b16 %v844
        %v3094 = vunpack.c.l.b16 %v845
        %v3095 = vunpack.c.h.b16 %v845
        %v3096 = vunpack.c.l.b16 %v846
        %v3097 = vunpack.c.l.b16 %v847
        %v3098 = vunpack.c.h.b16 %v847
        %v3099 = vunpack.c.l.b16 %v848
        %v3100 = vunpack.c.h.b16 %v848
        %v3101 = vunpack.c.l.b16 %v849
        %v3102 = vunpack.c.l.b16 %v850
        %v3103 = vunpack.c.h.b16 %v850
        %v3104 = vunpack.c.l.b16 %v851
        %v3105 = vunpack.c.h.b16 %v851
        %v3106 = vunpack.c.l.b16 %v852
        %v3107 = vunpack.c.l.b16 %v853
        %v3108 = vunpack.c.h.b16 %v853
        %v3109 = vunpack.c.l.b16 %v854
        %v3110 = vunpack.c.h.b16 %v854
        %v3111 = vunpack.c.l.b16 %v855
        %v3112 = vunpack.c.l.b16 %v856
        %v3113 = vunpack.c.h.b16 %v856
        %v3114 = vunpack.c.l.b16 %v857
        %v3115 = vunpack.c.h.b16 %v857
        %v3116 = vunpack.c.l.b16 %v858
        %v3117 = vunpack.c.l.b16 %v859
        %v3118 = vunpack.c.h.b16 %v859
        %v3119 = vunpack.c.l.b16 %v860
        %v3120 = vunpack.c.h.b16 %v860
        %v3121 = vunpack.c.l.b16 %v861
        %v3122 = vunpack.c.l.b16 %v862
        %v3123 = vunpack.c.h.b16 %v862
        %v3124 = vunpack.c.l.b16 %v863
        %v3125 = vunpack.c.h.b16 %v863
        %v3126 = vunpack.c.l.b16 %v864
        %v3127 = vunpack.c.l.b16 %v865
        %v3128 = vunpack.c.h.b16 %v865
        %v3129 = vunpack.c.l.b16 %v866
        %v3130 = vunpack.c.h.b16 %v866
        %v3131 = vunpack.c.l.b16 %v867
        %v3132 = vunpack.c.l.b16 %v868
        %v3133 = vunpack.c.h.b16 %v868
        %v3134 = vunpack.c.l.b16 %v869
        %v3135 = vunpack.c.h.b16 %v869
        %v3136 = vunpack.c.l.b16 %v870
        %v3137 = vunpack.c.l.b16 %v871
        %v3138 = vunpack.c.h.b16 %v871
        %v3139 = vunpack.c.l.b16 %v872
        %v3140 = vunpack.c.h.b16 %v872
        %v3141 = vunpack.c.l.b16 %v873
        %v3142 = vunpack.c.l.b16 %v874
        %v3143 = vunpack.c.h.b16 %v874
        %v3144 = vunpack.c.l.b16 %v875
        %v3145 = vunpack.c.h.b16 %v875
        %v3146 = vunpack.c.l.b16 %v876
        %v3147 = vunpack.c.l.b16 %v877
        %v3148 = vunpack.c.h.b16 %v877
        %v3149 = vunpack.c.l.b16 %v878
        %v3150 = vunpack.c.h.b16 %v878
        %v3151 = vunpack.c.l.b16 %v879
        %v3152 = vunpack.c.l.b16 %v880
        %v3153 = vunpack.c.h.b16 %v880
        %v3154 = vunpack.c.l.b16 %v881
        %v3155 = vunpack.c.h.b16 %v881
        %v3156 = vunpack.c.l.b16 %v882
        %v3157 = vunpack.c.l.b16 %v883
        %v3158 = vunpack.c.h.b16 %v883
        %v3159 = vunpack.c.l.b16 %v884
        %v3160 = vunpack.c.h.b16 %v884
        %v3161 = vunpack.c.l.b16 %v885
        %v3162 = vunpack.c.l.b16 %v886
        %v3163 = vunpack.c.h.b16 %v886
        %v3164 = vunpack.c.l.b16 %v887
        %v3165 = vunpack.c.h.b16 %v887
        %v3166 = vunpack.c.l.b16 %v888
        %v3167 = vunpack.c.l.b16 %v889
        %v3168 = vunpack.c.h.b16 %v889
        %v3169 = vunpack.c.l.b16 %v890
        %v3170 = vunpack.c.h.b16 %v890
        %v3171 = vunpack.c.l.b16 %v891
        %v3172 = vunpack.c.l.b16 %v892
        %v3173 = vunpack.c.h.b16 %v892
        %v3174 = vunpack.c.l.b16 %v893
        %v3175 = vunpack.c.h.b16 %v893
        %v3176 = vunpack.c.l.b16 %v894
        %v3177 = vunpack.c.l.b16 %v895
        %v3178 = vunpack.c.h.b16 %v895
        %v3179 = vunpack.c.l.b16 %v896
        %v3180 = vunpack.c.h.b16 %v896
        %v3181 = vunpack.c.l.b16 %v897
        %v3182 = vunpack.c.l.b16 %v898
        %v3183 = vunpack.c.h.b16 %v898
        %v3184 = vunpack.c.l.b16 %v899
        %v3185 = vunpack.c.h.b16 %v899
        %v3186 = vunpack.c.l.b16 %v900
        %v3187 = vunpack.c.l.b16 %v901
        %v3188 = vunpack.c.h.b16 %v901
        %v3189 = vunpack.c.l.b16 %v902
        %v3190 = vunpack.c.h.b16 %v902
        %v3191 = vunpack.c.l.b16 %v903
        %v3192 = vunpack.c.l.b16 %v904
        %v3193 = vunpack.c.h.b16 %v904
        %v3194 = vunpack.c.l.b16 %v905
        %v3195 = vunpack.c.h.b16 %v905
        %v3196 = vunpack.c.l.b16 %v906
        %v3197 = vunpack.c.l.b16 %v907
        %v3198 = vunpack.c.h.b16 %v907
        %v3199 = vunpack.c.l.b16 %v908
        %v3200 = vunpack.c.h.b16 %v908
        %v3201 = vunpack.c.l.b16 %v909
        %v3202 = vunpack.c.l.b16 %v910
        %v3203 = vunpack.c.h.b16 %v910
        %v3204 = vunpack.c.l.b16 %v911
        %v3205 = vunpack.c.h.b16 %v911
        %v3206 = vunpack.c.l.b16 %v912
        %v3207 = vunpack.c.l.b16 %v913
        %v3208 = vunpack.c.h.b16 %v913
        %v3209 = vunpack.c.l.b16 %v914
        %v3210 = vunpack.c.h.b16 %v914
        %v3211 = vunpack.c.l.b16 %v915
        %v3212 = vunpack.c.l.b16 %v916
        %v3213 = vunpack.c.h.b16 %v916
        %v3214 = vunpack.c.l.b16 %v917
        %v3215 = vunpack.c.h.b16 %v917
        %v3216 = vunpack.c.l.b16 %v918
        %v3217 = vunpack.c.l.b16 %v919
        %v3218 = vunpack.c.h.b16 %v919
        %v3219 = vunpack.c.l.b16 %v920
        %v3220 = vunpack.c.h.b16 %v920
        %v3221 = vunpack.c.l.b16 %v921
        %v3222 = vunpack.c.l.b16 %v922
        %v3223 = vunpack.c.h.b16 %v922
        %v3224 = vunpack.c.l.b16 %v923
        %v3225 = vunpack.c.h.b16 %v923
        %v3226 = vunpack.c.l.b16 %v924
        %v3227 = vunpack.c.l.b16 %v925
        %v3228 = vunpack.c.h.b16 %v925
        %v3229 = vunpack.c.l.b16 %v926
        %v3230 = vunpack.c.h.b16 %v926
        %v3231 = vunpack.c.l.b16 %v927
        %v3232 = vunpack.c.l.b16 %v928
        %v3233 = vunpack.c.h.b16 %v928
        %v3234 = vunpack.c.l.b16 %v929
        %v3235 = vunpack.c.h.b16 %v929
        %v3236 = vunpack.c.l.b16 %v930
        %v3237 = vunpack.c.l.b16 %v931
        %v3238 = vunpack.c.h.b16 %v931
        %v3239 = vunpack.c.l.b16 %v932
        %v3240 = vunpack.c.h.b16 %v932
        %v3241 = vunpack.c.l.b16 %v933
        %v3242 = vunpack.c.l.b16 %v934
        %v3243 = vunpack.c.h.b16 %v934
        %v3244 = vunpack.c.l.b16 %v935
        %v3245 = vunpack.c.h.b16 %v935
        %v3246 = vunpack.c.l.b16 %v936
        %v3247 = vunpack.c.l.b16 %v937
        %v3248 = vunpack.c.h.b16 %v937
        %v3249 = vunpack.c.l.b16 %v938
        %v3250 = vunpack.c.h.b16 %v938
        %v3251 = vunpack.c.l.b16 %v939
        %v3252 = vunpack.c.l.b16 %v940
        %v3253 = vunpack.c.h.b16 %v940
        %v3254 = vunpack.c.l.b16 %v941
        %v3255 = vunpack.c.h.b16 %v941
        %v3256 = vunpack.c.l.b16 %v942
        %v3257 = vunpack.c.l.b16 %v943
        %v3258 = vunpack.c.h.b16 %v943
        %v3259 = vunpack.c.l.b16 %v944
        %v3260 = vunpack.c.h.b16 %v944
        %v3261 = vunpack.c.l.b16 %v945
        %v3262 = vunpack.c.l.b16 %v946
        %v3263 = vunpack.c.h.b16 %v946
        %v3264 = vunpack.c.l.b16 %v947
        %v3265 = vunpack.c.h.b16 %v947
        %v3266 = vunpack.c.l.b16 %v948
        %v3267 = vunpack.c.l.b16 %v949
        %v3268 = vunpack.c.h.b16 %v949
        %v3269 = vunpack.c.l.b16 %v950
        %v3270 = vunpack.c.h.b16 %v950
        %v3271 = vunpack.c.l.b16 %v951
        %v3272 = vunpack.c.l.b16 %v952
        %v3273 = vunpack.c.h.b16 %v952
        %v3274 = vunpack.c.l.b16 %v953
        %v3275 = vunpack.c.h.b16 %v953
        %v3276 = vunpack.c.l.b16 %v954
        %v3277 = vunpack.c.l.b16 %v955
        %v3278 = vunpack.c.h.b16 %v955
        %v3279 = vunpack.c.l.b16 %v956
        %v3280 = vunpack.c.h.b16 %v956
        %v3281 = vunpack.c.l.b16 %v957
        %v3282 = vunpack.c.l.b16 %v958
        %v3283 = vunpack.c.h.b16 %v958
        %v3284 = vunpack.c.l.b16 %v959
        %v3285 = vunpack.c.h.b16 %v959
        %v3286 = vunpack.c.l.b16 %v960
        %v3287 = vunpack.c.l.b16 %v961
        %v3288 = vunpack.c.h.b16 %v961
        %v3289 = vunpack.c.l.b16 %v962
        %v3290 = vunpack.c.h.b16 %v962
        %v3291 = vunpack.c.l.b16 %v963
        %v3292 = vunpack.c.l.b16 %v964
        %v3293 = vunpack.c.h.b16 %v964
        %v3294 = vunpack.c.l.b16 %v965
        %v3295 = vunpack.c.h.b16 %v965
        %v3296 = vunpack.c.l.b16 %v966
        %v3297 = vunpack.c.l.b16 %v967
        %v3298 = vunpack.c.h.b16 %v967
        %v3299 = vunpack.c.l.b16 %v968
        %v3300 = vunpack.c.h.b16 %v968
        %v3301 = vunpack.c.l.b16 %v969
        %v3302 = vunpack.c.l.b16 %v970
        %v3303 = vunpack.c.h.b16 %v970
        %v3304 = vunpack.c.l.b16 %v971
        %v3305 = vunpack.c.h.b16 %v971
        %v3306 = vunpack.c.l.b16 %v972
        %v3307 = vunpack.c.l.b16 %v973
        %v3308 = vunpack.c.h.b16 %v973
        %v3309 = vunpack.c.l.b16 %v974
        %v3310 = vunpack.c.h.b16 %v974
        %v3311 = vunpack.c.l.b16 %v975
        %v3312 = vunpack.c.l.b16 %v976
        %v3313 = vunpack.c.h.b16 %v976
        %v3314 = vunpack.c.l.b16 %v977
        %v3315 = vunpack.c.h.b16 %v977
        %v3316 = vunpack.c.l.b16 %v978
        %v3317 = vunpack.c.l.b16 %v979
        %v3318 = vunpack.c.h.b16 %v979
        %v3319 = vunpack.c.l.b16 %v980
        %v3320 = vunpack.c.h.b16 %v980
        %v3321 = vunpack.c.l.b16 %v981
        %v3322 = vunpack.c.l.b16 %v982
        %v3323 = vunpack.c.h.b16 %v982
        %v3324 = vunpack.c.l.b16 %v983
        %v3325 = vunpack.c.h.b16 %v983
        %v3326 = vunpack.c.l.b16 %v984
        %v3327 = vunpack.c.l.b16 %v985
        %v3328 = vunpack.c.h.b16 %v985
        %v3329 = vunpack.c.l.b16 %v986
        %v3330 = vunpack.c.h.b16 %v986
        %v3331 = vunpack.c.l.b16 %v987
        %v3332 = vunpack.c.l.b16 %v988
        %v3333 = vunpack.c.h.b16 %v988
        %v3334 = vunpack.c.l.b16 %v989
        %v3335 = vunpack.c.h.b16 %v989
        %v3336 = vunpack.c.l.b16 %v990
        %v3337 = vunpack.c.l.b16 %v991
        %v3338 = vunpack.c.h.b16 %v991
        %v3339 = vunpack.c.l.b16 %v992
        %v3340 = vunpack.c.h.b16 %v992
        %v3341 = vunpack.c.l.b16 %v993
        %v3342 = vunpack.c.l.b16 %v994
        %v3343 = vunpack.c.h.b16 %v994
        %v3344 = vunpack.c.l.b16 %v995
        %v3345 = vunpack.c.h.b16 %v995
        %v3346 = vunpack.c.l.b16 %v996
        %v3347 = vunpack.c.l.b16 %v997
        %v3348 = vunpack.c.h.b16 %v997
        %v3349 = vunpack.c.l.b16 %v998
        %v3350 = vunpack.c.h.b16 %v998
        %v3351 = vunpack.c.l.b16 %v999
        %v3352 = vunpack.c.l.b16 %v1000
        %v3353 = vunpack.c.h.b16 %v1000
        %v3354 = vunpack.c.l.b16 %v1001
        %v3355 = vunpack.c.h.b16 %v1001
        %v3356 = vunpack.c.l.b16 %v1002
        %v3357 = vunpack.c.l.b16 %v1003
        %v3358 = vunpack.c.h.b16 %v1003
        %v3359 = vunpack.c.l.b16 %v1004
        %v3360 = vunpack.c.h.b16 %v1004
        %v3361 = vunpack.c.l.b16 %v1005
        %v3362 = vunpack.c.l.b16 %v1006
        %v3363 = vunpack.c.h.b16 %v1006
        %v3364 = vunpack.c.l.b16 %v1007
        %v3365 = vunpack.c.h.b16 %v1007
        %v3366 = vunpack.c.l.b16 %v1008
        %v3367 = vunpack.c.l.b16 %v1009
        %v3368 = vunpack.c.h.b16 %v1009
        %v3369 = vunpack.c.l.b16 %v1010
        %v3370 = vunpack.c.h.b16 %v1010
        %v3371 = vunpack.c.l.b16 %v1011
        %v3372 = vunpack.c.l.b16 %v1012
        %v3373 = vunpack.c.h.b16 %v1012
        %v3374 = vunpack.c.l.b16 %v1013
        %v3375 = vunpack.c.h.b16 %v1013
        %v3376 = vunpack.c.l.b16 %v1014
        %v3377 = vunpack.c.l.b16 %v1015
        %v3378 = vunpack.c.h.b16 %v1015
        %v3379 = vunpack.c.l.b16 %v1016
        %v3380 = vunpack.c.h.b16 %v1016
        %v3381 = vunpack.c.l.b16 %v1017
        %v3382 = vunpack.c.l.b16 %v1018
        %v3383 = vunpack.c.h.b16 %v1018
        %v3384 = vunpack.c.l.b16 %v1019
        %v3385 = vunpack.c.h.b16 %v1019
        %v3386 = vunpack.c.l.b16 %v1020
        %v3387 = vunpack.c.l.b16 %v1021
        %v3388 = vunpack.c.h.b16 %v1021
        %v3389 = vunpack.c.l.b16 %v1022
        %v3390 = vunpack.c.h.b16 %v1022
        %v3391 = vunpack.c.l.b16 %v1023
        %v3392 = vunpack.c.l.b16 %v1024
        %v3393 = vunpack.c.h.b16 %v1024
        %v3394 = vunpack.c.l.b16 %v1025
        %v3395 = vunpack.c.h.b16 %v1025
        %v3396 = vunpack.c.l.b16 %v1026
        %v3397 = vunpack.c.l.b16 %v1027
        %v3398 = vunpack.c.h.b16 %v1027
        %v3399 = vunpack.c.l.b16 %v1028
        %v3400 = vunpack.c.h.b16 %v1028
        %v3401 = vunpack.c.l.b16 %v1029
        %v3402 = vunpack.c.l.b16 %v1030
        %v3403 = vunpack.c.h.b16 %v1030
        %v3404 = vunpack.c.l.b16 %v1031
        %v3405 = vunpack.c.h.b16 %v1031
        %v3406 = vunpack.c.l.b16 %v1032
        %v3407 = vunpack.c.l.b16 %v1033
        %v3408 = vunpack.c.h.b16 %v1033
        %v3409 = vunpack.c.l.b16 %v1034
        %v3410 = vunpack.c.h.b16 %v1034
        %v3411 = vunpack.c.l.b16 %v1035
        %v3412 = vunpack.c.l.b16 %v1036
        %v3413 = vunpack.c.h.b16 %v1036
        %v3414 = vunpack.c.l.b16 %v1037
        %v3415 = vunpack.c.h.b16 %v1037
        %v3416 = vunpack.c.l.b16 %v1038
        %v3417 = vunpack.c.l.b16 %v1039
        %v3418 = vunpack.c.h.b16 %v1039
        %v3419 = vunpack.c.l.b16 %v1040
        %v3420 = vunpack.c.h.b16 %v1040
        %v3421 = vunpack.c.l.b16 %v1041
        %v3422 = vunpack.c.l.b16 %v1042
        %v3423 = vunpack.c.h.b16 %v1042
        %v3424 = vunpack.c.l.b16 %v1043
        %v3425 = vunpack.c.h.b16 %v1043
        %v3426 = vunpack.c.l.b16 %v1044
        %v3427 = vunpack.c.l.b16 %v1045
        %v3428 = vunpack.c.h.b16 %v1045
        %v3429 = vunpack.c.l.b16 %v1046
        %v3430 = vunpack.c.h.b16 %v1046
        %v3431 = vunpack.c.l.b16 %v1047
        %v3432 = vunpack.c.l.b16 %v1048
        %v3433 = vunpack.c.h.b16 %v1048
        %v3434 = vunpack.c.l.b16 %v1049
        %v3435 = vunpack.c.h.b16 %v1049
        %v3436 = vunpack.c.l.b16 %v1050
        %v3437 = vunpack.c.l.b16 %v1051
        %v3438 = vunpack.c.h.b16 %v1051
        %v3439 = vunpack.c.l.b16 %v1052
        %v3440 = vunpack.c.h.b16 %v1052
        %v3441 = vunpack.c.l.b16 %v1053
        %v3442 = vunpack.c.l.b16 %v1054
        %v3443 = vunpack.c.h.b16 %v1054
        %v3444 = vunpack.c.l.b16 %v1055
        %v3445 = vunpack.c.h.b16 %v1055
        %v3446 = vunpack.c.l.b16 %v1056
        %v3447 = vunpack.c.l.b16 %v1057
        %v3448 = vunpack.c.h.b16 %v1057
        %v3449 = vunpack.c.l.b16 %v1058
        %v3450 = vunpack.c.h.b16 %v1058
        %v3451 = vunpack.c.l.b16 %v1059
        %v3452 = vunpack.c.l.b16 %v1060
        %v3453 = vunpack.c.h.b16 %v1060
        %v3454 = vunpack.c.l.b16 %v1061
        %v3455 = vunpack.c.h.b16 %v1061
        %v3456 = vunpack.c.l.b16 %v1062
        %v3457 = vunpack.c.l.b16 %v1063
        %v3458 = vunpack.c.h.b16 %v1063
        %v3459 = vunpack.c.l.b16 %v1064
        %v3460 = vunpack.c.h.b16 %v1064
        %v3461 = vunpack.c.l.b16 %v1065
        %v3462 = vunpack.c.l.b16 %v1066
        %v3463 = vunpack.c.h.b16 %v1066
        %v3464 = vunpack.c.l.b16 %v1067
        %v3465 = vunpack.c.h.b16 %v1067
        %v3466 = vunpack.c.l.b16 %v1068
        %v3467 = vunpack.c.l.b16 %v1069
        %v3468 = vunpack.c.h.b16 %v1069
        %v3469 = vunpack.c.l.b16 %v1070
        %v3470 = vunpack.c.h.b16 %v1070
        %v3471 = vunpack.c.l.b16 %v1071
        %v3472 = vunpack.c.l.b16 %v1072
        %v3473 = vunpack.c.h.b16 %v1072
        %v3474 = vunpack.c.l.b16 %v1073
        %v3475 = vunpack.c.h.b16 %v1073
        %v3476 = vunpack.c.l.b16 %v1074
        %v3477 = vunpack.c.l.b16 %v1075
        %v3478 = vunpack.c.h.b16 %v1075
        %v3479 = vunpack.c.l.b16 %v1076
        %v3480 = vunpack.c.h.b16 %v1076
        %v3481 = vunpack.c.l.b16 %v1077
        %v3482 = vunpack.c.l.b16 %v1078
        %v3483 = vunpack.c.h.b16 %v1078
        %v3484 = vunpack.c.l.b16 %v1079
        %v3485 = vunpack.c.h.b16 %v1079
        %v3486 = vunpack.c.l.b16 %v1080
        %v3487 = vunpack.c.l.b16 %v1081
        %v3488 = vunpack.c.h.b16 %v1081
        %v3489 = vunpack.c.l.b16 %v1082
        %v3490 = vunpack.c.h.b16 %v1082
        %v3491 = vunpack.c.l.b16 %v1083
        %v3492 = vunpack.c.l.b16 %v1084
        %v3493 = vunpack.c.h.b16 %v1084
        %v3494 = vunpack.c.l.b16 %v1085
        %v3495 = vunpack.c.h.b16 %v1085
        %v3496 = vunpack.c.l.b16 %v1086
        %v3497 = vunpack.c.l.b16 %v1087
        %v3498 = vunpack.c.h.b16 %v1087
        %v3499 = vunpack.c.l.b16 %v1088
        %v3500 = vunpack.c.h.b16 %v1088
        %v3501 = vunpack.c.l.b16 %v1089
        %v3502 = vunpack.c.l.b16 %v1090
        %v3503 = vunpack.c.h.b16 %v1090
        %v3504 = vunpack.c.l.b16 %v1091
        %v3505 = vunpack.c.h.b16 %v1091
        %v3506 = vunpack.c.l.b16 %v1092
        %v3507 = vunpack.c.l.b16 %v1093
        %v3508 = vunpack.c.h.b16 %v1093
        %v3509 = vunpack.c.l.b16 %v1094
        %v3510 = vunpack.c.h.b16 %v1094
        %v3511 = vunpack.c.l.b16 %v1095
        %v3512 = vunpack.c.l.b16 %v1096
        %v3513 = vunpack.c.h.b16 %v1096
        %v3514 = vunpack.c.l.b16 %v1097
        %v3515 = vunpack.c.h.b16 %v1097
        %v3516 = vunpack.c.l.b16 %v1098
        %v3517 = vunpack.c.l.b16 %v1099
        %v3518 = vunpack.c.h.b16 %v1099
        %v3519 = vunpack.c.l.b16 %v1100
        %v3520 = vunpack.c.h.b16 %v1100
        %v3521 = vunpack.c.l.b16 %v1101
        %v3522 = vunpack.c.l.b16 %v1102
        %v3523 = vunpack.c.h.b16 %v1102
        %v3524 = vunpack.c.l.b16 %v1103
        %v3525 = vunpack.c.h.b16 %v1103
        %v3526 = vunpack.c.l.b16 %v1104
        %v3527 = vunpack.c.l.b16 %v1105
        %v3528 = vunpack.c.h.b16 %v1105
        %v3529 = vunpack.c.l.b16 %v1106
        %v3530 = vunpack.c.h.b16 %v1106
        %v3531 = vunpack.c.l.b16 %v1107
        %v3532 = vunpack.c.l.b16 %v1108
        %v3533 = vunpack.c.h.b16 %v1108
        %v3534 = vunpack.c.l.b16 %v1109
        %v3535 = vunpack.c.h.b16 %v1109
        %v3536 = vunpack.c.l.b16 %v1110
        %v3537 = vunpack.c.l.b16 %v1111
        %v3538 = vunpack.c.h.b16 %v1111
        %v3539 = vunpack.c.l.b16 %v1112
        %v3540 = vunpack.c.h.b16 %v1112
        %v3541 = vunpack.c.l.b16 %v1113
        %v3542 = vunpack.c.l.b16 %v1114
        %v3543 = vunpack.c.h.b16 %v1114
        %v3544 = vunpack.c.l.b16 %v1115
        %v3545 = vunpack.c.h.b16 %v1115
        %v3546 = vunpack.c.l.b16 %v1116
        %v3547 = vunpack.c.l.b16 %v1117
        %v3548 = vunpack.c.h.b16 %v1117
        %v3549 = vunpack.c.l.b16 %v1118
        %v3550 = vunpack.c.h.b16 %v1118
        %v3551 = vunpack.c.l.b16 %v1119
        %v3552 = vunpack.c.l.b16 %v1120
        %v3553 = vunpack.c.h.b16 %v1120
        %v3554 = vunpack.c.l.b16 %v1121
        %v3555 = vunpack.c.h.b16 %v1121
        %v3556 = vunpack.c.l.b16 %v1122
        %v3557 = vunpack.c.l.b16 %v1123
        %v3558 = vunpack.c.h.b16 %v1123
        %v3559 = vunpack.c.l.b16 %v1124
        %v3560 = vunpack.c.h.b16 %v1124
        %v3561 = vunpack.c.l.b16 %v1125
        %v3562 = vunpack.c.l.b16 %v1126
        %v3563 = vunpack.c.h.b16 %v1126
        %v3564 = vunpack.c.l.b16 %v1127
        %v3565 = vunpack.c.h.b16 %v1127
        %v3566 = vunpack.c.l.b16 %v1128
        %v3567 = vunpack.c.l.b16 %v1129
        %v3568 = vunpack.c.h.b16 %v1129
        %v3569 = vunpack.c.l.b16 %v1130
        %v3570 = vunpack.c.h.b16 %v1130
        %v3571 = vunpack.c.l.b16 %v1131
        %v3572 = vunpack.c.l.b16 %v1132
        %v3573 = vunpack.c.h.b16 %v1132
        %v3574 = vunpack.c.l.b16 %v1133
        %v3575 = vunpack.c.h.b16 %v1133
        %v3576 = vunpack.c.l.b16 %v1134
        %v3577 = vunpack.c.l.b16 %v1135
        %v3578 = vunpack.c.h.b16 %v1135
        %v3579 = vunpack.c.l.b16 %v1136
        %v3580 = vunpack.c.h.b16 %v1136
        %v3581 = vunpack.c.l.b16 %v1137
        %v3582 = vunpack.c.l.b16 %v1138
        %v3583 = vunpack.c.h.b16 %v1138
        %v3584 = vunpack.c.l.b16 %v1139
        %v3585 = vunpack.c.h.b16 %v1139
        %v3586 = vunpack.c.l.b16 %v1140
        %v3587 = vpack.c.b16 %v2152, %v2147
        %v3588 = vpack.c.b16 %v2153, %v2148
        %v3589 = vpack.c.b16 %v2154, %v2149
        %v3590 = vpack.c.b16 %v2155, %v2150
        %v3591 = vpack.c.b16 %v2156, %v2151
        %v3592 = vpack.c.b16 %v2162, %v2157
        %v3593 = vpack.c.b16 %v2163, %v2158
        %v3594 = vpack.c.b16 %v2164, %v2159
        %v3595 = vpack.c.b16 %v2165, %v2160
        %v3596 = vpack.c.b16 %v2166, %v2161
        %v3597 = vpack.c.b16 %v2172, %v2167
        %v3598 = vpack.c.b16 %v2173, %v2168
        %v3599 = vpack.c.b16 %v2174, %v2169
        %v3600 = vpack.c.b16 %v2175, %v2170
        %v3601 = vpack.c.b16 %v2176, %v2171
        %v3602 = vpack.c.b16 %v2182, %v2177
        %v3603 = vpack.c.b16 %v2183, %v2178
        %v3604 = vpack.c.b16 %v2184, %v2179
        %v3605 = vpack.c.b16 %v2185, %v2180
        %v3606 = vpack.c.b16 %v2186, %v2181
        %v3607 = vpack.c.b16 %v2192, %v2187
        %v3608 = vpack.c.b16 %v2193, %v2188
        %v3609 = vpack.c.b16 %v2194, %v2189
        %v3610 = vpack.c.b16 %v2195, %v2190
        %v3611 = vpack.c.b16 %v2196, %v2191
        %v3612 = vpack.c.b16 %v2202, %v2197
        %v3613 = vpack.c.b16 %v2203, %v2198
        %v3614 = vpack.c.b16 %v2204, %v2199
        %v3615 = vpack.c.b16 %v2205, %v2200
        %v3616 = vpack.c.b16 %v2206, %v2201
        %v3617 = vpack.c.b16 %v2212, %v2207
        %v3618 = vpack.c.b16 %v2213, %v2208
        %v3619 = vpack.c.b16 %v2214, %v2209
        %v3620 = vpack.c.b16 %v2215, %v2210
        %v3621 = vpack.c.b16 %v2216, %v2211
        %v3622 = vpack.c.b16 %v2222, %v2217
        %v3623 = vpack.c.b16 %v2223, %v2218
        %v3624 = vpack.c.b16 %v2224, %v2219
        %v3625 = vpack.c.b16 %v2225, %v2220
        %v3626 = vpack.c.b16 %v2226, %v2221
        %v3627 = vpack.c.b16 %v2232, %v2227
        %v3628 = vpack.c.b16 %v2233, %v2228
        %v3629 = vpack.c.b16 %v2234, %v2229
        %v3630 = vpack.c.b16 %v2235, %v2230
        %v3631 = vpack.c.b16 %v2236, %v2231
        %v3632 = vpack.c.b16 %v2242, %v2237
        %v3633 = vpack.c.b16 %v2243, %v2238
        %v3634 = vpack.c.b16 %v2244, %v2239
        %v3635 = vpack.c.b16 %v2245, %v2240
        %v3636 = vpack.c.b16 %v2246, %v2241
        %v3637 = vpack.c.b16 %v2252, %v2247
        %v3638 = vpack.c.b16 %v2253, %v2248
        %v3639 = vpack.c.b16 %v2254, %v2249
        %v3640 = vpack.c.b16 %v2255, %v2250
        %v3641 = vpack.c.b16 %v2256, %v2251
        %v3642 = vpack.c.b16 %v2262, %v2257
        %v3643 = vpack.c.b16 %v2263, %v2258
        %v3644 = vpack.c.b16 %v2264, %v2259
        %v3645 = vpack.c.b16 %v2265, %v2260
        %v3646 = vpack.c.b16 %v2266, %v2261
        %v3647 = vpack.c.b16 %v2272, %v2267
        %v3648 = vpack.c.b16 %v2273, %v2268
        %v3649 = vpack.c.b16 %v2274, %v2269
        %v3650 = vpack.c.b16 %v2275, %v2270
        %v3651 = vpack.c.b16 %v2276, %v2271
        %v3652 = vpack.c.b16 %v2282, %v2277
        %v3653 = vpack.c.b16 %v2283, %v2278
        %v3654 = vpack.c.b16 %v2284, %v2279
        %v3655 = vpack.c.b16 %v2285, %v2280
        %v3656 = vpack.c.b16 %v2286, %v2281
        %v3657 = vpack.c.b16 %v2292, %v2287
        %v3658 = vpack.c.b16 %v2293, %v2288
        %v3659 = vpack.c.b16 %v2294, %v2289
        %v3660 = vpack.c.b16 %v2295, %v2290
        %v3661 = vpack.c.b16 %v2296, %v2291
        %v3662 = vpack.c.b16 %v2302, %v2297
        %v3663 = vpack.c.b16 %v2303, %v2298
        %v3664 = vpack.c.b16 %v2304, %v2299
        %v3665 = vpack.c.b16 %v2305, %v2300
        %v3666 = vpack.c.b16 %v2306, %v2301
        %v3667 = vpack.c.b16 %v2312, %v2307
        %v3668 = vpack.c.b16 %v2313, %v2308
        %v3669 = vpack.c.b16 %v2314, %v2309
        %v3670 = vpack.c.b16 %v2315, %v2310
        %v3671 = vpack.c.b16 %v2316, %v2311
        %v3672 = vpack.c.b16 %v2322, %v2317
        %v3673 = vpack.c.b16 %v2323, %v2318
        %v3674 = vpack.c.b16 %v2324, %v2319
        %v3675 = vpack.c.b16 %v2325, %v2320
        %v3676 = vpack.c.b16 %v2326, %v2321
        %v3677 = vpack.c.b16 %v2332, %v2327
        %v3678 = vpack.c.b16 %v2333, %v2328
        %v3679 = vpack.c.b16 %v2334, %v2329
        %v3680 = vpack.c.b16 %v2335, %v2330
        %v3681 = vpack.c.b16 %v2336, %v2331
        %v3682 = vpack.c.b16 %v2342, %v2337
        %v3683 = vpack.c.b16 %v2343, %v2338
        %v3684 = vpack.c.b16 %v2344, %v2339
        %v3685 = vpack.c.b16 %v2345, %v2340
        %v3686 = vpack.c.b16 %v2346, %v2341
        %v3687 = vpack.c.b16 %v2352, %v2347
        %v3688 = vpack.c.b16 %v2353, %v2348
        %v3689 = vpack.c.b16 %v2354, %v2349
        %v3690 = vpack.c.b16 %v2355, %v2350
        %v3691 = vpack.c.b16 %v2356, %v2351
        %v3692 = vpack.c.b16 %v2362, %v2357
        %v3693 = vpack.c.b16 %v2363, %v2358
        %v3694 = vpack.c.b16 %v2364, %v2359
        %v3695 = vpack.c.b16 %v2365, %v2360
        %v3696 = vpack.c.b16 %v2366, %v2361
        %v3697 = vpack.c.b16 %v2372, %v2367
        %v3698 = vpack.c.b16 %v2373, %v2368
        %v3699 = vpack.c.b16 %v2374, %v2369
        %v3700 = vpack.c.b16 %v2375, %v2370
        %v3701 = vpack.c.b16 %v2376, %v2371
        %v3702 = vpack.c.b16 %v2382, %v2377
        %v3703 = vpack.c.b16 %v2383, %v2378
        %v3704 = vpack.c.b16 %v2384, %v2379
        %v3705 = vpack.c.b16 %v2385, %v2380
        %v3706 = vpack.c.b16 %v2386, %v2381
        %v3707 = vpack.c.b16 %v2392, %v2387
        %v3708 = vpack.c.b16 %v2393, %v2388
        %v3709 = vpack.c.b16 %v2394, %v2389
        %v3710 = vpack.c.b16 %v2395, %v2390
        %v3711 = vpack.c.b16 %v2396, %v2391
        %v3712 = vpack.c.b16 %v2402, %v2397
        %v3713 = vpack.c.b16 %v2403, %v2398
        %v3714 = vpack.c.b16 %v2404, %v2399
        %v3715 = vpack.c.b16 %v2405, %v2400
        %v3716 = vpack.c.b16 %v2406, %v2401
        %v3717 = vpack.c.b16 %v2412, %v2407
        %v3718 = vpack.c.b16 %v2413, %v2408
        %v3719 = vpack.c.b16 %v2414, %v2409
        %v3720 = vpack.c.b16 %v2415, %v2410
        %v3721 = vpack.c.b16 %v2416, %v2411
        %v3722 = vpack.c.b16 %v2422, %v2417
        %v3723 = vpack.c.b16 %v2423, %v2418
        %v3724 = vpack.c.b16 %v2424, %v2419
        %v3725 = vpack.c.b16 %v2425, %v2420
        %v3726 = vpack.c.b16 %v2426, %v2421
        %v3727 = vpack.c.b16 %v2432, %v2427
        %v3728 = vpack.c.b16 %v2433, %v2428
        %v3729 = vpack.c.b16 %v2434, %v2429
        %v3730 = vpack.c.b16 %v2435, %v2430
        %v3731 = vpack.c.b16 %v2436, %v2431
        %v3732 = vpack.c.b16 %v2442, %v2437
        %v3733 = vpack.c.b16 %v2443, %v2438
        %v3734 = vpack.c.b16 %v2444, %v2439
        %v3735 = vpack.c.b16 %v2445, %v2440
        %v3736 = vpack.c.b16 %v2446, %v2441
        %v3737 = vpack.c.b16 %v2452, %v2447
        %v3738 = vpack.c.b16 %v2453, %v2448
        %v3739 = vpack.c.b16 %v2454, %v2449
        %v3740 = vpack.c.b16 %v2455, %v2450
        %v3741 = vpack.c.b16 %v2456, %v2451
        %v3742 = vpack.c.b16 %v2462, %v2457
        %v3743 = vpack.c.b16 %v2463, %v2458
        %v3744 = vpack.c.b16 %v2464, %v2459
        %v3745 = vpack.c.b16 %v2465, %v2460
        %v3746 = vpack.c.b16 %v2466, %v2461
        %v3747 = vpack.c.b16 %v2472, %v2467
        %v3748 = vpack.c.b16 %v2473, %v2468
        %v3749 = vpack.c.b16 %v2474, %v2469
        %v3750 = vpack.c.b16 %v2475, %v2470
        %v3751 = vpack.c.b16 %v2476, %v2471
        %v3752 = vpack.c.b16 %v2482, %v2477
        %v3753 = vpack.c.b16 %v2483, %v2478
        %v3754 = vpack.c.b16 %v2484, %v2479
        %v3755 = vpack.c.b16 %v2485, %v2480
        %v3756 = vpack.c.b16 %v2486, %v2481
        %v3757 = vpack.c.b16 %v2492, %v2487
        %v3758 = vpack.c.b16 %v2493, %v2488
        %v3759 = vpack.c.b16 %v2494, %v2489
        %v3760 = vpack.c.b16 %v2495, %v2490
        %v3761 = vpack.c.b16 %v2496, %v2491
        %v3762 = vpack.c.b16 %v2502, %v2497
        %v3763 = vpack.c.b16 %v2503, %v2498
        %v3764 = vpack.c.b16 %v2504, %v2499
        %v3765 = vpack.c.b16 %v2505, %v2500
        %v3766 = vpack.c.b16 %v2506, %v2501
        %v3767 = vpack.c.b16 %v2512, %v2507
        %v3768 = vpack.c.b16 %v2513, %v2508
        %v3769 = vpack.c.b16 %v2514, %v2509
        %v3770 = vpack.c.b16 %v2515, %v2510
        %v3771 = vpack.c.b16 %v2516, %v2511
        %v3772 = vpack.c.b16 %v2522, %v2517
        %v3773 = vpack.c.b16 %v2523, %v2518
        %v3774 = vpack.c.b16 %v2524, %v2519
        %v3775 = vpack.c.b16 %v2525, %v2520
        %v3776 = vpack.c.b16 %v2526, %v2521
        %v3777 = vpack.c.b16 %v2532, %v2527
        %v3778 = vpack.c.b16 %v2533, %v2528
        %v3779 = vpack.c.b16 %v2534, %v2529
        %v3780 = vpack.c.b16 %v2535, %v2530
        %v3781 = vpack.c.b16 %v2536, %v2531
        %v3782 = vpack.c.b16 %v2542, %v2537
        %v3783 = vpack.c.b16 %v2543, %v2538
        %v3784 = vpack.c.b16 %v2544, %v2539
        %v3785 = vpack.c.b16 %v2545, %v2540
        %v3786 = vpack.c.b16 %v2546, %v2541
        %v3787 = vpack.c.b16 %v2552, %v2547
        %v3788 = vpack.c.b16 %v2553, %v2548
        %v3789 = vpack.c.b16 %v2554, %v2549
        %v3790 = vpack.c.b16 %v2555, %v2550
        %v3791 = vpack.c.b16 %v2556, %v2551
        %v3792 = vpack.c.b16 %v2562, %v2557
        %v3793 = vpack.c.b16 %v2563, %v2558
        %v3794 = vpack.c.b16 %v2564, %v2559
        %v3795 = vpack.c.b16 %v2565, %v2560
        %v3796 = vpack.c.b16 %v2566, %v2561
        %v3797 = vpack.c.b16 %v2572, %v2567
        %v3798 = vpack.c.b16 %v2573, %v2568
        %v3799 = vpack.c.b16 %v2574, %v2569
        %v3800 = vpack.c.b16 %v2575, %v2570
        %v3801 = vpack.c.b16 %v2576, %v2571
        %v3802 = vpack.c.b16 %v2582, %v2577
        %v3803 = vpack.c.b16 %v2583, %v2578
        %v3804 = vpack.c.b16 %v2584, %v2579
        %v3805 = vpack.c.b16 %v2585, %v2580
        %v3806 = vpack.c.b16 %v2586, %v2581
        %v3807 = vpack.c.b16 %v2592, %v2587
        %v3808 = vpack.c.b16 %v2593, %v2588
        %v3809 = vpack.c.b16 %v2594, %v2589
        %v3810 = vpack.c.b16 %v2595, %v2590
        %v3811 = vpack.c.b16 %v2596, %v2591
        %v3812 = vpack.c.b16 %v2602, %v2597
        %v3813 = vpack.c.b16 %v2603, %v2598
        %v3814 = vpack.c.b16 %v2604, %v2599
        %v3815 = vpack.c.b16 %v2605, %v2600
        %v3816 = vpack.c.b16 %v2606, %v2601
        %v3817 = vpack.c.b16 %v2612, %v2607
        %v3818 = vpack.c.b16 %v2613, %v2608
        %v3819 = vpack.c.b16 %v2614, %v2609
        %v3820 = vpack.c.b16 %v2615, %v2610
        %v3821 = vpack.c.b16 %v2616, %v2611
        %v3822 = vpack.c.b16 %v2622, %v2617
        %v3823 = vpack.c.b16 %v2623, %v2618
        %v3824 = vpack.c.b16 %v2624, %v2619
        %v3825 = vpack.c.b16 %v2625, %v2620
        %v3826 = vpack.c.b16 %v2626, %v2621
        %v3827 = vpack.c.b16 %v2632, %v2627
        %v3828 = vpack.c.b16 %v2633, %v2628
        %v3829 = vpack.c.b16 %v2634, %v2629
        %v3830 = vpack.c.b16 %v2635, %v2630
        %v3831 = vpack.c.b16 %v2636, %v2631
        %v3832 = vpack.c.b16 %v2642, %v2637
        %v3833 = vpack.c.b16 %v2643, %v2638
        %v3834 = vpack.c.b16 %v2644, %v2639
        %v3835 = vpack.c.b16 %v2645, %v2640
        %v3836 = vpack.c.b16 %v2646, %v2641
        %v3837 = vpack.c.b16 %v2652, %v2647
        %v3838 = vpack.c.b16 %v2653, %v2648
        %v3839 = vpack.c.b16 %v2654, %v2649
        %v3840 = vpack.c.b16 %v2655, %v2650
        %v3841 = vpack.c.b16 %v2656, %v2651
        %v3842 = vpack.c.b16 %v2662, %v2657
        %v3843 = vpack.c.b16 %v2663, %v2658
        %v3844 = vpack.c.b16 %v2664, %v2659
        %v3845 = vpack.c.b16 %v2665, %v2660
        %v3846 = vpack.c.b16 %v2666, %v2661
        %v3847 = vpack.c.b16 %v2672, %v2667
        %v3848 = vpack.c.b16 %v2673, %v2668
        %v3849 = vpack.c.b16 %v2674, %v2669
        %v3850 = vpack.c.b16 %v2675, %v2670
        %v3851 = vpack.c.b16 %v2676, %v2671
        %v3852 = vpack.c.b16 %v2682, %v2677
        %v3853 = vpack.c.b16 %v2683, %v2678
        %v3854 = vpack.c.b16 %v2684, %v2679
        %v3855 = vpack.c.b16 %v2685, %v2680
        %v3856 = vpack.c.b16 %v2686, %v2681
        %v3857 = vpack.c.b16 %v2692, %v2687
        %v3858 = vpack.c.b16 %v2693, %v2688
        %v3859 = vpack.c.b16 %v2694, %v2689
        %v3860 = vpack.c.b16 %v2695, %v2690
        %v3861 = vpack.c.b16 %v2696, %v2691
        %v3862 = vpack.c.b16 %v2702, %v2697
        %v3863 = vpack.c.b16 %v2703, %v2698
        %v3864 = vpack.c.b16 %v2704, %v2699
        %v3865 = vpack.c.b16 %v2705, %v2700
        %v3866 = vpack.c.b16 %v2706, %v2701
        %v3867 = vpack.c.b16 %v2712, %v2707
        %v3868 = vpack.c.b16 %v2713, %v2708
        %v3869 = vpack.c.b16 %v2714, %v2709
        %v3870 = vpack.c.b16 %v2715, %v2710
        %v3871 = vpack.c.b16 %v2716, %v2711
        %v3872 = vpack.c.b16 %v2722, %v2717
        %v3873 = vpack.c.b16 %v2723, %v2718
        %v3874 = vpack.c.b16 %v2724, %v2719
        %v3875 = vpack.c.b16 %v2725, %v2720
        %v3876 = vpack.c.b16 %v2726, %v2721
        %v3877 = vpack.c.b16 %v2732, %v2727
        %v3878 = vpack.c.b16 %v2733, %v2728
        %v3879 = vpack.c.b16 %v2734, %v2729
        %v3880 = vpack.c.b16 %v2735, %v2730
        %v3881 = vpack.c.b16 %v2736, %v2731
        %v3882 = vpack.c.b16 %v2742, %v2737
        %v3883 = vpack.c.b16 %v2743, %v2738
        %v3884 = vpack.c.b16 %v2744, %v2739
        %v3885 = vpack.c.b16 %v2745, %v2740
        %v3886 = vpack.c.b16 %v2746, %v2741
        %v3887 = vpack.c.b16 %v2752, %v2747
        %v3888 = vpack.c.b16 %v2753, %v2748
        %v3889 = vpack.c.b16 %v2754, %v2749
        %v3890 = vpack.c.b16 %v2755, %v2750
        %v3891 = vpack.c.b16 %v2756, %v2751
        %v3892 = vpack.c.b16 %v2762, %v2757
        %v3893 = vpack.c.b16 %v2763, %v2758
        %v3894 = vpack.c.b16 %v2764, %v2759
        %v3895 = vpack.c.b16 %v2765, %v2760
        %v3896 = vpack.c.b16 %v2766, %v2761
        %v3897 = vpack.c.b16 %v2772, %v2767
        %v3898 = vpack.c.b16 %v2773, %v2768
        %v3899 = vpack.c.b16 %v2774, %v2769
        %v3900 = vpack.c.b16 %v2775, %v2770
        %v3901 = vpack.c.b16 %v2776, %v2771
        %v3902 = vpack.c.b16 %v2782, %v2777
        %v3903 = vpack.c.b16 %v2783, %v2778
        %v3904 = vpack.c.b16 %v2784, %v2779
        %v3905 = vpack.c.b16 %v2785, %v2780
        %v3906 = vpack.c.b16 %v2786, %v2781
        %v3907 = vpack.c.b16 %v2792, %v2787
        %v3908 = vpack.c.b16 %v2793, %v2788
        %v3909 = vpack.c.b16 %v2794, %v2789
        %v3910 = vpack.c.b16 %v2795, %v2790
        %v3911 = vpack.c.b16 %v2796, %v2791
        %v3912 = vpack.c.b16 %v2802, %v2797
        %v3913 = vpack.c.b16 %v2803, %v2798
        %v3914 = vpack.c.b16 %v2804, %v2799
        %v3915 = vpack.c.b16 %v2805, %v2800
        %v3916 = vpack.c.b16 %v2806, %v2801
        %v3917 = vpack.c.b16 %v2812, %v2807
        %v3918 = vpack.c.b16 %v2813, %v2808
        %v3919 = vpack.c.b16 %v2814, %v2809
        %v3920 = vpack.c.b16 %v2815, %v2810
        %v3921 = vpack.c.b16 %v2816, %v2811
        %v3922 = vpack.c.b16 %v2822, %v2817
        %v3923 = vpack.c.b16 %v2823, %v2818
        %v3924 = vpack.c.b16 %v2824, %v2819
        %v3925 = vpack.c.b16 %v2825, %v2820
        %v3926 = vpack.c.b16 %v2826, %v2821
        %v3927 = vpack.c.b16 %v2832, %v2827
        %v3928 = vpack.c.b16 %v2833, %v2828
        %v3929 = vpack.c.b16 %v2834, %v2829
        %v3930 = vpack.c.b16 %v2835, %v2830
        %v3931 = vpack.c.b16 %v2836, %v2831
        %v3932 = vpack.c.b16 %v2842, %v2837
        %v3933 = vpack.c.b16 %v2843, %v2838
        %v3934 = vpack.c.b16 %v2844, %v2839
        %v3935 = vpack.c.b16 %v2845, %v2840
        %v3936 = vpack.c.b16 %v2846, %v2841
        %v3937 = vpack.c.b16 %v2852, %v2847
        %v3938 = vpack.c.b16 %v2853, %v2848
        %v3939 = vpack.c.b16 %v2854, %v2849
        %v3940 = vpack.c.b16 %v2855, %v2850
        %v3941 = vpack.c.b16 %v2856, %v2851
        %v3942 = vpack.c.b16 %v2862, %v2857
        %v3943 = vpack.c.b16 %v2863, %v2858
        %v3944 = vpack.c.b16 %v2864, %v2859
        %v3945 = vpack.c.b16 %v2865, %v2860
        %v3946 = vpack.c.b16 %v2866, %v2861
        %v3947 = vpack.c.b16 %v2872, %v2867
        %v3948 = vpack.c.b16 %v2873, %v2868
        %v3949 = vpack.c.b16 %v2874, %v2869
        %v3950 = vpack.c.b16 %v2875, %v2870
        %v3951 = vpack.c.b16 %v2876, %v2871
        %v3952 = vpack.c.b16 %v2882, %v2877
        %v3953 = vpack.c.b16 %v2883, %v2878
        %v3954 = vpack.c.b16 %v2884, %v2879
        %v3955 = vpack.c.b16 %v2885, %v2880
        %v3956 = vpack.c.b16 %v2886, %v2881
        %v3957 = vpack.c.b16 %v2892, %v2887
        %v3958 = vpack.c.b16 %v2893, %v2888
        %v3959 = vpack.c.b16 %v2894, %v2889
        %v3960 = vpack.c.b16 %v2895, %v2890
        %v3961 = vpack.c.b16 %v2896, %v2891
        %v3962 = vpack.c.b16 %v2902, %v2897
        %v3963 = vpack.c.b16 %v2903, %v2898
        %v3964 = vpack.c.b16 %v2904, %v2899
        %v3965 = vpack.c.b16 %v2905, %v2900
        %v3966 = vpack.c.b16 %v2906, %v2901
        %v3967 = vpack.c.b16 %v2912, %v2907
        %v3968 = vpack.c.b16 %v2913, %v2908
        %v3969 = vpack.c.b16 %v2914, %v2909
        %v3970 = vpack.c.b16 %v2915, %v2910
        %v3971 = vpack.c.b16 %v2916, %v2911
        %v3972 = vpack.c.b16 %v2922, %v2917
        %v3973 = vpack.c.b16 %v2923, %v2918
        %v3974 = vpack.c.b16 %v2924, %v2919
        %v3975 = vpack.c.b16 %v2925, %v2920
        %v3976 = vpack.c.b16 %v2926, %v2921
        %v3977 = vpack.c.b16 %v2932, %v2927
        %v3978 = vpack.c.b16 %v2933, %v2928
        %v3979 = vpack.c.b16 %v2934, %v2929
        %v3980 = vpack.c.b16 %v2935, %v2930
        %v3981 = vpack.c.b16 %v2936, %v2931
        %v3982 = vpack.c.b16 %v2942, %v2937
        %v3983 = vpack.c.b16 %v2943, %v2938
        %v3984 = vpack.c.b16 %v2944, %v2939
        %v3985 = vpack.c.b16 %v2945, %v2940
        %v3986 = vpack.c.b16 %v2946, %v2941
        %v3987 = vpack.c.b16 %v2952, %v2947
        %v3988 = vpack.c.b16 %v2953, %v2948
        %v3989 = vpack.c.b16 %v2954, %v2949
        %v3990 = vpack.c.b16 %v2955, %v2950
        %v3991 = vpack.c.b16 %v2956, %v2951
        %v3992 = vpack.c.b16 %v2962, %v2957
        %v3993 = vpack.c.b16 %v2963, %v2958
        %v3994 = vpack.c.b16 %v2964, %v2959
        %v3995 = vpack.c.b16 %v2965, %v2960
        %v3996 = vpack.c.b16 %v2966, %v2961
        %v3997 = vpack.c.b16 %v2972, %v2967
        %v3998 = vpack.c.b16 %v2973, %v2968
        %v3999 = vpack.c.b16 %v2974, %v2969
        %v4000 = vpack.c.b16 %v2975, %v2970
        %v4001 = vpack.c.b16 %v2976, %v2971
        %v4002 = vpack.c.b16 %v2982, %v2977
        %v4003 = vpack.c.b16 %v2983, %v2978
        %v4004 = vpack.c.b16 %v2984, %v2979
        %v4005 = vpack.c.b16 %v2985, %v2980
        %v4006 = vpack.c.b16 %v2986, %v2981
        %v4007 = vpack.c.b16 %v2992, %v2987
        %v4008 = vpack.c.b16 %v2993, %v2988
        %v4009 = vpack.c.b16 %v2994, %v2989
        %v4010 = vpack.c.b16 %v2995, %v2990
        %v4011 = vpack.c.b16 %v2996, %v2991
        %v4012 = vpack.c.b16 %v3002, %v2997
        %v4013 = vpack.c.b16 %v3003, %v2998
        %v4014 = vpack.c.b16 %v3004, %v2999
        %v4015 = vpack.c.b16 %v3005, %v3000
        %v4016 = vpack.c.b16 %v3006, %v3001
        %v4017 = vpack.c.b16 %v3012, %v3007
        %v4018 = vpack.c.b16 %v3013, %v3008
        %v4019 = vpack.c.b16 %v3014, %v3009
        %v4020 = vpack.c.b16 %v3015, %v3010
        %v4021 = vpack.c.b16 %v3016, %v3011
        %v4022 = vpack.c.b16 %v3022, %v3017
        %v4023 = vpack.c.b16 %v3023, %v3018
        %v4024 = vpack.c.b16 %v3024, %v3019
        %v4025 = vpack.c.b16 %v3025, %v3020
        %v4026 = vpack.c.b16 %v3026, %v3021
        %v4027 = vpack.c.b16 %v3032, %v3027
        %v4028 = vpack.c.b16 %v3033, %v3028
        %v4029 = vpack.c.b16 %v3034, %v3029
        %v4030 = vpack.c.b16 %v3035, %v3030
        %v4031 = vpack.c.b16 %v3036, %v3031
        %v4032 = vpack.c.b16 %v3042, %v3037
        %v4033 = vpack.c.b16 %v3043, %v3038
        %v4034 = vpack.c.b16 %v3044, %v3039
        %v4035 = vpack.c.b16 %v3045, %v3040
        %v4036 = vpack.c.b16 %v3046, %v3041
        %v4037 = vpack.c.b16 %v3052, %v3047
        %v4038 = vpack.c.b16 %v3053, %v3048
        %v4039 = vpack.c.b16 %v3054, %v3049
        %v4040 = vpack.c.b16 %v3055, %v3050
        %v4041 = vpack.c.b16 %v3056, %v3051
        %v4042 = vpack.c.b16 %v3062, %v3057
        %v4043 = vpack.c.b16 %v3063, %v3058
        %v4044 = vpack.c.b16 %v3064, %v3059
        %v4045 = vpack.c.b16 %v3065, %v3060
        %v4046 = vpack.c.b16 %v3066, %v3061
        %v4047 = vpack.c.b16 %v3072, %v3067
        %v4048 = vpack.c.b16 %v3073, %v3068
        %v4049 = vpack.c.b16 %v3074, %v3069
        %v4050 = vpack.c.b16 %v3075, %v3070
        %v4051 = vpack.c.b16 %v3076, %v3071
        %v4052 = vpack.c.b16 %v3082, %v3077
        %v4053 = vpack.c.b16 %v3083, %v3078
        %v4054 = vpack.c.b16 %v3084, %v3079
        %v4055 = vpack.c.b16 %v3085, %v3080
        %v4056 = vpack.c.b16 %v3086, %v3081
        %v4057 = vpack.c.b16 %v3092, %v3087
        %v4058 = vpack.c.b16 %v3093, %v3088
        %v4059 = vpack.c.b16 %v3094, %v3089
        %v4060 = vpack.c.b16 %v3095, %v3090
        %v4061 = vpack.c.b16 %v3096, %v3091
        %v4062 = vpack.c.b16 %v3102, %v3097
        %v4063 = vpack.c.b16 %v3103, %v3098
        %v4064 = vpack.c.b16 %v3104, %v3099
        %v4065 = vpack.c.b16 %v3105, %v3100
        %v4066 = vpack.c.b16 %v3106, %v3101
        %v4067 = vpack.c.b16 %v3112, %v3107
        %v4068 = vpack.c.b16 %v3113, %v3108
        %v4069 = vpack.c.b16 %v3114, %v3109
        %v4070 = vpack.c.b16 %v3115, %v3110
        %v4071 = vpack.c.b16 %v3116, %v3111
        %v4072 = vpack.c.b16 %v3122, %v3117
        %v4073 = vpack.c.b16 %v3123, %v3118
        %v4074 = vpack.c.b16 %v3124, %v3119
        %v4075 = vpack.c.b16 %v3125, %v3120
        %v4076 = vpack.c.b16 %v3126, %v3121
        %v4077 = vpack.c.b16 %v3132, %v3127
        %v4078 = vpack.c.b16 %v3133, %v3128
        %v4079 = vpack.c.b16 %v3134, %v3129
        %v4080 = vpack.c.b16 %v3135, %v3130
        %v4081 = vpack.c.b16 %v3136, %v3131
        %v4082 = vpack.c.b16 %v3142, %v3137
        %v4083 = vpack.c.b16 %v3143, %v3138
        %v4084 = vpack.c.b16 %v3144, %v3139
        %v4085 = vpack.c.b16 %v3145, %v3140
        %v4086 = vpack.c.b16 %v3146, %v3141
        %v4087 = vpack.c.b16 %v3152, %v3147
        %v4088 = vpack.c.b16 %v3153, %v3148
        %v4089 = vpack.c.b16 %v3154, %v3149
        %v4090 = vpack.c.b16 %v3155, %v3150
        %v4091 = vpack.c.b16 %v3156, %v3151
        %v4092 = vpack.c.b16 %v3162, %v3157
        %v4093 = vpack.c.b16 %v3163, %v3158
        %v4094 = vpack.c.b16 %v3164, %v3159
        %v4095 = vpack.c.b16 %v3165, %v3160
        %v4096 = vpack.c.b16 %v3166, %v3161
        %v4097 = vpack.c.b16 %v3172, %v3167
        %v4098 = vpack.c.b16 %v3173, %v3168
        %v4099 = vpack.c.b16 %v3174, %v3169
        %v4100 = vpack.c.b16 %v3175, %v3170
        %v4101 = vpack.c.b16 %v3176, %v3171
        %v4102 = vpack.c.b16 %v3182, %v3177
        %v4103 = vpack.c.b16 %v3183, %v3178
        %v4104 = vpack.c.b16 %v3184, %v3179
        %v4105 = vpack.c.b16 %v3185, %v3180
        %v4106 = vpack.c.b16 %v3186, %v3181
        %v4107 = vpack.c.b16 %v3192, %v3187
        %v4108 = vpack.c.b16 %v3193, %v3188
        %v4109 = vpack.c.b16 %v3194, %v3189
        %v4110 = vpack.c.b16 %v3195, %v3190
        %v4111 = vpack.c.b16 %v3196, %v3191
        %v4112 = vpack.c.b16 %v3202, %v3197
        %v4113 = vpack.c.b16 %v3203, %v3198
        %v4114 = vpack.c.b16 %v3204, %v3199
        %v4115 = vpack.c.b16 %v3205, %v3200
        %v4116 = vpack.c.b16 %v3206, %v3201
        %v4117 = vpack.c.b16 %v3212, %v3207
        %v4118 = vpack.c.b16 %v3213, %v3208
        %v4119 = vpack.c.b16 %v3214, %v3209
        %v4120 = vpack.c.b16 %v3215, %v3210
        %v4121 = vpack.c.b16 %v3216, %v3211
        %v4122 = vpack.c.b16 %v3222, %v3217
        %v4123 = vpack.c.b16 %v3223, %v3218
        %v4124 = vpack.c.b16 %v3224, %v3219
        %v4125 = vpack.c.b16 %v3225, %v3220
        %v4126 = vpack.c.b16 %v3226, %v3221
        %v4127 = vpack.c.b16 %v3232, %v3227
        %v4128 = vpack.c.b16 %v3233, %v3228
        %v4129 = vpack.c.b16 %v3234, %v3229
        %v4130 = vpack.c.b16 %v3235, %v3230
        %v4131 = vpack.c.b16 %v3236, %v3231
        %v4132 = vpack.c.b16 %v3242, %v3237
        %v4133 = vpack.c.b16 %v3243, %v3238
        %v4134 = vpack.c.b16 %v3244, %v3239
        %v4135 = vpack.c.b16 %v3245, %v3240
        %v4136 = vpack.c.b16 %v3246, %v3241
        %v4137 = vpack.c.b16 %v3252, %v3247
        %v4138 = vpack.c.b16 %v3253, %v3248
        %v4139 = vpack.c.b16 %v3254, %v3249
        %v4140 = vpack.c.b16 %v3255, %v3250
        %v4141 = vpack.c.b16 %v3256, %v3251
        %v4142 = vpack.c.b16 %v3262, %v3257
        %v4143 = vpack.c.b16 %v3263, %v3258
        %v4144 = vpack.c.b16 %v3264, %v3259
        %v4145 = vpack.c.b16 %v3265, %v3260
        %v4146 = vpack.c.b16 %v3266, %v3261
        %v4147 = vpack.c.b16 %v3272, %v3267
        %v4148 = vpack.c.b16 %v3273, %v3268
        %v4149 = vpack.c.b16 %v3274, %v3269
        %v4150 = vpack.c.b16 %v3275, %v3270
        %v4151 = vpack.c.b16 %v3276, %v3271
        %v4152 = vpack.c.b16 %v3282, %v3277
        %v4153 = vpack.c.b16 %v3283, %v3278
        %v4154 = vpack.c.b16 %v3284, %v3279
        %v4155 = vpack.c.b16 %v3285, %v3280
        %v4156 = vpack.c.b16 %v3286, %v3281
        %v4157 = vpack.c.b16 %v3292, %v3287
        %v4158 = vpack.c.b16 %v3293, %v3288
        %v4159 = vpack.c.b16 %v3294, %v3289
        %v4160 = vpack.c.b16 %v3295, %v3290
        %v4161 = vpack.c.b16 %v3296, %v3291
        %v4162 = vpack.c.b16 %v3302, %v3297
        %v4163 = vpack.c.b16 %v3303, %v3298
        %v4164 = vpack.c.b16 %v3304, %v3299
        %v4165 = vpack.c.b16 %v3305, %v3300
        %v4166 = vpack.c.b16 %v3306, %v3301
        %v4167 = vpack.c.b16 %v3312, %v3307
        %v4168 = vpack.c.b16 %v3313, %v3308
        %v4169 = vpack.c.b16 %v3314, %v3309
        %v4170 = vpack.c.b16 %v3315, %v3310
        %v4171 = vpack.c.b16 %v3316, %v3311
        %v4172 = vpack.c.b16 %v3322, %v3317
        %v4173 = vpack.c.b16 %v3323, %v3318
        %v4174 = vpack.c.b16 %v3324, %v3319
        %v4175 = vpack.c.b16 %v3325, %v3320
        %v4176 = vpack.c.b16 %v3326, %v3321
        %v4177 = vpack.c.b16 %v3332, %v3327
        %v4178 = vpack.c.b16 %v3333, %v3328
        %v4179 = vpack.c.b16 %v3334, %v3329
        %v4180 = vpack.c.b16 %v3335, %v3330
        %v4181 = vpack.c.b16 %v3336, %v3331
        %v4182 = vpack.c.b16 %v3342, %v3337
        %v4183 = vpack.c.b16 %v3343, %v3338
        %v4184 = vpack.c.b16 %v3344, %v3339
        %v4185 = vpack.c.b16 %v3345, %v3340
        %v4186 = vpack.c.b16 %v3346, %v3341
        %v4187 = vpack.c.b16 %v3352, %v3347
        %v4188 = vpack.c.b16 %v3353, %v3348
        %v4189 = vpack.c.b16 %v3354, %v3349
        %v4190 = vpack.c.b16 %v3355, %v3350
        %v4191 = vpack.c.b16 %v3356, %v3351
        %v4192 = vpack.c.b16 %v3362, %v3357
        %v4193 = vpack.c.b16 %v3363, %v3358
        %v4194 = vpack.c.b16 %v3364, %v3359
        %v4195 = vpack.c.b16 %v3365, %v3360
        %v4196 = vpack.c.b16 %v3366, %v3361
        %v4197 = vpack.c.b16 %v3372, %v3367
        %v4198 = vpack.c.b16 %v3373, %v3368
        %v4199 = vpack.c.b16 %v3374, %v3369
        %v4200 = vpack.c.b16 %v3375, %v3370
        %v4201 = vpack.c.b16 %v3376, %v3371
        %v4202 = vpack.c.b16 %v3382, %v3377
        %v4203 = vpack.c.b16 %v3383, %v3378
        %v4204 = vpack.c.b16 %v3384, %v3379
        %v4205 = vpack.c.b16 %v3385, %v3380
        %v4206 = vpack.c.b16 %v3386, %v3381
        %v4207 = vpack.c.b16 %v3392, %v3387
        %v4208 = vpack.c.b16 %v3393, %v3388
        %v4209 = vpack.c.b16 %v3394, %v3389
        %v4210 = vpack.c.b16 %v3395, %v3390
        %v4211 = vpack.c.b16 %v3396, %v3391
        %v4212 = vpack.c.b16 %v3402, %v3397
        %v4213 = vpack.c.b16 %v3403, %v3398
        %v4214 = vpack.c.b16 %v3404, %v3399
        %v4215 = vpack.c.b16 %v3405, %v3400
        %v4216 = vpack.c.b16 %v3406, %v3401
        %v4217 = vpack.c.b16 %v3412, %v3407
        %v4218 = vpack.c.b16 %v3413, %v3408
        %v4219 = vpack.c.b16 %v3414, %v3409
        %v4220 = vpack.c.b16 %v3415, %v3410
        %v4221 = vpack.c.b16 %v3416, %v3411
        %v4222 = vpack.c.b16 %v3422, %v3417
        %v4223 = vpack.c.b16 %v3423, %v3418
        %v4224 = vpack.c.b16 %v3424, %v3419
        %v4225 = vpack.c.b16 %v3425, %v3420
        %v4226 = vpack.c.b16 %v3426, %v3421
        %v4227 = vpack.c.b16 %v3432, %v3427
        %v4228 = vpack.c.b16 %v3433, %v3428
        %v4229 = vpack.c.b16 %v3434, %v3429
        %v4230 = vpack.c.b16 %v3435, %v3430
        %v4231 = vpack.c.b16 %v3436, %v3431
        %v4232 = vpack.c.b16 %v3442, %v3437
        %v4233 = vpack.c.b16 %v3443, %v3438
        %v4234 = vpack.c.b16 %v3444, %v3439
        %v4235 = vpack.c.b16 %v3445, %v3440
        %v4236 = vpack.c.b16 %v3446, %v3441
        %v4237 = vpack.c.b16 %v3452, %v3447
        %v4238 = vpack.c.b16 %v3453, %v3448
        %v4239 = vpack.c.b16 %v3454, %v3449
        %v4240 = vpack.c.b16 %v3455, %v3450
        %v4241 = vpack.c.b16 %v3456, %v3451
        %v4242 = vpack.c.b16 %v3462, %v3457
        %v4243 = vpack.c.b16 %v3463, %v3458
        %v4244 = vpack.c.b16 %v3464, %v3459
        %v4245 = vpack.c.b16 %v3465, %v3460
        %v4246 = vpack.c.b16 %v3466, %v3461
        %v4247 = vpack.c.b16 %v3472, %v3467
        %v4248 = vpack.c.b16 %v3473, %v3468
        %v4249 = vpack.c.b16 %v3474, %v3469
        %v4250 = vpack.c.b16 %v3475, %v3470
        %v4251 = vpack.c.b16 %v3476, %v3471
        %v4252 = vpack.c.b16 %v3482, %v3477
        %v4253 = vpack.c.b16 %v3483, %v3478
        %v4254 = vpack.c.b16 %v3484, %v3479
        %v4255 = vpack.c.b16 %v3485, %v3480
        %v4256 = vpack.c.b16 %v3486, %v3481
        %v4257 = vpack.c.b16 %v3492, %v3487
        %v4258 = vpack.c.b16 %v3493, %v3488
        %v4259 = vpack.c.b16 %v3494, %v3489
        %v4260 = vpack.c.b16 %v3495, %v3490
        %v4261 = vpack.c.b16 %v3496, %v3491
        %v4262 = vpack.c.b16 %v3502, %v3497
        %v4263 = vpack.c.b16 %v3503, %v3498
        %v4264 = vpack.c.b16 %v3504, %v3499
        %v4265 = vpack.c.b16 %v3505, %v3500
        %v4266 = vpack.c.b16 %v3506, %v3501
        %v4267 = vpack.c.b16 %v3512, %v3507
        %v4268 = vpack.c.b16 %v3513, %v3508
        %v4269 = vpack.c.b16 %v3514, %v3509
        %v4270 = vpack.c.b16 %v3515, %v3510
        %v4271 = vpack.c.b16 %v3516, %v3511
        %v4272 = vpack.c.b16 %v3522, %v3517
        %v4273 = vpack.c.b16 %v3523, %v3518
        %v4274 = vpack.c.b16 %v3524, %v3519
        %v4275 = vpack.c.b16 %v3525, %v3520
        %v4276 = vpack.c.b16 %v3526, %v3521
        %v4277 = vpack.c.b16 %v3532, %v3527
        %v4278 = vpack.c.b16 %v3533, %v3528
        %v4279 = vpack.c.b16 %v3534, %v3529
        %v4280 = vpack.c.b16 %v3535, %v3530
        %v4281 = vpack.c.b16 %v3536, %v3531
        %v4282 = vpack.c.b16 %v3542, %v3537
        %v4283 = vpack.c.b16 %v3543, %v3538
        %v4284 = vpack.c.b16 %v3544, %v3539
        %v4285 = vpack.c.b16 %v3545, %v3540
        %v4286 = vpack.c.b16 %v3546, %v3541
        %v4287 = vpack.c.b16 %v3552, %v3547
        %v4288 = vpack.c.b16 %v3553, %v3548
        %v4289 = vpack.c.b16 %v3554, %v3549
        %v4290 = vpack.c.b16 %v3555, %v3550
        %v4291 = vpack.c.b16 %v3556, %v3551
        %v4292 = vpack.c.b16 %v3562, %v3557
        %v4293 = vpack.c.b16 %v3563, %v3558
        %v4294 = vpack.c.b16 %v3564, %v3559
        %v4295 = vpack.c.b16 %v3565, %v3560
        %v4296 = vpack.c.b16 %v3566, %v3561
        %v4297 = vpack.c.b16 %v3572, %v3567
        %v4298 = vpack.c.b16 %v3573, %v3568
        %v4299 = vpack.c.b16 %v3574, %v3569
        %v4300 = vpack.c.b16 %v3575, %v3570
        %v4301 = vpack.c.b16 %v3576, %v3571
        %v4302 = vpack.c.b16 %v3582, %v3577
        %v4303 = vpack.c.b16 %v3583, %v3578
        %v4304 = vpack.c.b16 %v3584, %v3579
        %v4305 = vpack.c.b16 %v3585, %v3580
        %v4306 = vpack.c.b16 %v3586, %v3581
        %v5028 = vlaneseq
        %v5029 = vshrl.u32 %v5028, 7
        %v5030 = vsub.s32 0, %v5029
        %v5031 = vrot.slane %v1141, %v5030
        %v5032 = vlaneseq
        %v5033 = vshrl.u32 %v5032, 7
        %v5034 = vsub.s32 1, %v5033
        %v5035 = vrot.slane %v1141, %v5034
        %v5036 = vlaneseq
        %v5037 = vshrl.u32 %v5036, 7
        %v5038 = vsub.s32 2, %v5037
        %v5039 = vrot.slane %v1141, %v5038
        %v5040 = vlaneseq
        %v5041 = vshrl.u32 %v5040, 7
        %v5042 = vsub.s32 3, %v5041
        %v5043 = vrot.slane %v1141, %v5042
        %v5044 = vlaneseq
        %v5045 = vshrl.u32 %v5044, 7
        %v5046 = vsub.s32 4, %v5045
        %v5047 = vrot.slane %v1141, %v5046
        %5053 = vmatprep.subr.bf16.mxu0 %v3623
        %5054 = vmatpush1.bf16.msra.mxu0 %v3622
        %5055 = vmatprep.subr.bf16.mxu0 %v3618
        %5056 = vmatpush1.bf16.msra.mxu0 %v3617
        %5057 = vmatprep.subr.bf16.mxu0 %v3613
        %5058 = vmatpush1.bf16.msra.mxu0 %v3612
        %5059 = vmatprep.subr.bf16.mxu0 %v3608
        %5060 = vmatpush1.bf16.msra.mxu0 %v3607
        %5061 = vmatprep.subr.bf16.mxu0 %v3603
        %5062 = vmatpush1.bf16.msra.mxu0 %v3602
        %5063 = vmatprep.subr.bf16.mxu0 %v3598
        %5064 = vmatpush1.bf16.msra.mxu0 %v3597
        %5065 = vmatprep.subr.bf16.mxu0 %v3593
        %5066 = vmatpush1.bf16.msra.mxu0 %v3592
        %5067 = vmatprep.subr.bf16.mxu0 %v3588
        %5068 = vmatpush1.bf16.msra.mxu0 %v3587
        %5069 = vmatprep.subr.bf16.mxu0 %v3663
        %5070 = vmatpush2.bf16.msra.mxu0 %v3662
        %5071 = vmatprep.subr.bf16.mxu0 %v3658
        %5072 = vmatpush2.bf16.msra.mxu0 %v3657
        %5073 = vmatprep.subr.bf16.mxu0 %v3653
        %5074 = vmatpush2.bf16.msra.mxu0 %v3652
        %5075 = vmatprep.subr.bf16.mxu0 %v3648
        %5076 = vmatpush2.bf16.msra.mxu0 %v3647
        %5077 = vmatprep.subr.bf16.mxu0 %v3643
        %5078 = vmatpush2.bf16.msra.mxu0 %v3642
        %5079 = vmatprep.subr.bf16.mxu0 %v3638
        %5080 = vmatpush2.bf16.msra.mxu0 %v3637
        %5081 = vmatprep.subr.bf16.mxu0 %v3633
        %5082 = vmatpush2.bf16.msra.mxu0 %v3632
        %5083 = vmatprep.subr.bf16.mxu0 %v3628
        %5084 = vmatpush2.bf16.msra.mxu0 %v3627
        %5085 = vmatprep.mubr.bf16.mxu0 %v1182
        %5086 = vmatmul.mubr.bf16.gmra.mxu0 %v1168
        %v5087 = vpop.f32.mrf.mxu0
        %v5088 = vadd.f32 %v5031, %v5087
        %v5089 = vpop.f32.mrf.mxu0
        %v5090 = vadd.f32 %v5035, %v5089
        %v5091 = vpop.f32.mrf.mxu0
        %v5092 = vpop.f32.mrf.mxu0
        %5093 = vdwg.mxu0
        %5094 = vmatprep.subr.bf16.mxu0 %v3703
        %5095 = vmatpush1.bf16.msra.mxu0 %v3702
        %5096 = vmatprep.subr.bf16.mxu0 %v3698
        %5097 = vmatpush1.bf16.msra.mxu0 %v3697
        %5098 = vmatprep.subr.bf16.mxu0 %v3693
        %5099 = vmatpush1.bf16.msra.mxu0 %v3692
        %5100 = vmatprep.subr.bf16.mxu0 %v3688
        %5101 = vmatpush1.bf16.msra.mxu0 %v3687
        %5102 = vmatprep.subr.bf16.mxu0 %v3683
        %5103 = vmatpush1.bf16.msra.mxu0 %v3682
        %5104 = vmatprep.subr.bf16.mxu0 %v3678
        %5105 = vmatpush1.bf16.msra.mxu0 %v3677
        %5106 = vmatprep.subr.bf16.mxu0 %v3673
        %5107 = vmatpush1.bf16.msra.mxu0 %v3672
        %5108 = vmatprep.subr.bf16.mxu0 %v3668
        %5109 = vmatpush1.bf16.msra.mxu0 %v3667
        %5110 = vmatprep.subr.bf16.mxu0 %v3743
        %5111 = vmatpush2.bf16.msra.mxu0 %v3742
        %5112 = vmatprep.subr.bf16.mxu0 %v3738
        %5113 = vmatpush2.bf16.msra.mxu0 %v3737
        %5114 = vmatprep.subr.bf16.mxu0 %v3733
        %5115 = vmatpush2.bf16.msra.mxu0 %v3732
        %5116 = vmatprep.subr.bf16.mxu0 %v3728
        %5117 = vmatpush2.bf16.msra.mxu0 %v3727
        %5118 = vmatprep.subr.bf16.mxu0 %v3723
        %5119 = vmatpush2.bf16.msra.mxu0 %v3722
        %5120 = vmatprep.subr.bf16.mxu0 %v3718
        %5121 = vmatpush2.bf16.msra.mxu0 %v3717
        %5122 = vmatprep.subr.bf16.mxu0 %v3713
        %5123 = vmatpush2.bf16.msra.mxu0 %v3712
        %5124 = vmatprep.subr.bf16.mxu0 %v3708
        %5125 = vmatpush2.bf16.msra.mxu0 %v3707
        %5126 = vmatprep.mubr.bf16.mxu0 %v1192
        %5127 = vmatmul.mubr.bf16.gmra.mxu0 %v1190
        %v5128 = vpop.f32.mrf.mxu0
        %v5129 = vadd.f32 %v5088, %v5128
        %v5130 = vpop.f32.mrf.mxu0
        %v5131 = vadd.f32 %v5090, %v5130
        %v5132 = vpop.f32.mrf.mxu0
        %v5133 = vpop.f32.mrf.mxu0
        %5134 = vdwg.mxu0
        %5135 = vmatprep.subr.bf16.mxu0 %v3783
        %5136 = vmatpush1.bf16.msra.mxu0 %v3782
        %5137 = vmatprep.subr.bf16.mxu0 %v3778
        %5138 = vmatpush1.bf16.msra.mxu0 %v3777
        %5139 = vmatprep.subr.bf16.mxu0 %v3773
        %5140 = vmatpush1.bf16.msra.mxu0 %v3772
        %5141 = vmatprep.subr.bf16.mxu0 %v3768
        %5142 = vmatpush1.bf16.msra.mxu0 %v3767
        %5143 = vmatprep.subr.bf16.mxu0 %v3763
        %5144 = vmatpush1.bf16.msra.mxu0 %v3762
        %5145 = vmatprep.subr.bf16.mxu0 %v3758
        %5146 = vmatpush1.bf16.msra.mxu0 %v3757
        %5147 = vmatprep.subr.bf16.mxu0 %v3753
        %5148 = vmatpush1.bf16.msra.mxu0 %v3752
        %5149 = vmatprep.subr.bf16.mxu0 %v3748
        %5150 = vmatpush1.bf16.msra.mxu0 %v3747
        %5151 = vmatprep.subr.bf16.mxu0 %v3823
        %5152 = vmatpush2.bf16.msra.mxu0 %v3822
        %5153 = vmatprep.subr.bf16.mxu0 %v3818
        %5154 = vmatpush2.bf16.msra.mxu0 %v3817
        %5155 = vmatprep.subr.bf16.mxu0 %v3813
        %5156 = vmatpush2.bf16.msra.mxu0 %v3812
        %5157 = vmatprep.subr.bf16.mxu0 %v3808
        %5158 = vmatpush2.bf16.msra.mxu0 %v3807
        %5159 = vmatprep.subr.bf16.mxu0 %v3803
        %5160 = vmatpush2.bf16.msra.mxu0 %v3802
        %5161 = vmatprep.subr.bf16.mxu0 %v3798
        %5162 = vmatpush2.bf16.msra.mxu0 %v3797
        %5163 = vmatprep.subr.bf16.mxu0 %v3793
        %5164 = vmatpush2.bf16.msra.mxu0 %v3792
        %5165 = vmatprep.subr.bf16.mxu0 %v3788
        %5166 = vmatpush2.bf16.msra.mxu0 %v3787
        %5167 = vmatprep.mubr.bf16.mxu0 %v1189
        %5168 = vmatmul.mubr.bf16.gmra.mxu0 %v1175
        %v5169 = vpop.f32.mrf.mxu0
        %v5170 = vadd.f32 %v5129, %v5169
        %v5171 = vpop.f32.mrf.mxu0
        %v5172 = vadd.f32 %v5131, %v5171
        %v5173 = vpop.f32.mrf.mxu0
        %v5174 = vpop.f32.mrf.mxu0
        %5175 = vdwg.mxu0
        %5176 = vmatprep.subr.bf16.mxu0 %v3863
        %5177 = vmatpush1.bf16.msra.mxu0 %v3862
        %5178 = vmatprep.subr.bf16.mxu0 %v3858
        %5179 = vmatpush1.bf16.msra.mxu0 %v3857
        %5180 = vmatprep.subr.bf16.mxu0 %v3853
        %5181 = vmatpush1.bf16.msra.mxu0 %v3852
        %5182 = vmatprep.subr.bf16.mxu0 %v3848
        %5183 = vmatpush1.bf16.msra.mxu0 %v3847
        %5184 = vmatprep.subr.bf16.mxu0 %v3843
        %5185 = vmatpush1.bf16.msra.mxu0 %v3842
        %5186 = vmatprep.subr.bf16.mxu0 %v3838
        %5187 = vmatpush1.bf16.msra.mxu0 %v3837
        %5188 = vmatprep.subr.bf16.mxu0 %v3833
        %5189 = vmatpush1.bf16.msra.mxu0 %v3832
        %5190 = vmatprep.subr.bf16.mxu0 %v3828
        %5191 = vmatpush1.bf16.msra.mxu0 %v3827
        %5192 = vmatprep.subr.bf16.mxu0 %v3903
        %5193 = vmatpush2.bf16.msra.mxu0 %v3902
        %5194 = vmatprep.subr.bf16.mxu0 %v3898
        %5195 = vmatpush2.bf16.msra.mxu0 %v3897
        %5196 = vmatprep.subr.bf16.mxu0 %v3893
        %5197 = vmatpush2.bf16.msra.mxu0 %v3892
        %5198 = vmatprep.subr.bf16.mxu0 %v3888
        %5199 = vmatpush2.bf16.msra.mxu0 %v3887
        %5200 = vmatprep.subr.bf16.mxu0 %v3883
        %5201 = vmatpush2.bf16.msra.mxu0 %v3882
        %5202 = vmatprep.subr.bf16.mxu0 %v3878
        %5203 = vmatpush2.bf16.msra.mxu0 %v3877
        %5204 = vmatprep.subr.bf16.mxu0 %v3873
        %5205 = vmatpush2.bf16.msra.mxu0 %v3872
        %5206 = vmatprep.subr.bf16.mxu0 %v3868
        %5207 = vmatpush2.bf16.msra.mxu0 %v3867
        %5208 = vmatprep.mubr.bf16.mxu0 %v1193
        %5209 = vmatmul.mubr.bf16.gmra.mxu0 %v1191
        %v5210 = vpop.f32.mrf.mxu0
        %v5211 = vadd.f32 %v5170, %v5210
        %v5212 = vpop.f32.mrf.mxu0
        %v5213 = vadd.f32 %v5172, %v5212
        %v5214 = vpop.f32.mrf.mxu0
        %v5215 = vpop.f32.mrf.mxu0
        %5216 = vdwg.mxu0
        %5217 = vmatprep.subr.bf16.mxu0 %v3943
        %5218 = vmatpush1.bf16.msra.mxu0 %v3942
        %5219 = vmatprep.subr.bf16.mxu0 %v3938
        %5220 = vmatpush1.bf16.msra.mxu0 %v3937
        %5221 = vmatprep.subr.bf16.mxu0 %v3933
        %5222 = vmatpush1.bf16.msra.mxu0 %v3932
        %5223 = vmatprep.subr.bf16.mxu0 %v3928
        %5224 = vmatpush1.bf16.msra.mxu0 %v3927
        %5225 = vmatprep.subr.bf16.mxu0 %v3923
        %5226 = vmatpush1.bf16.msra.mxu0 %v3922
        %5227 = vmatprep.subr.bf16.mxu0 %v3918
        %5228 = vmatpush1.bf16.msra.mxu0 %v3917
        %5229 = vmatprep.subr.bf16.mxu0 %v3913
        %5230 = vmatpush1.bf16.msra.mxu0 %v3912
        %5231 = vmatprep.subr.bf16.mxu0 %v3908
        %5232 = vmatpush1.bf16.msra.mxu0 %v3907
        %5233 = vmatprep.subr.bf16.mxu0 %v3983
        %5234 = vmatpush2.bf16.msra.mxu0 %v3982
        %5235 = vmatprep.subr.bf16.mxu0 %v3978
        %5236 = vmatpush2.bf16.msra.mxu0 %v3977
        %5237 = vmatprep.subr.bf16.mxu0 %v3973
        %5238 = vmatpush2.bf16.msra.mxu0 %v3972
        %5239 = vmatprep.subr.bf16.mxu0 %v3968
        %5240 = vmatpush2.bf16.msra.mxu0 %v3967
        %5241 = vmatprep.subr.bf16.mxu0 %v3963
        %5242 = vmatpush2.bf16.msra.mxu0 %v3962
        %5243 = vmatprep.subr.bf16.mxu0 %v3958
        %5244 = vmatpush2.bf16.msra.mxu0 %v3957
        %5245 = vmatprep.subr.bf16.mxu0 %v3953
        %5246 = vmatpush2.bf16.msra.mxu0 %v3952
        %5247 = vmatprep.subr.bf16.mxu0 %v3948
        %5248 = vmatpush2.bf16.msra.mxu0 %v3947
        %5249 = vmatprep.mubr.bf16.mxu0 %v1231
        %5250 = vmatmul.mubr.bf16.gmra.mxu0 %v1217
        %v5251 = vpop.f32.mrf.mxu0
        %v5252 = vadd.f32 %v5211, %v5251
        %v5253 = vpop.f32.mrf.mxu0
        %v5254 = vadd.f32 %v5213, %v5253
        %v5255 = vpop.f32.mrf.mxu0
        %v5256 = vpop.f32.mrf.mxu0
        %5257 = vdwg.mxu0
        %5258 = vmatprep.subr.bf16.mxu0 %v4023
        %5259 = vmatpush1.bf16.msra.mxu0 %v4022
        %5260 = vmatprep.subr.bf16.mxu0 %v4018
        %5261 = vmatpush1.bf16.msra.mxu0 %v4017
        %5262 = vmatprep.subr.bf16.mxu0 %v4013
        %5263 = vmatpush1.bf16.msra.mxu0 %v4012
        %5264 = vmatprep.subr.bf16.mxu0 %v4008
        %5265 = vmatpush1.bf16.msra.mxu0 %v4007
        %5266 = vmatprep.subr.bf16.mxu0 %v4003
        %5267 = vmatpush1.bf16.msra.mxu0 %v4002
        %5268 = vmatprep.subr.bf16.mxu0 %v3998
        %5269 = vmatpush1.bf16.msra.mxu0 %v3997
        %5270 = vmatprep.subr.bf16.mxu0 %v3993
        %5271 = vmatpush1.bf16.msra.mxu0 %v3992
        %5272 = vmatprep.subr.bf16.mxu0 %v3988
        %5273 = vmatpush1.bf16.msra.mxu0 %v3987
        %5274 = vmatprep.subr.bf16.mxu0 %v4063
        %5275 = vmatpush2.bf16.msra.mxu0 %v4062
        %5276 = vmatprep.subr.bf16.mxu0 %v4058
        %5277 = vmatpush2.bf16.msra.mxu0 %v4057
        %5278 = vmatprep.subr.bf16.mxu0 %v4053
        %5279 = vmatpush2.bf16.msra.mxu0 %v4052
        %5280 = vmatprep.subr.bf16.mxu0 %v4048
        %5281 = vmatpush2.bf16.msra.mxu0 %v4047
        %5282 = vmatprep.subr.bf16.mxu0 %v4043
        %5283 = vmatpush2.bf16.msra.mxu0 %v4042
        %5284 = vmatprep.subr.bf16.mxu0 %v4038
        %5285 = vmatpush2.bf16.msra.mxu0 %v4037
        %5286 = vmatprep.subr.bf16.mxu0 %v4033
        %5287 = vmatpush2.bf16.msra.mxu0 %v4032
        %5288 = vmatprep.subr.bf16.mxu0 %v4028
        %5289 = vmatpush2.bf16.msra.mxu0 %v4027
        %5290 = vmatprep.mubr.bf16.mxu0 %v1241
        %5291 = vmatmul.mubr.bf16.gmra.mxu0 %v1239
        %v5292 = vpop.f32.mrf.mxu0
        %v5293 = vadd.f32 %v5252, %v5292
        %v5294 = vpop.f32.mrf.mxu0
        %v5295 = vadd.f32 %v5254, %v5294
        %v5296 = vpop.f32.mrf.mxu0
        %v5297 = vpop.f32.mrf.mxu0
        %5298 = vdwg.mxu0
        %5299 = vmatprep.subr.bf16.mxu0 %v4103
        %5300 = vmatpush1.bf16.msra.mxu0 %v4102
        %5301 = vmatprep.subr.bf16.mxu0 %v4098
        %5302 = vmatpush1.bf16.msra.mxu0 %v4097
        %5303 = vmatprep.subr.bf16.mxu0 %v4093
        %5304 = vmatpush1.bf16.msra.mxu0 %v4092
        %5305 = vmatprep.subr.bf16.mxu0 %v4088
        %5306 = vmatpush1.bf16.msra.mxu0 %v4087
        %5307 = vmatprep.subr.bf16.mxu0 %v4083
        %5308 = vmatpush1.bf16.msra.mxu0 %v4082
        %5309 = vmatprep.subr.bf16.mxu0 %v4078
        %5310 = vmatpush1.bf16.msra.mxu0 %v4077
        %5311 = vmatprep.subr.bf16.mxu0 %v4073
        %5312 = vmatpush1.bf16.msra.mxu0 %v4072
        %5313 = vmatprep.subr.bf16.mxu0 %v4068
        %5314 = vmatpush1.bf16.msra.mxu0 %v4067
        %5315 = vmatprep.subr.bf16.mxu0 %v4143
        %5316 = vmatpush2.bf16.msra.mxu0 %v4142
        %5317 = vmatprep.subr.bf16.mxu0 %v4138
        %5318 = vmatpush2.bf16.msra.mxu0 %v4137
        %5319 = vmatprep.subr.bf16.mxu0 %v4133
        %5320 = vmatpush2.bf16.msra.mxu0 %v4132
        %5321 = vmatprep.subr.bf16.mxu0 %v4128
        %5322 = vmatpush2.bf16.msra.mxu0 %v4127
        %5323 = vmatprep.subr.bf16.mxu0 %v4123
        %5324 = vmatpush2.bf16.msra.mxu0 %v4122
        %5325 = vmatprep.subr.bf16.mxu0 %v4118
        %5326 = vmatpush2.bf16.msra.mxu0 %v4117
        %5327 = vmatprep.subr.bf16.mxu0 %v4113
        %5328 = vmatpush2.bf16.msra.mxu0 %v4112
        %5329 = vmatprep.subr.bf16.mxu0 %v4108
        %5330 = vmatpush2.bf16.msra.mxu0 %v4107
        %5331 = vmatprep.mubr.bf16.mxu0 %v1238
        %5332 = vmatmul.mubr.bf16.gmra.mxu0 %v1224
        %v5333 = vpop.f32.mrf.mxu0
        %v5334 = vadd.f32 %v5293, %v5333
        %v5335 = vpop.f32.mrf.mxu0
        %v5336 = vadd.f32 %v5295, %v5335
        %v5337 = vpop.f32.mrf.mxu0
        %v5338 = vpop.f32.mrf.mxu0
        %5339 = vdwg.mxu0
        %5340 = vmatprep.subr.bf16.mxu0 %v4183
        %5341 = vmatpush1.bf16.msra.mxu0 %v4182
        %5342 = vmatprep.subr.bf16.mxu0 %v4178
        %5343 = vmatpush1.bf16.msra.mxu0 %v4177
        %5344 = vmatprep.subr.bf16.mxu0 %v4173
        %5345 = vmatpush1.bf16.msra.mxu0 %v4172
        %5346 = vmatprep.subr.bf16.mxu0 %v4168
        %5347 = vmatpush1.bf16.msra.mxu0 %v4167
        %5348 = vmatprep.subr.bf16.mxu0 %v4163
        %5349 = vmatpush1.bf16.msra.mxu0 %v4162
        %5350 = vmatprep.subr.bf16.mxu0 %v4158
        %5351 = vmatpush1.bf16.msra.mxu0 %v4157
        %5352 = vmatprep.subr.bf16.mxu0 %v4153
        %5353 = vmatpush1.bf16.msra.mxu0 %v4152
        %5354 = vmatprep.subr.bf16.mxu0 %v4148
        %5355 = vmatpush1.bf16.msra.mxu0 %v4147
        %5356 = vmatprep.subr.bf16.mxu0 %v4223
        %5357 = vmatpush2.bf16.msra.mxu0 %v4222
        %5358 = vmatprep.subr.bf16.mxu0 %v4218
        %5359 = vmatpush2.bf16.msra.mxu0 %v4217
        %5360 = vmatprep.subr.bf16.mxu0 %v4213
        %5361 = vmatpush2.bf16.msra.mxu0 %v4212
        %5362 = vmatprep.subr.bf16.mxu0 %v4208
        %5363 = vmatpush2.bf16.msra.mxu0 %v4207
        %5364 = vmatprep.subr.bf16.mxu0 %v4203
        %5365 = vmatpush2.bf16.msra.mxu0 %v4202
        %5366 = vmatprep.subr.bf16.mxu0 %v4198
        %5367 = vmatpush2.bf16.msra.mxu0 %v4197
        %5368 = vmatprep.subr.bf16.mxu0 %v4193
        %5369 = vmatpush2.bf16.msra.mxu0 %v4192
        %5370 = vmatprep.subr.bf16.mxu0 %v4188
        %5371 = vmatpush2.bf16.msra.mxu0 %v4187
        %5372 = vmatprep.mubr.bf16.mxu0 %v1242
        %5373 = vmatmul.mubr.bf16.gmra.mxu0 %v1240
        %v5374 = vpop.f32.mrf.mxu0
        %v5375 = vadd.f32 %v5334, %v5374
        %v5376 = vpop.f32.mrf.mxu0
        %v5377 = vadd.f32 %v5336, %v5376
        %v5378 = vpop.f32.mrf.mxu0
        %v5379 = vpop.f32.mrf.mxu0
        %5380 = vdwg.mxu0
        %5381 = vmatprep.subr.bf16.mxu0 %v4263
        %5382 = vmatpush1.bf16.msra.mxu0 %v4262
        %5383 = vmatprep.subr.bf16.mxu0 %v4258
        %5384 = vmatpush1.bf16.msra.mxu0 %v4257
        %5385 = vmatprep.subr.bf16.mxu0 %v4253
        %5386 = vmatpush1.bf16.msra.mxu0 %v4252
        %5387 = vmatprep.subr.bf16.mxu0 %v4248
        %5388 = vmatpush1.bf16.msra.mxu0 %v4247
        %5389 = vmatprep.subr.bf16.mxu0 %v4243
        %5390 = vmatpush1.bf16.msra.mxu0 %v4242
        %5391 = vmatprep.subr.bf16.mxu0 %v4238
        %5392 = vmatpush1.bf16.msra.mxu0 %v4237
        %5393 = vmatprep.subr.bf16.mxu0 %v4233
        %5394 = vmatpush1.bf16.msra.mxu0 %v4232
        %5395 = vmatprep.subr.bf16.mxu0 %v4228
        %5396 = vmatpush1.bf16.msra.mxu0 %v4227
        %5397 = vmatprep.subr.bf16.mxu0 %v4303
        %5398 = vmatpush2.bf16.msra.mxu0 %v4302
        %5399 = vmatprep.subr.bf16.mxu0 %v4298
        %5400 = vmatpush2.bf16.msra.mxu0 %v4297
        %5401 = vmatprep.subr.bf16.mxu0 %v4293
        %5402 = vmatpush2.bf16.msra.mxu0 %v4292
        %5403 = vmatprep.subr.bf16.mxu0 %v4288
        %5404 = vmatpush2.bf16.msra.mxu0 %v4287
        %5405 = vmatprep.subr.bf16.mxu0 %v4283
        %5406 = vmatpush2.bf16.msra.mxu0 %v4282
        %5407 = vmatprep.subr.bf16.mxu0 %v4278
        %5408 = vmatpush2.bf16.msra.mxu0 %v4277
        %5409 = vmatprep.subr.bf16.mxu0 %v4273
        %5410 = vmatpush2.bf16.msra.mxu0 %v4272
        %5411 = vmatprep.subr.bf16.mxu0 %v4268
        %5412 = vmatpush2.bf16.msra.mxu0 %v4267
        %5413 = vmatprep.mubr.bf16.mxu0 %v1264
        %5414 = vmatmul.mubr.bf16.gmra.mxu0 %v1257
        %v5415 = vpop.f32.mrf.mxu0
        %v5416 = vadd.f32 %v5375, %v5415
        %v5417 = vpop.f32.mrf.mxu0
        %v5418 = vadd.f32 %v5377, %v5417
        %v5419 = vpop.f32.mrf.mxu0
        %v5420 = vpop.f32.mrf.mxu0
        %5421 = vdwg.mxu0
        %5422 = vmatprep.subr.bf16.mxu0 %v3625
        %5423 = vmatpush1.bf16.msra.mxu0 %v3624
        %5424 = vmatprep.subr.bf16.mxu0 %v3620
        %5425 = vmatpush1.bf16.msra.mxu0 %v3619
        %5426 = vmatprep.subr.bf16.mxu0 %v3615
        %5427 = vmatpush1.bf16.msra.mxu0 %v3614
        %5428 = vmatprep.subr.bf16.mxu0 %v3610
        %5429 = vmatpush1.bf16.msra.mxu0 %v3609
        %5430 = vmatprep.subr.bf16.mxu0 %v3605
        %5431 = vmatpush1.bf16.msra.mxu0 %v3604
        %5432 = vmatprep.subr.bf16.mxu0 %v3600
        %5433 = vmatpush1.bf16.msra.mxu0 %v3599
        %5434 = vmatprep.subr.bf16.mxu0 %v3595
        %5435 = vmatpush1.bf16.msra.mxu0 %v3594
        %5436 = vmatprep.subr.bf16.mxu0 %v3590
        %5437 = vmatpush1.bf16.msra.mxu0 %v3589
        %5438 = vmatprep.subr.bf16.mxu0 %v3665
        %5439 = vmatpush2.bf16.msra.mxu0 %v3664
        %5440 = vmatprep.subr.bf16.mxu0 %v3660
        %5441 = vmatpush2.bf16.msra.mxu0 %v3659
        %5442 = vmatprep.subr.bf16.mxu0 %v3655
        %5443 = vmatpush2.bf16.msra.mxu0 %v3654
        %5444 = vmatprep.subr.bf16.mxu0 %v3650
        %5445 = vmatpush2.bf16.msra.mxu0 %v3649
        %5446 = vmatprep.subr.bf16.mxu0 %v3645
        %5447 = vmatpush2.bf16.msra.mxu0 %v3644
        %5448 = vmatprep.subr.bf16.mxu0 %v3640
        %5449 = vmatpush2.bf16.msra.mxu0 %v3639
        %5450 = vmatprep.subr.bf16.mxu0 %v3635
        %5451 = vmatpush2.bf16.msra.mxu0 %v3634
        %5452 = vmatprep.subr.bf16.mxu0 %v3630
        %5453 = vmatpush2.bf16.msra.mxu0 %v3629
        %5454 = vmatprep.mubr.bf16.mxu0 %v1182
        %5455 = vmatmul.mubr.bf16.gmra.mxu0 %v1168
        %v5456 = vpop.f32.mrf.mxu0
        %v5457 = vadd.f32 %v5039, %v5456
        %v5458 = vpop.f32.mrf.mxu0
        %v5459 = vadd.f32 %v5043, %v5458
        %v5460 = vpop.f32.mrf.mxu0
        %v5461 = vpop.f32.mrf.mxu0
        %5462 = vdwg.mxu0
        %5463 = vmatprep.subr.bf16.mxu0 %v3705
        %5464 = vmatpush1.bf16.msra.mxu0 %v3704
        %5465 = vmatprep.subr.bf16.mxu0 %v3700
        %5466 = vmatpush1.bf16.msra.mxu0 %v3699
        %5467 = vmatprep.subr.bf16.mxu0 %v3695
        %5468 = vmatpush1.bf16.msra.mxu0 %v3694
        %5469 = vmatprep.subr.bf16.mxu0 %v3690
        %5470 = vmatpush1.bf16.msra.mxu0 %v3689
        %5471 = vmatprep.subr.bf16.mxu0 %v3685
        %5472 = vmatpush1.bf16.msra.mxu0 %v3684
        %5473 = vmatprep.subr.bf16.mxu0 %v3680
        %5474 = vmatpush1.bf16.msra.mxu0 %v3679
        %5475 = vmatprep.subr.bf16.mxu0 %v3675
        %5476 = vmatpush1.bf16.msra.mxu0 %v3674
        %5477 = vmatprep.subr.bf16.mxu0 %v3670
        %5478 = vmatpush1.bf16.msra.mxu0 %v3669
        %5479 = vmatprep.subr.bf16.mxu0 %v3745
        %5480 = vmatpush2.bf16.msra.mxu0 %v3744
        %5481 = vmatprep.subr.bf16.mxu0 %v3740
        %5482 = vmatpush2.bf16.msra.mxu0 %v3739
        %5483 = vmatprep.subr.bf16.mxu0 %v3735
        %5484 = vmatpush2.bf16.msra.mxu0 %v3734
        %5485 = vmatprep.subr.bf16.mxu0 %v3730
        %5486 = vmatpush2.bf16.msra.mxu0 %v3729
        %5487 = vmatprep.subr.bf16.mxu0 %v3725
        %5488 = vmatpush2.bf16.msra.mxu0 %v3724
        %5489 = vmatprep.subr.bf16.mxu0 %v3720
        %5490 = vmatpush2.bf16.msra.mxu0 %v3719
        %5491 = vmatprep.subr.bf16.mxu0 %v3715
        %5492 = vmatpush2.bf16.msra.mxu0 %v3714
        %5493 = vmatprep.subr.bf16.mxu0 %v3710
        %5494 = vmatpush2.bf16.msra.mxu0 %v3709
        %5495 = vmatprep.mubr.bf16.mxu0 %v1192
        %5496 = vmatmul.mubr.bf16.gmra.mxu0 %v1190
        %v5497 = vpop.f32.mrf.mxu0
        %v5498 = vadd.f32 %v5457, %v5497
        %v5499 = vpop.f32.mrf.mxu0
        %v5500 = vadd.f32 %v5459, %v5499
        %v5501 = vpop.f32.mrf.mxu0
        %v5502 = vpop.f32.mrf.mxu0
        %5503 = vdwg.mxu0
        %5504 = vmatprep.subr.bf16.mxu0 %v3785
        %5505 = vmatpush1.bf16.msra.mxu0 %v3784
        %5506 = vmatprep.subr.bf16.mxu0 %v3780
        %5507 = vmatpush1.bf16.msra.mxu0 %v3779
        %5508 = vmatprep.subr.bf16.mxu0 %v3775
        %5509 = vmatpush1.bf16.msra.mxu0 %v3774
        %5510 = vmatprep.subr.bf16.mxu0 %v3770
        %5511 = vmatpush1.bf16.msra.mxu0 %v3769
        %5512 = vmatprep.subr.bf16.mxu0 %v3765
        %5513 = vmatpush1.bf16.msra.mxu0 %v3764
        %5514 = vmatprep.subr.bf16.mxu0 %v3760
        %5515 = vmatpush1.bf16.msra.mxu0 %v3759
        %5516 = vmatprep.subr.bf16.mxu0 %v3755
        %5517 = vmatpush1.bf16.msra.mxu0 %v3754
        %5518 = vmatprep.subr.bf16.mxu0 %v3750
        %5519 = vmatpush1.bf16.msra.mxu0 %v3749
        %5520 = vmatprep.subr.bf16.mxu0 %v3825
        %5521 = vmatpush2.bf16.msra.mxu0 %v3824
        %5522 = vmatprep.subr.bf16.mxu0 %v3820
        %5523 = vmatpush2.bf16.msra.mxu0 %v3819
        %5524 = vmatprep.subr.bf16.mxu0 %v3815
        %5525 = vmatpush2.bf16.msra.mxu0 %v3814
        %5526 = vmatprep.subr.bf16.mxu0 %v3810
        %5527 = vmatpush2.bf16.msra.mxu0 %v3809
        %5528 = vmatprep.subr.bf16.mxu0 %v3805
        %5529 = vmatpush2.bf16.msra.mxu0 %v3804
        %5530 = vmatprep.subr.bf16.mxu0 %v3800
        %5531 = vmatpush2.bf16.msra.mxu0 %v3799
        %5532 = vmatprep.subr.bf16.mxu0 %v3795
        %5533 = vmatpush2.bf16.msra.mxu0 %v3794
        %5534 = vmatprep.subr.bf16.mxu0 %v3790
        %5535 = vmatpush2.bf16.msra.mxu0 %v3789
        %5536 = vmatprep.mubr.bf16.mxu0 %v1189
        %5537 = vmatmul.mubr.bf16.gmra.mxu0 %v1175
        %v5538 = vpop.f32.mrf.mxu0
        %v5539 = vadd.f32 %v5498, %v5538
        %v5540 = vpop.f32.mrf.mxu0
        %v5541 = vadd.f32 %v5500, %v5540
        %v5542 = vpop.f32.mrf.mxu0
        %v5543 = vpop.f32.mrf.mxu0
        %5544 = vdwg.mxu0
        %5545 = vmatprep.subr.bf16.mxu0 %v3865
        %5546 = vmatpush1.bf16.msra.mxu0 %v3864
        %5547 = vmatprep.subr.bf16.mxu0 %v3860
        %5548 = vmatpush1.bf16.msra.mxu0 %v3859
        %5549 = vmatprep.subr.bf16.mxu0 %v3855
        %5550 = vmatpush1.bf16.msra.mxu0 %v3854
        %5551 = vmatprep.subr.bf16.mxu0 %v3850
        %5552 = vmatpush1.bf16.msra.mxu0 %v3849
        %5553 = vmatprep.subr.bf16.mxu0 %v3845
        %5554 = vmatpush1.bf16.msra.mxu0 %v3844
        %5555 = vmatprep.subr.bf16.mxu0 %v3840
        %5556 = vmatpush1.bf16.msra.mxu0 %v3839
        %5557 = vmatprep.subr.bf16.mxu0 %v3835
        %5558 = vmatpush1.bf16.msra.mxu0 %v3834
        %5559 = vmatprep.subr.bf16.mxu0 %v3830
        %5560 = vmatpush1.bf16.msra.mxu0 %v3829
        %5561 = vmatprep.subr.bf16.mxu0 %v3905
        %5562 = vmatpush2.bf16.msra.mxu0 %v3904
        %5563 = vmatprep.subr.bf16.mxu0 %v3900
        %5564 = vmatpush2.bf16.msra.mxu0 %v3899
        %5565 = vmatprep.subr.bf16.mxu0 %v3895
        %5566 = vmatpush2.bf16.msra.mxu0 %v3894
        %5567 = vmatprep.subr.bf16.mxu0 %v3890
        %5568 = vmatpush2.bf16.msra.mxu0 %v3889
        %5569 = vmatprep.subr.bf16.mxu0 %v3885
        %5570 = vmatpush2.bf16.msra.mxu0 %v3884
        %5571 = vmatprep.subr.bf16.mxu0 %v3880
        %5572 = vmatpush2.bf16.msra.mxu0 %v3879
        %5573 = vmatprep.subr.bf16.mxu0 %v3875
        %5574 = vmatpush2.bf16.msra.mxu0 %v3874
        %5575 = vmatprep.subr.bf16.mxu0 %v3870
        %5576 = vmatpush2.bf16.msra.mxu0 %v3869
        %5577 = vmatprep.mubr.bf16.mxu0 %v1193
        %5578 = vmatmul.mubr.bf16.gmra.mxu0 %v1191
        %v5579 = vpop.f32.mrf.mxu0
        %v5580 = vadd.f32 %v5539, %v5579
        %v5581 = vpop.f32.mrf.mxu0
        %v5582 = vadd.f32 %v5541, %v5581
        %v5583 = vpop.f32.mrf.mxu0
        %v5584 = vpop.f32.mrf.mxu0
        %5585 = vdwg.mxu0
        %5586 = vmatprep.subr.bf16.mxu0 %v3945
        %5587 = vmatpush1.bf16.msra.mxu0 %v3944
        %5588 = vmatprep.subr.bf16.mxu0 %v3940
        %5589 = vmatpush1.bf16.msra.mxu0 %v3939
        %5590 = vmatprep.subr.bf16.mxu0 %v3935
        %5591 = vmatpush1.bf16.msra.mxu0 %v3934
        %5592 = vmatprep.subr.bf16.mxu0 %v3930
        %5593 = vmatpush1.bf16.msra.mxu0 %v3929
        %5594 = vmatprep.subr.bf16.mxu0 %v3925
        %5595 = vmatpush1.bf16.msra.mxu0 %v3924
        %5596 = vmatprep.subr.bf16.mxu0 %v3920
        %5597 = vmatpush1.bf16.msra.mxu0 %v3919
        %5598 = vmatprep.subr.bf16.mxu0 %v3915
        %5599 = vmatpush1.bf16.msra.mxu0 %v3914
        %5600 = vmatprep.subr.bf16.mxu0 %v3910
        %5601 = vmatpush1.bf16.msra.mxu0 %v3909
        %5602 = vmatprep.subr.bf16.mxu0 %v3985
        %5603 = vmatpush2.bf16.msra.mxu0 %v3984
        %5604 = vmatprep.subr.bf16.mxu0 %v3980
        %5605 = vmatpush2.bf16.msra.mxu0 %v3979
        %5606 = vmatprep.subr.bf16.mxu0 %v3975
        %5607 = vmatpush2.bf16.msra.mxu0 %v3974
        %5608 = vmatprep.subr.bf16.mxu0 %v3970
        %5609 = vmatpush2.bf16.msra.mxu0 %v3969
        %5610 = vmatprep.subr.bf16.mxu0 %v3965
        %5611 = vmatpush2.bf16.msra.mxu0 %v3964
        %5612 = vmatprep.subr.bf16.mxu0 %v3960
        %5613 = vmatpush2.bf16.msra.mxu0 %v3959
        %5614 = vmatprep.subr.bf16.mxu0 %v3955
        %5615 = vmatpush2.bf16.msra.mxu0 %v3954
        %5616 = vmatprep.subr.bf16.mxu0 %v3950
        %5617 = vmatpush2.bf16.msra.mxu0 %v3949
        %5618 = vmatprep.mubr.bf16.mxu0 %v1231
        %5619 = vmatmul.mubr.bf16.gmra.mxu0 %v1217
        %v5620 = vpop.f32.mrf.mxu0
        %v5621 = vadd.f32 %v5580, %v5620
        %v5622 = vpop.f32.mrf.mxu0
        %v5623 = vadd.f32 %v5582, %v5622
        %v5624 = vpop.f32.mrf.mxu0
        %v5625 = vpop.f32.mrf.mxu0
        %5626 = vdwg.mxu0
        %5627 = vmatprep.subr.bf16.mxu0 %v4025
        %5628 = vmatpush1.bf16.msra.mxu0 %v4024
        %5629 = vmatprep.subr.bf16.mxu0 %v4020
        %5630 = vmatpush1.bf16.msra.mxu0 %v4019
        %5631 = vmatprep.subr.bf16.mxu0 %v4015
        %5632 = vmatpush1.bf16.msra.mxu0 %v4014
        %5633 = vmatprep.subr.bf16.mxu0 %v4010
        %5634 = vmatpush1.bf16.msra.mxu0 %v4009
        %5635 = vmatprep.subr.bf16.mxu0 %v4005
        %5636 = vmatpush1.bf16.msra.mxu0 %v4004
        %5637 = vmatprep.subr.bf16.mxu0 %v4000
        %5638 = vmatpush1.bf16.msra.mxu0 %v3999
        %5639 = vmatprep.subr.bf16.mxu0 %v3995
        %5640 = vmatpush1.bf16.msra.mxu0 %v3994
        %5641 = vmatprep.subr.bf16.mxu0 %v3990
        %5642 = vmatpush1.bf16.msra.mxu0 %v3989
        %5643 = vmatprep.subr.bf16.mxu0 %v4065
        %5644 = vmatpush2.bf16.msra.mxu0 %v4064
        %5645 = vmatprep.subr.bf16.mxu0 %v4060
        %5646 = vmatpush2.bf16.msra.mxu0 %v4059
        %5647 = vmatprep.subr.bf16.mxu0 %v4055
        %5648 = vmatpush2.bf16.msra.mxu0 %v4054
        %5649 = vmatprep.subr.bf16.mxu0 %v4050
        %5650 = vmatpush2.bf16.msra.mxu0 %v4049
        %5651 = vmatprep.subr.bf16.mxu0 %v4045
        %5652 = vmatpush2.bf16.msra.mxu0 %v4044
        %5653 = vmatprep.subr.bf16.mxu0 %v4040
        %5654 = vmatpush2.bf16.msra.mxu0 %v4039
        %5655 = vmatprep.subr.bf16.mxu0 %v4035
        %5656 = vmatpush2.bf16.msra.mxu0 %v4034
        %5657 = vmatprep.subr.bf16.mxu0 %v4030
        %5658 = vmatpush2.bf16.msra.mxu0 %v4029
        %5659 = vmatprep.mubr.bf16.mxu0 %v1241
        %5660 = vmatmul.mubr.bf16.gmra.mxu0 %v1239
        %v5661 = vpop.f32.mrf.mxu0
        %v5662 = vadd.f32 %v5621, %v5661
        %v5663 = vpop.f32.mrf.mxu0
        %v5664 = vadd.f32 %v5623, %v5663
        %v5665 = vpop.f32.mrf.mxu0
        %v5666 = vpop.f32.mrf.mxu0
        %5667 = vdwg.mxu0
        %5668 = vmatprep.subr.bf16.mxu0 %v4105
        %5669 = vmatpush1.bf16.msra.mxu0 %v4104
        %5670 = vmatprep.subr.bf16.mxu0 %v4100
        %5671 = vmatpush1.bf16.msra.mxu0 %v4099
        %5672 = vmatprep.subr.bf16.mxu0 %v4095
        %5673 = vmatpush1.bf16.msra.mxu0 %v4094
        %5674 = vmatprep.subr.bf16.mxu0 %v4090
        %5675 = vmatpush1.bf16.msra.mxu0 %v4089
        %5676 = vmatprep.subr.bf16.mxu0 %v4085
        %5677 = vmatpush1.bf16.msra.mxu0 %v4084
        %5678 = vmatprep.subr.bf16.mxu0 %v4080
        %5679 = vmatpush1.bf16.msra.mxu0 %v4079
        %5680 = vmatprep.subr.bf16.mxu0 %v4075
        %5681 = vmatpush1.bf16.msra.mxu0 %v4074
        %5682 = vmatprep.subr.bf16.mxu0 %v4070
        %5683 = vmatpush1.bf16.msra.mxu0 %v4069
        %5684 = vmatprep.subr.bf16.mxu0 %v4145
        %5685 = vmatpush2.bf16.msra.mxu0 %v4144
        %5686 = vmatprep.subr.bf16.mxu0 %v4140
        %5687 = vmatpush2.bf16.msra.mxu0 %v4139
        %5688 = vmatprep.subr.bf16.mxu0 %v4135
        %5689 = vmatpush2.bf16.msra.mxu0 %v4134
        %5690 = vmatprep.subr.bf16.mxu0 %v4130
        %5691 = vmatpush2.bf16.msra.mxu0 %v4129
        %5692 = vmatprep.subr.bf16.mxu0 %v4125
        %5693 = vmatpush2.bf16.msra.mxu0 %v4124
        %5694 = vmatprep.subr.bf16.mxu0 %v4120
        %5695 = vmatpush2.bf16.msra.mxu0 %v4119
        %5696 = vmatprep.subr.bf16.mxu0 %v4115
        %5697 = vmatpush2.bf16.msra.mxu0 %v4114
        %5698 = vmatprep.subr.bf16.mxu0 %v4110
        %5699 = vmatpush2.bf16.msra.mxu0 %v4109
        %5700 = vmatprep.mubr.bf16.mxu0 %v1238
        %5701 = vmatmul.mubr.bf16.gmra.mxu0 %v1224
        %v5702 = vpop.f32.mrf.mxu0
        %v5703 = vadd.f32 %v5662, %v5702
        %v5704 = vpop.f32.mrf.mxu0
        %v5705 = vadd.f32 %v5664, %v5704
        %v5706 = vpop.f32.mrf.mxu0
        %v5707 = vpop.f32.mrf.mxu0
        %5708 = vdwg.mxu0
        %5709 = vmatprep.subr.bf16.mxu0 %v4185
        %5710 = vmatpush1.bf16.msra.mxu0 %v4184
        %5711 = vmatprep.subr.bf16.mxu0 %v4180
        %5712 = vmatpush1.bf16.msra.mxu0 %v4179
        %5713 = vmatprep.subr.bf16.mxu0 %v4175
        %5714 = vmatpush1.bf16.msra.mxu0 %v4174
        %5715 = vmatprep.subr.bf16.mxu0 %v4170
        %5716 = vmatpush1.bf16.msra.mxu0 %v4169
        %5717 = vmatprep.subr.bf16.mxu0 %v4165
        %5718 = vmatpush1.bf16.msra.mxu0 %v4164
        %5719 = vmatprep.subr.bf16.mxu0 %v4160
        %5720 = vmatpush1.bf16.msra.mxu0 %v4159
        %5721 = vmatprep.subr.bf16.mxu0 %v4155
        %5722 = vmatpush1.bf16.msra.mxu0 %v4154
        %5723 = vmatprep.subr.bf16.mxu0 %v4150
        %5724 = vmatpush1.bf16.msra.mxu0 %v4149
        %5725 = vmatprep.subr.bf16.mxu0 %v4225
        %5726 = vmatpush2.bf16.msra.mxu0 %v4224
        %5727 = vmatprep.subr.bf16.mxu0 %v4220
        %5728 = vmatpush2.bf16.msra.mxu0 %v4219
        %5729 = vmatprep.subr.bf16.mxu0 %v4215
        %5730 = vmatpush2.bf16.msra.mxu0 %v4214
        %5731 = vmatprep.subr.bf16.mxu0 %v4210
        %5732 = vmatpush2.bf16.msra.mxu0 %v4209
        %5733 = vmatprep.subr.bf16.mxu0 %v4205
        %5734 = vmatpush2.bf16.msra.mxu0 %v4204
        %5735 = vmatprep.subr.bf16.mxu0 %v4200
        %5736 = vmatpush2.bf16.msra.mxu0 %v4199
        %5737 = vmatprep.subr.bf16.mxu0 %v4195
        %5738 = vmatpush2.bf16.msra.mxu0 %v4194
        %5739 = vmatprep.subr.bf16.mxu0 %v4190
        %5740 = vmatpush2.bf16.msra.mxu0 %v4189
        %5741 = vmatprep.mubr.bf16.mxu0 %v1242
        %5742 = vmatmul.mubr.bf16.gmra.mxu0 %v1240
        %v5743 = vpop.f32.mrf.mxu0
        %v5744 = vadd.f32 %v5703, %v5743
        %v5745 = vpop.f32.mrf.mxu0
        %v5746 = vadd.f32 %v5705, %v5745
        %v5747 = vpop.f32.mrf.mxu0
        %v5748 = vpop.f32.mrf.mxu0
        %5749 = vdwg.mxu0
        %5750 = vmatprep.subr.bf16.mxu0 %v4265
        %5751 = vmatpush1.bf16.msra.mxu0 %v4264
        %5752 = vmatprep.subr.bf16.mxu0 %v4260
        %5753 = vmatpush1.bf16.msra.mxu0 %v4259
        %5754 = vmatprep.subr.bf16.mxu0 %v4255
        %5755 = vmatpush1.bf16.msra.mxu0 %v4254
        %5756 = vmatprep.subr.bf16.mxu0 %v4250
        %5757 = vmatpush1.bf16.msra.mxu0 %v4249
        %5758 = vmatprep.subr.bf16.mxu0 %v4245
        %5759 = vmatpush1.bf16.msra.mxu0 %v4244
        %5760 = vmatprep.subr.bf16.mxu0 %v4240
        %5761 = vmatpush1.bf16.msra.mxu0 %v4239
        %5762 = vmatprep.subr.bf16.mxu0 %v4235
        %5763 = vmatpush1.bf16.msra.mxu0 %v4234
        %5764 = vmatprep.subr.bf16.mxu0 %v4230
        %5765 = vmatpush1.bf16.msra.mxu0 %v4229
        %5766 = vmatprep.subr.bf16.mxu0 %v4305
        %5767 = vmatpush2.bf16.msra.mxu0 %v4304
        %5768 = vmatprep.subr.bf16.mxu0 %v4300
        %5769 = vmatpush2.bf16.msra.mxu0 %v4299
        %5770 = vmatprep.subr.bf16.mxu0 %v4295
        %5771 = vmatpush2.bf16.msra.mxu0 %v4294
        %5772 = vmatprep.subr.bf16.mxu0 %v4290
        %5773 = vmatpush2.bf16.msra.mxu0 %v4289
        %5774 = vmatprep.subr.bf16.mxu0 %v4285
        %5775 = vmatpush2.bf16.msra.mxu0 %v4284
        %5776 = vmatprep.subr.bf16.mxu0 %v4280
        %5777 = vmatpush2.bf16.msra.mxu0 %v4279
        %5778 = vmatprep.subr.bf16.mxu0 %v4275
        %5779 = vmatpush2.bf16.msra.mxu0 %v4274
        %5780 = vmatprep.subr.bf16.mxu0 %v4270
        %5781 = vmatpush2.bf16.msra.mxu0 %v4269
        %5782 = vmatprep.mubr.bf16.mxu0 %v1264
        %5783 = vmatmul.mubr.bf16.gmra.mxu0 %v1257
        %v5784 = vpop.f32.mrf.mxu0
        %v5785 = vadd.f32 %v5744, %v5784
        %v5786 = vpop.f32.mrf.mxu0
        %v5787 = vadd.f32 %v5746, %v5786
        %v5788 = vpop.f32.mrf.mxu0
        %v5789 = vpop.f32.mrf.mxu0
        %5790 = vdwg.mxu0
        %5791 = vmatprep.subr.bf16.mxu0 0
        %5792 = vmatpush1.bf16.msra.mxu0 %v3626
        %5793 = vmatprep.subr.bf16.mxu0 0
        %5794 = vmatpush1.bf16.msra.mxu0 %v3621
        %5795 = vmatprep.subr.bf16.mxu0 0
        %5796 = vmatpush1.bf16.msra.mxu0 %v3616
        %5797 = vmatprep.subr.bf16.mxu0 0
        %5798 = vmatpush1.bf16.msra.mxu0 %v3611
        %5799 = vmatprep.subr.bf16.mxu0 0
        %5800 = vmatpush1.bf16.msra.mxu0 %v3606
        %5801 = vmatprep.subr.bf16.mxu0 0
        %5802 = vmatpush1.bf16.msra.mxu0 %v3601
        %5803 = vmatprep.subr.bf16.mxu0 0
        %5804 = vmatpush1.bf16.msra.mxu0 %v3596
        %5805 = vmatprep.subr.bf16.mxu0 0
        %5806 = vmatpush1.bf16.msra.mxu0 %v3591
        %5807 = vmatprep.subr.bf16.mxu0 0
        %5808 = vmatpush2.bf16.msra.mxu0 %v3666
        %5809 = vmatprep.subr.bf16.mxu0 0
        %5810 = vmatpush2.bf16.msra.mxu0 %v3661
        %5811 = vmatprep.subr.bf16.mxu0 0
        %5812 = vmatpush2.bf16.msra.mxu0 %v3656
        %5813 = vmatprep.subr.bf16.mxu0 0
        %5814 = vmatpush2.bf16.msra.mxu0 %v3651
        %5815 = vmatprep.subr.bf16.mxu0 0
        %5816 = vmatpush2.bf16.msra.mxu0 %v3646
        %5817 = vmatprep.subr.bf16.mxu0 0
        %5818 = vmatpush2.bf16.msra.mxu0 %v3641
        %5819 = vmatprep.subr.bf16.mxu0 0
        %5820 = vmatpush2.bf16.msra.mxu0 %v3636
        %5821 = vmatprep.subr.bf16.mxu0 0
        %5822 = vmatpush2.bf16.msra.mxu0 %v3631
        %5823 = vmatprep.mubr.bf16.mxu0 %v1182
        %5824 = vmatmul.mubr.bf16.gmra.mxu0 %v1168
        %v5825 = vpop.f32.mrf.mxu0
        %v5826 = vadd.f32 %v5047, %v5825
        %v5827 = vpop.f32.mrf.mxu0
        %v5828 = vpop.f32.mrf.mxu0
        %v5829 = vpop.f32.mrf.mxu0
        %5830 = vdwg.mxu0
        %5831 = vmatprep.subr.bf16.mxu0 0
        %5832 = vmatpush1.bf16.msra.mxu0 %v3706
        %5833 = vmatprep.subr.bf16.mxu0 0
        %5834 = vmatpush1.bf16.msra.mxu0 %v3701
        %5835 = vmatprep.subr.bf16.mxu0 0
        %5836 = vmatpush1.bf16.msra.mxu0 %v3696
        %5837 = vmatprep.subr.bf16.mxu0 0
        %5838 = vmatpush1.bf16.msra.mxu0 %v3691
        %5839 = vmatprep.subr.bf16.mxu0 0
        %5840 = vmatpush1.bf16.msra.mxu0 %v3686
        %5841 = vmatprep.subr.bf16.mxu0 0
        %5842 = vmatpush1.bf16.msra.mxu0 %v3681
        %5843 = vmatprep.subr.bf16.mxu0 0
        %5844 = vmatpush1.bf16.msra.mxu0 %v3676
        %5845 = vmatprep.subr.bf16.mxu0 0
        %5846 = vmatpush1.bf16.msra.mxu0 %v3671
        %5847 = vmatprep.subr.bf16.mxu0 0
        %5848 = vmatpush2.bf16.msra.mxu0 %v3746
        %5849 = vmatprep.subr.bf16.mxu0 0
        %5850 = vmatpush2.bf16.msra.mxu0 %v3741
        %5851 = vmatprep.subr.bf16.mxu0 0
        %5852 = vmatpush2.bf16.msra.mxu0 %v3736
        %5853 = vmatprep.subr.bf16.mxu0 0
        %5854 = vmatpush2.bf16.msra.mxu0 %v3731
        %5855 = vmatprep.subr.bf16.mxu0 0
        %5856 = vmatpush2.bf16.msra.mxu0 %v3726
        %5857 = vmatprep.subr.bf16.mxu0 0
        %5858 = vmatpush2.bf16.msra.mxu0 %v3721
        %5859 = vmatprep.subr.bf16.mxu0 0
        %5860 = vmatpush2.bf16.msra.mxu0 %v3716
        %5861 = vmatprep.subr.bf16.mxu0 0
        %5862 = vmatpush2.bf16.msra.mxu0 %v3711
        %5863 = vmatprep.mubr.bf16.mxu0 %v1192
        %5864 = vmatmul.mubr.bf16.gmra.mxu0 %v1190
        %v5865 = vpop.f32.mrf.mxu0
        %v5866 = vadd.f32 %v5826, %v5865
        %v5867 = vpop.f32.mrf.mxu0
        %v5868 = vpop.f32.mrf.mxu0
        %v5869 = vpop.f32.mrf.mxu0
        %5870 = vdwg.mxu0
        %5871 = vmatprep.subr.bf16.mxu0 0
        %5872 = vmatpush1.bf16.msra.mxu0 %v3786
        %5873 = vmatprep.subr.bf16.mxu0 0
        %5874 = vmatpush1.bf16.msra.mxu0 %v3781
        %5875 = vmatprep.subr.bf16.mxu0 0
        %5876 = vmatpush1.bf16.msra.mxu0 %v3776
        %5877 = vmatprep.subr.bf16.mxu0 0
        %5878 = vmatpush1.bf16.msra.mxu0 %v3771
        %5879 = vmatprep.subr.bf16.mxu0 0
        %5880 = vmatpush1.bf16.msra.mxu0 %v3766
        %5881 = vmatprep.subr.bf16.mxu0 0
        %5882 = vmatpush1.bf16.msra.mxu0 %v3761
        %5883 = vmatprep.subr.bf16.mxu0 0
        %5884 = vmatpush1.bf16.msra.mxu0 %v3756
        %5885 = vmatprep.subr.bf16.mxu0 0
        %5886 = vmatpush1.bf16.msra.mxu0 %v3751
        %5887 = vmatprep.subr.bf16.mxu0 0
        %5888 = vmatpush2.bf16.msra.mxu0 %v3826
        %5889 = vmatprep.subr.bf16.mxu0 0
        %5890 = vmatpush2.bf16.msra.mxu0 %v3821
        %5891 = vmatprep.subr.bf16.mxu0 0
        %5892 = vmatpush2.bf16.msra.mxu0 %v3816
        %5893 = vmatprep.subr.bf16.mxu0 0
        %5894 = vmatpush2.bf16.msra.mxu0 %v3811
        %5895 = vmatprep.subr.bf16.mxu0 0
        %5896 = vmatpush2.bf16.msra.mxu0 %v3806
        %5897 = vmatprep.subr.bf16.mxu0 0
        %5898 = vmatpush2.bf16.msra.mxu0 %v3801
        %5899 = vmatprep.subr.bf16.mxu0 0
        %5900 = vmatpush2.bf16.msra.mxu0 %v3796
        %5901 = vmatprep.subr.bf16.mxu0 0
        %5902 = vmatpush2.bf16.msra.mxu0 %v3791
        %5903 = vmatprep.mubr.bf16.mxu0 %v1189
        %5904 = vmatmul.mubr.bf16.gmra.mxu0 %v1175
        %v5905 = vpop.f32.mrf.mxu0
        %v5906 = vadd.f32 %v5866, %v5905
        %v5907 = vpop.f32.mrf.mxu0
        %v5908 = vpop.f32.mrf.mxu0
        %v5909 = vpop.f32.mrf.mxu0
        %5910 = vdwg.mxu0
        %5911 = vmatprep.subr.bf16.mxu0 0
        %5912 = vmatpush1.bf16.msra.mxu0 %v3866
        %5913 = vmatprep.subr.bf16.mxu0 0
        %5914 = vmatpush1.bf16.msra.mxu0 %v3861
        %5915 = vmatprep.subr.bf16.mxu0 0
        %5916 = vmatpush1.bf16.msra.mxu0 %v3856
        %5917 = vmatprep.subr.bf16.mxu0 0
        %5918 = vmatpush1.bf16.msra.mxu0 %v3851
        %5919 = vmatprep.subr.bf16.mxu0 0
        %5920 = vmatpush1.bf16.msra.mxu0 %v3846
        %5921 = vmatprep.subr.bf16.mxu0 0
        %5922 = vmatpush1.bf16.msra.mxu0 %v3841
        %5923 = vmatprep.subr.bf16.mxu0 0
        %5924 = vmatpush1.bf16.msra.mxu0 %v3836
        %5925 = vmatprep.subr.bf16.mxu0 0
        %5926 = vmatpush1.bf16.msra.mxu0 %v3831
        %5927 = vmatprep.subr.bf16.mxu0 0
        %5928 = vmatpush2.bf16.msra.mxu0 %v3906
        %5929 = vmatprep.subr.bf16.mxu0 0
        %5930 = vmatpush2.bf16.msra.mxu0 %v3901
        %5931 = vmatprep.subr.bf16.mxu0 0
        %5932 = vmatpush2.bf16.msra.mxu0 %v3896
        %5933 = vmatprep.subr.bf16.mxu0 0
        %5934 = vmatpush2.bf16.msra.mxu0 %v3891
        %5935 = vmatprep.subr.bf16.mxu0 0
        %5936 = vmatpush2.bf16.msra.mxu0 %v3886
        %5937 = vmatprep.subr.bf16.mxu0 0
        %5938 = vmatpush2.bf16.msra.mxu0 %v3881
        %5939 = vmatprep.subr.bf16.mxu0 0
        %5940 = vmatpush2.bf16.msra.mxu0 %v3876
        %5941 = vmatprep.subr.bf16.mxu0 0
        %5942 = vmatpush2.bf16.msra.mxu0 %v3871
        %5943 = vmatprep.mubr.bf16.mxu0 %v1193
        %5944 = vmatmul.mubr.bf16.gmra.mxu0 %v1191
        %v5945 = vpop.f32.mrf.mxu0
        %v5946 = vadd.f32 %v5906, %v5945
        %v5947 = vpop.f32.mrf.mxu0
        %v5948 = vpop.f32.mrf.mxu0
        %v5949 = vpop.f32.mrf.mxu0
        %5950 = vdwg.mxu0
        %5951 = vmatprep.subr.bf16.mxu0 0
        %5952 = vmatpush1.bf16.msra.mxu0 %v3946
        %5953 = vmatprep.subr.bf16.mxu0 0
        %5954 = vmatpush1.bf16.msra.mxu0 %v3941
        %5955 = vmatprep.subr.bf16.mxu0 0
        %5956 = vmatpush1.bf16.msra.mxu0 %v3936
        %5957 = vmatprep.subr.bf16.mxu0 0
        %5958 = vmatpush1.bf16.msra.mxu0 %v3931
        %5959 = vmatprep.subr.bf16.mxu0 0
        %5960 = vmatpush1.bf16.msra.mxu0 %v3926
        %5961 = vmatprep.subr.bf16.mxu0 0
        %5962 = vmatpush1.bf16.msra.mxu0 %v3921
        %5963 = vmatprep.subr.bf16.mxu0 0
        %5964 = vmatpush1.bf16.msra.mxu0 %v3916
        %5965 = vmatprep.subr.bf16.mxu0 0
        %5966 = vmatpush1.bf16.msra.mxu0 %v3911
        %5967 = vmatprep.subr.bf16.mxu0 0
        %5968 = vmatpush2.bf16.msra.mxu0 %v3986
        %5969 = vmatprep.subr.bf16.mxu0 0
        %5970 = vmatpush2.bf16.msra.mxu0 %v3981
        %5971 = vmatprep.subr.bf16.mxu0 0
        %5972 = vmatpush2.bf16.msra.mxu0 %v3976
        %5973 = vmatprep.subr.bf16.mxu0 0
        %5974 = vmatpush2.bf16.msra.mxu0 %v3971
        %5975 = vmatprep.subr.bf16.mxu0 0
        %5976 = vmatpush2.bf16.msra.mxu0 %v3966
        %5977 = vmatprep.subr.bf16.mxu0 0
        %5978 = vmatpush2.bf16.msra.mxu0 %v3961
        %5979 = vmatprep.subr.bf16.mxu0 0
        %5980 = vmatpush2.bf16.msra.mxu0 %v3956
        %5981 = vmatprep.subr.bf16.mxu0 0
        %5982 = vmatpush2.bf16.msra.mxu0 %v3951
        %5983 = vmatprep.mubr.bf16.mxu0 %v1231
        %5984 = vmatmul.mubr.bf16.gmra.mxu0 %v1217
        %v5985 = vpop.f32.mrf.mxu0
        %v5986 = vadd.f32 %v5946, %v5985
        %v5987 = vpop.f32.mrf.mxu0
        %v5988 = vpop.f32.mrf.mxu0
        %v5989 = vpop.f32.mrf.mxu0
        %5990 = vdwg.mxu0
        %5991 = vmatprep.subr.bf16.mxu0 0
        %5992 = vmatpush1.bf16.msra.mxu0 %v4026
        %5993 = vmatprep.subr.bf16.mxu0 0
        %5994 = vmatpush1.bf16.msra.mxu0 %v4021
        %5995 = vmatprep.subr.bf16.mxu0 0
        %5996 = vmatpush1.bf16.msra.mxu0 %v4016
        %5997 = vmatprep.subr.bf16.mxu0 0
        %5998 = vmatpush1.bf16.msra.mxu0 %v4011
        %5999 = vmatprep.subr.bf16.mxu0 0
        %6000 = vmatpush1.bf16.msra.mxu0 %v4006
        %6001 = vmatprep.subr.bf16.mxu0 0
        %6002 = vmatpush1.bf16.msra.mxu0 %v4001
        %6003 = vmatprep.subr.bf16.mxu0 0
        %6004 = vmatpush1.bf16.msra.mxu0 %v3996
        %6005 = vmatprep.subr.bf16.mxu0 0
        %6006 = vmatpush1.bf16.msra.mxu0 %v3991
        %6007 = vmatprep.subr.bf16.mxu0 0
        %6008 = vmatpush2.bf16.msra.mxu0 %v4066
        %6009 = vmatprep.subr.bf16.mxu0 0
        %6010 = vmatpush2.bf16.msra.mxu0 %v4061
        %6011 = vmatprep.subr.bf16.mxu0 0
        %6012 = vmatpush2.bf16.msra.mxu0 %v4056
        %6013 = vmatprep.subr.bf16.mxu0 0
        %6014 = vmatpush2.bf16.msra.mxu0 %v4051
        %6015 = vmatprep.subr.bf16.mxu0 0
        %6016 = vmatpush2.bf16.msra.mxu0 %v4046
        %6017 = vmatprep.subr.bf16.mxu0 0
        %6018 = vmatpush2.bf16.msra.mxu0 %v4041
        %6019 = vmatprep.subr.bf16.mxu0 0
        %6020 = vmatpush2.bf16.msra.mxu0 %v4036
        %6021 = vmatprep.subr.bf16.mxu0 0
        %6022 = vmatpush2.bf16.msra.mxu0 %v4031
        %6023 = vmatprep.mubr.bf16.mxu0 %v1241
        %6024 = vmatmul.mubr.bf16.gmra.mxu0 %v1239
        %v6025 = vpop.f32.mrf.mxu0
        %v6026 = vadd.f32 %v5986, %v6025
        %v6027 = vpop.f32.mrf.mxu0
        %v6028 = vpop.f32.mrf.mxu0
        %v6029 = vpop.f32.mrf.mxu0
        %6030 = vdwg.mxu0
        %6031 = vmatprep.subr.bf16.mxu0 0
        %6032 = vmatpush1.bf16.msra.mxu0 %v4106
        %6033 = vmatprep.subr.bf16.mxu0 0
        %6034 = vmatpush1.bf16.msra.mxu0 %v4101
        %6035 = vmatprep.subr.bf16.mxu0 0
        %6036 = vmatpush1.bf16.msra.mxu0 %v4096
        %6037 = vmatprep.subr.bf16.mxu0 0
        %6038 = vmatpush1.bf16.msra.mxu0 %v4091
        %6039 = vmatprep.subr.bf16.mxu0 0
        %6040 = vmatpush1.bf16.msra.mxu0 %v4086
        %6041 = vmatprep.subr.bf16.mxu0 0
        %6042 = vmatpush1.bf16.msra.mxu0 %v4081
        %6043 = vmatprep.subr.bf16.mxu0 0
        %6044 = vmatpush1.bf16.msra.mxu0 %v4076
        %6045 = vmatprep.subr.bf16.mxu0 0
        %6046 = vmatpush1.bf16.msra.mxu0 %v4071
        %6047 = vmatprep.subr.bf16.mxu0 0
        %6048 = vmatpush2.bf16.msra.mxu0 %v4146
        %6049 = vmatprep.subr.bf16.mxu0 0
        %6050 = vmatpush2.bf16.msra.mxu0 %v4141
        %6051 = vmatprep.subr.bf16.mxu0 0
        %6052 = vmatpush2.bf16.msra.mxu0 %v4136
        %6053 = vmatprep.subr.bf16.mxu0 0
        %6054 = vmatpush2.bf16.msra.mxu0 %v4131
        %6055 = vmatprep.subr.bf16.mxu0 0
        %6056 = vmatpush2.bf16.msra.mxu0 %v4126
        %6057 = vmatprep.subr.bf16.mxu0 0
        %6058 = vmatpush2.bf16.msra.mxu0 %v4121
        %6059 = vmatprep.subr.bf16.mxu0 0
        %6060 = vmatpush2.bf16.msra.mxu0 %v4116
        %6061 = vmatprep.subr.bf16.mxu0 0
        %6062 = vmatpush2.bf16.msra.mxu0 %v4111
        %6063 = vmatprep.mubr.bf16.mxu0 %v1238
        %6064 = vmatmul.mubr.bf16.gmra.mxu0 %v1224
        %v6065 = vpop.f32.mrf.mxu0
        %v6066 = vadd.f32 %v6026, %v6065
        %v6067 = vpop.f32.mrf.mxu0
        %v6068 = vpop.f32.mrf.mxu0
        %v6069 = vpop.f32.mrf.mxu0
        %6070 = vdwg.mxu0
        %6071 = vmatprep.subr.bf16.mxu0 0
        %6072 = vmatpush1.bf16.msra.mxu0 %v4186
        %6073 = vmatprep.subr.bf16.mxu0 0
        %6074 = vmatpush1.bf16.msra.mxu0 %v4181
        %6075 = vmatprep.subr.bf16.mxu0 0
        %6076 = vmatpush1.bf16.msra.mxu0 %v4176
        %6077 = vmatprep.subr.bf16.mxu0 0
        %6078 = vmatpush1.bf16.msra.mxu0 %v4171
        %6079 = vmatprep.subr.bf16.mxu0 0
        %6080 = vmatpush1.bf16.msra.mxu0 %v4166
        %6081 = vmatprep.subr.bf16.mxu0 0
        %6082 = vmatpush1.bf16.msra.mxu0 %v4161
        %6083 = vmatprep.subr.bf16.mxu0 0
        %6084 = vmatpush1.bf16.msra.mxu0 %v4156
        %6085 = vmatprep.subr.bf16.mxu0 0
        %6086 = vmatpush1.bf16.msra.mxu0 %v4151
        %6087 = vmatprep.subr.bf16.mxu0 0
        %6088 = vmatpush2.bf16.msra.mxu0 %v4226
        %6089 = vmatprep.subr.bf16.mxu0 0
        %6090 = vmatpush2.bf16.msra.mxu0 %v4221
        %6091 = vmatprep.subr.bf16.mxu0 0
        %6092 = vmatpush2.bf16.msra.mxu0 %v4216
        %6093 = vmatprep.subr.bf16.mxu0 0
        %6094 = vmatpush2.bf16.msra.mxu0 %v4211
        %6095 = vmatprep.subr.bf16.mxu0 0
        %6096 = vmatpush2.bf16.msra.mxu0 %v4206
        %6097 = vmatprep.subr.bf16.mxu0 0
        %6098 = vmatpush2.bf16.msra.mxu0 %v4201
        %6099 = vmatprep.subr.bf16.mxu0 0
        %6100 = vmatpush2.bf16.msra.mxu0 %v4196
        %6101 = vmatprep.subr.bf16.mxu0 0
        %6102 = vmatpush2.bf16.msra.mxu0 %v4191
        %6103 = vmatprep.mubr.bf16.mxu0 %v1242
        %6104 = vmatmul.mubr.bf16.gmra.mxu0 %v1240
        %v6105 = vpop.f32.mrf.mxu0
        %v6106 = vadd.f32 %v6066, %v6105
        %v6107 = vpop.f32.mrf.mxu0
        %v6108 = vpop.f32.mrf.mxu0
        %v6109 = vpop.f32.mrf.mxu0
        %6110 = vdwg.mxu0
        %6111 = vmatprep.subr.bf16.mxu0 0
        %6112 = vmatpush1.bf16.msra.mxu0 %v4266
        %6113 = vmatprep.subr.bf16.mxu0 0
        %6114 = vmatpush1.bf16.msra.mxu0 %v4261
        %6115 = vmatprep.subr.bf16.mxu0 0
        %6116 = vmatpush1.bf16.msra.mxu0 %v4256
        %6117 = vmatprep.subr.bf16.mxu0 0
        %6118 = vmatpush1.bf16.msra.mxu0 %v4251
        %6119 = vmatprep.subr.bf16.mxu0 0
        %6120 = vmatpush1.bf16.msra.mxu0 %v4246
        %6121 = vmatprep.subr.bf16.mxu0 0
        %6122 = vmatpush1.bf16.msra.mxu0 %v4241
        %6123 = vmatprep.subr.bf16.mxu0 0
        %6124 = vmatpush1.bf16.msra.mxu0 %v4236
        %6125 = vmatprep.subr.bf16.mxu0 0
        %6126 = vmatpush1.bf16.msra.mxu0 %v4231
        %6127 = vmatprep.subr.bf16.mxu0 0
        %6128 = vmatpush2.bf16.msra.mxu0 %v4306
        %6129 = vmatprep.subr.bf16.mxu0 0
        %6130 = vmatpush2.bf16.msra.mxu0 %v4301
        %6131 = vmatprep.subr.bf16.mxu0 0
        %6132 = vmatpush2.bf16.msra.mxu0 %v4296
        %6133 = vmatprep.subr.bf16.mxu0 0
        %6134 = vmatpush2.bf16.msra.mxu0 %v4291
        %6135 = vmatprep.subr.bf16.mxu0 0
        %6136 = vmatpush2.bf16.msra.mxu0 %v4286
        %6137 = vmatprep.subr.bf16.mxu0 0
        %6138 = vmatpush2.bf16.msra.mxu0 %v4281
        %6139 = vmatprep.subr.bf16.mxu0 0
        %6140 = vmatpush2.bf16.msra.mxu0 %v4276
        %6141 = vmatprep.subr.bf16.mxu0 0
        %6142 = vmatpush2.bf16.msra.mxu0 %v4271
        %6143 = vmatprep.mubr.bf16.mxu0 %v1264
        %6144 = vmatmul.mubr.bf16.gmra.mxu0 %v1257
        %v6145 = vpop.f32.mrf.mxu0
        %v6146 = vadd.f32 %v6106, %v6145
        %v6147 = vpop.f32.mrf.mxu0
        %v6148 = vpop.f32.mrf.mxu0
        %v6149 = vpop.f32.mrf.mxu0
        %6150 = vdwg.mxu0
        %v6151 = vpack.c.bf16 %v5416, %v5416
        %v6152 = vpack.c.bf16 %v5418, %v5418
        %v6153 = vpack.c.bf16 %v5785, %v5785
        %v6154 = vpack.c.bf16 %v5787, %v5787
        %v6155 = vpack.c.bf16 %v6146, %v6146
        %v6156 = vld [vmem:[%s3] sm:$0xf]
        %v6157 = vld [vmem:[%s3 + $0x4] sm:$0xf]
        %v6158 = vld [vmem:[%s3 + $0x8] sm:$0xf]
        %v6159 = vld [vmem:[%s3 + $0xc] sm:$0xf]
        %v6160 = vld [vmem:[%s3 + $0x10] sm:$0xf]
        %v6161 = vld [vmem:[%s3 + $0x14] sm:$0xf]
        %v6162 = vld [vmem:[%s3 + $0x18] sm:$0xf]
        %v6163 = vld [vmem:[%s3 + $0x1c] sm:$0xf]
        %v6164 = vld [vmem:[%s3 + $0x20] sm:$0xf]
        %v6165 = vld [vmem:[%s3 + $0x24] sm:$0xf]
        %v6166 = vld [vmem:[%s3 + $0x28] sm:$0xf]
        %v6167 = vld [vmem:[%s3 + $0x2c] sm:$0xf]
        %v6168 = vld [vmem:[%s3 + $0x30] sm:$0xf]
        %v6169 = vld [vmem:[%s3 + $0x34] sm:$0xf]
        %v6170 = vld [vmem:[%s3 + $0x38] sm:$0xf]
        %v6171 = vld [vmem:[%s3 + $0x3c] sm:$0xf]
        %v6172 = vld [vmem:[%s3 + $0x40] sm:$0xf]
        %v6173 = vld [vmem:[%s3 + $0x44] sm:$0xf]
        %v6174 = vld [vmem:[%s3 + $0x48] sm:$0xf]
        %v6175 = vld [vmem:[%s3 + $0x4c] sm:$0xf]
        %v6176 = vld [vmem:[%s3 + $0x50] sm:$0xf]
        %v6177 = vld [vmem:[%s3 + $0x54] sm:$0xf]
        %v6178 = vld [vmem:[%s3 + $0x58] sm:$0xf]
        %v6179 = vld [vmem:[%s3 + $0x5c] sm:$0xf]
        %v6180 = vld [vmem:[%s3 + $0x60] sm:$0xf]
        %v6181 = vld [vmem:[%s3 + $0x64] sm:$0xf]
        %v6182 = vld [vmem:[%s3 + $0x68] sm:$0xf]
        %v6183 = vld [vmem:[%s3 + $0x6c] sm:$0xf]
        %v6184 = vld [vmem:[%s3 + $0x70] sm:$0xf]
        %v6185 = vld [vmem:[%s3 + $0x74] sm:$0xf]
        %v6186 = vld [vmem:[%s3 + $0x78] sm:$0xf]
        %v6187 = vld [vmem:[%s3 + $0x7c] sm:$0xf]
        %v6188 = vld [vmem:[%s3 + $0x80] sm:$0xf]
        %v6189 = vld [vmem:[%s3 + $0x84] sm:$0xf]
        %v6190 = vld [vmem:[%s3 + $0x88] sm:$0xf]
        %v6191 = vld [vmem:[%s3 + $0x8c] sm:$0xf]
        %v6192 = vld [vmem:[%s3 + $0x90] sm:$0xf]
        %v6193 = vld [vmem:[%s3 + $0x94] sm:$0xf]
        %v6194 = vld [vmem:[%s3 + $0x98] sm:$0xf]
        %v6195 = vld [vmem:[%s3 + $0x9c] sm:$0xf]
        %v6196 = vld [vmem:[%s3 + $0xa0] sm:$0xf]
        %v6197 = vld [vmem:[%s3 + $0xa4] sm:$0xf]
        %v6198 = vld [vmem:[%s3 + $0xa8] sm:$0xf]
        %v6199 = vld [vmem:[%s3 + $0xac] sm:$0xf]
        %v6200 = vld [vmem:[%s3 + $0xb0] sm:$0xf]
        %v6201 = vld [vmem:[%s3 + $0xb4] sm:$0xf]
        %v6202 = vld [vmem:[%s3 + $0xb8] sm:$0xf]
        %v6203 = vld [vmem:[%s3 + $0xbc] sm:$0xf]
        %v6204 = vld [vmem:[%s3 + $0xc0] sm:$0xf]
        %v6205 = vld [vmem:[%s3 + $0xc4] sm:$0xf]
        %v6206 = vld [vmem:[%s3 + $0xc8] sm:$0xf]
        %v6207 = vld [vmem:[%s3 + $0xcc] sm:$0xf]
        %v6208 = vld [vmem:[%s3 + $0xd0] sm:$0xf]
        %v6209 = vld [vmem:[%s3 + $0xd4] sm:$0xf]
        %v6210 = vld [vmem:[%s3 + $0xd8] sm:$0xf]
        %v6211 = vld [vmem:[%s3 + $0xdc] sm:$0xf]
        %v6212 = vld [vmem:[%s3 + $0xe0] sm:$0xf]
        %v6213 = vld [vmem:[%s3 + $0xe4] sm:$0xf]
        %v6214 = vld [vmem:[%s3 + $0xe8] sm:$0xf]
        %v6215 = vld [vmem:[%s3 + $0xec] sm:$0xf]
        %v6216 = vld [vmem:[%s3 + $0xf0] sm:$0xf]
        %v6217 = vld [vmem:[%s3 + $0xf4] sm:$0xf]
        %v6218 = vld [vmem:[%s3 + $0xf8] sm:$0xf]
        %v6219 = vld [vmem:[%s3 + $0xfc] sm:$0xf]
        %v6220 = vld [vmem:[%s3 + $0x100] sm:$0xf]
        %v6221 = vld [vmem:[%s3 + $0x104] sm:$0xf]
        %v6222 = vld [vmem:[%s3 + $0x108] sm:$0xf]
        %v6223 = vld [vmem:[%s3 + $0x10c] sm:$0xf]
        %v6224 = vld [vmem:[%s3 + $0x110] sm:$0xf]
        %v6225 = vld [vmem:[%s3 + $0x114] sm:$0xf]
        %v6226 = vld [vmem:[%s3 + $0x118] sm:$0xf]
        %v6227 = vld [vmem:[%s3 + $0x11c] sm:$0xf]
        %v6228 = vld [vmem:[%s3 + $0x120] sm:$0xf]
        %v6229 = vld [vmem:[%s3 + $0x124] sm:$0xf]
        %v6230 = vld [vmem:[%s3 + $0x128] sm:$0xf]
        %v6231 = vld [vmem:[%s3 + $0x12c] sm:$0xf]
        %v6232 = vld [vmem:[%s3 + $0x130] sm:$0xf]
        %v6233 = vld [vmem:[%s3 + $0x134] sm:$0xf]
        %v6234 = vld [vmem:[%s3 + $0x138] sm:$0xf]
        %v6235 = vld [vmem:[%s3 + $0x13c] sm:$0xf]
        %v6236 = vld [vmem:[%s4] sm:$0x1]
        %v6317 = vunpack.c.l.b16 %v6156
        %v6318 = vunpack.c.l.b16 %v6157
        %v6319 = vunpack.c.l.b16 %v6158
        %v6320 = vunpack.c.l.b16 %v6159
        %v6321 = vunpack.c.l.b16 %v6160
        %v6322 = vunpack.c.l.b16 %v6161
        %v6323 = vunpack.c.l.b16 %v6162
        %v6324 = vunpack.c.l.b16 %v6163
        %v6325 = vunpack.c.l.b16 %v6164
        %v6326 = vunpack.c.l.b16 %v6165
        %v6327 = vunpack.c.l.b16 %v6166
        %v6328 = vunpack.c.l.b16 %v6167
        %v6329 = vunpack.c.l.b16 %v6168
        %v6330 = vunpack.c.l.b16 %v6169
        %v6331 = vunpack.c.l.b16 %v6170
        %v6332 = vunpack.c.l.b16 %v6171
        %v6333 = vunpack.c.l.b16 %v6172
        %v6334 = vunpack.c.l.b16 %v6173
        %v6335 = vunpack.c.l.b16 %v6174
        %v6336 = vunpack.c.l.b16 %v6175
        %v6337 = vunpack.c.l.b16 %v6176
        %v6338 = vunpack.c.l.b16 %v6177
        %v6339 = vunpack.c.l.b16 %v6178
        %v6340 = vunpack.c.l.b16 %v6179
        %v6341 = vunpack.c.l.b16 %v6180
        %v6342 = vunpack.c.l.b16 %v6181
        %v6343 = vunpack.c.l.b16 %v6182
        %v6344 = vunpack.c.l.b16 %v6183
        %v6345 = vunpack.c.l.b16 %v6184
        %v6346 = vunpack.c.l.b16 %v6185
        %v6347 = vunpack.c.l.b16 %v6186
        %v6348 = vunpack.c.l.b16 %v6187
        %v6349 = vunpack.c.l.b16 %v6188
        %v6350 = vunpack.c.l.b16 %v6189
        %v6351 = vunpack.c.l.b16 %v6190
        %v6352 = vunpack.c.l.b16 %v6191
        %v6353 = vunpack.c.l.b16 %v6192
        %v6354 = vunpack.c.l.b16 %v6193
        %v6355 = vunpack.c.l.b16 %v6194
        %v6356 = vunpack.c.l.b16 %v6195
        %v6357 = vunpack.c.l.b16 %v6196
        %v6358 = vunpack.c.l.b16 %v6197
        %v6359 = vunpack.c.l.b16 %v6198
        %v6360 = vunpack.c.l.b16 %v6199
        %v6361 = vunpack.c.l.b16 %v6200
        %v6362 = vunpack.c.l.b16 %v6201
        %v6363 = vunpack.c.l.b16 %v6202
        %v6364 = vunpack.c.l.b16 %v6203
        %v6365 = vunpack.c.l.b16 %v6204
        %v6366 = vunpack.c.l.b16 %v6205
        %v6367 = vunpack.c.l.b16 %v6206
        %v6368 = vunpack.c.l.b16 %v6207
        %v6369 = vunpack.c.l.b16 %v6208
        %v6370 = vunpack.c.l.b16 %v6209
        %v6371 = vunpack.c.l.b16 %v6210
        %v6372 = vunpack.c.l.b16 %v6211
        %v6373 = vunpack.c.l.b16 %v6212
        %v6374 = vunpack.c.l.b16 %v6213
        %v6375 = vunpack.c.l.b16 %v6214
        %v6376 = vunpack.c.l.b16 %v6215
        %v6377 = vunpack.c.l.b16 %v6216
        %v6378 = vunpack.c.l.b16 %v6217
        %v6379 = vunpack.c.l.b16 %v6218
        %v6380 = vunpack.c.l.b16 %v6219
        %v6381 = vunpack.c.l.b16 %v6220
        %v6382 = vunpack.c.l.b16 %v6221
        %v6383 = vunpack.c.l.b16 %v6222
        %v6384 = vunpack.c.l.b16 %v6223
        %v6385 = vunpack.c.l.b16 %v6224
        %v6386 = vunpack.c.l.b16 %v6225
        %v6387 = vunpack.c.l.b16 %v6226
        %v6388 = vunpack.c.l.b16 %v6227
        %v6389 = vunpack.c.l.b16 %v6228
        %v6390 = vunpack.c.l.b16 %v6229
        %v6391 = vunpack.c.l.b16 %v6230
        %v6392 = vunpack.c.l.b16 %v6231
        %v6393 = vunpack.c.l.b16 %v6232
        %v6394 = vunpack.c.l.b16 %v6233
        %v6395 = vunpack.c.l.b16 %v6234
        %v6396 = vunpack.c.l.b16 %v6235
        %v6397 = vpack.c.b16 %v6318, %v6317
        %v6398 = vpack.c.b16 %v6320, %v6319
        %v6399 = vpack.c.b16 %v6322, %v6321
        %v6400 = vpack.c.b16 %v6324, %v6323
        %v6401 = vpack.c.b16 %v6326, %v6325
        %v6402 = vpack.c.b16 %v6328, %v6327
        %v6403 = vpack.c.b16 %v6330, %v6329
        %v6404 = vpack.c.b16 %v6332, %v6331
        %v6405 = vpack.c.b16 %v6334, %v6333
        %v6406 = vpack.c.b16 %v6336, %v6335
        %v6407 = vpack.c.b16 %v6338, %v6337
        %v6408 = vpack.c.b16 %v6340, %v6339
        %v6409 = vpack.c.b16 %v6342, %v6341
        %v6410 = vpack.c.b16 %v6344, %v6343
        %v6411 = vpack.c.b16 %v6346, %v6345
        %v6412 = vpack.c.b16 %v6348, %v6347
        %v6413 = vpack.c.b16 %v6350, %v6349
        %v6414 = vpack.c.b16 %v6352, %v6351
        %v6415 = vpack.c.b16 %v6354, %v6353
        %v6416 = vpack.c.b16 %v6356, %v6355
        %v6417 = vpack.c.b16 %v6358, %v6357
        %v6418 = vpack.c.b16 %v6360, %v6359
        %v6419 = vpack.c.b16 %v6362, %v6361
        %v6420 = vpack.c.b16 %v6364, %v6363
        %v6421 = vpack.c.b16 %v6366, %v6365
        %v6422 = vpack.c.b16 %v6368, %v6367
        %v6423 = vpack.c.b16 %v6370, %v6369
        %v6424 = vpack.c.b16 %v6372, %v6371
        %v6425 = vpack.c.b16 %v6374, %v6373
        %v6426 = vpack.c.b16 %v6376, %v6375
        %v6427 = vpack.c.b16 %v6378, %v6377
        %v6428 = vpack.c.b16 %v6380, %v6379
        %v6429 = vpack.c.b16 %v6382, %v6381
        %v6430 = vpack.c.b16 %v6384, %v6383
        %v6431 = vpack.c.b16 %v6386, %v6385
        %v6432 = vpack.c.b16 %v6388, %v6387
        %v6433 = vpack.c.b16 %v6390, %v6389
        %v6434 = vpack.c.b16 %v6392, %v6391
        %v6435 = vpack.c.b16 %v6394, %v6393
        %v6436 = vpack.c.b16 %v6396, %v6395
        %6477 = vmatprep.subr.bf16.mxu0 0
        %6478 = vmatpush1.bf16.msra.mxu0 %v6404
        %6479 = vmatprep.subr.bf16.mxu0 0
        %6480 = vmatpush1.bf16.msra.mxu0 %v6403
        %6481 = vmatprep.subr.bf16.mxu0 0
        %6482 = vmatpush1.bf16.msra.mxu0 %v6402
        %6483 = vmatprep.subr.bf16.mxu0 0
        %6484 = vmatpush1.bf16.msra.mxu0 %v6401
        %6485 = vmatprep.subr.bf16.mxu0 0
        %6486 = vmatpush1.bf16.msra.mxu0 %v6400
        %6487 = vmatprep.subr.bf16.mxu0 0
        %6488 = vmatpush1.bf16.msra.mxu0 %v6399
        %6489 = vmatprep.subr.bf16.mxu0 0
        %6490 = vmatpush1.bf16.msra.mxu0 %v6398
        %6491 = vmatprep.subr.bf16.mxu0 0
        %6492 = vmatpush1.bf16.msra.mxu0 %v6397
        %6493 = vmatprep.subr.bf16.mxu0 0
        %6494 = vmatpush2.bf16.msra.mxu0 %v6412
        %6495 = vmatprep.subr.bf16.mxu0 0
        %6496 = vmatpush2.bf16.msra.mxu0 %v6411
        %6497 = vmatprep.subr.bf16.mxu0 0
        %6498 = vmatpush2.bf16.msra.mxu0 %v6410
        %6499 = vmatprep.subr.bf16.mxu0 0
        %6500 = vmatpush2.bf16.msra.mxu0 %v6409
        %6501 = vmatprep.subr.bf16.mxu0 0
        %6502 = vmatpush2.bf16.msra.mxu0 %v6408
        %6503 = vmatprep.subr.bf16.mxu0 0
        %6504 = vmatpush2.bf16.msra.mxu0 %v6407
        %6505 = vmatprep.subr.bf16.mxu0 0
        %6506 = vmatpush2.bf16.msra.mxu0 %v6406
        %6507 = vmatprep.subr.bf16.mxu0 0
        %6508 = vmatpush2.bf16.msra.mxu0 %v6405
        %6509 = vmatprep.mubr.bf16.mxu0 %v6152
        %6510 = vmatmul.mubr.bf16.gmra.mxu0 %v6151
        %v6511 = vpop.f32.mrf.mxu0
        %v6512 = vadd.f32 %v6236, %v6511
        %v6513 = vpop.f32.mrf.mxu0
        %v6514 = vpop.f32.mrf.mxu0
        %v6515 = vpop.f32.mrf.mxu0
        %6516 = vdwg.mxu0
        %6517 = vmatprep.subr.bf16.mxu0 0
        %6518 = vmatpush1.bf16.msra.mxu0 %v6420
        %6519 = vmatprep.subr.bf16.mxu0 0
        %6520 = vmatpush1.bf16.msra.mxu0 %v6419
        %6521 = vmatprep.subr.bf16.mxu0 0
        %6522 = vmatpush1.bf16.msra.mxu0 %v6418
        %6523 = vmatprep.subr.bf16.mxu0 0
        %6524 = vmatpush1.bf16.msra.mxu0 %v6417
        %6525 = vmatprep.subr.bf16.mxu0 0
        %6526 = vmatpush1.bf16.msra.mxu0 %v6416
        %6527 = vmatprep.subr.bf16.mxu0 0
        %6528 = vmatpush1.bf16.msra.mxu0 %v6415
        %6529 = vmatprep.subr.bf16.mxu0 0
        %6530 = vmatpush1.bf16.msra.mxu0 %v6414
        %6531 = vmatprep.subr.bf16.mxu0 0
        %6532 = vmatpush1.bf16.msra.mxu0 %v6413
        %6533 = vmatprep.subr.bf16.mxu0 0
        %6534 = vmatpush2.bf16.msra.mxu0 %v6428
        %6535 = vmatprep.subr.bf16.mxu0 0
        %6536 = vmatpush2.bf16.msra.mxu0 %v6427
        %6537 = vmatprep.subr.bf16.mxu0 0
        %6538 = vmatpush2.bf16.msra.mxu0 %v6426
        %6539 = vmatprep.subr.bf16.mxu0 0
        %6540 = vmatpush2.bf16.msra.mxu0 %v6425
        %6541 = vmatprep.subr.bf16.mxu0 0
        %6542 = vmatpush2.bf16.msra.mxu0 %v6424
        %6543 = vmatprep.subr.bf16.mxu0 0
        %6544 = vmatpush2.bf16.msra.mxu0 %v6423
        %6545 = vmatprep.subr.bf16.mxu0 0
        %6546 = vmatpush2.bf16.msra.mxu0 %v6422
        %6547 = vmatprep.subr.bf16.mxu0 0
        %6548 = vmatpush2.bf16.msra.mxu0 %v6421
        %6549 = vmatprep.mubr.bf16.mxu0 %v6154
        %6550 = vmatmul.mubr.bf16.gmra.mxu0 %v6153
        %v6551 = vpop.f32.mrf.mxu0
        %v6552 = vadd.f32 %v6512, %v6551
        %v6553 = vpop.f32.mrf.mxu0
        %v6554 = vpop.f32.mrf.mxu0
        %v6555 = vpop.f32.mrf.mxu0
        %6556 = vdwg.mxu0
        %6557 = vmatprep.subr.bf16.mxu0 0
        %6558 = vmatpush1.bf16.msra.mxu0 %v6436
        %6559 = vmatprep.subr.bf16.mxu0 0
        %6560 = vmatpush1.bf16.msra.mxu0 %v6435
        %6561 = vmatprep.subr.bf16.mxu0 0
        %6562 = vmatpush1.bf16.msra.mxu0 %v6434
        %6563 = vmatprep.subr.bf16.mxu0 0
        %6564 = vmatpush1.bf16.msra.mxu0 %v6433
        %6565 = vmatprep.subr.bf16.mxu0 0
        %6566 = vmatpush1.bf16.msra.mxu0 %v6432
        %6567 = vmatprep.subr.bf16.mxu0 0
        %6568 = vmatpush1.bf16.msra.mxu0 %v6431
        %6569 = vmatprep.subr.bf16.mxu0 0
        %6570 = vmatpush1.bf16.msra.mxu0 %v6430
        %6571 = vmatprep.subr.bf16.mxu0 0
        %6572 = vmatpush1.bf16.msra.mxu0 %v6429
        %6573 = vmatprep.subr.bf16.mxu0 0
        %6574 = vmatpush2.bf16.msra.mxu0 0
        %6575 = vmatprep.subr.bf16.mxu0 0
        %6576 = vmatpush2.bf16.msra.mxu0 0
        %6577 = vmatprep.subr.bf16.mxu0 0
        %6578 = vmatpush2.bf16.msra.mxu0 0
        %6579 = vmatprep.subr.bf16.mxu0 0
        %6580 = vmatpush2.bf16.msra.mxu0 0
        %6581 = vmatprep.subr.bf16.mxu0 0
        %6582 = vmatpush2.bf16.msra.mxu0 0
        %6583 = vmatprep.subr.bf16.mxu0 0
        %6584 = vmatpush2.bf16.msra.mxu0 0
        %6585 = vmatprep.subr.bf16.mxu0 0
        %6586 = vmatpush2.bf16.msra.mxu0 0
        %6587 = vmatprep.subr.bf16.mxu0 0
        %6588 = vmatpush2.bf16.msra.mxu0 0
        %6589 = vmatprep.mubr.bf16.mxu0 0
        %6590 = vmatmul.mubr.bf16.gmra.mxu0 %v6155
        %v6591 = vpop.f32.mrf.mxu0
        %v6592 = vadd.f32 %v6552, %v6591
        %v6593 = vpop.f32.mrf.mxu0
        %v6594 = vpop.f32.mrf.mxu0
        %v6595 = vpop.f32.mrf.mxu0
        %6596 = vdwg.mxu0
        %v6597 = vpack.c.bf16 %v6592, %v6592
        %v6598 = vld [vmem:[%s5] sm:$0xf]
        %v6599 = vld [vmem:[%s5 + $0x4] sm:$0xf]
        %v6600 = vld [vmem:[%s5 + $0x8] sm:$0xf]
        %v6601 = vld [vmem:[%s5 + $0xc] sm:$0xf]
        %v6602 = vld [vmem:[%s5 + $0x10] sm:$0xf]
        %v6603 = vld [vmem:[%s5 + $0x14] sm:$0xf]
        %v6604 = vld [vmem:[%s5 + $0x18] sm:$0xf]
        %v6605 = vld [vmem:[%s5 + $0x1c] sm:$0xf]
        %v6606 = vld [vmem:[%s5 + $0x20] sm:$0xf]
        %v6607 = vld [vmem:[%s5 + $0x24] sm:$0xf]
        %v6608 = vld [vmem:[%s5 + $0x28] sm:$0xf]
        %v6609 = vld [vmem:[%s5 + $0x2c] sm:$0xf]
        %v6610 = vld [vmem:[%s5 + $0x30] sm:$0xf]
        %v6611 = vld [vmem:[%s5 + $0x34] sm:$0xf]
        %v6612 = vld [vmem:[%s5 + $0x38] sm:$0xf]
        %v6613 = vld [vmem:[%s5 + $0x3c] sm:$0xf]
        %v6614 = vld [vmem:[%s6] sm:$0x1]
        %v6631 = vunpack.c.l.b16 %v6598
        %v6632 = vunpack.c.l.b16 %v6599
        %v6633 = vunpack.c.l.b16 %v6600
        %v6634 = vunpack.c.l.b16 %v6601
        %v6635 = vunpack.c.l.b16 %v6602
        %v6636 = vunpack.c.l.b16 %v6603
        %v6637 = vunpack.c.l.b16 %v6604
        %v6638 = vunpack.c.l.b16 %v6605
        %v6639 = vunpack.c.l.b16 %v6606
        %v6640 = vunpack.c.l.b16 %v6607
        %v6641 = vunpack.c.l.b16 %v6608
        %v6642 = vunpack.c.l.b16 %v6609
        %v6643 = vunpack.c.l.b16 %v6610
        %v6644 = vunpack.c.l.b16 %v6611
        %v6645 = vunpack.c.l.b16 %v6612
        %v6646 = vunpack.c.l.b16 %v6613
        %v6647 = vpack.c.b16 %v6632, %v6631
        %v6648 = vpack.c.b16 %v6634, %v6633
        %v6649 = vpack.c.b16 %v6636, %v6635
        %v6650 = vpack.c.b16 %v6638, %v6637
        %v6651 = vpack.c.b16 %v6640, %v6639
        %v6652 = vpack.c.b16 %v6642, %v6641
        %v6653 = vpack.c.b16 %v6644, %v6643
        %v6654 = vpack.c.b16 %v6646, %v6645
        %6663 = vmatprep.subr.bf16.mxu0 0
        %6664 = vmatpush1.bf16.msra.mxu0 %v6654
        %6665 = vmatprep.subr.bf16.mxu0 0
        %6666 = vmatpush1.bf16.msra.mxu0 %v6653
        %6667 = vmatprep.subr.bf16.mxu0 0
        %6668 = vmatpush1.bf16.msra.mxu0 %v6652
        %6669 = vmatprep.subr.bf16.mxu0 0
        %6670 = vmatpush1.bf16.msra.mxu0 %v6651
        %6671 = vmatprep.subr.bf16.mxu0 0
        %6672 = vmatpush1.bf16.msra.mxu0 %v6650
        %6673 = vmatprep.subr.bf16.mxu0 0
        %6674 = vmatpush1.bf16.msra.mxu0 %v6649
        %6675 = vmatprep.subr.bf16.mxu0 0
        %6676 = vmatpush1.bf16.msra.mxu0 %v6648
        %6677 = vmatprep.subr.bf16.mxu0 0
        %6678 = vmatpush1.bf16.msra.mxu0 %v6647
        %6679 = vmatprep.subr.bf16.mxu0 0
        %6680 = vmatpush2.bf16.msra.mxu0 0
        %6681 = vmatprep.subr.bf16.mxu0 0
        %6682 = vmatpush2.bf16.msra.mxu0 0
        %6683 = vmatprep.subr.bf16.mxu0 0
        %6684 = vmatpush2.bf16.msra.mxu0 0
        %6685 = vmatprep.subr.bf16.mxu0 0
        %6686 = vmatpush2.bf16.msra.mxu0 0
        %6687 = vmatprep.subr.bf16.mxu0 0
        %6688 = vmatpush2.bf16.msra.mxu0 0
        %6689 = vmatprep.subr.bf16.mxu0 0
        %6690 = vmatpush2.bf16.msra.mxu0 0
        %6691 = vmatprep.subr.bf16.mxu0 0
        %6692 = vmatpush2.bf16.msra.mxu0 0
        %6693 = vmatprep.subr.bf16.mxu0 0
        %6694 = vmatpush2.bf16.msra.mxu0 0
        %6695 = vmatprep.mubr.bf16.mxu0 0
        %6696 = vmatmul.mubr.bf16.gmra.mxu0 %v6597
        %v6697 = vpop.f32.mrf.mxu0
        %v6698 = vadd.f32 %v6614, %v6697
        %v6699 = vpop.f32.mrf.mxu0
        %v6700 = vpop.f32.mrf.mxu0
        %v6701 = vpop.f32.mrf.mxu0
        %6702 = vdwg.mxu0
        %6703 = vst [vmem:[%s268] sm:$0x1] %v6698
        %s6704 = sand.u32 %s181, 1
        %s6705 = scalar_lea.sflag [#allocation3], %s6704
        %s6706 = sand.u32 %s181, 1
        %s6707 = scalar_lea.vmem [#allocation2], %s6706
        // Predicated region
        $region49: #{forward_pallas.5} parent=47 // pred_check
          %p6708 = pneg %p191
        $region50: #{forward_pallas.5} parent=47 // pred_check_branch
          %6710 = sbr.rel (%p6708) target = $region52
        $region51: #{forward_pallas.5} parent=47 // pred_region
          %s6712 = ssub.s32 16, 16
          %6713 = vsyncadd %s6705, %s6712
          %s6714 = smul.addr %s21, 16
          %s6715 = scalar_lea.hbm %s7, %s6714
          %s6717 = sshll.u32 %s6707, 4
          %s6718 = int_to_ptr.vmem [resolvable:$true] %s6717
          %6720 = dma.vmem_to_hbm [thread:$0]  %s6718, 16, %s6715, %s6705
        $region52: #{forward_pallas.5} parent=47 // pred_fallthru
          _
      $region48: #{forward_pallas.5} parent=5 // pred_fallthru
        _
      %p6721 = scmp.le.s32.totalorder 2, %s16
      // Predicated region
      $region53: #{forward_pallas.5} parent=5 // pred_check
        %p6722 = pneg %p6721
      $region54: #{forward_pallas.5} parent=5 // pred_check_branch
        %6724 = sbr.rel (%p6722) target = $region56
      $region55: #{forward_pallas.5} parent=5 // pred_region
        %s6725 = ssub.s32 %s16, 2
        // Predicated region
        $region57: #{forward_pallas.5} parent=55 // pred_check
          %p6726 = pneg %p197
        $region58: #{forward_pallas.5} parent=55 // pred_check_branch
          %6728 = sbr.rel (%p6726) target = $region60
        $region59: #{forward_pallas.5} parent=55 // pred_region
          %s6729 = sand.u32 %s182, 1
          %s6730 = scalar_lea.sflag [#allocation3], %s6729
          %s6731 = sand.u32 %s182, 1
          %s6732 = scalar_lea.vmem [#allocation2], %s6731
          %6733 = dma.done %s6730, 16
        $region60: #{forward_pallas.5} parent=55 // pred_fallthru
          _
      $region56: #{forward_pallas.5} parent=5 // pred_fallthru
        _
    $region6: #{forward_pallas.5} parent=1 // loop_footer
      %s20 = sadd.s32 1, %s16
    $region7: #{forward_pallas.5} parent=1 // loop_footer_branch
      %15 = sbr.rel target = $region3
    $region8: #{forward_pallas.5} parent=1 // loop_exit
      _
    %6734 = vsyncpa [#allocation3], 1
    %s6735 = scalar_lea.sflag [#allocation3], 1
    %6736 = vsyncpa %s6735, 1

</llo_original>
